<compile_context>
chip_gen: v5e
topology: v5e:2x2
jax: 0.10.0
libtpu: 0.0.40
codegen_flags: <defaults>
</compile_context>

<pallas_src>
import functools

import jax
import jax.numpy as jnp
from jax.experimental import pallas as pl
from jax.experimental.pallas import tpu as pltpu


def _silu(x):
    return x * jax.nn.sigmoid(x)


def _row_tile(H):
    for t in (16, 8):
        if H % t == 0:
            return t
    return H


# ---------------------------------------------------------------------------
# Generic banded-matmul conv: out = act(scale * conv(x) + shift)
# inputs are lane-concatenated in-kernel (fuses the C2f concat into cv2).
# ---------------------------------------------------------------------------
def _make_conv_kernel(K, TH, W, Cout, n_src, affine, act_out):
    halo = K - 1

    def kernel(*refs):
        x_refs = refs[:n_src]
        t_ref = refs[n_src]
        pos = n_src + 1
        if affine:
            scale_ref, shift_ref = refs[pos], refs[pos + 1]
            pos += 2
        o_ref = refs[pos]

        h0 = pl.multiple_of(pl.program_id(1) * TH, TH)
        slabs = [r[0, pl.ds(h0, TH + halo), :].astype(jnp.bfloat16)
                 for r in x_refs]
        slab = slabs[0] if n_src == 1 else jnp.concatenate(slabs, axis=-1)

        acc = jnp.zeros((TH, W * Cout), jnp.float32)
        for kh in range(K):
            acc += jnp.dot(slab[kh:kh + TH, :], t_ref[kh],
                           preferred_element_type=jnp.float32)
        if affine:
            acc = acc * scale_ref[...] + shift_ref[...]
        if act_out:
            acc = _silu(acc)
        o_ref[0] = acc.astype(o_ref.dtype)

    return kernel


def conv_flat(inputs, T, scale=None, shift=None, *, K, H, W, Cout,
              act_out=False, out_dtype=jnp.float32):
    """inputs: list of (B, Hp, Wp*Ci); T: (K, sum_i Wp*Ci, W*Cout) bf16."""
    B = inputs[0].shape[0]
    TH = _row_tile(H)
    affine = scale is not None

    in_specs = [pl.BlockSpec((1,) + x.shape[1:], lambda b, h: (b, 0, 0))
                for x in inputs]
    in_specs.append(pl.BlockSpec(T.shape, lambda b, h: (0, 0, 0)))
    args = list(inputs) + [T]
    if affine:
        in_specs += [pl.BlockSpec((1, W * Cout), lambda b, h: (0, 0))] * 2
        args += [scale, shift]

    kernel = _make_conv_kernel(K, TH, W, Cout, len(inputs), affine, act_out)
    return pl.pallas_call(
        kernel,
        out_shape=jax.ShapeDtypeStruct((B, H, W * Cout), out_dtype),
        grid=(B, H // TH),
        in_specs=in_specs,
        out_specs=pl.BlockSpec((1, TH, W * Cout), lambda b, h: (b, h, 0)),
        compiler_params=pltpu.CompilerParams(
            dimension_semantics=("parallel", "parallel")),
    )(*args)


# ---------------------------------------------------------------------------
# Fused KAGN core: s = base_conv(SiLU(z)) + poly_conv(SiLU(gram(tanh(z))))
# Gram basis is computed on the resident row slab (never hits HBM); both convs
# are done with the same K banded matmuls over the lane-concatenated sources
# [SiLU(z), g_0, ..., g_degree]  (== torch channel order d*C + c).
# ---------------------------------------------------------------------------
def _make_kagn_kernel(TH, H, W, C, degree):
    K = 3
    pad = 1
    halo = K - 1
    Wp = W + 2 * pad

    def kernel(z_ref, t_ref, beta_ref, o_ref):
        h0 = pl.multiple_of(pl.program_id(1) * TH, TH)
        R = TH + halo
        slab = z_ref[0, pl.ds(h0, R), :].astype(jnp.float32)   # (R, Wp*C)

        # The reference zero-pads the *gram* tensor (poly_conv input), so the
        # Gram basis at padded-z positions must be forced to 0.
        rows = jax.lax.broadcasted_iota(jnp.int32, (R, Wp * C), 0) + h0
        cols = jax.lax.broadcasted_iota(jnp.int32, (R, Wp * C), 1)
        valid = ((rows >= pad) & (rows < H + pad) &
                 (cols >= pad * C) & (cols < (W + pad) * C))

        srcs = [_silu(slab).astype(jnp.bfloat16)]        # base_conv input (SiLU(0)=0)
        t = jnp.tanh(slab)
        p_prev = jnp.ones_like(t)
        p_cur = t
        srcs.append(jnp.where(valid, _silu(p_prev), 0.0).astype(jnp.bfloat16))
        if degree >= 1:
            srcs.append(jnp.where(valid, _silu(p_cur), 0.0).astype(jnp.bfloat16))
        for i in range(2, degree + 1):
            p_next = t * p_cur - beta_ref[i - 2] * p_prev
            srcs.append(jnp.where(valid, _silu(p_next), 0.0).astype(jnp.bfloat16))
            p_prev, p_cur = p_cur, p_next

        slab_all = jnp.concatenate(srcs, axis=-1)        # (R, (degree+2)*Wp*C)
        acc = jnp.zeros((TH, W * C), jnp.float32)
        for kh in range(K):
            acc += jnp.dot(slab_all[kh:kh + TH, :], t_ref[kh],
                           preferred_element_type=jnp.float32)
        o_ref[0] = acc.astype(o_ref.dtype)

    return kernel


def kagn_block(zp, T, betas, *, H, W, C, degree):
    B = zp.shape[0]
    TH = _row_tile(H)
    return pl.pallas_call(
        _make_kagn_kernel(TH, H, W, C, degree),
        out_shape=jax.ShapeDtypeStruct((B, H, W * C), jnp.float32),
        grid=(B, H // TH),
        in_specs=[
            pl.BlockSpec((1,) + zp.shape[1:], lambda b, h: (b, 0, 0)),
            pl.BlockSpec(T.shape, lambda b, h: (0, 0, 0)),
            pl.BlockSpec(memory_space=pltpu.MemorySpace.SMEM),
        ],
        out_specs=pl.BlockSpec((1, TH, W * C), lambda b, h: (b, h, 0)),
        compiler_params=pltpu.CompilerParams(
            dimension_semantics=("parallel", "parallel")),
    )(zp, T, betas)


# ---------------------------------------------------------------------------
# SiLU(InstanceNorm2d(s)) : per-(b, c) spatial stats (biased var, eps=1e-5).
# Channel reductions / broadcasts are done with a 0/1 channel-match matrix so
# no in-kernel reshapes are needed in the lane-dense (H, W*C) layout.
# ---------------------------------------------------------------------------
def _make_inorm_kernel(H, W, C, eps=1e-5):
    inv_n = 1.0 / float(H * W)

    def kernel(s_ref, a_ref, o_ref):
        s = s_ref[0].astype(jnp.float32)                 # (H, W*C)
        A = a_ref[...]                                   # (W*C, W*C) channel gather
        mean = jnp.sum(jnp.dot(s, A, preferred_element_type=jnp.float32),
                       axis=0, keepdims=True) * inv_n    # per-channel mean, bcast
        d = s - mean
        var = jnp.sum(jnp.dot(d * d, A, preferred_element_type=jnp.float32),
                      axis=0, keepdims=True) * inv_n
        o_ref[0] = _silu(d * jax.lax.rsqrt(var + eps)).astype(o_ref.dtype)

    return kernel


def instnorm_silu(s, *, H, W, C):
    B = s.shape[0]
    A = jnp.tile(jnp.eye(C, dtype=jnp.float32), (W, W))  # A[w'C+a, wC+b] = (a==b)
    return pl.pallas_call(
        _make_inorm_kernel(H, W, C),
        out_shape=jax.ShapeDtypeStruct((B, H, W * C), jnp.float32),
        grid=(B,),
        in_specs=[
            pl.BlockSpec((1, H, W * C), lambda b: (b, 0, 0)),
            pl.BlockSpec((W * C, W * C), lambda b: (0, 0)),
        ],
        out_specs=pl.BlockSpec((1, H, W * C), lambda b: (b, 0, 0)),
        compiler_params=pltpu.CompilerParams(dimension_semantics=("parallel",)),
    )(s, A)


# ---------------------------------------------------------------------------
# Parameter construction (deterministic, synthetic) and the full forward pass.
# ---------------------------------------------------------------------------
def _oihw_to_kkio(w):
    """(Cout, Cin, K, K) torch layout -> (K, K, Cin, Cout)."""
    return jnp.transpose(w, (2, 3, 1, 0))


def _toeplitz(w, W, pad, dtype=jnp.bfloat16):
    """w: (K, K, Cin, Cout) -> (K, (W+2*pad)*Cin, W*Cout) banded matmul weight."""
    K, _, Cin, Cout = w.shape
    Wp = W + 2 * pad
    T = jnp.zeros((K, Wp, Cin, W, Cout), jnp.float32)
    for kw in range(K):
        for wo in range(W):
            T = T.at[:, wo + kw, :, wo, :].set(w[:, kw, :, :])
    return T.reshape(K, Wp * Cin, W * Cout).astype(dtype)


def _pad_hw(x, H, W, C, pad):
    """(B, H, W*C) -> zero padded (B, H+2p, (W+2p)*C)  (pad once, reuse)."""
    B = x.shape[0]
    x4 = x.reshape(B, H, W, C)
    x4 = jnp.pad(x4, ((0, 0), (pad, pad), (pad, pad), (0, 0)))
    return x4.reshape(B, H + 2 * pad, (W + 2 * pad) * C)


def init_params(key, c1, c2, H, W, n=1, e=0.5, degree=3):
    c = int(c2 * e)
    keys = iter(jax.random.split(key, 32 + 16 * n))
    D1 = degree + 1

    def kaiming(cout, cin, k):
        fan_in = cin * k * k
        bound = (3.0 / fan_in) ** 0.5
        return jax.random.uniform(next(keys), (cout, cin, k, k), jnp.float32,
                                  -bound, bound)

    def bn_fold(ch):   # inference-mode BN folded to per-channel affine (lane tiled)
        gamma = jax.random.uniform(next(keys), (ch,), jnp.float32, 0.8, 1.2)
        beta = jax.random.uniform(next(keys), (ch,), jnp.float32, -0.1, 0.1)
        mean = jax.random.uniform(next(keys), (ch,), jnp.float32, -0.1, 0.1)
        var = jax.random.uniform(next(keys), (ch,), jnp.float32, 0.9, 1.1)
        scale = gamma / jnp.sqrt(var + 1e-5)
        shift = beta - mean * scale
        return (jnp.tile(scale, W).reshape(1, W * ch),
                jnp.tile(shift, W).reshape(1, W * ch))

    p = {"c": c, "c2": c2, "degree": degree}

    # C2f.cv1: 1x1, c1 -> 2c, BN, SiLU
    p["cv1_T"] = _toeplitz(_oihw_to_kkio(kaiming(2 * c, c1, 1)), W, 0)
    p["cv1_scale"], p["cv1_shift"] = bn_fold(2 * c)

    blocks = []
    for _ in range(n):
        blk = {}
        # Bottleneck.cv1: 3x3, c -> c, BN, SiLU
        blk["bcv1_T"] = _toeplitz(_oihw_to_kkio(kaiming(c, c, 3)), W, 1)
        blk["bcv1_scale"], blk["bcv1_shift"] = bn_fold(c)
        # KAGN base_conv + poly_conv fused into one banded weight; source order
        # is [SiLU(z), gram_0, ..., gram_degree] == torch channel order d*c + ci.
        base = _oihw_to_kkio(kaiming(c, c, 3))
        poly = kaiming(c, c * D1, 3).reshape(c, D1, c, 3, 3)
        taps = [_toeplitz(base, W, 1)]
        taps += [_toeplitz(_oihw_to_kkio(poly[:, d]), W, 1) for d in range(D1)]
        blk["kagn_T"] = jnp.concatenate(taps, axis=1)
        # Gram recurrence coefficients beta(i-1, i), i = 2..degree (same
        # expression/grouping as the torch reference beta()).
        bw_std = 1.0 / (3 ** 2 * c * (degree + 1.0))
        bw = bw_std * jax.random.normal(next(keys), (D1,), jnp.float32)

        def beta_fn(nn_, m):
            return ((m + nn_) * (m - nn_) * nn_ ** 2
                    / (m ** 2 / (4.0 * nn_ ** 2 - 1.0)) * bw[nn_])

        betas = [beta_fn(i - 1, i) for i in range(2, degree + 1)]
        blk["betas"] = (jnp.stack(betas) if betas
                        else jnp.zeros((1,), jnp.float32)).astype(jnp.float32)
        blocks.append(blk)
    p["blocks"] = blocks

    # C2f.cv2: 1x1, (2+n)c -> c2, BN, SiLU; per-source banded blocks so the CSP
    # concat is fused into the conv as an in-register lane concat.
    w2 = kaiming(c2, (2 + n) * c, 1)
    src_taps = [_toeplitz(_oihw_to_kkio(w2[:, s * c:(s + 1) * c]), W, 0)
                for s in range(2 + n)]
    p["cv2_T"] = jnp.concatenate(src_taps, axis=1)
    p["cv2_scale"], p["cv2_shift"] = bn_fold(c2)
    return p


def c2f_kagnconv_forward(x_nchw, p):
    """x_nchw: (B, c1, H, W) -> (B, c2, H, W), matching C2f_KAGNConv.forward."""
    B, c1, H, W = x_nchw.shape
    c, c2, degree = p["c"], p["c2"], p["degree"]

    # NCHW -> lane-dense (B, H, W*C)
    x = jnp.transpose(x_nchw, (0, 2, 3, 1)).astype(jnp.float32)
    x = x.reshape(B, H, W * c1)

    # cv1: 1x1 conv + BN + SiLU, then chunk(2) along channels
    y = conv_flat([x], p["cv1_T"], p["cv1_scale"], p["cv1_shift"],
                  K=1, H=H, W=W, Cout=2 * c, act_out=True)
    y4 = y.reshape(B, H, W, 2 * c)
    ys = [y4[..., :c].reshape(B, H, W * c), y4[..., c:].reshape(B, H, W * c)]

    # Bottleneck_KAGNConv2DLayerV2 (shortcut=False in C2f default -> no residual)
    for blk in p["blocks"]:
        inp = ys[-1]
        # Bottleneck.cv1: 3x3 conv + BN + SiLU
        z = conv_flat([_pad_hw(inp, H, W, c, 1)], blk["bcv1_T"],
                      blk["bcv1_scale"], blk["bcv1_shift"],
                      K=3, H=H, W=W, Cout=c, act_out=True)
        # Fused KAGN core: base_conv(SiLU(z)) + poly_conv(SiLU(gram(tanh(z))))
        zp = _pad_hw(z, H, W, c, 1)          # padded once, reused by both convs
        s = kagn_block(zp, blk["kagn_T"], blk["betas"],
                       H=H, W=W, C=c, degree=degree)
        # SiLU(InstanceNorm2d(.))
        ys.append(instnorm_silu(s, H=H, W=W, C=c))

    # cv2 over the (fused) concat of [y0, y1, m1, ..., mn]
    out = conv_flat(ys, p["cv2_T"], p["cv2_scale"], p["cv2_shift"],
                    K=1, H=H, W=W, Cout=c2, act_out=True)
    return jnp.transpose(out.reshape(B, H, W, c2), (0, 3, 1, 2))


if __name__ == "__main__":
    key = jax.random.PRNGKey(0)
    kp, kx = jax.random.split(key)
    B, C1, C2, H, W = 2, 8, 8, 16, 16

    params = init_params(kp, C1, C2, H, W, n=1)
    x = jax.random.normal(kx, (B, C1, H, W), jnp.float32)

    fwd = jax.jit(functools.partial(c2f_kagnconv_forward, p=params))
    out = fwd(x)
    jax.block_until_ready(out)

    assert out.shape == (B, C2, H, W), out.shape
    assert bool(jnp.all(jnp.isfinite(out)))
    print("KERNEL_OK")
</pallas_src>

<mosaic_0001>
module attributes {stable_mosaic.version = 11 : i64} {
  func.func @kernel(%arg0: i32, %arg1: i32, %arg2: memref<1x16x128xf32, #tpu.memory_space<vmem>>, %arg3: memref<1x128x128xbf16, #tpu.memory_space<vmem>>, %arg4: memref<1x128xf32, #tpu.memory_space<vmem>>, %arg5: memref<1x128xf32, #tpu.memory_space<vmem>>, %arg6: memref<1x16x128xf32, #tpu.memory_space<vmem>>) attributes {dimension_semantics = [#tpu.dimension_semantics<parallel>, #tpu.dimension_semantics<parallel>], iteration_bounds = array<i64: 2, 1>, scalar_prefetch = 0 : i64, scratch_operands = 0 : i64, tpu.core_type = #tpu.core_type<tc>, window_params = [{transform_indices = @transform_0, window_bounds = array<i64: 1, 16, 128>}, {pipeline_mode = #tpu.pipeline_mode<synchronous>, transform_indices = @transform_1, window_bounds = array<i64: 1, 128, 128>}, {pipeline_mode = #tpu.pipeline_mode<synchronous>, transform_indices = @transform_2, window_bounds = array<i64: 1, 128>}, {pipeline_mode = #tpu.pipeline_mode<synchronous>, transform_indices = @transform_3, window_bounds = array<i64: 1, 128>}, {transform_indices = @transform_4, window_bounds = array<i64: 1, 16, 128>}]} {
    %c16_i32 = arith.constant 16 : i32
    %0 = arith.muli %arg1, %c16_i32 : i32
    %1 = tpu.assume_multiple %0, 16 : i32
    %c0 = arith.constant 0 : index
    %2 = arith.index_cast %1 : i32 to index
    %c0_0 = arith.constant 0 : index
    %3 = vector.load %arg2[%c0, %2, %c0_0] : memref<1x16x128xf32, #tpu.memory_space<vmem>>, vector<1x16x128xf32>
    %4 = vector.shape_cast %3 : vector<1x16x128xf32> to vector<16x128xf32>
    %5 = arith.truncf %4 : vector<16x128xf32> to vector<16x128xbf16>
    %cst = arith.constant 0.000000e+00 : f32
    %6 = vector.broadcast %cst : f32 to vector<16x128xf32>
    %c0_1 = arith.constant 0 : index
    %c0_2 = arith.constant 0 : index
    %c0_3 = arith.constant 0 : index
    %7 = vector.load %arg3[%c0_1, %c0_2, %c0_3] : memref<1x128x128xbf16, #tpu.memory_space<vmem>>, vector<1x128x128xbf16>
    %8 = vector.shape_cast %7 : vector<1x128x128xbf16> to vector<128x128xbf16>
    %cst_4 = arith.constant dense<0.000000e+00> : vector<16x128xf32>
    %9 = tpu.matmul %5, %8, %cst_4 {dimension_numbers = #tpu.dot_dimension_numbers<[1], [0], [0], [1], [0, 0, 1, 1], [], []>} : vector<16x128xbf16>, vector<128x128xbf16>, vector<16x128xf32> -> vector<16x128xf32>
    %10 = arith.addf %6, %9 : vector<16x128xf32>
    %c0_5 = arith.constant 0 : index
    %c0_6 = arith.constant 0 : index
    %11 = vector.load %arg4[%c0_5, %c0_6] : memref<1x128xf32, #tpu.memory_space<vmem>>, vector<1x128xf32>
    %12 = vector.broadcast %11 : vector<1x128xf32> to vector<16x128xf32>
    %13 = arith.mulf %10, %12 : vector<16x128xf32>
    %c0_7 = arith.constant 0 : index
    %c0_8 = arith.constant 0 : index
    %14 = vector.load %arg5[%c0_7, %c0_8] : memref<1x128xf32, #tpu.memory_space<vmem>>, vector<1x128xf32>
    %15 = vector.broadcast %14 : vector<1x128xf32> to vector<16x128xf32>
    %16 = arith.addf %13, %15 : vector<16x128xf32>
    %17 = arith.negf %16 : vector<16x128xf32>
    %18 = math.exp %17 : vector<16x128xf32>
    %cst_9 = arith.constant 1.000000e+00 : f32
    %19 = vector.broadcast %cst_9 : f32 to vector<16x128xf32>
    %20 = arith.addf %19, %18 : vector<16x128xf32>
    %21 = arith.divf %19, %20 : vector<16x128xf32>
    %22 = arith.mulf %16, %21 : vector<16x128xf32>
    %c0_10 = arith.constant 0 : index
    %c0_11 = arith.constant 0 : index
    %c0_12 = arith.constant 0 : index
    %23 = vector.load %arg6[%c0_10, %c0_11, %c0_12] : memref<1x16x128xf32, #tpu.memory_space<vmem>>, vector<1x16x128xf32>
    %24 = vector.shape_cast %23 : vector<1x16x128xf32> to vector<16x128xf32>
    %25 = vector.shape_cast %22 : vector<16x128xf32> to vector<1x16x128xf32>
    tpu.vector_store %arg6[%c0_10, %c0_11, %c0_12], %25 {strides = array<i32>} : memref<1x16x128xf32, #tpu.memory_space<vmem>>, vector<1x16x128xf32>,
    return
  }
  func.func @transform_0(%arg0: i32, %arg1: i32) -> (i32, i32, i32) {
    %c0_i32 = arith.constant 0 : i32
    %c0_i32_0 = arith.constant 0 : i32
    %c0_i32_1 = arith.constant 0 : i32
    return %arg0, %c0_i32, %c0_i32_0 : i32, i32, i32
  }
  func.func @transform_1(%arg0: i32, %arg1: i32) -> (i32, i32, i32) {
    %c0_i32 = arith.constant 0 : i32
    %c0_i32_0 = arith.constant 0 : i32
    %c0_i32_1 = arith.constant 0 : i32
    %c0_i32_2 = arith.constant 0 : i32
    return %c0_i32, %c0_i32_0, %c0_i32_1 : i32, i32, i32
  }
  func.func @transform_2(%arg0: i32, %arg1: i32) -> (i32, i32) {
    %c0_i32 = arith.constant 0 : i32
    %c0_i32_0 = arith.constant 0 : i32
    %c0_i32_1 = arith.constant 0 : i32
    return %c0_i32, %c0_i32_0 : i32, i32
  }
  func.func @transform_3(%arg0: i32, %arg1: i32) -> (i32, i32) {
    %c0_i32 = arith.constant 0 : i32
    %c0_i32_0 = arith.constant 0 : i32
    %c0_i32_1 = arith.constant 0 : i32
    return %c0_i32, %c0_i32_0 : i32, i32
  }
  func.func @transform_4(%arg0: i32, %arg1: i32) -> (i32, i32, i32) {
    %c0_i32 = arith.constant 0 : i32
    %c0_i32_0 = arith.constant 0 : i32
    return %arg0, %arg1, %c0_i32 : i32, i32, i32
  }
}

module attributes {stable_mosaic.version = 11 : i64} {
  func.func @kernel(%arg0: i32, %arg1: i32, %arg2: memref<1x18x72xf32, #tpu.memory_space<vmem>>, %arg3: memref<3x72x64xbf16, #tpu.memory_space<vmem>>, %arg4: memref<1x64xf32, #tpu.memory_space<vmem>>, %arg5: memref<1x64xf32, #tpu.memory_space<vmem>>, %arg6: memref<1x16x64xf32, #tpu.memory_space<vmem>>) attributes {dimension_semantics = [#tpu.dimension_semantics<parallel>, #tpu.dimension_semantics<parallel>], iteration_bounds = array<i64: 2, 1>, scalar_prefetch = 0 : i64, scratch_operands = 0 : i64, tpu.core_type = #tpu.core_type<tc>, window_params = [{transform_indices = @transform_0, window_bounds = array<i64: 1, 18, 72>}, {pipeline_mode = #tpu.pipeline_mode<synchronous>, transform_indices = @transform_1, window_bounds = array<i64: 3, 72, 64>}, {pipeline_mode = #tpu.pipeline_mode<synchronous>, transform_indices = @transform_2, window_bounds = array<i64: 1, 64>}, {pipeline_mode = #tpu.pipeline_mode<synchronous>, transform_indices = @transform_3, window_bounds = array<i64: 1, 64>}, {transform_indices = @transform_4, window_bounds = array<i64: 1, 16, 64>}]} {
    %c16_i32 = arith.constant 16 : i32
    %0 = arith.muli %arg1, %c16_i32 : i32
    %1 = tpu.assume_multiple %0, 16 : i32
    %c0 = arith.constant 0 : index
    %2 = arith.index_cast %1 : i32 to index
    %c0_0 = arith.constant 0 : index
    %3 = vector.load %arg2[%c0, %2, %c0_0] : memref<1x18x72xf32, #tpu.memory_space<vmem>>, vector<1x18x72xf32>
    %4 = vector.shape_cast %3 : vector<1x18x72xf32> to vector<18x72xf32>
    %5 = arith.truncf %4 : vector<18x72xf32> to vector<18x72xbf16>
    %cst = arith.constant 0.000000e+00 : f32
    %6 = vector.broadcast %cst : f32 to vector<16x64xf32>
    %7 = vector.extract_strided_slice %5 {offsets = [0, 0], sizes = [16, 72], strides = [1, 1]} : vector<18x72xbf16> to vector<16x72xbf16>
    %c0_1 = arith.constant 0 : index
    %c0_2 = arith.constant 0 : index
    %c0_3 = arith.constant 0 : index
    %8 = vector.load %arg3[%c0_1, %c0_2, %c0_3] : memref<3x72x64xbf16, #tpu.memory_space<vmem>>, vector<1x72x64xbf16>
    %9 = vector.shape_cast %8 : vector<1x72x64xbf16> to vector<72x64xbf16>
    %cst_4 = arith.constant dense<0.000000e+00> : vector<16x64xf32>
    %10 = tpu.matmul %7, %9, %cst_4 {dimension_numbers = #tpu.dot_dimension_numbers<[1], [0], [0], [1], [0, 0, 1, 1], [], []>} : vector<16x72xbf16>, vector<72x64xbf16>, vector<16x64xf32> -> vector<16x64xf32>
    %11 = arith.addf %6, %10 : vector<16x64xf32>
    %12 = vector.extract_strided_slice %5 {offsets = [1, 0], sizes = [16, 72], strides = [1, 1]} : vector<18x72xbf16> to vector<16x72xbf16>
    %c1 = arith.constant 1 : index
    %c0_5 = arith.constant 0 : index
    %c0_6 = arith.constant 0 : index
    %13 = vector.load %arg3[%c1, %c0_5, %c0_6] : memref<3x72x64xbf16, #tpu.memory_space<vmem>>, vector<1x72x64xbf16>
    %14 = vector.shape_cast %13 : vector<1x72x64xbf16> to vector<72x64xbf16>
    %cst_7 = arith.constant dense<0.000000e+00> : vector<16x64xf32>
    %15 = tpu.matmul %12, %14, %cst_7 {dimension_numbers = #tpu.dot_dimension_numbers<[1], [0], [0], [1], [0, 0, 1, 1], [], []>} : vector<16x72xbf16>, vector<72x64xbf16>, vector<16x64xf32> -> vector<16x64xf32>
    %16 = arith.addf %11, %15 : vector<16x64xf32>
    %17 = vector.extract_strided_slice %5 {offsets = [2, 0], sizes = [16, 72], strides = [1, 1]} : vector<18x72xbf16> to vector<16x72xbf16>
    %c2 = arith.constant 2 : index
    %c0_8 = arith.constant 0 : index
    %c0_9 = arith.constant 0 : index
    %18 = vector.load %arg3[%c2, %c0_8, %c0_9] : memref<3x72x64xbf16, #tpu.memory_space<vmem>>, vector<1x72x64xbf16>
    %19 = vector.shape_cast %18 : vector<1x72x64xbf16> to vector<72x64xbf16>
    %cst_10 = arith.constant dense<0.000000e+00> : vector<16x64xf32>
    %20 = tpu.matmul %17, %19, %cst_10 {dimension_numbers = #tpu.dot_dimension_numbers<[1], [0], [0], [1], [0, 0, 1, 1], [], []>} : vector<16x72xbf16>, vector<72x64xbf16>, vector<16x64xf32> -> vector<16x64xf32>
    %21 = arith.addf %16, %20 : vector<16x64xf32>
    %c0_11 = arith.constant 0 : index
    %c0_12 = arith.constant 0 : index
    %22 = vector.load %arg4[%c0_11, %c0_12] : memref<1x64xf32, #tpu.memory_space<vmem>>, vector<1x64xf32>
    %23 = vector.broadcast %22 : vector<1x64xf32> to vector<16x64xf32>
    %24 = arith.mulf %21, %23 : vector<16x64xf32>
    %c0_13 = arith.constant 0 : index
    %c0_14 = arith.constant 0 : index
    %25 = vector.load %arg5[%c0_13, %c0_14] : memref<1x64xf32, #tpu.memory_space<vmem>>, vector<1x64xf32>
    %26 = vector.broadcast %25 : vector<1x64xf32> to vector<16x64xf32>
    %27 = arith.addf %24, %26 : vector<16x64xf32>
    %28 = arith.negf %27 : vector<16x64xf32>
    %29 = math.exp %28 : vector<16x64xf32>
    %cst_15 = arith.constant 1.000000e+00 : f32
    %30 = vector.broadcast %cst_15 : f32 to vector<16x64xf32>
    %31 = arith.addf %30, %29 : vector<16x64xf32>
    %32 = arith.divf %30, %31 : vector<16x64xf32>
    %33 = arith.mulf %27, %32 : vector<16x64xf32>
    %c0_16 = arith.constant 0 : index
    %c0_17 = arith.constant 0 : index
    %c0_18 = arith.constant 0 : index
    %34 = vector.load %arg6[%c0_16, %c0_17, %c0_18] : memref<1x16x64xf32, #tpu.memory_space<vmem>>, vector<1x16x64xf32>
    %35 = vector.shape_cast %34 : vector<1x16x64xf32> to vector<16x64xf32>
    %36 = vector.shape_cast %33 : vector<16x64xf32> to vector<1x16x64xf32>
    tpu.vector_store %arg6[%c0_16, %c0_17, %c0_18], %36 {strides = array<i32>} : memref<1x16x64xf32, #tpu.memory_space<vmem>>, vector<1x16x64xf32>,
    return
  }
  func.func @transform_0(%arg0: i32, %arg1: i32) -> (i32, i32, i32) {
    %c0_i32 = arith.constant 0 : i32
    %c0_i32_0 = arith.constant 0 : i32
    %c0_i32_1 = arith.constant 0 : i32
    return %arg0, %c0_i32, %c0_i32_0 : i32, i32, i32
  }
  func.func @transform_1(%arg0: i32, %arg1: i32) -> (i32, i32, i32) {
    %c0_i32 = arith.constant 0 : i32
    %c0_i32_0 = arith.constant 0 : i32
    %c0_i32_1 = arith.constant 0 : i32
    %c0_i32_2 = arith.constant 0 : i32
    return %c0_i32, %c0_i32_0, %c0_i32_1 : i32, i32, i32
  }
  func.func @transform_2(%arg0: i32, %arg1: i32) -> (i32, i32) {
    %c0_i32 = arith.constant 0 : i32
    %c0_i32_0 = arith.constant 0 : i32
    %c0_i32_1 = arith.constant 0 : i32
    return %c0_i32, %c0_i32_0 : i32, i32
  }
  func.func @transform_3(%arg0: i32, %arg1: i32) -> (i32, i32) {
    %c0_i32 = arith.constant 0 : i32
    %c0_i32_0 = arith.constant 0 : i32
    %c0_i32_1 = arith.constant 0 : i32
    return %c0_i32, %c0_i32_0 : i32, i32
  }
  func.func @transform_4(%arg0: i32, %arg1: i32) -> (i32, i32, i32) {
    %c0_i32 = arith.constant 0 : i32
    %c0_i32_0 = arith.constant 0 : i32
    return %arg0, %arg1, %c0_i32 : i32, i32, i32
  }
}

module attributes {stable_mosaic.version = 11 : i64} {
  func.func @kernel(%arg0: i32, %arg1: i32, %arg2: memref<1x18x72xf32, #tpu.memory_space<vmem>>, %arg3: memref<3x360x64xbf16, #tpu.memory_space<vmem>>, %arg4: memref<2xf32, #tpu.memory_space<smem>>, %arg5: memref<1x16x64xf32, #tpu.memory_space<vmem>>) attributes {dimension_semantics = [#tpu.dimension_semantics<parallel>, #tpu.dimension_semantics<parallel>], iteration_bounds = array<i64: 2, 1>, scalar_prefetch = 0 : i64, scratch_operands = 0 : i64, tpu.core_type = #tpu.core_type<tc>, window_params = [{transform_indices = @transform_0, window_bounds = array<i64: 1, 18, 72>}, {pipeline_mode = #tpu.pipeline_mode<synchronous>, transform_indices = @transform_1, window_bounds = array<i64: 3, 360, 64>}, {transform_indices = @transform_2, window_bounds = array<i64: 2>}, {transform_indices = @transform_3, window_bounds = array<i64: 1, 16, 64>}]} {
    %c16_i32 = arith.constant 16 : i32
    %0 = arith.muli %arg1, %c16_i32 : i32
    %1 = tpu.assume_multiple %0, 16 : i32
    %c0 = arith.constant 0 : index
    %2 = arith.index_cast %1 : i32 to index
    %c0_0 = arith.constant 0 : index
    %3 = vector.load %arg2[%c0, %2, %c0_0] : memref<1x18x72xf32, #tpu.memory_space<vmem>>, vector<1x18x72xf32>
    %4 = vector.shape_cast %3 : vector<1x18x72xf32> to vector<18x72xf32>
    %5 = tpu.iota {dimensions = array<i32: 0>} : vector<18x72xi32>
    %6 = vector.broadcast %1 : i32 to vector<18x72xi32>
    %7 = arith.addi %5, %6 : vector<18x72xi32>
    %8 = tpu.iota {dimensions = array<i32: 1>} : vector<18x72xi32>
    %c1_i32 = arith.constant 1 : i32
    %9 = vector.broadcast %c1_i32 : i32 to vector<18x72xi32>
    %10 = arith.cmpi sge, %7, %9 : vector<18x72xi32>
    %c17_i32 = arith.constant 17 : i32
    %11 = vector.broadcast %c17_i32 : i32 to vector<18x72xi32>
    %12 = arith.cmpi slt, %7, %11 : vector<18x72xi32>
    %13 = arith.andi %10, %12 : vector<18x72xi1>
    %c4_i32 = arith.constant 4 : i32
    %14 = vector.broadcast %c4_i32 : i32 to vector<18x72xi32>
    %15 = arith.cmpi sge, %8, %14 : vector<18x72xi32>
    %16 = arith.andi %13, %15 : vector<18x72xi1>
    %c68_i32 = arith.constant 68 : i32
    %17 = vector.broadcast %c68_i32 : i32 to vector<18x72xi32>
    %18 = arith.cmpi slt, %8, %17 : vector<18x72xi32>
    %19 = arith.andi %16, %18 : vector<18x72xi1>
    %20 = arith.negf %4 : vector<18x72xf32>
    %21 = math.exp %20 : vector<18x72xf32>
    %cst = arith.constant 1.000000e+00 : f32
    %22 = vector.broadcast %cst : f32 to vector<18x72xf32>
    %23 = arith.addf %22, %21 : vector<18x72xf32>
    %24 = arith.divf %22, %23 : vector<18x72xf32>
    %25 = arith.mulf %4, %24 : vector<18x72xf32>
    %26 = arith.truncf %25 : vector<18x72xf32> to vector<18x72xbf16>
    %27 = math.tanh %4 : vector<18x72xf32>
    %cst_1 = arith.constant 1.000000e+00 : f32
    %28 = vector.broadcast %cst_1 : f32 to vector<18x72xf32>
    %29 = arith.negf %28 : vector<18x72xf32>
    %30 = math.exp %29 : vector<18x72xf32>
    %cst_2 = arith.constant 1.000000e+00 : f32
    %31 = vector.broadcast %cst_2 : f32 to vector<18x72xf32>
    %32 = arith.addf %31, %30 : vector<18x72xf32>
    %33 = arith.divf %31, %32 : vector<18x72xf32>
    %34 = arith.mulf %28, %33 : vector<18x72xf32>
    %cst_3 = arith.constant 0.000000e+00 : f32
    %35 = vector.broadcast %cst_3 : f32 to vector<18x72xf32>
    %36 = arith.select %19, %34, %35 : vector<18x72xi1>, vector<18x72xf32>
    %37 = arith.truncf %36 : vector<18x72xf32> to vector<18x72xbf16>
    %38 = arith.negf %27 : vector<18x72xf32>
    %39 = math.exp %38 : vector<18x72xf32>
    %cst_4 = arith.constant 1.000000e+00 : f32
    %40 = vector.broadcast %cst_4 : f32 to vector<18x72xf32>
    %41 = arith.addf %40, %39 : vector<18x72xf32>
    %42 = arith.divf %40, %41 : vector<18x72xf32>
    %43 = arith.mulf %27, %42 : vector<18x72xf32>
    %cst_5 = arith.constant 0.000000e+00 : f32
    %44 = vector.broadcast %cst_5 : f32 to vector<18x72xf32>
    %45 = arith.select %19, %43, %44 : vector<18x72xi1>, vector<18x72xf32>
    %46 = arith.truncf %45 : vector<18x72xf32> to vector<18x72xbf16>
    %47 = arith.mulf %27, %27 : vector<18x72xf32>
    %c0_6 = arith.constant 0 : index
    %48 = memref.load %arg4[%c0_6] : memref<2xf32, #tpu.memory_space<smem>>
    %49 = vector.broadcast %48 : f32 to vector<18x72xf32>
    %50 = arith.mulf %49, %28 : vector<18x72xf32>
    %51 = arith.subf %47, %50 : vector<18x72xf32>
    %52 = arith.negf %51 : vector<18x72xf32>
    %53 = math.exp %52 : vector<18x72xf32>
    %cst_7 = arith.constant 1.000000e+00 : f32
    %54 = vector.broadcast %cst_7 : f32 to vector<18x72xf32>
    %55 = arith.addf %54, %53 : vector<18x72xf32>
    %56 = arith.divf %54, %55 : vector<18x72xf32>
    %57 = arith.mulf %51, %56 : vector<18x72xf32>
    %cst_8 = arith.constant 0.000000e+00 : f32
    %58 = vector.broadcast %cst_8 : f32 to vector<18x72xf32>
    %59 = arith.select %19, %57, %58 : vector<18x72xi1>, vector<18x72xf32>
    %60 = arith.truncf %59 : vector<18x72xf32> to vector<18x72xbf16>
    %61 = arith.mulf %27, %51 : vector<18x72xf32>
    %c1 = arith.constant 1 : index
    %62 = memref.load %arg4[%c1] : memref<2xf32, #tpu.memory_space<smem>>
    %63 = vector.broadcast %62 : f32 to vector<18x72xf32>
    %64 = arith.mulf %63, %27 : vector<18x72xf32>
    %65 = arith.subf %61, %64 : vector<18x72xf32>
    %66 = arith.negf %65 : vector<18x72xf32>
    %67 = math.exp %66 : vector<18x72xf32>
    %cst_9 = arith.constant 1.000000e+00 : f32
    %68 = vector.broadcast %cst_9 : f32 to vector<18x72xf32>
    %69 = arith.addf %68, %67 : vector<18x72xf32>
    %70 = arith.divf %68, %69 : vector<18x72xf32>
    %71 = arith.mulf %65, %70 : vector<18x72xf32>
    %cst_10 = arith.constant 0.000000e+00 : f32
    %72 = vector.broadcast %cst_10 : f32 to vector<18x72xf32>
    %73 = arith.select %19, %71, %72 : vector<18x72xi1>, vector<18x72xf32>
    %74 = arith.truncf %73 : vector<18x72xf32> to vector<18x72xbf16>
    %75 = tpu.concatenate %26, %37, %46, %60, %74 in 1 : vector<18x72xbf16>, vector<18x72xbf16>, vector<18x72xbf16>, vector<18x72xbf16>, vector<18x72xbf16> -> vector<18x360xbf16>
    %cst_11 = arith.constant 0.000000e+00 : f32
    %76 = vector.broadcast %cst_11 : f32 to vector<16x64xf32>
    %77 = vector.extract_strided_slice %75 {offsets = [0, 0], sizes = [16, 360], strides = [1, 1]} : vector<18x360xbf16> to vector<16x360xbf16>
    %c0_12 = arith.constant 0 : index
    %c0_13 = arith.constant 0 : index
    %c0_14 = arith.constant 0 : index
    %78 = vector.load %arg3[%c0_12, %c0_13, %c0_14] : memref<3x360x64xbf16, #tpu.memory_space<vmem>>, vector<1x360x64xbf16>
    %79 = vector.shape_cast %78 : vector<1x360x64xbf16> to vector<360x64xbf16>
    %cst_15 = arith.constant dense<0.000000e+00> : vector<16x64xf32>
    %80 = tpu.matmul %77, %79, %cst_15 {dimension_numbers = #tpu.dot_dimension_numbers<[1], [0], [0], [1], [0, 0, 1, 1], [], []>} : vector<16x360xbf16>, vector<360x64xbf16>, vector<16x64xf32> -> vector<16x64xf32>
    %81 = arith.addf %76, %80 : vector<16x64xf32>
    %82 = vector.extract_strided_slice %75 {offsets = [1, 0], sizes = [16, 360], strides = [1, 1]} : vector<18x360xbf16> to vector<16x360xbf16>
    %c1_16 = arith.constant 1 : index
    %c0_17 = arith.constant 0 : index
    %c0_18 = arith.constant 0 : index
    %83 = vector.load %arg3[%c1_16, %c0_17, %c0_18] : memref<3x360x64xbf16, #tpu.memory_space<vmem>>, vector<1x360x64xbf16>
    %84 = vector.shape_cast %83 : vector<1x360x64xbf16> to vector<360x64xbf16>
    %cst_19 = arith.constant dense<0.000000e+00> : vector<16x64xf32>
    %85 = tpu.matmul %82, %84, %cst_19 {dimension_numbers = #tpu.dot_dimension_numbers<[1], [0], [0], [1], [0, 0, 1, 1], [], []>} : vector<16x360xbf16>, vector<360x64xbf16>, vector<16x64xf32> -> vector<16x64xf32>
    %86 = arith.addf %81, %85 : vector<16x64xf32>
    %87 = vector.extract_strided_slice %75 {offsets = [2, 0], sizes = [16, 360], strides = [1, 1]} : vector<18x360xbf16> to vector<16x360xbf16>
    %c2 = arith.constant 2 : index
    %c0_20 = arith.constant 0 : index
    %c0_21 = arith.constant 0 : index
    %88 = vector.load %arg3[%c2, %c0_20, %c0_21] : memref<3x360x64xbf16, #tpu.memory_space<vmem>>, vector<1x360x64xbf16>
    %89 = vector.shape_cast %88 : vector<1x360x64xbf16> to vector<360x64xbf16>
    %cst_22 = arith.constant dense<0.000000e+00> : vector<16x64xf32>
    %90 = tpu.matmul %87, %89, %cst_22 {dimension_numbers = #tpu.dot_dimension_numbers<[1], [0], [0], [1], [0, 0, 1, 1], [], []>} : vector<16x360xbf16>, vector<360x64xbf16>, vector<16x64xf32> -> vector<16x64xf32>
    %91 = arith.addf %86, %90 : vector<16x64xf32>
    %c0_23 = arith.constant 0 : index
    %c0_24 = arith.constant 0 : index
    %c0_25 = arith.constant 0 : index
    %92 = vector.load %arg5[%c0_23, %c0_24, %c0_25] : memref<1x16x64xf32, #tpu.memory_space<vmem>>, vector<1x16x64xf32>
    %93 = vector.shape_cast %92 : vector<1x16x64xf32> to vector<16x64xf32>
    %94 = vector.shape_cast %91 : vector<16x64xf32> to vector<1x16x64xf32>
    tpu.vector_store %arg5[%c0_23, %c0_24, %c0_25], %94 {strides = array<i32>} : memref<1x16x64xf32, #tpu.memory_space<vmem>>, vector<1x16x64xf32>,
    return
  }
  func.func @transform_0(%arg0: i32, %arg1: i32) -> (i32, i32, i32) {
    %c0_i32 = arith.constant 0 : i32
    %c0_i32_0 = arith.constant 0 : i32
    %c0_i32_1 = arith.constant 0 : i32
    return %arg0, %c0_i32, %c0_i32_0 : i32, i32, i32
  }
  func.func @transform_1(%arg0: i32, %arg1: i32) -> (i32, i32, i32) {
    %c0_i32 = arith.constant 0 : i32
    %c0_i32_0 = arith.constant 0 : i32
    %c0_i32_1 = arith.constant 0 : i32
    %c0_i32_2 = arith.constant 0 : i32
    return %c0_i32, %c0_i32_0, %c0_i32_1 : i32, i32, i32
  }
  func.func @transform_2(%arg0: i32, %arg1: i32) -> i32 {
    %c0_i32 = arith.constant 0 : i32
    %c0_i32_0 = arith.constant 0 : i32
    return %c0_i32 : i32
  }
  func.func @transform_3(%arg0: i32, %arg1: i32) -> (i32, i32, i32) {
    %c0_i32 = arith.constant 0 : i32
    %c0_i32_0 = arith.constant 0 : i32
    return %arg0, %arg1, %c0_i32 : i32, i32, i32
  }
}

module attributes {stable_mosaic.version = 11 : i64} {
  func.func @kernel(%arg0: i32, %arg1: memref<1x16x64xf32, #tpu.memory_space<vmem>>, %arg2: memref<64x64xf32, #tpu.memory_space<vmem>>, %arg3: memref<1x16x64xf32, #tpu.memory_space<vmem>>) attributes {dimension_semantics = [#tpu.dimension_semantics<parallel>], iteration_bounds = array<i64: 2>, scalar_prefetch = 0 : i64, scratch_operands = 0 : i64, tpu.core_type = #tpu.core_type<tc>, window_params = [{transform_indices = @transform_0, window_bounds = array<i64: 1, 16, 64>}, {pipeline_mode = #tpu.pipeline_mode<synchronous>, transform_indices = @transform_1, window_bounds = array<i64: 64, 64>}, {transform_indices = @transform_2, window_bounds = array<i64: 1, 16, 64>}]} {
    %c0 = arith.constant 0 : index
    %c0_0 = arith.constant 0 : index
    %c0_1 = arith.constant 0 : index
    %0 = vector.load %arg1[%c0, %c0_0, %c0_1] : memref<1x16x64xf32, #tpu.memory_space<vmem>>, vector<1x16x64xf32>
    %1 = vector.shape_cast %0 : vector<1x16x64xf32> to vector<16x64xf32>
    %c0_2 = arith.constant 0 : index
    %c0_3 = arith.constant 0 : index
    %2 = vector.load %arg2[%c0_2, %c0_3] : memref<64x64xf32, #tpu.memory_space<vmem>>, vector<64x64xf32>
    %cst = arith.constant dense<0.000000e+00> : vector<16x64xf32>
    %3 = tpu.matmul %1, %2, %cst {dimension_numbers = #tpu.dot_dimension_numbers<[1], [0], [0], [1], [0, 0, 1, 1], [], []>} : vector<16x64xf32>, vector<64x64xf32>, vector<16x64xf32> -> vector<16x64xf32>
    %cst_4 = arith.constant dense<0.000000e+00> : vector<64xf32>
    %4 = vector.multi_reduction <add>, %3, %cst_4 [0] : vector<16x64xf32> to vector<64xf32>
    %5 = vector.shape_cast %4 : vector<64xf32> to vector<1x64xf32>
    %cst_5 = arith.constant 3.906250e-03 : f32
    %6 = vector.broadcast %cst_5 : f32 to vector<1x64xf32>
    %7 = arith.mulf %5, %6 : vector<1x64xf32>
    %8 = vector.broadcast %7 : vector<1x64xf32> to vector<16x64xf32>
    %9 = arith.subf %1, %8 : vector<16x64xf32>
    %10 = arith.mulf %9, %9 : vector<16x64xf32>
    %cst_6 = arith.constant dense<0.000000e+00> : vector<16x64xf32>
    %11 = tpu.matmul %10, %2, %cst_6 {dimension_numbers = #tpu.dot_dimension_numbers<[1], [0], [0], [1], [0, 0, 1, 1], [], []>} : vector<16x64xf32>, vector<64x64xf32>, vector<16x64xf32> -> vector<16x64xf32>
    %cst_7 = arith.constant dense<0.000000e+00> : vector<64xf32>
    %12 = vector.multi_reduction <add>, %11, %cst_7 [0] : vector<16x64xf32> to vector<64xf32>
    %13 = vector.shape_cast %12 : vector<64xf32> to vector<1x64xf32>
    %cst_8 = arith.constant 3.906250e-03 : f32
    %14 = vector.broadcast %cst_8 : f32 to vector<1x64xf32>
    %15 = arith.mulf %13, %14 : vector<1x64xf32>
    %cst_9 = arith.constant 9.99999974E-6 : f32
    %16 = vector.broadcast %cst_9 : f32 to vector<1x64xf32>
    %17 = arith.addf %15, %16 : vector<1x64xf32>
    %18 = math.rsqrt %17 : vector<1x64xf32>
    %19 = vector.broadcast %18 : vector<1x64xf32> to vector<16x64xf32>
    %20 = arith.mulf %9, %19 : vector<16x64xf32>
    %21 = arith.negf %20 : vector<16x64xf32>
    %22 = math.exp %21 : vector<16x64xf32>
    %cst_10 = arith.constant 1.000000e+00 : f32
    %23 = vector.broadcast %cst_10 : f32 to vector<16x64xf32>
    %24 = arith.addf %23, %22 : vector<16x64xf32>
    %25 = arith.divf %23, %24 : vector<16x64xf32>
    %26 = arith.mulf %20, %25 : vector<16x64xf32>
    %c0_11 = arith.constant 0 : index
    %c0_12 = arith.constant 0 : index
    %c0_13 = arith.constant 0 : index
    %27 = vector.load %arg3[%c0_11, %c0_12, %c0_13] : memref<1x16x64xf32, #tpu.memory_space<vmem>>, vector<1x16x64xf32>
    %28 = vector.shape_cast %27 : vector<1x16x64xf32> to vector<16x64xf32>
    %29 = vector.shape_cast %26 : vector<16x64xf32> to vector<1x16x64xf32>
    tpu.vector_store %arg3[%c0_11, %c0_12, %c0_13], %29 {strides = array<i32>} : memref<1x16x64xf32, #tpu.memory_space<vmem>>, vector<1x16x64xf32>,
    return
  }
  func.func @transform_0(%arg0: i32) -> (i32, i32, i32) {
    %c0_i32 = arith.constant 0 : i32
    %c0_i32_0 = arith.constant 0 : i32
    %c0_i32_1 = arith.constant 0 : i32
    return %arg0, %c0_i32, %c0_i32_0 : i32, i32, i32
  }
  func.func @transform_1(%arg0: i32) -> (i32, i32) {
    %c0_i32 = arith.constant 0 : i32
    %c0_i32_0 = arith.constant 0 : i32
    %c0_i32_1 = arith.constant 0 : i32
    return %c0_i32, %c0_i32_0 : i32, i32
  }
  func.func @transform_2(%arg0: i32) -> (i32, i32, i32) {
    %c0_i32 = arith.constant 0 : i32
    %c0_i32_0 = arith.constant 0 : i32
    %c0_i32_1 = arith.constant 0 : i32
    return %arg0, %c0_i32, %c0_i32_0 : i32, i32, i32
  }
}

module attributes {stable_mosaic.version = 11 : i64} {
  func.func @kernel(%arg0: i32, %arg1: i32, %arg2: memref<1x16x64xf32, #tpu.memory_space<vmem>>, %arg3: memref<1x16x64xf32, #tpu.memory_space<vmem>>, %arg4: memref<1x16x64xf32, #tpu.memory_space<vmem>>, %arg5: memref<1x192x128xbf16, #tpu.memory_space<vmem>>, %arg6: memref<1x128xf32, #tpu.memory_space<vmem>>, %arg7: memref<1x128xf32, #tpu.memory_space<vmem>>, %arg8: memref<1x16x128xf32, #tpu.memory_space<vmem>>) attributes {dimension_semantics = [#tpu.dimension_semantics<parallel>, #tpu.dimension_semantics<parallel>], iteration_bounds = array<i64: 2, 1>, scalar_prefetch = 0 : i64, scratch_operands = 0 : i64, tpu.core_type = #tpu.core_type<tc>, window_params = [{transform_indices = @transform_0, window_bounds = array<i64: 1, 16, 64>}, {transform_indices = @transform_1, window_bounds = array<i64: 1, 16, 64>}, {transform_indices = @transform_2, window_bounds = array<i64: 1, 16, 64>}, {pipeline_mode = #tpu.pipeline_mode<synchronous>, transform_indices = @transform_3, window_bounds = array<i64: 1, 192, 128>}, {pipeline_mode = #tpu.pipeline_mode<synchronous>, transform_indices = @transform_4, window_bounds = array<i64: 1, 128>}, {pipeline_mode = #tpu.pipeline_mode<synchronous>, transform_indices = @transform_5, window_bounds = array<i64: 1, 128>}, {transform_indices = @transform_6, window_bounds = array<i64: 1, 16, 128>}]} {
    %c16_i32 = arith.constant 16 : i32
    %0 = arith.muli %arg1, %c16_i32 : i32
    %1 = tpu.assume_multiple %0, 16 : i32
    %c0 = arith.constant 0 : index
    %2 = arith.index_cast %1 : i32 to index
    %c0_0 = arith.constant 0 : index
    %3 = vector.load %arg2[%c0, %2, %c0_0] : memref<1x16x64xf32, #tpu.memory_space<vmem>>, vector<1x16x64xf32>
    %4 = vector.shape_cast %3 : vector<1x16x64xf32> to vector<16x64xf32>
    %5 = arith.truncf %4 : vector<16x64xf32> to vector<16x64xbf16>
    %c0_1 = arith.constant 0 : index
    %6 = arith.index_cast %1 : i32 to index
    %c0_2 = arith.constant 0 : index
    %7 = vector.load %arg3[%c0_1, %6, %c0_2] : memref<1x16x64xf32, #tpu.memory_space<vmem>>, vector<1x16x64xf32>
    %8 = vector.shape_cast %7 : vector<1x16x64xf32> to vector<16x64xf32>
    %9 = arith.truncf %8 : vector<16x64xf32> to vector<16x64xbf16>
    %c0_3 = arith.constant 0 : index
    %10 = arith.index_cast %1 : i32 to index
    %c0_4 = arith.constant 0 : index
    %11 = vector.load %arg4[%c0_3, %10, %c0_4] : memref<1x16x64xf32, #tpu.memory_space<vmem>>, vector<1x16x64xf32>
    %12 = vector.shape_cast %11 : vector<1x16x64xf32> to vector<16x64xf32>
    %13 = arith.truncf %12 : vector<16x64xf32> to vector<16x64xbf16>
    %14 = tpu.concatenate %5, %9, %13 in 1 : vector<16x64xbf16>, vector<16x64xbf16>, vector<16x64xbf16> -> vector<16x192xbf16>
    %cst = arith.constant 0.000000e+00 : f32
    %15 = vector.broadcast %cst : f32 to vector<16x128xf32>
    %c0_5 = arith.constant 0 : index
    %c0_6 = arith.constant 0 : index
    %c0_7 = arith.constant 0 : index
    %16 = vector.load %arg5[%c0_5, %c0_6, %c0_7] : memref<1x192x128xbf16, #tpu.memory_space<vmem>>, vector<1x192x128xbf16>
    %17 = vector.shape_cast %16 : vector<1x192x128xbf16> to vector<192x128xbf16>
    %cst_8 = arith.constant dense<0.000000e+00> : vector<16x128xf32>
    %18 = tpu.matmul %14, %17, %cst_8 {dimension_numbers = #tpu.dot_dimension_numbers<[1], [0], [0], [1], [0, 0, 1, 1], [], []>} : vector<16x192xbf16>, vector<192x128xbf16>, vector<16x128xf32> -> vector<16x128xf32>
    %19 = arith.addf %15, %18 : vector<16x128xf32>
    %c0_9 = arith.constant 0 : index
    %c0_10 = arith.constant 0 : index
    %20 = vector.load %arg6[%c0_9, %c0_10] : memref<1x128xf32, #tpu.memory_space<vmem>>, vector<1x128xf32>
    %21 = vector.broadcast %20 : vector<1x128xf32> to vector<16x128xf32>
    %22 = arith.mulf %19, %21 : vector<16x128xf32>
    %c0_11 = arith.constant 0 : index
    %c0_12 = arith.constant 0 : index
    %23 = vector.load %arg7[%c0_11, %c0_12] : memref<1x128xf32, #tpu.memory_space<vmem>>, vector<1x128xf32>
    %24 = vector.broadcast %23 : vector<1x128xf32> to vector<16x128xf32>
    %25 = arith.addf %22, %24 : vector<16x128xf32>
    %26 = arith.negf %25 : vector<16x128xf32>
    %27 = math.exp %26 : vector<16x128xf32>
    %cst_13 = arith.constant 1.000000e+00 : f32
    %28 = vector.broadcast %cst_13 : f32 to vector<16x128xf32>
    %29 = arith.addf %28, %27 : vector<16x128xf32>
    %30 = arith.divf %28, %29 : vector<16x128xf32>
    %31 = arith.mulf %25, %30 : vector<16x128xf32>
    %c0_14 = arith.constant 0 : index
    %c0_15 = arith.constant 0 : index
    %c0_16 = arith.constant 0 : index
    %32 = vector.load %arg8[%c0_14, %c0_15, %c0_16] : memref<1x16x128xf32, #tpu.memory_space<vmem>>, vector<1x16x128xf32>
    %33 = vector.shape_cast %32 : vector<1x16x128xf32> to vector<16x128xf32>
    %34 = vector.shape_cast %31 : vector<16x128xf32> to vector<1x16x128xf32>
    tpu.vector_store %arg8[%c0_14, %c0_15, %c0_16], %34 {strides = array<i32>} : memref<1x16x128xf32, #tpu.memory_space<vmem>>, vector<1x16x128xf32>,
    return
  }
  func.func @transform_0(%arg0: i32, %arg1: i32) -> (i32, i32, i32) {
    %c0_i32 = arith.constant 0 : i32
    %c0_i32_0 = arith.constant 0 : i32
    %c0_i32_1 = arith.constant 0 : i32
    return %arg0, %c0_i32, %c0_i32_0 : i32, i32, i32
  }
  func.func @transform_1(%arg0: i32, %arg1: i32) -> (i32, i32, i32) {
    %c0_i32 = arith.constant 0 : i32
    %c0_i32_0 = arith.constant 0 : i32
    %c0_i32_1 = arith.constant 0 : i32
    return %arg0, %c0_i32, %c0_i32_0 : i32, i32, i32
  }
  func.func @transform_2(%arg0: i32, %arg1: i32) -> (i32, i32, i32) {
    %c0_i32 = arith.constant 0 : i32
    %c0_i32_0 = arith.constant 0 : i32
    %c0_i32_1 = arith.constant 0 : i32
    return %arg0, %c0_i32, %c0_i32_0 : i32, i32, i32
  }
  func.func @transform_3(%arg0: i32, %arg1: i32) -> (i32, i32, i32) {
    %c0_i32 = arith.constant 0 : i32
    %c0_i32_0 = arith.constant 0 : i32
    %c0_i32_1 = arith.constant 0 : i32
    %c0_i32_2 = arith.constant 0 : i32
    return %c0_i32, %c0_i32_0, %c0_i32_1 : i32, i32, i32
  }
  func.func @transform_4(%arg0: i32, %arg1: i32) -> (i32, i32) {
    %c0_i32 = arith.constant 0 : i32
    %c0_i32_0 = arith.constant 0 : i32
    %c0_i32_1 = arith.constant 0 : i32
    return %c0_i32, %c0_i32_0 : i32, i32
  }
  func.func @transform_5(%arg0: i32, %arg1: i32) -> (i32, i32) {
    %c0_i32 = arith.constant 0 : i32
    %c0_i32_0 = arith.constant 0 : i32
    %c0_i32_1 = arith.constant 0 : i32
    return %c0_i32, %c0_i32_0 : i32, i32
  }
  func.func @transform_6(%arg0: i32, %arg1: i32) -> (i32, i32, i32) {
    %c0_i32 = arith.constant 0 : i32
    %c0_i32_0 = arith.constant 0 : i32
    return %arg0, %arg1, %c0_i32 : i32, i32, i32
  }
}

</mosaic_0001>

<llo_original>
// kernel: tile.8
$region0: #{tile.8}
  #allocation0 [shape = 's32[1]{0}', space=sflag, size = 0x4, scoped, tag = 'scoped memory for tile.8']
  %s0 = inlined_call_operand.vmem [shape: f32[4,4], index: 0, kind: input, shape index: {}]
  %s1 = inlined_call_operand.vmem [shape: f32[16,4,16,4], index: 1, kind: output, shape index: {}]
  // Predicated region
  $region2: #{tile.8} parent=0 // pred_check
    _
  $region3: #{tile.8} parent=0 // pred_check_branch
    %3 = sbr.rel (0) target = $region5
  $region4: #{tile.8} parent=0 // pred_region
    _
  $region5: #{tile.8} parent=0 // pred_fallthru
    _
  %v4 = vld [vmem:[%s0] ss:$0 sm:$0xff]
  %5 = vst [vmem:[%s1] sm:$0xff] %v4
  %s6 = scalar_lea.vmem %s1, 64
  %7 = vst [vmem:[%s6] sm:$0xff] %v4
  %s8 = scalar_lea.vmem %s1, 128
  %9 = vst [vmem:[%s8] sm:$0xff] %v4
  %s10 = scalar_lea.vmem %s1, 192
  %11 = vst [vmem:[%s10] sm:$0xff] %v4
  %s12 = scalar_lea.vmem %s1, 256
  %13 = vst [vmem:[%s12] sm:$0xff] %v4
  %s14 = scalar_lea.vmem %s1, 320
  %15 = vst [vmem:[%s14] sm:$0xff] %v4
  %s16 = scalar_lea.vmem %s1, 384
  %17 = vst [vmem:[%s16] sm:$0xff] %v4
  %s18 = scalar_lea.vmem %s1, 448
  %19 = vst [vmem:[%s18] sm:$0xff] %v4
  %s20 = scalar_lea.vmem %s1, 512
  %21 = vst [vmem:[%s20] sm:$0xff] %v4
  %s22 = scalar_lea.vmem %s1, 576
  %23 = vst [vmem:[%s22] sm:$0xff] %v4
  %s24 = scalar_lea.vmem %s1, 640
  %25 = vst [vmem:[%s24] sm:$0xff] %v4
  %s26 = scalar_lea.vmem %s1, 704
  %27 = vst [vmem:[%s26] sm:$0xff] %v4
  %s28 = scalar_lea.vmem %s1, 768
  %29 = vst [vmem:[%s28] sm:$0xff] %v4
  %s30 = scalar_lea.vmem %s1, 832
  %31 = vst [vmem:[%s30] sm:$0xff] %v4
  %s32 = scalar_lea.vmem %s1, 896
  %33 = vst [vmem:[%s32] sm:$0xff] %v4
  %s34 = scalar_lea.vmem %s1, 960
  %35 = vst [vmem:[%s34] sm:$0xff] %v4
  %s36 = scalar_lea.vmem %s0, 1
  %v37 = vld [vmem:[%s36] ss:$0 sm:$0xff]
  %s38 = scalar_lea.vmem %s1, 16
  %39 = vst [vmem:[%s38] sm:$0xff] %v37
  %s40 = scalar_lea.vmem %s1, 80
  %41 = vst [vmem:[%s40] sm:$0xff] %v37
  %s42 = scalar_lea.vmem %s1, 144
  %43 = vst [vmem:[%s42] sm:$0xff] %v37
  %s44 = scalar_lea.vmem %s1, 208
  %45 = vst [vmem:[%s44] sm:$0xff] %v37
  %s46 = scalar_lea.vmem %s1, 272
  %47 = vst [vmem:[%s46] sm:$0xff] %v37
  %s48 = scalar_lea.vmem %s1, 336
  %49 = vst [vmem:[%s48] sm:$0xff] %v37
  %s50 = scalar_lea.vmem %s1, 400
  %51 = vst [vmem:[%s50] sm:$0xff] %v37
  %s52 = scalar_lea.vmem %s1, 464
  %53 = vst [vmem:[%s52] sm:$0xff] %v37
  %s54 = scalar_lea.vmem %s1, 528
  %55 = vst [vmem:[%s54] sm:$0xff] %v37
  %s56 = scalar_lea.vmem %s1, 592
  %57 = vst [vmem:[%s56] sm:$0xff] %v37
  %s58 = scalar_lea.vmem %s1, 656
  %59 = vst [vmem:[%s58] sm:$0xff] %v37
  %s60 = scalar_lea.vmem %s1, 720
  %61 = vst [vmem:[%s60] sm:$0xff] %v37
  %s62 = scalar_lea.vmem %s1, 784
  %63 = vst [vmem:[%s62] sm:$0xff] %v37
  %s64 = scalar_lea.vmem %s1, 848
  %65 = vst [vmem:[%s64] sm:$0xff] %v37
  %s66 = scalar_lea.vmem %s1, 912
  %67 = vst [vmem:[%s66] sm:$0xff] %v37
  %s68 = scalar_lea.vmem %s1, 976
  %69 = vst [vmem:[%s68] sm:$0xff] %v37
  %s70 = scalar_lea.vmem %s0, 2
  %v71 = vld [vmem:[%s70] ss:$0 sm:$0xff]
  %s72 = scalar_lea.vmem %s1, 32
  %73 = vst [vmem:[%s72] sm:$0xff] %v71
  %s74 = scalar_lea.vmem %s1, 96
  %75 = vst [vmem:[%s74] sm:$0xff] %v71
  %s76 = scalar_lea.vmem %s1, 160
  %77 = vst [vmem:[%s76] sm:$0xff] %v71
  %s78 = scalar_lea.vmem %s1, 224
  %79 = vst [vmem:[%s78] sm:$0xff] %v71
  %s80 = scalar_lea.vmem %s1, 288
  %81 = vst [vmem:[%s80] sm:$0xff] %v71
  %s82 = scalar_lea.vmem %s1, 352
  %83 = vst [vmem:[%s82] sm:$0xff] %v71
  %s84 = scalar_lea.vmem %s1, 416
  %85 = vst [vmem:[%s84] sm:$0xff] %v71
  %s86 = scalar_lea.vmem %s1, 480
  %87 = vst [vmem:[%s86] sm:$0xff] %v71
  %s88 = scalar_lea.vmem %s1, 544
  %89 = vst [vmem:[%s88] sm:$0xff] %v71
  %s90 = scalar_lea.vmem %s1, 608
  %91 = vst [vmem:[%s90] sm:$0xff] %v71
  %s92 = scalar_lea.vmem %s1, 672
  %93 = vst [vmem:[%s92] sm:$0xff] %v71
  %s94 = scalar_lea.vmem %s1, 736
  %95 = vst [vmem:[%s94] sm:$0xff] %v71
  %s96 = scalar_lea.vmem %s1, 800
  %97 = vst [vmem:[%s96] sm:$0xff] %v71
  %s98 = scalar_lea.vmem %s1, 864
  %99 = vst [vmem:[%s98] sm:$0xff] %v71
  %s100 = scalar_lea.vmem %s1, 928
  %101 = vst [vmem:[%s100] sm:$0xff] %v71
  %s102 = scalar_lea.vmem %s1, 992
  %103 = vst [vmem:[%s102] sm:$0xff] %v71
  %s104 = scalar_lea.vmem %s0, 3
  %v105 = vld [vmem:[%s104] ss:$0 sm:$0xff]
  %s106 = scalar_lea.vmem %s1, 48
  %107 = vst [vmem:[%s106] sm:$0xff] %v105
  %s108 = scalar_lea.vmem %s1, 112
  %109 = vst [vmem:[%s108] sm:$0xff] %v105
  %s110 = scalar_lea.vmem %s1, 176
  %111 = vst [vmem:[%s110] sm:$0xff] %v105
  %s112 = scalar_lea.vmem %s1, 240
  %113 = vst [vmem:[%s112] sm:$0xff] %v105
  %s114 = scalar_lea.vmem %s1, 304
  %115 = vst [vmem:[%s114] sm:$0xff] %v105
  %s116 = scalar_lea.vmem %s1, 368
  %117 = vst [vmem:[%s116] sm:$0xff] %v105
  %s118 = scalar_lea.vmem %s1, 432
  %119 = vst [vmem:[%s118] sm:$0xff] %v105
  %s120 = scalar_lea.vmem %s1, 496
  %121 = vst [vmem:[%s120] sm:$0xff] %v105
  %s122 = scalar_lea.vmem %s1, 560
  %123 = vst [vmem:[%s122] sm:$0xff] %v105
  %s124 = scalar_lea.vmem %s1, 624
  %125 = vst [vmem:[%s124] sm:$0xff] %v105
  %s126 = scalar_lea.vmem %s1, 688
  %127 = vst [vmem:[%s126] sm:$0xff] %v105
  %s128 = scalar_lea.vmem %s1, 752
  %129 = vst [vmem:[%s128] sm:$0xff] %v105
  %s130 = scalar_lea.vmem %s1, 816
  %131 = vst [vmem:[%s130] sm:$0xff] %v105
  %s132 = scalar_lea.vmem %s1, 880
  %133 = vst [vmem:[%s132] sm:$0xff] %v105
  %s134 = scalar_lea.vmem %s1, 944
  %135 = vst [vmem:[%s134] sm:$0xff] %v105
  %s136 = scalar_lea.vmem %s1, 1008
  %137 = vst [vmem:[%s136] sm:$0xff] %v105
  %s138 = scalar_lea.vmem %s1, 8
  %139 = vst [vmem:[%s138] sm:$0xff] %v4
  %s140 = scalar_lea.vmem %s1, 72
  %141 = vst [vmem:[%s140] sm:$0xff] %v4
  %s142 = scalar_lea.vmem %s1, 136
  %143 = vst [vmem:[%s142] sm:$0xff] %v4
  %s144 = scalar_lea.vmem %s1, 200
  %145 = vst [vmem:[%s144] sm:$0xff] %v4
  %s146 = scalar_lea.vmem %s1, 264
  %147 = vst [vmem:[%s146] sm:$0xff] %v4
  %s148 = scalar_lea.vmem %s1, 328
  %149 = vst [vmem:[%s148] sm:$0xff] %v4
  %s150 = scalar_lea.vmem %s1, 392
  %151 = vst [vmem:[%s150] sm:$0xff] %v4
  %s152 = scalar_lea.vmem %s1, 456
  %153 = vst [vmem:[%s152] sm:$0xff] %v4
  %s154 = scalar_lea.vmem %s1, 520
  %155 = vst [vmem:[%s154] sm:$0xff] %v4
  %s156 = scalar_lea.vmem %s1, 584
  %157 = vst [vmem:[%s156] sm:$0xff] %v4
  %s158 = scalar_lea.vmem %s1, 648
  %159 = vst [vmem:[%s158] sm:$0xff] %v4
  %s160 = scalar_lea.vmem %s1, 712
  %161 = vst [vmem:[%s160] sm:$0xff] %v4
  %s162 = scalar_lea.vmem %s1, 776
  %163 = vst [vmem:[%s162] sm:$0xff] %v4
  %s164 = scalar_lea.vmem %s1, 840
  %165 = vst [vmem:[%s164] sm:$0xff] %v4
  %s166 = scalar_lea.vmem %s1, 904
  %167 = vst [vmem:[%s166] sm:$0xff] %v4
  %s168 = scalar_lea.vmem %s1, 968
  %169 = vst [vmem:[%s168] sm:$0xff] %v4
  %s170 = scalar_lea.vmem %s1, 24
  %171 = vst [vmem:[%s170] sm:$0xff] %v37
  %s172 = scalar_lea.vmem %s1, 88
  %173 = vst [vmem:[%s172] sm:$0xff] %v37
  %s174 = scalar_lea.vmem %s1, 152
  %175 = vst [vmem:[%s174] sm:$0xff] %v37
  %s176 = scalar_lea.vmem %s1, 216
  %177 = vst [vmem:[%s176] sm:$0xff] %v37
  %s178 = scalar_lea.vmem %s1, 280
  %179 = vst [vmem:[%s178] sm:$0xff] %v37
  %s180 = scalar_lea.vmem %s1, 344
  %181 = vst [vmem:[%s180] sm:$0xff] %v37
  %s182 = scalar_lea.vmem %s1, 408
  %183 = vst [vmem:[%s182] sm:$0xff] %v37
  %s184 = scalar_lea.vmem %s1, 472
  %185 = vst [vmem:[%s184] sm:$0xff] %v37
  %s186 = scalar_lea.vmem %s1, 536
  %187 = vst [vmem:[%s186] sm:$0xff] %v37
  %s188 = scalar_lea.vmem %s1, 600
  %189 = vst [vmem:[%s188] sm:$0xff] %v37
  %s190 = scalar_lea.vmem %s1, 664
  %191 = vst [vmem:[%s190] sm:$0xff] %v37
  %s192 = scalar_lea.vmem %s1, 728
  %193 = vst [vmem:[%s192] sm:$0xff] %v37
  %s194 = scalar_lea.vmem %s1, 792
  %195 = vst [vmem:[%s194] sm:$0xff] %v37
  %s196 = scalar_lea.vmem %s1, 856
  %197 = vst [vmem:[%s196] sm:$0xff] %v37
  %s198 = scalar_lea.vmem %s1, 920
  %199 = vst [vmem:[%s198] sm:$0xff] %v37
  %s200 = scalar_lea.vmem %s1, 984
  %201 = vst [vmem:[%s200] sm:$0xff] %v37
  %s202 = scalar_lea.vmem %s1, 40
  %203 = vst [vmem:[%s202] sm:$0xff] %v71
  %s204 = scalar_lea.vmem %s1, 104
  %205 = vst [vmem:[%s204] sm:$0xff] %v71
  %s206 = scalar_lea.vmem %s1, 168
  %207 = vst [vmem:[%s206] sm:$0xff] %v71
  %s208 = scalar_lea.vmem %s1, 232
  %209 = vst [vmem:[%s208] sm:$0xff] %v71
  %s210 = scalar_lea.vmem %s1, 296
  %211 = vst [vmem:[%s210] sm:$0xff] %v71
  %s212 = scalar_lea.vmem %s1, 360
  %213 = vst [vmem:[%s212] sm:$0xff] %v71
  %s214 = scalar_lea.vmem %s1, 424
  %215 = vst [vmem:[%s214] sm:$0xff] %v71
  %s216 = scalar_lea.vmem %s1, 488
  %217 = vst [vmem:[%s216] sm:$0xff] %v71
  %s218 = scalar_lea.vmem %s1, 552
  %219 = vst [vmem:[%s218] sm:$0xff] %v71
  %s220 = scalar_lea.vmem %s1, 616
  %221 = vst [vmem:[%s220] sm:$0xff] %v71
  %s222 = scalar_lea.vmem %s1, 680
  %223 = vst [vmem:[%s222] sm:$0xff] %v71
  %s224 = scalar_lea.vmem %s1, 744
  %225 = vst [vmem:[%s224] sm:$0xff] %v71
  %s226 = scalar_lea.vmem %s1, 808
  %227 = vst [vmem:[%s226] sm:$0xff] %v71
  %s228 = scalar_lea.vmem %s1, 872
  %229 = vst [vmem:[%s228] sm:$0xff] %v71
  %s230 = scalar_lea.vmem %s1, 936
  %231 = vst [vmem:[%s230] sm:$0xff] %v71
  %s232 = scalar_lea.vmem %s1, 1000
  %233 = vst [vmem:[%s232] sm:$0xff] %v71
  %s234 = scalar_lea.vmem %s1, 56
  %235 = vst [vmem:[%s234] sm:$0xff] %v105
  %s236 = scalar_lea.vmem %s1, 120
  %237 = vst [vmem:[%s236] sm:$0xff] %v105
  %s238 = scalar_lea.vmem %s1, 184
  %239 = vst [vmem:[%s238] sm:$0xff] %v105
  %s240 = scalar_lea.vmem %s1, 248
  %241 = vst [vmem:[%s240] sm:$0xff] %v105
  %s242 = scalar_lea.vmem %s1, 312
  %243 = vst [vmem:[%s242] sm:$0xff] %v105
  %s244 = scalar_lea.vmem %s1, 376
  %245 = vst [vmem:[%s244] sm:$0xff] %v105
  %s246 = scalar_lea.vmem %s1, 440
  %247 = vst [vmem:[%s246] sm:$0xff] %v105
  %s248 = scalar_lea.vmem %s1, 504
  %249 = vst [vmem:[%s248] sm:$0xff] %v105
  %s250 = scalar_lea.vmem %s1, 568
  %251 = vst [vmem:[%s250] sm:$0xff] %v105
  %s252 = scalar_lea.vmem %s1, 632
  %253 = vst [vmem:[%s252] sm:$0xff] %v105
  %s254 = scalar_lea.vmem %s1, 696
  %255 = vst [vmem:[%s254] sm:$0xff] %v105
  %s256 = scalar_lea.vmem %s1, 760
  %257 = vst [vmem:[%s256] sm:$0xff] %v105
  %s258 = scalar_lea.vmem %s1, 824
  %259 = vst [vmem:[%s258] sm:$0xff] %v105
  %s260 = scalar_lea.vmem %s1, 888
  %261 = vst [vmem:[%s260] sm:$0xff] %v105
  %s262 = scalar_lea.vmem %s1, 952
  %263 = vst [vmem:[%s262] sm:$0xff] %v105
  %s264 = scalar_lea.vmem %s1, 1016
  %265 = vst [vmem:[%s264] sm:$0xff] %v105

// kernel: c2f_kagnconv_forward.5
$region0: #{c2f_kagnconv_forward.5}
  #allocation0 [shape = 'u32[]', space=smem, size = 0x4, offset = 0x4, fixed_abs, tag = 'smem constant byte address 0x4 - core index']
  #allocation1 [shape = 'u32[72,128]{1,0:T(1,128)}', space=vmem, size = 0x9000, scoped, tag = 'internal scratch']
  %s0 = inlined_call_operand.vmem [shape: f32[2,16,128], index: 0, kind: input, shape index: {}]
  %s1 = inlined_call_operand.vmem [shape: bf16[1,128,128], index: 1, kind: input, shape index: {}]
  %s2 = inlined_call_operand.vmem [shape: f32[1,128], index: 2, kind: input, shape index: {}]
  %s3 = inlined_call_operand.vmem [shape: f32[1,128], index: 3, kind: input, shape index: {}]
  %s4 = inlined_call_operand.vmem [shape: f32[2,16,128], index: 4, kind: output, shape index: {}]
  %s5 = sld [smem:[#allocation0]]
  $region49: #{c2f_kagnconv_forward.5} parent=0
    _
  %s7 = ssub.s32 1, %s5
  %s8 = scalar_select 0, %s7, %s5
  loop: start=0, step=1, limit=4
  $region2: #{c2f_kagnconv_forward.5} parent=0 // loop_pre_header
    _
  $region3: #{c2f_kagnconv_forward.5} parent=0 // loop_header
    %s10 = sphi 0, %s14
    %p11 = scmp.ge.s32.totalorder %s10, 4
    %s17 = sphi 0, %s29
    %s18 = sphi 0, %s25
    %s19 = sphi 0, %s17
    %s20 = sphi 0, %s18
    %s21 = sphi 0, %s19
    %s22 = sphi 0, %s20
    %s32 = sphi 0, %s34
    %s35 = sphi 0, %s32
    %s36 = sphi 0, %s35
    %s52 = sphi 0, %s36
    %s56 = sphi 0, %s56
    %s58 = sphi 0, %s56
    %s59 = sphi 0, %s58
    %s73 = sphi 0, %s59
    %s77 = sphi 0, %s77
    %s79 = sphi 0, %s77
    %s80 = sphi 0, %s79
    %s94 = sphi 0, %s80
    %s98 = sphi 0, %s98
    %s100 = sphi 0, %s98
    %s101 = sphi 0, %s100
    %s115 = sphi 0, %s101
    %s123 = sphi 0, %s125
    %s126 = sphi 0, %s123
    %s127 = sphi 0, %s126
    %s143 = sphi 0, %s127
  $region4: #{c2f_kagnconv_forward.5} parent=0 // loop_header_branch
    %13 = sbr.rel (%p11) target = $region8
  $region5: #{c2f_kagnconv_forward.5} parent=0 // loop_body
    %s15 = ssub.s32 %s10, 1
    %s16 = ssub.s32 %s10, 2
    %s23 = sadd.s32 1, %s18
    %p24 = scmp.ge.s32.totalorder %s23, 1
    %s25 = scalar_select %p24, 0, %s23
    %s26 = sadd.s32 1, %s17
    %s27 = scalar_select %p24, %s26, %s17
    %p28 = scmp.ge.s32.totalorder %s27, 2
    %s29 = scalar_select %p28, 0, %s27
    %s30 = ssub.s32 %s17, %s29
    %p31 = scmp.eq.s32.totalorder %s30, 0
    %s33 = sadd.s32 %s32, 1
    %s34 = scalar_select %p31, %s32, %s33
    %p37 = pneg %p31
    %p38 = scmp.eq.s32.totalorder %s10, 1
    %p39 = por %p37, %p38
    %p40 = scmp.ne.s32.totalorder %s32, %s35
    %p41 = scmp.eq.s32.totalorder %s10, 0
    %p42 = por %p40, %p41
    %p43 = scmp.ne.s32.totalorder %s32, %s35
    %p44 = scmp.eq.s32.totalorder %s15, 1
    %p45 = por %p43, %p44
    %p46 = scmp.ne.s32.totalorder %s35, %s36
    %p47 = scmp.eq.s32.totalorder %s15, 0
    %p48 = por %p46, %p47
    %p49 = scmp.ne.s32.totalorder %s35, %s36
    %p50 = scmp.eq.s32.totalorder %s16, 1
    %p51 = por %p49, %p50
    %p53 = scmp.ne.s32.totalorder %s36, %s52
    %p54 = scmp.eq.s32.totalorder %s16, 0
    %p55 = por %p53, %p54
    %s57 = sadd.s32 %s56, 1
    %p60 = scmp.eq.s32.totalorder %s10, 1
    %p61 = scmp.ne.s32.totalorder %s56, %s58
    %p62 = scmp.eq.s32.totalorder %s10, 0
    %p63 = por %p61, %p62
    %p64 = scmp.ne.s32.totalorder %s56, %s58
    %p65 = scmp.eq.s32.totalorder %s15, 1
    %p66 = por %p64, %p65
    %p67 = scmp.ne.s32.totalorder %s58, %s59
    %p68 = scmp.eq.s32.totalorder %s15, 0
    %p69 = por %p67, %p68
    %p70 = scmp.ne.s32.totalorder %s58, %s59
    %p71 = scmp.eq.s32.totalorder %s16, 1
    %p72 = por %p70, %p71
    %p74 = scmp.ne.s32.totalorder %s59, %s73
    %p75 = scmp.eq.s32.totalorder %s16, 0
    %p76 = por %p74, %p75
    %s78 = sadd.s32 %s77, 1
    %p81 = scmp.eq.s32.totalorder %s10, 1
    %p82 = scmp.ne.s32.totalorder %s77, %s79
    %p83 = scmp.eq.s32.totalorder %s10, 0
    %p84 = por %p82, %p83
    %p85 = scmp.ne.s32.totalorder %s77, %s79
    %p86 = scmp.eq.s32.totalorder %s15, 1
    %p87 = por %p85, %p86
    %p88 = scmp.ne.s32.totalorder %s79, %s80
    %p89 = scmp.eq.s32.totalorder %s15, 0
    %p90 = por %p88, %p89
    %p91 = scmp.ne.s32.totalorder %s79, %s80
    %p92 = scmp.eq.s32.totalorder %s16, 1
    %p93 = por %p91, %p92
    %p95 = scmp.ne.s32.totalorder %s80, %s94
    %p96 = scmp.eq.s32.totalorder %s16, 0
    %p97 = por %p95, %p96
    %s99 = sadd.s32 %s98, 1
    %p102 = scmp.eq.s32.totalorder %s10, 1
    %p103 = scmp.ne.s32.totalorder %s98, %s100
    %p104 = scmp.eq.s32.totalorder %s10, 0
    %p105 = por %p103, %p104
    %p106 = scmp.ne.s32.totalorder %s98, %s100
    %p107 = scmp.eq.s32.totalorder %s15, 1
    %p108 = por %p106, %p107
    %p109 = scmp.ne.s32.totalorder %s100, %s101
    %p110 = scmp.eq.s32.totalorder %s15, 0
    %p111 = por %p109, %p110
    %p112 = scmp.ne.s32.totalorder %s100, %s101
    %p113 = scmp.eq.s32.totalorder %s16, 1
    %p114 = por %p112, %p113
    %p116 = scmp.ne.s32.totalorder %s101, %s115
    %p117 = scmp.eq.s32.totalorder %s16, 0
    %p118 = por %p116, %p117
    %s119 = ssub.s32 %s17, %s29
    %s120 = ssub.s32 %s18, %s25
    %s121 = sor.u32 %s119, %s120
    %p122 = scmp.eq.s32.totalorder %s121, 0
    %s124 = sadd.s32 %s123, 1
    %s125 = scalar_select %p122, %s123, %s124
    %p128 = pneg %p122
    %p129 = scmp.eq.s32.totalorder %s10, 1
    %p130 = por %p128, %p129
    %p131 = scmp.ne.s32.totalorder %s123, %s126
    %p132 = scmp.eq.s32.totalorder %s10, 0
    %p133 = por %p131, %p132
    %p134 = scmp.ne.s32.totalorder %s123, %s126
    %p135 = scmp.eq.s32.totalorder %s15, 1
    %p136 = por %p134, %p135
    %p137 = scmp.ne.s32.totalorder %s126, %s127
    %p138 = scmp.eq.s32.totalorder %s15, 0
    %p139 = por %p137, %p138
    %p140 = scmp.ne.s32.totalorder %s126, %s127
    %p141 = scmp.eq.s32.totalorder %s16, 1
    %p142 = por %p140, %p141
    %p144 = scmp.ne.s32.totalorder %s127, %s143
    %p145 = scmp.eq.s32.totalorder %s16, 0
    %p146 = por %p144, %p145
    %p147 = scmp.le.s32.totalorder 1, %s10
    %p148 = scmp.lt.s32.totalorder %s10, 3
    %p149 = pnand %p147, %p148
    %p150 = pneg %p149
    // Predicated region
    $region9: #{c2f_kagnconv_forward.5} parent=5 // pred_check
      _
    $region10: #{c2f_kagnconv_forward.5} parent=5 // pred_check_branch
      %152 = sbr.rel (%p149) target = $region12
    $region11: #{c2f_kagnconv_forward.5} parent=5 // pred_region
      %s153 = ssub.s32 %s10, 1
      // Predicated region
      $region13: #{c2f_kagnconv_forward.5} parent=11 // pred_check
        %p154 = pneg %p69
      $region14: #{c2f_kagnconv_forward.5} parent=11 // pred_check_branch
        %156 = sbr.rel (%p154) target = $region16
      $region15: #{c2f_kagnconv_forward.5} parent=11 // pred_region
        _
      $region16: #{c2f_kagnconv_forward.5} parent=11 // pred_fallthru
        _
      // Predicated region
      $region17: #{c2f_kagnconv_forward.5} parent=11 // pred_check
        %p157 = pneg %p90
      $region18: #{c2f_kagnconv_forward.5} parent=11 // pred_check_branch
        %159 = sbr.rel (%p157) target = $region20
      $region19: #{c2f_kagnconv_forward.5} parent=11 // pred_region
        _
      $region20: #{c2f_kagnconv_forward.5} parent=11 // pred_fallthru
        _
      // Predicated region
      $region21: #{c2f_kagnconv_forward.5} parent=11 // pred_check
        %p160 = pneg %p111
      $region22: #{c2f_kagnconv_forward.5} parent=11 // pred_check_branch
        %162 = sbr.rel (%p160) target = $region24
      $region23: #{c2f_kagnconv_forward.5} parent=11 // pred_region
        _
      $region24: #{c2f_kagnconv_forward.5} parent=11 // pred_fallthru
        _
    $region12: #{c2f_kagnconv_forward.5} parent=5 // pred_fallthru
      _
    %p163 = scmp.lt.s32.totalorder %s10, 2
    // Predicated region
    $region25: #{c2f_kagnconv_forward.5} parent=5 // pred_check
      %p164 = pneg %p163
    $region26: #{c2f_kagnconv_forward.5} parent=5 // pred_check_branch
      %166 = sbr.rel (%p164) target = $region28
    $region27: #{c2f_kagnconv_forward.5} parent=5 // pred_region
      // Predicated region
      $region29: #{c2f_kagnconv_forward.5} parent=27 // pred_check
        %p167 = pneg %p42
      $region30: #{c2f_kagnconv_forward.5} parent=27 // pred_check_branch
        %169 = sbr.rel (%p167) target = $region32
      $region31: #{c2f_kagnconv_forward.5} parent=27 // pred_region
        %p170 = scmp.lt.s32.totalorder %s17, 1
        %s171 = scalar_select %p170, %s17, 1
        %s172 = smul.addr %s171, 2
        %s173 = smul.addr %s172, 8
        %s174 = scalar_lea.vmem %s0, %s173
      $region32: #{c2f_kagnconv_forward.5} parent=27 // pred_fallthru
        _
    $region28: #{c2f_kagnconv_forward.5} parent=5 // pred_fallthru
      _
    %p175 = scmp.le.s32.totalorder 1, %s10
    %p176 = scmp.lt.s32.totalorder %s10, 3
    %p177 = pnand %p175, %p176
    %p178 = pneg %p177
    // Predicated region
    $region33: #{c2f_kagnconv_forward.5} parent=5 // pred_check
      _
    $region34: #{c2f_kagnconv_forward.5} parent=5 // pred_check_branch
      %180 = sbr.rel (%p177) target = $region36
    $region35: #{c2f_kagnconv_forward.5} parent=5 // pred_region
      %s181 = ssub.s32 %s10, 1
      %p182 = scmp.lt.s32.totalorder %s19, 1
      %s183 = scalar_select %p182, %s19, 1
      %s184 = smul.addr %s183, 2
      %s185 = smul.addr %s184, 8
      %s186 = scalar_lea.vmem %s0, %s185
      %p187 = pneg %p48
      %p188 = pneg %p45
      %p189 = pneg %p69
      %p190 = pneg %p66
      %p191 = pneg %p90
      %p192 = pneg %p87
      %p193 = pneg %p111
      %p194 = pneg %p108
      %p195 = pneg %p139
      %p196 = pneg %p136
      %s197 = smul.u32 2, %s20
      %p198 = scmp.lt.s32.totalorder %s19, 1
      %s199 = scalar_select %p198, %s19, 1
      %p200 = scmp.lt.s32.totalorder %s197, 1
      %s201 = scalar_select %p200, %s197, 1
      %s202 = smul.addr %s199, 2
      %s203 = sadd.s32 %s201, %s202
      %s204 = smul.addr %s203, 8
      %s205 = scalar_lea.vmem %s4, %s204
      %p206 = scmp.lt.s32.totalorder %s19, 1
      %s207 = scalar_select %p206, %s19, 1
      %s208 = smul.addr %s207, 2
      %s209 = smul.addr %s208, 8
      %s210 = scalar_lea.vmem %s0, %s209
      %s211 = smul.u32 2, %s20
      %p212 = scmp.lt.s32.totalorder %s19, 1
      %s213 = scalar_select %p212, %s19, 1
      %p214 = scmp.lt.s32.totalorder %s211, 1
      %s215 = scalar_select %p214, %s211, 1
      %s216 = smul.addr %s213, 2
      %s217 = sadd.s32 %s215, %s216
      %s218 = smul.addr %s217, 8
      %s219 = scalar_lea.vmem %s4, %s218
      %s220 = smul.u32 2, %s20
      %s221 = smul.u32 %s20, 16
      %s222 = scalar_lea.vmem %s210, %s221
      %v223 = vld [vmem:[%s222] sm:$0xff]
      %v224 = vld [vmem:[%s222 + $0x8] sm:$0xff]
      %v225 = vpack.c.bf16 %v224, %v223
      %v226 = vld [vmem:[%s1] sm:$0xf]
      %v227 = vld [vmem:[%s1 + $0x4] sm:$0xf]
      %v228 = vld [vmem:[%s1 + $0x8] sm:$0xf]
      %v229 = vld [vmem:[%s1 + $0xc] sm:$0xf]
      %v230 = vld [vmem:[%s1 + $0x10] sm:$0xf]
      %v231 = vld [vmem:[%s1 + $0x14] sm:$0xf]
      %v232 = vld [vmem:[%s1 + $0x18] sm:$0xf]
      %v233 = vld [vmem:[%s1 + $0x1c] sm:$0xf]
      %v234 = vld [vmem:[%s1 + $0x20] sm:$0xf]
      %v235 = vld [vmem:[%s1 + $0x24] sm:$0xf]
      %v236 = vld [vmem:[%s1 + $0x28] sm:$0xf]
      %v237 = vld [vmem:[%s1 + $0x2c] sm:$0xf]
      %v238 = vld [vmem:[%s1 + $0x30] sm:$0xf]
      %v239 = vld [vmem:[%s1 + $0x34] sm:$0xf]
      %v240 = vld [vmem:[%s1 + $0x38] sm:$0xf]
      %v241 = vld [vmem:[%s1 + $0x3c] sm:$0xf]
      %v258 = vunpack.c.l.b16 %v226
      %v259 = vunpack.c.l.b16 %v227
      %v260 = vunpack.c.l.b16 %v228
      %v261 = vunpack.c.l.b16 %v229
      %v262 = vunpack.c.l.b16 %v230
      %v263 = vunpack.c.l.b16 %v231
      %v264 = vunpack.c.l.b16 %v232
      %v265 = vunpack.c.l.b16 %v233
      %v266 = vunpack.c.l.b16 %v234
      %v267 = vunpack.c.l.b16 %v235
      %v268 = vunpack.c.l.b16 %v236
      %v269 = vunpack.c.l.b16 %v237
      %v270 = vunpack.c.l.b16 %v238
      %v271 = vunpack.c.l.b16 %v239
      %v272 = vunpack.c.l.b16 %v240
      %v273 = vunpack.c.l.b16 %v241
      %v274 = vpack.c.b16 %v259, %v258
      %v275 = vpack.c.b16 %v261, %v260
      %v276 = vpack.c.b16 %v263, %v262
      %v277 = vpack.c.b16 %v265, %v264
      %v278 = vpack.c.b16 %v267, %v266
      %v279 = vpack.c.b16 %v269, %v268
      %v280 = vpack.c.b16 %v271, %v270
      %v281 = vpack.c.b16 %v273, %v272
      %290 = vmatpush.bf16.msra.mxu0 %v281
      %291 = vmatpush.bf16.msra.mxu0 %v280
      %292 = vmatpush.bf16.msra.mxu0 %v279
      %293 = vmatpush.bf16.msra.mxu0 %v278
      %294 = vmatpush.bf16.msra.mxu0 %v277
      %295 = vmatpush.bf16.msra.mxu0 %v276
      %296 = vmatpush.bf16.msra.mxu0 %v275
      %297 = vmatpush.bf16.msra.mxu0 %v274
      %298 = vmatmul.bf16.gmra.mxu0 %v225
      %v299 = vpop.f32.mrf.mxu0
      %v300 = vadd.f32 0.0, %v299
      %v301 = vpop.f32.mrf.mxu0
      %v302 = vadd.f32 0.0, %v301
      %303 = vdwg.mxu0
      %v304 = vld [vmem:[%s2] sm:$0x1]
      %v306 = vperm.slane %v304, 0
      %v308 = vmul.f32 %v300, %v306
      %v309 = vmul.f32 %v302, %v306
      %v310 = vld [vmem:[%s3] sm:$0x1]
      %v312 = vperm.slane %v310, 0
      %v314 = vadd.f32 %v308, %v312
      %v315 = vadd.f32 %v309, %v312
      %v316 = vxor.u32 %v314, 2147483648
      %v317 = vxor.u32 %v315, 2147483648
      %v318 = vmul.f32 %v316, 1.442695
      %v319 = vpow.pop %v318
      %v320 = vmul.f32 %v317, 1.442695
      %v321 = vpow.pop %v320
      %v322 = vadd.f32 %v319, 1.0
      %v323 = vadd.f32 %v321, 1.0
      %v324 = vrcp.pop %v322
      %v325 = vmul.f32 %v322, %v324
      %v326 = vsub.f32 1.0, %v325
      %v327 = vmul.f32 %v324, %v326
      %v328 = vadd.f32 %v324, %v327
      %vm329 = vweird.f32 %v322
      %vm330 = vweird.f32 %v324
      %vm331 = vmor %vm329, %vm330
      %v332 = vsel %vm331, %v324, %v328
      %v333 = vand.u32 2147483647, %v322
      %vm334 = vcmp.eq.f32.partialorder %v333, 8.507059e+37
      %v335 = vand.u32 %v322, 2147483648
      %v336 = vor.u32 1.1754944e-38, %v335
      %v337 = vsel %vm334, %v336, %v332
      %v338 = vmul.f32 1.0, %v337
      %v339 = vrcp.pop %v323
      %v340 = vmul.f32 %v323, %v339
      %v341 = vsub.f32 1.0, %v340
      %v342 = vmul.f32 %v339, %v341
      %v343 = vadd.f32 %v339, %v342
      %vm344 = vweird.f32 %v323
      %vm345 = vweird.f32 %v339
      %vm346 = vmor %vm344, %vm345
      %v347 = vsel %vm346, %v339, %v343
      %v348 = vand.u32 2147483647, %v323
      %vm349 = vcmp.eq.f32.partialorder %v348, 8.507059e+37
      %v350 = vand.u32 %v323, 2147483648
      %v351 = vor.u32 1.1754944e-38, %v350
      %v352 = vsel %vm349, %v351, %v347
      %v353 = vmul.f32 1.0, %v352
      %v354 = vmul.f32 %v314, %v338
      %v355 = vmul.f32 %v315, %v353
      %356 = vst [vmem:[%s219] sm:$0xff] %v354
      %357 = vst [vmem:[%s219 + $0x8] sm:$0xff] %v355
      %s358 = smul.u32 2, %s20
      %p359 = scmp.lt.s32.totalorder %s19, 1
      %s360 = scalar_select %p359, %s19, 1
      %p361 = scmp.lt.s32.totalorder %s358, 1
      %s362 = scalar_select %p361, %s358, 1
      %s363 = smul.addr %s360, 2
      %s364 = sadd.s32 %s362, %s363
      %s365 = smul.addr %s364, 8
      %s366 = scalar_lea.vmem %s4, %s365
      // Predicated region
      $region37: #{c2f_kagnconv_forward.5} parent=35 // pred_check
        %p367 = pneg %p136
      $region38: #{c2f_kagnconv_forward.5} parent=35 // pred_check_branch
        %369 = sbr.rel (%p367) target = $region40
      $region39: #{c2f_kagnconv_forward.5} parent=35 // pred_region
        %s370 = smul.u32 2, %s20
      $region40: #{c2f_kagnconv_forward.5} parent=35 // pred_fallthru
        _
    $region36: #{c2f_kagnconv_forward.5} parent=5 // pred_fallthru
      _
    %p371 = scmp.le.s32.totalorder 2, %s10
    // Predicated region
    $region41: #{c2f_kagnconv_forward.5} parent=5 // pred_check
      %p372 = pneg %p371
    $region42: #{c2f_kagnconv_forward.5} parent=5 // pred_check_branch
      %374 = sbr.rel (%p372) target = $region44
    $region43: #{c2f_kagnconv_forward.5} parent=5 // pred_region
      %s375 = ssub.s32 %s10, 2
      // Predicated region
      $region45: #{c2f_kagnconv_forward.5} parent=43 // pred_check
        %p376 = pneg %p142
      $region46: #{c2f_kagnconv_forward.5} parent=43 // pred_check_branch
        %378 = sbr.rel (%p376) target = $region48
      $region47: #{c2f_kagnconv_forward.5} parent=43 // pred_region
        %s379 = smul.u32 2, %s22
        %p380 = scmp.lt.s32.totalorder %s21, 1
        %s381 = scalar_select %p380, %s21, 1
        %p382 = scmp.lt.s32.totalorder %s379, 1
        %s383 = scalar_select %p382, %s379, 1
        %s384 = smul.addr %s381, 2
        %s385 = sadd.s32 %s383, %s384
        %s386 = smul.addr %s385, 8
        %s387 = scalar_lea.vmem %s4, %s386
      $region48: #{c2f_kagnconv_forward.5} parent=43 // pred_fallthru
        _
    $region44: #{c2f_kagnconv_forward.5} parent=5 // pred_fallthru
      _
  $region6: #{c2f_kagnconv_forward.5} parent=0 // loop_footer
    %s14 = sadd.s32 1, %s10
  $region7: #{c2f_kagnconv_forward.5} parent=0 // loop_footer_branch
    %9 = sbr.rel target = $region3
  $region8: #{c2f_kagnconv_forward.5} parent=0 // loop_exit
    _

// kernel: tile.9
$region0: #{tile.9}
  %s0 = inlined_call_operand.vmem [shape: f32[16,4,16,4], index: 0, kind: input, shape index: {}]
  %s1 = inlined_call_operand.vmem [shape: f32[64,64], index: 1, kind: output, shape index: {}]
  %s2 = smov 3
  %v3 = vld [vmem:[%s0] ss:$16 sm:%s2]
  %s4 = smov 12
  %v5 = vld [vmem:[%s0] ss:$16 sm:%s4]
  %vm6 = vcmask 1043458
  %v7 = vsel %vm6, %v5, %v3
  %s8 = smov 48
  %v9 = vld [vmem:[%s0] ss:$16 sm:%s8]
  %vm10 = vcmask 1045508
  %v11 = vsel %vm10, %v9, %v7
  %s12 = smov 192
  %v13 = vld [vmem:[%s0] ss:$16 sm:%s12]
  %vm14 = vcmask 1047558
  %v15 = vsel %vm14, %v13, %v11
  %vm16 = vcmask 31744
  %17 = vst.msk [vmem:[%s1] sm:$0xff] %vm16, %v15
  %s18 = scalar_lea.vmem %s0, 128
  %s19 = smov 3
  %v20 = vld [vmem:[%s18] ss:$16 sm:%s19]
  %s21 = scalar_lea.vmem %s0, 128
  %s22 = smov 12
  %v23 = vld [vmem:[%s21] ss:$16 sm:%s22]
  %vm24 = vcmask 1043458
  %v25 = vsel %vm24, %v23, %v20
  %s26 = scalar_lea.vmem %s0, 128
  %s27 = smov 48
  %v28 = vld [vmem:[%s26] ss:$16 sm:%s27]
  %vm29 = vcmask 1045508
  %v30 = vsel %vm29, %v28, %v25
  %s31 = scalar_lea.vmem %s0, 128
  %s32 = smov 192
  %v33 = vld [vmem:[%s31] ss:$16 sm:%s32]
  %vm34 = vcmask 1047558
  %v35 = vsel %vm34, %v33, %v30
  %vm36 = vcmask 31744
  %s37 = scalar_lea.vmem %s1, 8
  %38 = vst.msk [vmem:[%s37] sm:$0xff] %vm36, %v35
  %s39 = scalar_lea.vmem %s0, 256
  %s40 = smov 3
  %v41 = vld [vmem:[%s39] ss:$16 sm:%s40]
  %s42 = scalar_lea.vmem %s0, 256
  %s43 = smov 12
  %v44 = vld [vmem:[%s42] ss:$16 sm:%s43]
  %vm45 = vcmask 1043458
  %v46 = vsel %vm45, %v44, %v41
  %s47 = scalar_lea.vmem %s0, 256
  %s48 = smov 48
  %v49 = vld [vmem:[%s47] ss:$16 sm:%s48]
  %vm50 = vcmask 1045508
  %v51 = vsel %vm50, %v49, %v46
  %s52 = scalar_lea.vmem %s0, 256
  %s53 = smov 192
  %v54 = vld [vmem:[%s52] ss:$16 sm:%s53]
  %vm55 = vcmask 1047558
  %v56 = vsel %vm55, %v54, %v51
  %vm57 = vcmask 31744
  %s58 = scalar_lea.vmem %s1, 16
  %59 = vst.msk [vmem:[%s58] sm:$0xff] %vm57, %v56
  %s60 = scalar_lea.vmem %s0, 384
  %s61 = smov 3
  %v62 = vld [vmem:[%s60] ss:$16 sm:%s61]
  %s63 = scalar_lea.vmem %s0, 384
  %s64 = smov 12
  %v65 = vld [vmem:[%s63] ss:$16 sm:%s64]
  %vm66 = vcmask 1043458
  %v67 = vsel %vm66, %v65, %v62
  %s68 = scalar_lea.vmem %s0, 384
  %s69 = smov 48
  %v70 = vld [vmem:[%s68] ss:$16 sm:%s69]
  %vm71 = vcmask 1045508
  %v72 = vsel %vm71, %v70, %v67
  %s73 = scalar_lea.vmem %s0, 384
  %s74 = smov 192
  %v75 = vld [vmem:[%s73] ss:$16 sm:%s74]
  %vm76 = vcmask 1047558
  %v77 = vsel %vm76, %v75, %v72
  %vm78 = vcmask 31744
  %s79 = scalar_lea.vmem %s1, 24
  %80 = vst.msk [vmem:[%s79] sm:$0xff] %vm78, %v77
  %s81 = scalar_lea.vmem %s0, 512
  %s82 = smov 3
  %v83 = vld [vmem:[%s81] ss:$16 sm:%s82]
  %s84 = scalar_lea.vmem %s0, 512
  %s85 = smov 12
  %v86 = vld [vmem:[%s84] ss:$16 sm:%s85]
  %vm87 = vcmask 1043458
  %v88 = vsel %vm87, %v86, %v83
  %s89 = scalar_lea.vmem %s0, 512
  %s90 = smov 48
  %v91 = vld [vmem:[%s89] ss:$16 sm:%s90]
  %vm92 = vcmask 1045508
  %v93 = vsel %vm92, %v91, %v88
  %s94 = scalar_lea.vmem %s0, 512
  %s95 = smov 192
  %v96 = vld [vmem:[%s94] ss:$16 sm:%s95]
  %vm97 = vcmask 1047558
  %v98 = vsel %vm97, %v96, %v93
  %vm99 = vcmask 31744
  %s100 = scalar_lea.vmem %s1, 32
  %101 = vst.msk [vmem:[%s100] sm:$0xff] %vm99, %v98
  %s102 = scalar_lea.vmem %s0, 640
  %s103 = smov 3
  %v104 = vld [vmem:[%s102] ss:$16 sm:%s103]
  %s105 = scalar_lea.vmem %s0, 640
  %s106 = smov 12
  %v107 = vld [vmem:[%s105] ss:$16 sm:%s106]
  %vm108 = vcmask 1043458
  %v109 = vsel %vm108, %v107, %v104
  %s110 = scalar_lea.vmem %s0, 640
  %s111 = smov 48
  %v112 = vld [vmem:[%s110] ss:$16 sm:%s111]
  %vm113 = vcmask 1045508
  %v114 = vsel %vm113, %v112, %v109
  %s115 = scalar_lea.vmem %s0, 640
  %s116 = smov 192
  %v117 = vld [vmem:[%s115] ss:$16 sm:%s116]
  %vm118 = vcmask 1047558
  %v119 = vsel %vm118, %v117, %v114
  %vm120 = vcmask 31744
  %s121 = scalar_lea.vmem %s1, 40
  %122 = vst.msk [vmem:[%s121] sm:$0xff] %vm120, %v119
  %s123 = scalar_lea.vmem %s0, 768
  %s124 = smov 3
  %v125 = vld [vmem:[%s123] ss:$16 sm:%s124]
  %s126 = scalar_lea.vmem %s0, 768
  %s127 = smov 12
  %v128 = vld [vmem:[%s126] ss:$16 sm:%s127]
  %vm129 = vcmask 1043458
  %v130 = vsel %vm129, %v128, %v125
  %s131 = scalar_lea.vmem %s0, 768
  %s132 = smov 48
  %v133 = vld [vmem:[%s131] ss:$16 sm:%s132]
  %vm134 = vcmask 1045508
  %v135 = vsel %vm134, %v133, %v130
  %s136 = scalar_lea.vmem %s0, 768
  %s137 = smov 192
  %v138 = vld [vmem:[%s136] ss:$16 sm:%s137]
  %vm139 = vcmask 1047558
  %v140 = vsel %vm139, %v138, %v135
  %vm141 = vcmask 31744
  %s142 = scalar_lea.vmem %s1, 48
  %143 = vst.msk [vmem:[%s142] sm:$0xff] %vm141, %v140
  %s144 = scalar_lea.vmem %s0, 896
  %s145 = smov 3
  %v146 = vld [vmem:[%s144] ss:$16 sm:%s145]
  %s147 = scalar_lea.vmem %s0, 896
  %s148 = smov 12
  %v149 = vld [vmem:[%s147] ss:$16 sm:%s148]
  %vm150 = vcmask 1043458
  %v151 = vsel %vm150, %v149, %v146
  %s152 = scalar_lea.vmem %s0, 896
  %s153 = smov 48
  %v154 = vld [vmem:[%s152] ss:$16 sm:%s153]
  %vm155 = vcmask 1045508
  %v156 = vsel %vm155, %v154, %v151
  %s157 = scalar_lea.vmem %s0, 896
  %s158 = smov 192
  %v159 = vld [vmem:[%s157] ss:$16 sm:%s158]
  %vm160 = vcmask 1047558
  %v161 = vsel %vm160, %v159, %v156
  %vm162 = vcmask 31744
  %s163 = scalar_lea.vmem %s1, 56
  %164 = vst.msk [vmem:[%s163] sm:$0xff] %vm162, %v161
  %s165 = scalar_lea.vmem %s0, 15
  %s166 = smov 3
  %v167 = vld [vmem:[%s165] ss:$16 sm:%s166]
  %s168 = scalar_lea.vmem %s0, 15
  %s169 = smov 12
  %v170 = vld [vmem:[%s168] ss:$16 sm:%s169]
  %vm171 = vcmask 1043458
  %v172 = vsel %vm171, %v170, %v167
  %s173 = scalar_lea.vmem %s0, 15
  %s174 = smov 48
  %v175 = vld [vmem:[%s173] ss:$16 sm:%s174]
  %vm176 = vcmask 1045508
  %v177 = vsel %vm176, %v175, %v172
  %s178 = scalar_lea.vmem %s0, 15
  %s179 = smov 192
  %v180 = vld [vmem:[%s178] ss:$16 sm:%s179]
  %vm181 = vcmask 1047558
  %v182 = vsel %vm181, %v180, %v177
  %183 = vrot.lane.b32.xlu0 %v182, 60
  %v184 = vpop.permute.xlu0 %183
  %vm185 = vcmask 523744
  %186 = vst.msk [vmem:[%s1] sm:$0xff] %vm185, %v184
  %s187 = scalar_lea.vmem %s0, 527
  %s188 = smov 3
  %v189 = vld [vmem:[%s187] ss:$16 sm:%s188]
  %s190 = scalar_lea.vmem %s0, 527
  %s191 = smov 12
  %v192 = vld [vmem:[%s190] ss:$16 sm:%s191]
  %vm193 = vcmask 1043458
  %v194 = vsel %vm193, %v192, %v189
  %s195 = scalar_lea.vmem %s0, 527
  %s196 = smov 48
  %v197 = vld [vmem:[%s195] ss:$16 sm:%s196]
  %vm198 = vcmask 1045508
  %v199 = vsel %vm198, %v197, %v194
  %s200 = scalar_lea.vmem %s0, 527
  %s201 = smov 192
  %v202 = vld [vmem:[%s200] ss:$16 sm:%s201]
  %vm203 = vcmask 1047558
  %v204 = vsel %vm203, %v202, %v199
  %205 = vrot.lane.b32.xlu0 %v204, 60
  %v206 = vpop.permute.xlu0 %205
  %vm207 = vcmask 523744
  %s208 = scalar_lea.vmem %s1, 32
  %209 = vst.msk [vmem:[%s208] sm:$0xff] %vm207, %v206
  %s210 = scalar_lea.vmem %s0, 143
  %s211 = smov 3
  %v212 = vld [vmem:[%s210] ss:$16 sm:%s211]
  %s213 = scalar_lea.vmem %s0, 143
  %s214 = smov 12
  %v215 = vld [vmem:[%s213] ss:$16 sm:%s214]
  %vm216 = vcmask 1043458
  %v217 = vsel %vm216, %v215, %v212
  %s218 = scalar_lea.vmem %s0, 143
  %s219 = smov 48
  %v220 = vld [vmem:[%s218] ss:$16 sm:%s219]
  %vm221 = vcmask 1045508
  %v222 = vsel %vm221, %v220, %v217
  %s223 = scalar_lea.vmem %s0, 143
  %s224 = smov 192
  %v225 = vld [vmem:[%s223] ss:$16 sm:%s224]
  %vm226 = vcmask 1047558
  %v227 = vsel %vm226, %v225, %v222
  %228 = vrot.lane.b32.xlu0 %v227, 60
  %v229 = vpop.permute.xlu0 %228
  %vm230 = vcmask 523744
  %s231 = scalar_lea.vmem %s1, 8
  %232 = vst.msk [vmem:[%s231] sm:$0xff] %vm230, %v229
  %s233 = scalar_lea.vmem %s0, 655
  %s234 = smov 3
  %v235 = vld [vmem:[%s233] ss:$16 sm:%s234]
  %s236 = scalar_lea.vmem %s0, 655
  %s237 = smov 12
  %v238 = vld [vmem:[%s236] ss:$16 sm:%s237]
  %vm239 = vcmask 1043458
  %v240 = vsel %vm239, %v238, %v235
  %s241 = scalar_lea.vmem %s0, 655
  %s242 = smov 48
  %v243 = vld [vmem:[%s241] ss:$16 sm:%s242]
  %vm244 = vcmask 1045508
  %v245 = vsel %vm244, %v243, %v240
  %s246 = scalar_lea.vmem %s0, 655
  %s247 = smov 192
  %v248 = vld [vmem:[%s246] ss:$16 sm:%s247]
  %vm249 = vcmask 1047558
  %v250 = vsel %vm249, %v248, %v245
  %251 = vrot.lane.b32.xlu0 %v250, 60
  %v252 = vpop.permute.xlu0 %251
  %vm253 = vcmask 523744
  %s254 = scalar_lea.vmem %s1, 40
  %255 = vst.msk [vmem:[%s254] sm:$0xff] %vm253, %v252
  %s256 = scalar_lea.vmem %s0, 271
  %s257 = smov 3
  %v258 = vld [vmem:[%s256] ss:$16 sm:%s257]
  %s259 = scalar_lea.vmem %s0, 271
  %s260 = smov 12
  %v261 = vld [vmem:[%s259] ss:$16 sm:%s260]
  %vm262 = vcmask 1043458
  %v263 = vsel %vm262, %v261, %v258
  %s264 = scalar_lea.vmem %s0, 271
  %s265 = smov 48
  %v266 = vld [vmem:[%s264] ss:$16 sm:%s265]
  %vm267 = vcmask 1045508
  %v268 = vsel %vm267, %v266, %v263
  %s269 = scalar_lea.vmem %s0, 271
  %s270 = smov 192
  %v271 = vld [vmem:[%s269] ss:$16 sm:%s270]
  %vm272 = vcmask 1047558
  %v273 = vsel %vm272, %v271, %v268
  %274 = vrot.lane.b32.xlu0 %v273, 60
  %v275 = vpop.permute.xlu0 %274
  %vm276 = vcmask 523744
  %s277 = scalar_lea.vmem %s1, 16
  %278 = vst.msk [vmem:[%s277] sm:$0xff] %vm276, %v275
  %s279 = scalar_lea.vmem %s0, 783
  %s280 = smov 3
  %v281 = vld [vmem:[%s279] ss:$16 sm:%s280]
  %s282 = scalar_lea.vmem %s0, 783
  %s283 = smov 12
  %v284 = vld [vmem:[%s282] ss:$16 sm:%s283]
  %vm285 = vcmask 1043458
  %v286 = vsel %vm285, %v284, %v281
  %s287 = scalar_lea.vmem %s0, 783
  %s288 = smov 48
  %v289 = vld [vmem:[%s287] ss:$16 sm:%s288]
  %vm290 = vcmask 1045508
  %v291 = vsel %vm290, %v289, %v286
  %s292 = scalar_lea.vmem %s0, 783
  %s293 = smov 192
  %v294 = vld [vmem:[%s292] ss:$16 sm:%s293]
  %vm295 = vcmask 1047558
  %v296 = vsel %vm295, %v294, %v291
  %297 = vrot.lane.b32.xlu0 %v296, 60
  %v298 = vpop.permute.xlu0 %297
  %vm299 = vcmask 523744
  %s300 = scalar_lea.vmem %s1, 48
  %301 = vst.msk [vmem:[%s300] sm:$0xff] %vm299, %v298
  %s302 = scalar_lea.vmem %s0, 399
  %s303 = smov 3
  %v304 = vld [vmem:[%s302] ss:$16 sm:%s303]
  %s305 = scalar_lea.vmem %s0, 399
  %s306 = smov 12
  %v307 = vld [vmem:[%s305] ss:$16 sm:%s306]
  %vm308 = vcmask 1043458
  %v309 = vsel %vm308, %v307, %v304
  %s310 = scalar_lea.vmem %s0, 399
  %s311 = smov 48
  %v312 = vld [vmem:[%s310] ss:$16 sm:%s311]
  %vm313 = vcmask 1045508
  %v314 = vsel %vm313, %v312, %v309
  %s315 = scalar_lea.vmem %s0, 399
  %s316 = smov 192
  %v317 = vld [vmem:[%s315] ss:$16 sm:%s316]
  %vm318 = vcmask 1047558
  %v319 = vsel %vm318, %v317, %v314
  %320 = vrot.lane.b32.xlu0 %v319, 60
  %v321 = vpop.permute.xlu0 %320
  %vm322 = vcmask 523744
  %s323 = scalar_lea.vmem %s1, 24
  %324 = vst.msk [vmem:[%s323] sm:$0xff] %vm322, %v321
  %s325 = scalar_lea.vmem %s0, 911
  %s326 = smov 3
  %v327 = vld [vmem:[%s325] ss:$16 sm:%s326]
  %s328 = scalar_lea.vmem %s0, 911
  %s329 = smov 12
  %v330 = vld [vmem:[%s328] ss:$16 sm:%s329]
  %vm331 = vcmask 1043458
  %v332 = vsel %vm331, %v330, %v327
  %s333 = scalar_lea.vmem %s0, 911
  %s334 = smov 48
  %v335 = vld [vmem:[%s333] ss:$16 sm:%s334]
  %vm336 = vcmask 1045508
  %v337 = vsel %vm336, %v335, %v332
  %s338 = scalar_lea.vmem %s0, 911
  %s339 = smov 192
  %v340 = vld [vmem:[%s338] ss:$16 sm:%s339]
  %vm341 = vcmask 1047558
  %v342 = vsel %vm341, %v340, %v337
  %343 = vrot.lane.b32.xlu0 %v342, 60
  %v344 = vpop.permute.xlu0 %343
  %vm345 = vcmask 523744
  %s346 = scalar_lea.vmem %s1, 56
  %347 = vst.msk [vmem:[%s346] sm:$0xff] %vm345, %v344
  %s348 = scalar_lea.vmem %s0, 14
  %s349 = smov 3
  %v350 = vld [vmem:[%s348] ss:$16 sm:%s349]
  %s351 = scalar_lea.vmem %s0, 14
  %s352 = smov 12
  %v353 = vld [vmem:[%s351] ss:$16 sm:%s352]
  %vm354 = vcmask 1043458
  %v355 = vsel %vm354, %v353, %v350
  %s356 = scalar_lea.vmem %s0, 14
  %s357 = smov 48
  %v358 = vld [vmem:[%s356] ss:$16 sm:%s357]
  %vm359 = vcmask 1045508
  %v360 = vsel %vm359, %v358, %v355
  %s361 = scalar_lea.vmem %s0, 14
  %s362 = smov 192
  %v363 = vld [vmem:[%s361] ss:$16 sm:%s362]
  %vm364 = vcmask 1047558
  %v365 = vsel %vm364, %v363, %v360
  %366 = vrot.lane.b32.xlu0 %v365, 56
  %v367 = vpop.permute.xlu0 %366
  %vm368 = vcmask 490944
  %369 = vst.msk [vmem:[%s1] sm:$0xff] %vm368, %v367
  %s370 = scalar_lea.vmem %s0, 526
  %s371 = smov 3
  %v372 = vld [vmem:[%s370] ss:$16 sm:%s371]
  %s373 = scalar_lea.vmem %s0, 526
  %s374 = smov 12
  %v375 = vld [vmem:[%s373] ss:$16 sm:%s374]
  %vm376 = vcmask 1043458
  %v377 = vsel %vm376, %v375, %v372
  %s378 = scalar_lea.vmem %s0, 526
  %s379 = smov 48
  %v380 = vld [vmem:[%s378] ss:$16 sm:%s379]
  %vm381 = vcmask 1045508
  %v382 = vsel %vm381, %v380, %v377
  %s383 = scalar_lea.vmem %s0, 526
  %s384 = smov 192
  %v385 = vld [vmem:[%s383] ss:$16 sm:%s384]
  %vm386 = vcmask 1047558
  %v387 = vsel %vm386, %v385, %v382
  %388 = vrot.lane.b32.xlu0 %v387, 56
  %v389 = vpop.permute.xlu0 %388
  %vm390 = vcmask 490944
  %s391 = scalar_lea.vmem %s1, 32
  %392 = vst.msk [vmem:[%s391] sm:$0xff] %vm390, %v389
  %s393 = scalar_lea.vmem %s0, 142
  %s394 = smov 3
  %v395 = vld [vmem:[%s393] ss:$16 sm:%s394]
  %s396 = scalar_lea.vmem %s0, 142
  %s397 = smov 12
  %v398 = vld [vmem:[%s396] ss:$16 sm:%s397]
  %vm399 = vcmask 1043458
  %v400 = vsel %vm399, %v398, %v395
  %s401 = scalar_lea.vmem %s0, 142
  %s402 = smov 48
  %v403 = vld [vmem:[%s401] ss:$16 sm:%s402]
  %vm404 = vcmask 1045508
  %v405 = vsel %vm404, %v403, %v400
  %s406 = scalar_lea.vmem %s0, 142
  %s407 = smov 192
  %v408 = vld [vmem:[%s406] ss:$16 sm:%s407]
  %vm409 = vcmask 1047558
  %v410 = vsel %vm409, %v408, %v405
  %411 = vrot.lane.b32.xlu0 %v410, 56
  %v412 = vpop.permute.xlu0 %411
  %vm413 = vcmask 490944
  %s414 = scalar_lea.vmem %s1, 8
  %415 = vst.msk [vmem:[%s414] sm:$0xff] %vm413, %v412
  %s416 = scalar_lea.vmem %s0, 654
  %s417 = smov 3
  %v418 = vld [vmem:[%s416] ss:$16 sm:%s417]
  %s419 = scalar_lea.vmem %s0, 654
  %s420 = smov 12
  %v421 = vld [vmem:[%s419] ss:$16 sm:%s420]
  %vm422 = vcmask 1043458
  %v423 = vsel %vm422, %v421, %v418
  %s424 = scalar_lea.vmem %s0, 654
  %s425 = smov 48
  %v426 = vld [vmem:[%s424] ss:$16 sm:%s425]
  %vm427 = vcmask 1045508
  %v428 = vsel %vm427, %v426, %v423
  %s429 = scalar_lea.vmem %s0, 654
  %s430 = smov 192
  %v431 = vld [vmem:[%s429] ss:$16 sm:%s430]
  %vm432 = vcmask 1047558
  %v433 = vsel %vm432, %v431, %v428
  %434 = vrot.lane.b32.xlu0 %v433, 56
  %v435 = vpop.permute.xlu0 %434
  %vm436 = vcmask 490944
  %s437 = scalar_lea.vmem %s1, 40
  %438 = vst.msk [vmem:[%s437] sm:$0xff] %vm436, %v435
  %s439 = scalar_lea.vmem %s0, 270
  %s440 = smov 3
  %v441 = vld [vmem:[%s439] ss:$16 sm:%s440]
  %s442 = scalar_lea.vmem %s0, 270
  %s443 = smov 12
  %v444 = vld [vmem:[%s442] ss:$16 sm:%s443]
  %vm445 = vcmask 1043458
  %v446 = vsel %vm445, %v444, %v441
  %s447 = scalar_lea.vmem %s0, 270
  %s448 = smov 48
  %v449 = vld [vmem:[%s447] ss:$16 sm:%s448]
  %vm450 = vcmask 1045508
  %v451 = vsel %vm450, %v449, %v446
  %s452 = scalar_lea.vmem %s0, 270
  %s453 = smov 192
  %v454 = vld [vmem:[%s452] ss:$16 sm:%s453]
  %vm455 = vcmask 1047558
  %v456 = vsel %vm455, %v454, %v451
  %457 = vrot.lane.b32.xlu0 %v456, 56
  %v458 = vpop.permute.xlu0 %457
  %vm459 = vcmask 490944
  %s460 = scalar_lea.vmem %s1, 16
  %461 = vst.msk [vmem:[%s460] sm:$0xff] %vm459, %v458
  %s462 = scalar_lea.vmem %s0, 782
  %s463 = smov 3
  %v464 = vld [vmem:[%s462] ss:$16 sm:%s463]
  %s465 = scalar_lea.vmem %s0, 782
  %s466 = smov 12
  %v467 = vld [vmem:[%s465] ss:$16 sm:%s466]
  %vm468 = vcmask 1043458
  %v469 = vsel %vm468, %v467, %v464
  %s470 = scalar_lea.vmem %s0, 782
  %s471 = smov 48
  %v472 = vld [vmem:[%s470] ss:$16 sm:%s471]
  %vm473 = vcmask 1045508
  %v474 = vsel %vm473, %v472, %v469
  %s475 = scalar_lea.vmem %s0, 782
  %s476 = smov 192
  %v477 = vld [vmem:[%s475] ss:$16 sm:%s476]
  %vm478 = vcmask 1047558
  %v479 = vsel %vm478, %v477, %v474
  %480 = vrot.lane.b32.xlu0 %v479, 56
  %v481 = vpop.permute.xlu0 %480
  %vm482 = vcmask 490944
  %s483 = scalar_lea.vmem %s1, 48
  %484 = vst.msk [vmem:[%s483] sm:$0xff] %vm482, %v481
  %s485 = scalar_lea.vmem %s0, 398
  %s486 = smov 3
  %v487 = vld [vmem:[%s485] ss:$16 sm:%s486]
  %s488 = scalar_lea.vmem %s0, 398
  %s489 = smov 12
  %v490 = vld [vmem:[%s488] ss:$16 sm:%s489]
  %vm491 = vcmask 1043458
  %v492 = vsel %vm491, %v490, %v487
  %s493 = scalar_lea.vmem %s0, 398
  %s494 = smov 48
  %v495 = vld [vmem:[%s493] ss:$16 sm:%s494]
  %vm496 = vcmask 1045508
  %v497 = vsel %vm496, %v495, %v492
  %s498 = scalar_lea.vmem %s0, 398
  %s499 = smov 192
  %v500 = vld [vmem:[%s498] ss:$16 sm:%s499]
  %vm501 = vcmask 1047558
  %v502 = vsel %vm501, %v500, %v497
  %503 = vrot.lane.b32.xlu0 %v502, 56
  %v504 = vpop.permute.xlu0 %503
  %vm505 = vcmask 490944
  %s506 = scalar_lea.vmem %s1, 24
  %507 = vst.msk [vmem:[%s506] sm:$0xff] %vm505, %v504
  %s508 = scalar_lea.vmem %s0, 910
  %s509 = smov 3
  %v510 = vld [vmem:[%s508] ss:$16 sm:%s509]
  %s511 = scalar_lea.vmem %s0, 910
  %s512 = smov 12
  %v513 = vld [vmem:[%s511] ss:$16 sm:%s512]
  %vm514 = vcmask 1043458
  %v515 = vsel %vm514, %v513, %v510
  %s516 = scalar_lea.vmem %s0, 910
  %s517 = smov 48
  %v518 = vld [vmem:[%s516] ss:$16 sm:%s517]
  %vm519 = vcmask 1045508
  %v520 = vsel %vm519, %v518, %v515
  %s521 = scalar_lea.vmem %s0, 910
  %s522 = smov 192
  %v523 = vld [vmem:[%s521] ss:$16 sm:%s522]
  %vm524 = vcmask 1047558
  %v525 = vsel %vm524, %v523, %v520
  %526 = vrot.lane.b32.xlu0 %v525, 56
  %v527 = vpop.permute.xlu0 %526
  %vm528 = vcmask 490944
  %s529 = scalar_lea.vmem %s1, 56
  %530 = vst.msk [vmem:[%s529] sm:$0xff] %vm528, %v527
  %s531 = scalar_lea.vmem %s0, 13
  %s532 = smov 3
  %v533 = vld [vmem:[%s531] ss:$16 sm:%s532]
  %s534 = scalar_lea.vmem %s0, 13
  %s535 = smov 12
  %v536 = vld [vmem:[%s534] ss:$16 sm:%s535]
  %vm537 = vcmask 1043458
  %v538 = vsel %vm537, %v536, %v533
  %s539 = scalar_lea.vmem %s0, 13
  %s540 = smov 48
  %v541 = vld [vmem:[%s539] ss:$16 sm:%s540]
  %vm542 = vcmask 1045508
  %v543 = vsel %vm542, %v541, %v538
  %s544 = scalar_lea.vmem %s0, 13
  %s545 = smov 192
  %v546 = vld [vmem:[%s544] ss:$16 sm:%s545]
  %vm547 = vcmask 1047558
  %v548 = vsel %vm547, %v546, %v543
  %549 = vrot.lane.b32.xlu0 %v548, 52
  %v550 = vpop.permute.xlu0 %549
  %vm551 = vcmask 458144
  %552 = vst.msk [vmem:[%s1] sm:$0xff] %vm551, %v550
  %s553 = scalar_lea.vmem %s0, 525
  %s554 = smov 3
  %v555 = vld [vmem:[%s553] ss:$16 sm:%s554]
  %s556 = scalar_lea.vmem %s0, 525
  %s557 = smov 12
  %v558 = vld [vmem:[%s556] ss:$16 sm:%s557]
  %vm559 = vcmask 1043458
  %v560 = vsel %vm559, %v558, %v555
  %s561 = scalar_lea.vmem %s0, 525
  %s562 = smov 48
  %v563 = vld [vmem:[%s561] ss:$16 sm:%s562]
  %vm564 = vcmask 1045508
  %v565 = vsel %vm564, %v563, %v560
  %s566 = scalar_lea.vmem %s0, 525
  %s567 = smov 192
  %v568 = vld [vmem:[%s566] ss:$16 sm:%s567]
  %vm569 = vcmask 1047558
  %v570 = vsel %vm569, %v568, %v565
  %571 = vrot.lane.b32.xlu0 %v570, 52
  %v572 = vpop.permute.xlu0 %571
  %vm573 = vcmask 458144
  %s574 = scalar_lea.vmem %s1, 32
  %575 = vst.msk [vmem:[%s574] sm:$0xff] %vm573, %v572
  %s576 = scalar_lea.vmem %s0, 141
  %s577 = smov 3
  %v578 = vld [vmem:[%s576] ss:$16 sm:%s577]
  %s579 = scalar_lea.vmem %s0, 141
  %s580 = smov 12
  %v581 = vld [vmem:[%s579] ss:$16 sm:%s580]
  %vm582 = vcmask 1043458
  %v583 = vsel %vm582, %v581, %v578
  %s584 = scalar_lea.vmem %s0, 141
  %s585 = smov 48
  %v586 = vld [vmem:[%s584] ss:$16 sm:%s585]
  %vm587 = vcmask 1045508
  %v588 = vsel %vm587, %v586, %v583
  %s589 = scalar_lea.vmem %s0, 141
  %s590 = smov 192
  %v591 = vld [vmem:[%s589] ss:$16 sm:%s590]
  %vm592 = vcmask 1047558
  %v593 = vsel %vm592, %v591, %v588
  %594 = vrot.lane.b32.xlu0 %v593, 52
  %v595 = vpop.permute.xlu0 %594
  %vm596 = vcmask 458144
  %s597 = scalar_lea.vmem %s1, 8
  %598 = vst.msk [vmem:[%s597] sm:$0xff] %vm596, %v595
  %s599 = scalar_lea.vmem %s0, 653
  %s600 = smov 3
  %v601 = vld [vmem:[%s599] ss:$16 sm:%s600]
  %s602 = scalar_lea.vmem %s0, 653
  %s603 = smov 12
  %v604 = vld [vmem:[%s602] ss:$16 sm:%s603]
  %vm605 = vcmask 1043458
  %v606 = vsel %vm605, %v604, %v601
  %s607 = scalar_lea.vmem %s0, 653
  %s608 = smov 48
  %v609 = vld [vmem:[%s607] ss:$16 sm:%s608]
  %vm610 = vcmask 1045508
  %v611 = vsel %vm610, %v609, %v606
  %s612 = scalar_lea.vmem %s0, 653
  %s613 = smov 192
  %v614 = vld [vmem:[%s612] ss:$16 sm:%s613]
  %vm615 = vcmask 1047558
  %v616 = vsel %vm615, %v614, %v611
  %617 = vrot.lane.b32.xlu0 %v616, 52
  %v618 = vpop.permute.xlu0 %617
  %vm619 = vcmask 458144
  %s620 = scalar_lea.vmem %s1, 40
  %621 = vst.msk [vmem:[%s620] sm:$0xff] %vm619, %v618
  %s622 = scalar_lea.vmem %s0, 269
  %s623 = smov 3
  %v624 = vld [vmem:[%s622] ss:$16 sm:%s623]
  %s625 = scalar_lea.vmem %s0, 269
  %s626 = smov 12
  %v627 = vld [vmem:[%s625] ss:$16 sm:%s626]
  %vm628 = vcmask 1043458
  %v629 = vsel %vm628, %v627, %v624
  %s630 = scalar_lea.vmem %s0, 269
  %s631 = smov 48
  %v632 = vld [vmem:[%s630] ss:$16 sm:%s631]
  %vm633 = vcmask 1045508
  %v634 = vsel %vm633, %v632, %v629
  %s635 = scalar_lea.vmem %s0, 269
  %s636 = smov 192
  %v637 = vld [vmem:[%s635] ss:$16 sm:%s636]
  %vm638 = vcmask 1047558
  %v639 = vsel %vm638, %v637, %v634
  %640 = vrot.lane.b32.xlu0 %v639, 52
  %v641 = vpop.permute.xlu0 %640
  %vm642 = vcmask 458144
  %s643 = scalar_lea.vmem %s1, 16
  %644 = vst.msk [vmem:[%s643] sm:$0xff] %vm642, %v641
  %s645 = scalar_lea.vmem %s0, 781
  %s646 = smov 3
  %v647 = vld [vmem:[%s645] ss:$16 sm:%s646]
  %s648 = scalar_lea.vmem %s0, 781
  %s649 = smov 12
  %v650 = vld [vmem:[%s648] ss:$16 sm:%s649]
  %vm651 = vcmask 1043458
  %v652 = vsel %vm651, %v650, %v647
  %s653 = scalar_lea.vmem %s0, 781
  %s654 = smov 48
  %v655 = vld [vmem:[%s653] ss:$16 sm:%s654]
  %vm656 = vcmask 1045508
  %v657 = vsel %vm656, %v655, %v652
  %s658 = scalar_lea.vmem %s0, 781
  %s659 = smov 192
  %v660 = vld [vmem:[%s658] ss:$16 sm:%s659]
  %vm661 = vcmask 1047558
  %v662 = vsel %vm661, %v660, %v657
  %663 = vrot.lane.b32.xlu0 %v662, 52
  %v664 = vpop.permute.xlu0 %663
  %vm665 = vcmask 458144
  %s666 = scalar_lea.vmem %s1, 48
  %667 = vst.msk [vmem:[%s666] sm:$0xff] %vm665, %v664
  %s668 = scalar_lea.vmem %s0, 397
  %s669 = smov 3
  %v670 = vld [vmem:[%s668] ss:$16 sm:%s669]
  %s671 = scalar_lea.vmem %s0, 397
  %s672 = smov 12
  %v673 = vld [vmem:[%s671] ss:$16 sm:%s672]
  %vm674 = vcmask 1043458
  %v675 = vsel %vm674, %v673, %v670
  %s676 = scalar_lea.vmem %s0, 397
  %s677 = smov 48
  %v678 = vld [vmem:[%s676] ss:$16 sm:%s677]
  %vm679 = vcmask 1045508
  %v680 = vsel %vm679, %v678, %v675
  %s681 = scalar_lea.vmem %s0, 397
  %s682 = smov 192
  %v683 = vld [vmem:[%s681] ss:$16 sm:%s682]
  %vm684 = vcmask 1047558
  %v685 = vsel %vm684, %v683, %v680
  %686 = vrot.lane.b32.xlu0 %v685, 52
  %v687 = vpop.permute.xlu0 %686
  %vm688 = vcmask 458144
  %s689 = scalar_lea.vmem %s1, 24
  %690 = vst.msk [vmem:[%s689] sm:$0xff] %vm688, %v687
  %s691 = scalar_lea.vmem %s0, 909
  %s692 = smov 3
  %v693 = vld [vmem:[%s691] ss:$16 sm:%s692]
  %s694 = scalar_lea.vmem %s0, 909
  %s695 = smov 12
  %v696 = vld [vmem:[%s694] ss:$16 sm:%s695]
  %vm697 = vcmask 1043458
  %v698 = vsel %vm697, %v696, %v693
  %s699 = scalar_lea.vmem %s0, 909
  %s700 = smov 48
  %v701 = vld [vmem:[%s699] ss:$16 sm:%s700]
  %vm702 = vcmask 1045508
  %v703 = vsel %vm702, %v701, %v698
  %s704 = scalar_lea.vmem %s0, 909
  %s705 = smov 192
  %v706 = vld [vmem:[%s704] ss:$16 sm:%s705]
  %vm707 = vcmask 1047558
  %v708 = vsel %vm707, %v706, %v703
  %709 = vrot.lane.b32.xlu0 %v708, 52
  %v710 = vpop.permute.xlu0 %709
  %vm711 = vcmask 458144
  %s712 = scalar_lea.vmem %s1, 56
  %713 = vst.msk [vmem:[%s712] sm:$0xff] %vm711, %v710
  %s714 = scalar_lea.vmem %s0, 12
  %s715 = smov 3
  %v716 = vld [vmem:[%s714] ss:$16 sm:%s715]
  %s717 = scalar_lea.vmem %s0, 12
  %s718 = smov 12
  %v719 = vld [vmem:[%s717] ss:$16 sm:%s718]
  %vm720 = vcmask 1043458
  %v721 = vsel %vm720, %v719, %v716
  %s722 = scalar_lea.vmem %s0, 12
  %s723 = smov 48
  %v724 = vld [vmem:[%s722] ss:$16 sm:%s723]
  %vm725 = vcmask 1045508
  %v726 = vsel %vm725, %v724, %v721
  %s727 = scalar_lea.vmem %s0, 12
  %s728 = smov 192
  %v729 = vld [vmem:[%s727] ss:$16 sm:%s728]
  %vm730 = vcmask 1047558
  %v731 = vsel %vm730, %v729, %v726
  %732 = vrot.lane.b32.xlu0 %v731, 48
  %v733 = vpop.permute.xlu0 %732
  %vm734 = vcmask 425344
  %735 = vst.msk [vmem:[%s1] sm:$0xff] %vm734, %v733
  %s736 = scalar_lea.vmem %s0, 524
  %s737 = smov 3
  %v738 = vld [vmem:[%s736] ss:$16 sm:%s737]
  %s739 = scalar_lea.vmem %s0, 524
  %s740 = smov 12
  %v741 = vld [vmem:[%s739] ss:$16 sm:%s740]
  %vm742 = vcmask 1043458
  %v743 = vsel %vm742, %v741, %v738
  %s744 = scalar_lea.vmem %s0, 524
  %s745 = smov 48
  %v746 = vld [vmem:[%s744] ss:$16 sm:%s745]
  %vm747 = vcmask 1045508
  %v748 = vsel %vm747, %v746, %v743
  %s749 = scalar_lea.vmem %s0, 524
  %s750 = smov 192
  %v751 = vld [vmem:[%s749] ss:$16 sm:%s750]
  %vm752 = vcmask 1047558
  %v753 = vsel %vm752, %v751, %v748
  %754 = vrot.lane.b32.xlu0 %v753, 48
  %v755 = vpop.permute.xlu0 %754
  %vm756 = vcmask 425344
  %s757 = scalar_lea.vmem %s1, 32
  %758 = vst.msk [vmem:[%s757] sm:$0xff] %vm756, %v755
  %s759 = scalar_lea.vmem %s0, 140
  %s760 = smov 3
  %v761 = vld [vmem:[%s759] ss:$16 sm:%s760]
  %s762 = scalar_lea.vmem %s0, 140
  %s763 = smov 12
  %v764 = vld [vmem:[%s762] ss:$16 sm:%s763]
  %vm765 = vcmask 1043458
  %v766 = vsel %vm765, %v764, %v761
  %s767 = scalar_lea.vmem %s0, 140
  %s768 = smov 48
  %v769 = vld [vmem:[%s767] ss:$16 sm:%s768]
  %vm770 = vcmask 1045508
  %v771 = vsel %vm770, %v769, %v766
  %s772 = scalar_lea.vmem %s0, 140
  %s773 = smov 192
  %v774 = vld [vmem:[%s772] ss:$16 sm:%s773]
  %vm775 = vcmask 1047558
  %v776 = vsel %vm775, %v774, %v771
  %777 = vrot.lane.b32.xlu0 %v776, 48
  %v778 = vpop.permute.xlu0 %777
  %vm779 = vcmask 425344
  %s780 = scalar_lea.vmem %s1, 8
  %781 = vst.msk [vmem:[%s780] sm:$0xff] %vm779, %v778
  %s782 = scalar_lea.vmem %s0, 652
  %s783 = smov 3
  %v784 = vld [vmem:[%s782] ss:$16 sm:%s783]
  %s785 = scalar_lea.vmem %s0, 652
  %s786 = smov 12
  %v787 = vld [vmem:[%s785] ss:$16 sm:%s786]
  %vm788 = vcmask 1043458
  %v789 = vsel %vm788, %v787, %v784
  %s790 = scalar_lea.vmem %s0, 652
  %s791 = smov 48
  %v792 = vld [vmem:[%s790] ss:$16 sm:%s791]
  %vm793 = vcmask 1045508
  %v794 = vsel %vm793, %v792, %v789
  %s795 = scalar_lea.vmem %s0, 652
  %s796 = smov 192
  %v797 = vld [vmem:[%s795] ss:$16 sm:%s796]
  %vm798 = vcmask 1047558
  %v799 = vsel %vm798, %v797, %v794
  %800 = vrot.lane.b32.xlu0 %v799, 48
  %v801 = vpop.permute.xlu0 %800
  %vm802 = vcmask 425344
  %s803 = scalar_lea.vmem %s1, 40
  %804 = vst.msk [vmem:[%s803] sm:$0xff] %vm802, %v801
  %s805 = scalar_lea.vmem %s0, 268
  %s806 = smov 3
  %v807 = vld [vmem:[%s805] ss:$16 sm:%s806]
  %s808 = scalar_lea.vmem %s0, 268
  %s809 = smov 12
  %v810 = vld [vmem:[%s808] ss:$16 sm:%s809]
  %vm811 = vcmask 1043458
  %v812 = vsel %vm811, %v810, %v807
  %s813 = scalar_lea.vmem %s0, 268
  %s814 = smov 48
  %v815 = vld [vmem:[%s813] ss:$16 sm:%s814]
  %vm816 = vcmask 1045508
  %v817 = vsel %vm816, %v815, %v812
  %s818 = scalar_lea.vmem %s0, 268
  %s819 = smov 192
  %v820 = vld [vmem:[%s818] ss:$16 sm:%s819]
  %vm821 = vcmask 1047558
  %v822 = vsel %vm821, %v820, %v817
  %823 = vrot.lane.b32.xlu0 %v822, 48
  %v824 = vpop.permute.xlu0 %823
  %vm825 = vcmask 425344
  %s826 = scalar_lea.vmem %s1, 16
  %827 = vst.msk [vmem:[%s826] sm:$0xff] %vm825, %v824
  %s828 = scalar_lea.vmem %s0, 780
  %s829 = smov 3
  %v830 = vld [vmem:[%s828] ss:$16 sm:%s829]
  %s831 = scalar_lea.vmem %s0, 780
  %s832 = smov 12
  %v833 = vld [vmem:[%s831] ss:$16 sm:%s832]
  %vm834 = vcmask 1043458
  %v835 = vsel %vm834, %v833, %v830
  %s836 = scalar_lea.vmem %s0, 780
  %s837 = smov 48
  %v838 = vld [vmem:[%s836] ss:$16 sm:%s837]
  %vm839 = vcmask 1045508
  %v840 = vsel %vm839, %v838, %v835
  %s841 = scalar_lea.vmem %s0, 780
  %s842 = smov 192
  %v843 = vld [vmem:[%s841] ss:$16 sm:%s842]
  %vm844 = vcmask 1047558
  %v845 = vsel %vm844, %v843, %v840
  %846 = vrot.lane.b32.xlu0 %v845, 48
  %v847 = vpop.permute.xlu0 %846
  %vm848 = vcmask 425344
  %s849 = scalar_lea.vmem %s1, 48
  %850 = vst.msk [vmem:[%s849] sm:$0xff] %vm848, %v847
  %s851 = scalar_lea.vmem %s0, 396
  %s852 = smov 3
  %v853 = vld [vmem:[%s851] ss:$16 sm:%s852]
  %s854 = scalar_lea.vmem %s0, 396
  %s855 = smov 12
  %v856 = vld [vmem:[%s854] ss:$16 sm:%s855]
  %vm857 = vcmask 1043458
  %v858 = vsel %vm857, %v856, %v853
  %s859 = scalar_lea.vmem %s0, 396
  %s860 = smov 48
  %v861 = vld [vmem:[%s859] ss:$16 sm:%s860]
  %vm862 = vcmask 1045508
  %v863 = vsel %vm862, %v861, %v858
  %s864 = scalar_lea.vmem %s0, 396
  %s865 = smov 192
  %v866 = vld [vmem:[%s864] ss:$16 sm:%s865]
  %vm867 = vcmask 1047558
  %v868 = vsel %vm867, %v866, %v863
  %869 = vrot.lane.b32.xlu0 %v868, 48
  %v870 = vpop.permute.xlu0 %869
  %vm871 = vcmask 425344
  %s872 = scalar_lea.vmem %s1, 24
  %873 = vst.msk [vmem:[%s872] sm:$0xff] %vm871, %v870
  %s874 = scalar_lea.vmem %s0, 908
  %s875 = smov 3
  %v876 = vld [vmem:[%s874] ss:$16 sm:%s875]
  %s877 = scalar_lea.vmem %s0, 908
  %s878 = smov 12
  %v879 = vld [vmem:[%s877] ss:$16 sm:%s878]
  %vm880 = vcmask 1043458
  %v881 = vsel %vm880, %v879, %v876
  %s882 = scalar_lea.vmem %s0, 908
  %s883 = smov 48
  %v884 = vld [vmem:[%s882] ss:$16 sm:%s883]
  %vm885 = vcmask 1045508
  %v886 = vsel %vm885, %v884, %v881
  %s887 = scalar_lea.vmem %s0, 908
  %s888 = smov 192
  %v889 = vld [vmem:[%s887] ss:$16 sm:%s888]
  %vm890 = vcmask 1047558
  %v891 = vsel %vm890, %v889, %v886
  %892 = vrot.lane.b32.xlu0 %v891, 48
  %v893 = vpop.permute.xlu0 %892
  %vm894 = vcmask 425344
  %s895 = scalar_lea.vmem %s1, 56
  %896 = vst.msk [vmem:[%s895] sm:$0xff] %vm894, %v893
  %s897 = scalar_lea.vmem %s0, 11
  %s898 = smov 3
  %v899 = vld [vmem:[%s897] ss:$16 sm:%s898]
  %s900 = scalar_lea.vmem %s0, 11
  %s901 = smov 12
  %v902 = vld [vmem:[%s900] ss:$16 sm:%s901]
  %vm903 = vcmask 1043458
  %v904 = vsel %vm903, %v902, %v899
  %s905 = scalar_lea.vmem %s0, 11
  %s906 = smov 48
  %v907 = vld [vmem:[%s905] ss:$16 sm:%s906]
  %vm908 = vcmask 1045508
  %v909 = vsel %vm908, %v907, %v904
  %s910 = scalar_lea.vmem %s0, 11
  %s911 = smov 192
  %v912 = vld [vmem:[%s910] ss:$16 sm:%s911]
  %vm913 = vcmask 1047558
  %v914 = vsel %vm913, %v912, %v909
  %915 = vrot.lane.b32.xlu0 %v914, 44
  %v916 = vpop.permute.xlu0 %915
  %vm917 = vcmask 392544
  %918 = vst.msk [vmem:[%s1] sm:$0xff] %vm917, %v916
  %s919 = scalar_lea.vmem %s0, 523
  %s920 = smov 3
  %v921 = vld [vmem:[%s919] ss:$16 sm:%s920]
  %s922 = scalar_lea.vmem %s0, 523
  %s923 = smov 12
  %v924 = vld [vmem:[%s922] ss:$16 sm:%s923]
  %vm925 = vcmask 1043458
  %v926 = vsel %vm925, %v924, %v921
  %s927 = scalar_lea.vmem %s0, 523
  %s928 = smov 48
  %v929 = vld [vmem:[%s927] ss:$16 sm:%s928]
  %vm930 = vcmask 1045508
  %v931 = vsel %vm930, %v929, %v926
  %s932 = scalar_lea.vmem %s0, 523
  %s933 = smov 192
  %v934 = vld [vmem:[%s932] ss:$16 sm:%s933]
  %vm935 = vcmask 1047558
  %v936 = vsel %vm935, %v934, %v931
  %937 = vrot.lane.b32.xlu0 %v936, 44
  %v938 = vpop.permute.xlu0 %937
  %vm939 = vcmask 392544
  %s940 = scalar_lea.vmem %s1, 32
  %941 = vst.msk [vmem:[%s940] sm:$0xff] %vm939, %v938
  %s942 = scalar_lea.vmem %s0, 139
  %s943 = smov 3
  %v944 = vld [vmem:[%s942] ss:$16 sm:%s943]
  %s945 = scalar_lea.vmem %s0, 139
  %s946 = smov 12
  %v947 = vld [vmem:[%s945] ss:$16 sm:%s946]
  %vm948 = vcmask 1043458
  %v949 = vsel %vm948, %v947, %v944
  %s950 = scalar_lea.vmem %s0, 139
  %s951 = smov 48
  %v952 = vld [vmem:[%s950] ss:$16 sm:%s951]
  %vm953 = vcmask 1045508
  %v954 = vsel %vm953, %v952, %v949
  %s955 = scalar_lea.vmem %s0, 139
  %s956 = smov 192
  %v957 = vld [vmem:[%s955] ss:$16 sm:%s956]
  %vm958 = vcmask 1047558
  %v959 = vsel %vm958, %v957, %v954
  %960 = vrot.lane.b32.xlu0 %v959, 44
  %v961 = vpop.permute.xlu0 %960
  %vm962 = vcmask 392544
  %s963 = scalar_lea.vmem %s1, 8
  %964 = vst.msk [vmem:[%s963] sm:$0xff] %vm962, %v961
  %s965 = scalar_lea.vmem %s0, 651
  %s966 = smov 3
  %v967 = vld [vmem:[%s965] ss:$16 sm:%s966]
  %s968 = scalar_lea.vmem %s0, 651
  %s969 = smov 12
  %v970 = vld [vmem:[%s968] ss:$16 sm:%s969]
  %vm971 = vcmask 1043458
  %v972 = vsel %vm971, %v970, %v967
  %s973 = scalar_lea.vmem %s0, 651
  %s974 = smov 48
  %v975 = vld [vmem:[%s973] ss:$16 sm:%s974]
  %vm976 = vcmask 1045508
  %v977 = vsel %vm976, %v975, %v972
  %s978 = scalar_lea.vmem %s0, 651
  %s979 = smov 192
  %v980 = vld [vmem:[%s978] ss:$16 sm:%s979]
  %vm981 = vcmask 1047558
  %v982 = vsel %vm981, %v980, %v977
  %983 = vrot.lane.b32.xlu0 %v982, 44
  %v984 = vpop.permute.xlu0 %983
  %vm985 = vcmask 392544
  %s986 = scalar_lea.vmem %s1, 40
  %987 = vst.msk [vmem:[%s986] sm:$0xff] %vm985, %v984
  %s988 = scalar_lea.vmem %s0, 267
  %s989 = smov 3
  %v990 = vld [vmem:[%s988] ss:$16 sm:%s989]
  %s991 = scalar_lea.vmem %s0, 267
  %s992 = smov 12
  %v993 = vld [vmem:[%s991] ss:$16 sm:%s992]
  %vm994 = vcmask 1043458
  %v995 = vsel %vm994, %v993, %v990
  %s996 = scalar_lea.vmem %s0, 267
  %s997 = smov 48
  %v998 = vld [vmem:[%s996] ss:$16 sm:%s997]
  %vm999 = vcmask 1045508
  %v1000 = vsel %vm999, %v998, %v995
  %s1001 = scalar_lea.vmem %s0, 267
  %s1002 = smov 192
  %v1003 = vld [vmem:[%s1001] ss:$16 sm:%s1002]
  %vm1004 = vcmask 1047558
  %v1005 = vsel %vm1004, %v1003, %v1000
  %1006 = vrot.lane.b32.xlu0 %v1005, 44
  %v1007 = vpop.permute.xlu0 %1006
  %vm1008 = vcmask 392544
  %s1009 = scalar_lea.vmem %s1, 16
  %1010 = vst.msk [vmem:[%s1009] sm:$0xff] %vm1008, %v1007
  %s1011 = scalar_lea.vmem %s0, 779
  %s1012 = smov 3
  %v1013 = vld [vmem:[%s1011] ss:$16 sm:%s1012]
  %s1014 = scalar_lea.vmem %s0, 779
  %s1015 = smov 12
  %v1016 = vld [vmem:[%s1014] ss:$16 sm:%s1015]
  %vm1017 = vcmask 1043458
  %v1018 = vsel %vm1017, %v1016, %v1013
  %s1019 = scalar_lea.vmem %s0, 779
  %s1020 = smov 48
  %v1021 = vld [vmem:[%s1019] ss:$16 sm:%s1020]
  %vm1022 = vcmask 1045508
  %v1023 = vsel %vm1022, %v1021, %v1018
  %s1024 = scalar_lea.vmem %s0, 779
  %s1025 = smov 192
  %v1026 = vld [vmem:[%s1024] ss:$16 sm:%s1025]
  %vm1027 = vcmask 1047558
  %v1028 = vsel %vm1027, %v1026, %v1023
  %1029 = vrot.lane.b32.xlu0 %v1028, 44
  %v1030 = vpop.permute.xlu0 %1029
  %vm1031 = vcmask 392544
  %s1032 = scalar_lea.vmem %s1, 48
  %1033 = vst.msk [vmem:[%s1032] sm:$0xff] %vm1031, %v1030
  %s1034 = scalar_lea.vmem %s0, 395
  %s1035 = smov 3
  %v1036 = vld [vmem:[%s1034] ss:$16 sm:%s1035]
  %s1037 = scalar_lea.vmem %s0, 395
  %s1038 = smov 12
  %v1039 = vld [vmem:[%s1037] ss:$16 sm:%s1038]
  %vm1040 = vcmask 1043458
  %v1041 = vsel %vm1040, %v1039, %v1036
  %s1042 = scalar_lea.vmem %s0, 395
  %s1043 = smov 48
  %v1044 = vld [vmem:[%s1042] ss:$16 sm:%s1043]
  %vm1045 = vcmask 1045508
  %v1046 = vsel %vm1045, %v1044, %v1041
  %s1047 = scalar_lea.vmem %s0, 395
  %s1048 = smov 192
  %v1049 = vld [vmem:[%s1047] ss:$16 sm:%s1048]
  %vm1050 = vcmask 1047558
  %v1051 = vsel %vm1050, %v1049, %v1046
  %1052 = vrot.lane.b32.xlu0 %v1051, 44
  %v1053 = vpop.permute.xlu0 %1052
  %vm1054 = vcmask 392544
  %s1055 = scalar_lea.vmem %s1, 24
  %1056 = vst.msk [vmem:[%s1055] sm:$0xff] %vm1054, %v1053
  %s1057 = scalar_lea.vmem %s0, 907
  %s1058 = smov 3
  %v1059 = vld [vmem:[%s1057] ss:$16 sm:%s1058]
  %s1060 = scalar_lea.vmem %s0, 907
  %s1061 = smov 12
  %v1062 = vld [vmem:[%s1060] ss:$16 sm:%s1061]
  %vm1063 = vcmask 1043458
  %v1064 = vsel %vm1063, %v1062, %v1059
  %s1065 = scalar_lea.vmem %s0, 907
  %s1066 = smov 48
  %v1067 = vld [vmem:[%s1065] ss:$16 sm:%s1066]
  %vm1068 = vcmask 1045508
  %v1069 = vsel %vm1068, %v1067, %v1064
  %s1070 = scalar_lea.vmem %s0, 907
  %s1071 = smov 192
  %v1072 = vld [vmem:[%s1070] ss:$16 sm:%s1071]
  %vm1073 = vcmask 1047558
  %v1074 = vsel %vm1073, %v1072, %v1069
  %1075 = vrot.lane.b32.xlu0 %v1074, 44
  %v1076 = vpop.permute.xlu0 %1075
  %vm1077 = vcmask 392544
  %s1078 = scalar_lea.vmem %s1, 56
  %1079 = vst.msk [vmem:[%s1078] sm:$0xff] %vm1077, %v1076
  %s1080 = scalar_lea.vmem %s0, 10
  %s1081 = smov 3
  %v1082 = vld [vmem:[%s1080] ss:$16 sm:%s1081]
  %s1083 = scalar_lea.vmem %s0, 10
  %s1084 = smov 12
  %v1085 = vld [vmem:[%s1083] ss:$16 sm:%s1084]
  %vm1086 = vcmask 1043458
  %v1087 = vsel %vm1086, %v1085, %v1082
  %s1088 = scalar_lea.vmem %s0, 10
  %s1089 = smov 48
  %v1090 = vld [vmem:[%s1088] ss:$16 sm:%s1089]
  %vm1091 = vcmask 1045508
  %v1092 = vsel %vm1091, %v1090, %v1087
  %s1093 = scalar_lea.vmem %s0, 10
  %s1094 = smov 192
  %v1095 = vld [vmem:[%s1093] ss:$16 sm:%s1094]
  %vm1096 = vcmask 1047558
  %v1097 = vsel %vm1096, %v1095, %v1092
  %1098 = vrot.lane.b32.xlu0 %v1097, 40
  %v1099 = vpop.permute.xlu0 %1098
  %vm1100 = vcmask 359744
  %1101 = vst.msk [vmem:[%s1] sm:$0xff] %vm1100, %v1099
  %s1102 = scalar_lea.vmem %s0, 522
  %s1103 = smov 3
  %v1104 = vld [vmem:[%s1102] ss:$16 sm:%s1103]
  %s1105 = scalar_lea.vmem %s0, 522
  %s1106 = smov 12
  %v1107 = vld [vmem:[%s1105] ss:$16 sm:%s1106]
  %vm1108 = vcmask 1043458
  %v1109 = vsel %vm1108, %v1107, %v1104
  %s1110 = scalar_lea.vmem %s0, 522
  %s1111 = smov 48
  %v1112 = vld [vmem:[%s1110] ss:$16 sm:%s1111]
  %vm1113 = vcmask 1045508
  %v1114 = vsel %vm1113, %v1112, %v1109
  %s1115 = scalar_lea.vmem %s0, 522
  %s1116 = smov 192
  %v1117 = vld [vmem:[%s1115] ss:$16 sm:%s1116]
  %vm1118 = vcmask 1047558
  %v1119 = vsel %vm1118, %v1117, %v1114
  %1120 = vrot.lane.b32.xlu0 %v1119, 40
  %v1121 = vpop.permute.xlu0 %1120
  %vm1122 = vcmask 359744
  %s1123 = scalar_lea.vmem %s1, 32
  %1124 = vst.msk [vmem:[%s1123] sm:$0xff] %vm1122, %v1121
  %s1125 = scalar_lea.vmem %s0, 138
  %s1126 = smov 3
  %v1127 = vld [vmem:[%s1125] ss:$16 sm:%s1126]
  %s1128 = scalar_lea.vmem %s0, 138
  %s1129 = smov 12
  %v1130 = vld [vmem:[%s1128] ss:$16 sm:%s1129]
  %vm1131 = vcmask 1043458
  %v1132 = vsel %vm1131, %v1130, %v1127
  %s1133 = scalar_lea.vmem %s0, 138
  %s1134 = smov 48
  %v1135 = vld [vmem:[%s1133] ss:$16 sm:%s1134]
  %vm1136 = vcmask 1045508
  %v1137 = vsel %vm1136, %v1135, %v1132
  %s1138 = scalar_lea.vmem %s0, 138
  %s1139 = smov 192
  %v1140 = vld [vmem:[%s1138] ss:$16 sm:%s1139]
  %vm1141 = vcmask 1047558
  %v1142 = vsel %vm1141, %v1140, %v1137
  %1143 = vrot.lane.b32.xlu0 %v1142, 40
  %v1144 = vpop.permute.xlu0 %1143
  %vm1145 = vcmask 359744
  %s1146 = scalar_lea.vmem %s1, 8
  %1147 = vst.msk [vmem:[%s1146] sm:$0xff] %vm1145, %v1144
  %s1148 = scalar_lea.vmem %s0, 650
  %s1149 = smov 3
  %v1150 = vld [vmem:[%s1148] ss:$16 sm:%s1149]
  %s1151 = scalar_lea.vmem %s0, 650
  %s1152 = smov 12
  %v1153 = vld [vmem:[%s1151] ss:$16 sm:%s1152]
  %vm1154 = vcmask 1043458
  %v1155 = vsel %vm1154, %v1153, %v1150
  %s1156 = scalar_lea.vmem %s0, 650
  %s1157 = smov 48
  %v1158 = vld [vmem:[%s1156] ss:$16 sm:%s1157]
  %vm1159 = vcmask 1045508
  %v1160 = vsel %vm1159, %v1158, %v1155
  %s1161 = scalar_lea.vmem %s0, 650
  %s1162 = smov 192
  %v1163 = vld [vmem:[%s1161] ss:$16 sm:%s1162]
  %vm1164 = vcmask 1047558
  %v1165 = vsel %vm1164, %v1163, %v1160
  %1166 = vrot.lane.b32.xlu0 %v1165, 40
  %v1167 = vpop.permute.xlu0 %1166
  %vm1168 = vcmask 359744
  %s1169 = scalar_lea.vmem %s1, 40
  %1170 = vst.msk [vmem:[%s1169] sm:$0xff] %vm1168, %v1167
  %s1171 = scalar_lea.vmem %s0, 266
  %s1172 = smov 3
  %v1173 = vld [vmem:[%s1171] ss:$16 sm:%s1172]
  %s1174 = scalar_lea.vmem %s0, 266
  %s1175 = smov 12
  %v1176 = vld [vmem:[%s1174] ss:$16 sm:%s1175]
  %vm1177 = vcmask 1043458
  %v1178 = vsel %vm1177, %v1176, %v1173
  %s1179 = scalar_lea.vmem %s0, 266
  %s1180 = smov 48
  %v1181 = vld [vmem:[%s1179] ss:$16 sm:%s1180]
  %vm1182 = vcmask 1045508
  %v1183 = vsel %vm1182, %v1181, %v1178
  %s1184 = scalar_lea.vmem %s0, 266
  %s1185 = smov 192
  %v1186 = vld [vmem:[%s1184] ss:$16 sm:%s1185]
  %vm1187 = vcmask 1047558
  %v1188 = vsel %vm1187, %v1186, %v1183
  %1189 = vrot.lane.b32.xlu0 %v1188, 40
  %v1190 = vpop.permute.xlu0 %1189
  %vm1191 = vcmask 359744
  %s1192 = scalar_lea.vmem %s1, 16
  %1193 = vst.msk [vmem:[%s1192] sm:$0xff] %vm1191, %v1190
  %s1194 = scalar_lea.vmem %s0, 778
  %s1195 = smov 3
  %v1196 = vld [vmem:[%s1194] ss:$16 sm:%s1195]
  %s1197 = scalar_lea.vmem %s0, 778
  %s1198 = smov 12
  %v1199 = vld [vmem:[%s1197] ss:$16 sm:%s1198]
  %vm1200 = vcmask 1043458
  %v1201 = vsel %vm1200, %v1199, %v1196
  %s1202 = scalar_lea.vmem %s0, 778
  %s1203 = smov 48
  %v1204 = vld [vmem:[%s1202] ss:$16 sm:%s1203]
  %vm1205 = vcmask 1045508
  %v1206 = vsel %vm1205, %v1204, %v1201
  %s1207 = scalar_lea.vmem %s0, 778
  %s1208 = smov 192
  %v1209 = vld [vmem:[%s1207] ss:$16 sm:%s1208]
  %vm1210 = vcmask 1047558
  %v1211 = vsel %vm1210, %v1209, %v1206
  %1212 = vrot.lane.b32.xlu0 %v1211, 40
  %v1213 = vpop.permute.xlu0 %1212
  %vm1214 = vcmask 359744
  %s1215 = scalar_lea.vmem %s1, 48
  %1216 = vst.msk [vmem:[%s1215] sm:$0xff] %vm1214, %v1213
  %s1217 = scalar_lea.vmem %s0, 394
  %s1218 = smov 3
  %v1219 = vld [vmem:[%s1217] ss:$16 sm:%s1218]
  %s1220 = scalar_lea.vmem %s0, 394
  %s1221 = smov 12
  %v1222 = vld [vmem:[%s1220] ss:$16 sm:%s1221]
  %vm1223 = vcmask 1043458
  %v1224 = vsel %vm1223, %v1222, %v1219
  %s1225 = scalar_lea.vmem %s0, 394
  %s1226 = smov 48
  %v1227 = vld [vmem:[%s1225] ss:$16 sm:%s1226]
  %vm1228 = vcmask 1045508
  %v1229 = vsel %vm1228, %v1227, %v1224
  %s1230 = scalar_lea.vmem %s0, 394
  %s1231 = smov 192
  %v1232 = vld [vmem:[%s1230] ss:$16 sm:%s1231]
  %vm1233 = vcmask 1047558
  %v1234 = vsel %vm1233, %v1232, %v1229
  %1235 = vrot.lane.b32.xlu0 %v1234, 40
  %v1236 = vpop.permute.xlu0 %1235
  %vm1237 = vcmask 359744
  %s1238 = scalar_lea.vmem %s1, 24
  %1239 = vst.msk [vmem:[%s1238] sm:$0xff] %vm1237, %v1236
  %s1240 = scalar_lea.vmem %s0, 906
  %s1241 = smov 3
  %v1242 = vld [vmem:[%s1240] ss:$16 sm:%s1241]
  %s1243 = scalar_lea.vmem %s0, 906
  %s1244 = smov 12
  %v1245 = vld [vmem:[%s1243] ss:$16 sm:%s1244]
  %vm1246 = vcmask 1043458
  %v1247 = vsel %vm1246, %v1245, %v1242
  %s1248 = scalar_lea.vmem %s0, 906
  %s1249 = smov 48
  %v1250 = vld [vmem:[%s1248] ss:$16 sm:%s1249]
  %vm1251 = vcmask 1045508
  %v1252 = vsel %vm1251, %v1250, %v1247
  %s1253 = scalar_lea.vmem %s0, 906
  %s1254 = smov 192
  %v1255 = vld [vmem:[%s1253] ss:$16 sm:%s1254]
  %vm1256 = vcmask 1047558
  %v1257 = vsel %vm1256, %v1255, %v1252
  %1258 = vrot.lane.b32.xlu0 %v1257, 40
  %v1259 = vpop.permute.xlu0 %1258
  %vm1260 = vcmask 359744
  %s1261 = scalar_lea.vmem %s1, 56
  %1262 = vst.msk [vmem:[%s1261] sm:$0xff] %vm1260, %v1259
  %s1263 = scalar_lea.vmem %s0, 9
  %s1264 = smov 3
  %v1265 = vld [vmem:[%s1263] ss:$16 sm:%s1264]
  %s1266 = scalar_lea.vmem %s0, 9
  %s1267 = smov 12
  %v1268 = vld [vmem:[%s1266] ss:$16 sm:%s1267]
  %vm1269 = vcmask 1043458
  %v1270 = vsel %vm1269, %v1268, %v1265
  %s1271 = scalar_lea.vmem %s0, 9
  %s1272 = smov 48
  %v1273 = vld [vmem:[%s1271] ss:$16 sm:%s1272]
  %vm1274 = vcmask 1045508
  %v1275 = vsel %vm1274, %v1273, %v1270
  %s1276 = scalar_lea.vmem %s0, 9
  %s1277 = smov 192
  %v1278 = vld [vmem:[%s1276] ss:$16 sm:%s1277]
  %vm1279 = vcmask 1047558
  %v1280 = vsel %vm1279, %v1278, %v1275
  %1281 = vrot.lane.b32.xlu0 %v1280, 36
  %v1282 = vpop.permute.xlu0 %1281
  %vm1283 = vcmask 326944
  %1284 = vst.msk [vmem:[%s1] sm:$0xff] %vm1283, %v1282
  %s1285 = scalar_lea.vmem %s0, 521
  %s1286 = smov 3
  %v1287 = vld [vmem:[%s1285] ss:$16 sm:%s1286]
  %s1288 = scalar_lea.vmem %s0, 521
  %s1289 = smov 12
  %v1290 = vld [vmem:[%s1288] ss:$16 sm:%s1289]
  %vm1291 = vcmask 1043458
  %v1292 = vsel %vm1291, %v1290, %v1287
  %s1293 = scalar_lea.vmem %s0, 521
  %s1294 = smov 48
  %v1295 = vld [vmem:[%s1293] ss:$16 sm:%s1294]
  %vm1296 = vcmask 1045508
  %v1297 = vsel %vm1296, %v1295, %v1292
  %s1298 = scalar_lea.vmem %s0, 521
  %s1299 = smov 192
  %v1300 = vld [vmem:[%s1298] ss:$16 sm:%s1299]
  %vm1301 = vcmask 1047558
  %v1302 = vsel %vm1301, %v1300, %v1297
  %1303 = vrot.lane.b32.xlu0 %v1302, 36
  %v1304 = vpop.permute.xlu0 %1303
  %vm1305 = vcmask 326944
  %s1306 = scalar_lea.vmem %s1, 32
  %1307 = vst.msk [vmem:[%s1306] sm:$0xff] %vm1305, %v1304
  %s1308 = scalar_lea.vmem %s0, 137
  %s1309 = smov 3
  %v1310 = vld [vmem:[%s1308] ss:$16 sm:%s1309]
  %s1311 = scalar_lea.vmem %s0, 137
  %s1312 = smov 12
  %v1313 = vld [vmem:[%s1311] ss:$16 sm:%s1312]
  %vm1314 = vcmask 1043458
  %v1315 = vsel %vm1314, %v1313, %v1310
  %s1316 = scalar_lea.vmem %s0, 137
  %s1317 = smov 48
  %v1318 = vld [vmem:[%s1316] ss:$16 sm:%s1317]
  %vm1319 = vcmask 1045508
  %v1320 = vsel %vm1319, %v1318, %v1315
  %s1321 = scalar_lea.vmem %s0, 137
  %s1322 = smov 192
  %v1323 = vld [vmem:[%s1321] ss:$16 sm:%s1322]
  %vm1324 = vcmask 1047558
  %v1325 = vsel %vm1324, %v1323, %v1320
  %1326 = vrot.lane.b32.xlu0 %v1325, 36
  %v1327 = vpop.permute.xlu0 %1326
  %vm1328 = vcmask 326944
  %s1329 = scalar_lea.vmem %s1, 8
  %1330 = vst.msk [vmem:[%s1329] sm:$0xff] %vm1328, %v1327
  %s1331 = scalar_lea.vmem %s0, 649
  %s1332 = smov 3
  %v1333 = vld [vmem:[%s1331] ss:$16 sm:%s1332]
  %s1334 = scalar_lea.vmem %s0, 649
  %s1335 = smov 12
  %v1336 = vld [vmem:[%s1334] ss:$16 sm:%s1335]
  %vm1337 = vcmask 1043458
  %v1338 = vsel %vm1337, %v1336, %v1333
  %s1339 = scalar_lea.vmem %s0, 649
  %s1340 = smov 48
  %v1341 = vld [vmem:[%s1339] ss:$16 sm:%s1340]
  %vm1342 = vcmask 1045508
  %v1343 = vsel %vm1342, %v1341, %v1338
  %s1344 = scalar_lea.vmem %s0, 649
  %s1345 = smov 192
  %v1346 = vld [vmem:[%s1344] ss:$16 sm:%s1345]
  %vm1347 = vcmask 1047558
  %v1348 = vsel %vm1347, %v1346, %v1343
  %1349 = vrot.lane.b32.xlu0 %v1348, 36
  %v1350 = vpop.permute.xlu0 %1349
  %vm1351 = vcmask 326944
  %s1352 = scalar_lea.vmem %s1, 40
  %1353 = vst.msk [vmem:[%s1352] sm:$0xff] %vm1351, %v1350
  %s1354 = scalar_lea.vmem %s0, 265
  %s1355 = smov 3
  %v1356 = vld [vmem:[%s1354] ss:$16 sm:%s1355]
  %s1357 = scalar_lea.vmem %s0, 265
  %s1358 = smov 12
  %v1359 = vld [vmem:[%s1357] ss:$16 sm:%s1358]
  %vm1360 = vcmask 1043458
  %v1361 = vsel %vm1360, %v1359, %v1356
  %s1362 = scalar_lea.vmem %s0, 265
  %s1363 = smov 48
  %v1364 = vld [vmem:[%s1362] ss:$16 sm:%s1363]
  %vm1365 = vcmask 1045508
  %v1366 = vsel %vm1365, %v1364, %v1361
  %s1367 = scalar_lea.vmem %s0, 265
  %s1368 = smov 192
  %v1369 = vld [vmem:[%s1367] ss:$16 sm:%s1368]
  %vm1370 = vcmask 1047558
  %v1371 = vsel %vm1370, %v1369, %v1366
  %1372 = vrot.lane.b32.xlu0 %v1371, 36
  %v1373 = vpop.permute.xlu0 %1372
  %vm1374 = vcmask 326944
  %s1375 = scalar_lea.vmem %s1, 16
  %1376 = vst.msk [vmem:[%s1375] sm:$0xff] %vm1374, %v1373
  %s1377 = scalar_lea.vmem %s0, 777
  %s1378 = smov 3
  %v1379 = vld [vmem:[%s1377] ss:$16 sm:%s1378]
  %s1380 = scalar_lea.vmem %s0, 777
  %s1381 = smov 12
  %v1382 = vld [vmem:[%s1380] ss:$16 sm:%s1381]
  %vm1383 = vcmask 1043458
  %v1384 = vsel %vm1383, %v1382, %v1379
  %s1385 = scalar_lea.vmem %s0, 777
  %s1386 = smov 48
  %v1387 = vld [vmem:[%s1385] ss:$16 sm:%s1386]
  %vm1388 = vcmask 1045508
  %v1389 = vsel %vm1388, %v1387, %v1384
  %s1390 = scalar_lea.vmem %s0, 777
  %s1391 = smov 192
  %v1392 = vld [vmem:[%s1390] ss:$16 sm:%s1391]
  %vm1393 = vcmask 1047558
  %v1394 = vsel %vm1393, %v1392, %v1389
  %1395 = vrot.lane.b32.xlu0 %v1394, 36
  %v1396 = vpop.permute.xlu0 %1395
  %vm1397 = vcmask 326944
  %s1398 = scalar_lea.vmem %s1, 48
  %1399 = vst.msk [vmem:[%s1398] sm:$0xff] %vm1397, %v1396
  %s1400 = scalar_lea.vmem %s0, 393
  %s1401 = smov 3
  %v1402 = vld [vmem:[%s1400] ss:$16 sm:%s1401]
  %s1403 = scalar_lea.vmem %s0, 393
  %s1404 = smov 12
  %v1405 = vld [vmem:[%s1403] ss:$16 sm:%s1404]
  %vm1406 = vcmask 1043458
  %v1407 = vsel %vm1406, %v1405, %v1402
  %s1408 = scalar_lea.vmem %s0, 393
  %s1409 = smov 48
  %v1410 = vld [vmem:[%s1408] ss:$16 sm:%s1409]
  %vm1411 = vcmask 1045508
  %v1412 = vsel %vm1411, %v1410, %v1407
  %s1413 = scalar_lea.vmem %s0, 393
  %s1414 = smov 192
  %v1415 = vld [vmem:[%s1413] ss:$16 sm:%s1414]
  %vm1416 = vcmask 1047558
  %v1417 = vsel %vm1416, %v1415, %v1412
  %1418 = vrot.lane.b32.xlu0 %v1417, 36
  %v1419 = vpop.permute.xlu0 %1418
  %vm1420 = vcmask 326944
  %s1421 = scalar_lea.vmem %s1, 24
  %1422 = vst.msk [vmem:[%s1421] sm:$0xff] %vm1420, %v1419
  %s1423 = scalar_lea.vmem %s0, 905
  %s1424 = smov 3
  %v1425 = vld [vmem:[%s1423] ss:$16 sm:%s1424]
  %s1426 = scalar_lea.vmem %s0, 905
  %s1427 = smov 12
  %v1428 = vld [vmem:[%s1426] ss:$16 sm:%s1427]
  %vm1429 = vcmask 1043458
  %v1430 = vsel %vm1429, %v1428, %v1425
  %s1431 = scalar_lea.vmem %s0, 905
  %s1432 = smov 48
  %v1433 = vld [vmem:[%s1431] ss:$16 sm:%s1432]
  %vm1434 = vcmask 1045508
  %v1435 = vsel %vm1434, %v1433, %v1430
  %s1436 = scalar_lea.vmem %s0, 905
  %s1437 = smov 192
  %v1438 = vld [vmem:[%s1436] ss:$16 sm:%s1437]
  %vm1439 = vcmask 1047558
  %v1440 = vsel %vm1439, %v1438, %v1435
  %1441 = vrot.lane.b32.xlu0 %v1440, 36
  %v1442 = vpop.permute.xlu0 %1441
  %vm1443 = vcmask 326944
  %s1444 = scalar_lea.vmem %s1, 56
  %1445 = vst.msk [vmem:[%s1444] sm:$0xff] %vm1443, %v1442
  %s1446 = scalar_lea.vmem %s0, 8
  %s1447 = smov 3
  %v1448 = vld [vmem:[%s1446] ss:$16 sm:%s1447]
  %s1449 = scalar_lea.vmem %s0, 8
  %s1450 = smov 12
  %v1451 = vld [vmem:[%s1449] ss:$16 sm:%s1450]
  %vm1452 = vcmask 1043458
  %v1453 = vsel %vm1452, %v1451, %v1448
  %s1454 = scalar_lea.vmem %s0, 8
  %s1455 = smov 48
  %v1456 = vld [vmem:[%s1454] ss:$16 sm:%s1455]
  %vm1457 = vcmask 1045508
  %v1458 = vsel %vm1457, %v1456, %v1453
  %s1459 = scalar_lea.vmem %s0, 8
  %s1460 = smov 192
  %v1461 = vld [vmem:[%s1459] ss:$16 sm:%s1460]
  %vm1462 = vcmask 1047558
  %v1463 = vsel %vm1462, %v1461, %v1458
  %1464 = vrot.lane.b32.xlu0 %v1463, 32
  %v1465 = vpop.permute.xlu0 %1464
  %vm1466 = vcmask 294144
  %1467 = vst.msk [vmem:[%s1] sm:$0xff] %vm1466, %v1465
  %s1468 = scalar_lea.vmem %s0, 520
  %s1469 = smov 3
  %v1470 = vld [vmem:[%s1468] ss:$16 sm:%s1469]
  %s1471 = scalar_lea.vmem %s0, 520
  %s1472 = smov 12
  %v1473 = vld [vmem:[%s1471] ss:$16 sm:%s1472]
  %vm1474 = vcmask 1043458
  %v1475 = vsel %vm1474, %v1473, %v1470
  %s1476 = scalar_lea.vmem %s0, 520
  %s1477 = smov 48
  %v1478 = vld [vmem:[%s1476] ss:$16 sm:%s1477]
  %vm1479 = vcmask 1045508
  %v1480 = vsel %vm1479, %v1478, %v1475
  %s1481 = scalar_lea.vmem %s0, 520
  %s1482 = smov 192
  %v1483 = vld [vmem:[%s1481] ss:$16 sm:%s1482]
  %vm1484 = vcmask 1047558
  %v1485 = vsel %vm1484, %v1483, %v1480
  %1486 = vrot.lane.b32.xlu0 %v1485, 32
  %v1487 = vpop.permute.xlu0 %1486
  %vm1488 = vcmask 294144
  %s1489 = scalar_lea.vmem %s1, 32
  %1490 = vst.msk [vmem:[%s1489] sm:$0xff] %vm1488, %v1487
  %s1491 = scalar_lea.vmem %s0, 136
  %s1492 = smov 3
  %v1493 = vld [vmem:[%s1491] ss:$16 sm:%s1492]
  %s1494 = scalar_lea.vmem %s0, 136
  %s1495 = smov 12
  %v1496 = vld [vmem:[%s1494] ss:$16 sm:%s1495]
  %vm1497 = vcmask 1043458
  %v1498 = vsel %vm1497, %v1496, %v1493
  %s1499 = scalar_lea.vmem %s0, 136
  %s1500 = smov 48
  %v1501 = vld [vmem:[%s1499] ss:$16 sm:%s1500]
  %vm1502 = vcmask 1045508
  %v1503 = vsel %vm1502, %v1501, %v1498
  %s1504 = scalar_lea.vmem %s0, 136
  %s1505 = smov 192
  %v1506 = vld [vmem:[%s1504] ss:$16 sm:%s1505]
  %vm1507 = vcmask 1047558
  %v1508 = vsel %vm1507, %v1506, %v1503
  %1509 = vrot.lane.b32.xlu0 %v1508, 32
  %v1510 = vpop.permute.xlu0 %1509
  %vm1511 = vcmask 294144
  %s1512 = scalar_lea.vmem %s1, 8
  %1513 = vst.msk [vmem:[%s1512] sm:$0xff] %vm1511, %v1510
  %s1514 = scalar_lea.vmem %s0, 648
  %s1515 = smov 3
  %v1516 = vld [vmem:[%s1514] ss:$16 sm:%s1515]
  %s1517 = scalar_lea.vmem %s0, 648
  %s1518 = smov 12
  %v1519 = vld [vmem:[%s1517] ss:$16 sm:%s1518]
  %vm1520 = vcmask 1043458
  %v1521 = vsel %vm1520, %v1519, %v1516
  %s1522 = scalar_lea.vmem %s0, 648
  %s1523 = smov 48
  %v1524 = vld [vmem:[%s1522] ss:$16 sm:%s1523]
  %vm1525 = vcmask 1045508
  %v1526 = vsel %vm1525, %v1524, %v1521
  %s1527 = scalar_lea.vmem %s0, 648
  %s1528 = smov 192
  %v1529 = vld [vmem:[%s1527] ss:$16 sm:%s1528]
  %vm1530 = vcmask 1047558
  %v1531 = vsel %vm1530, %v1529, %v1526
  %1532 = vrot.lane.b32.xlu0 %v1531, 32
  %v1533 = vpop.permute.xlu0 %1532
  %vm1534 = vcmask 294144
  %s1535 = scalar_lea.vmem %s1, 40
  %1536 = vst.msk [vmem:[%s1535] sm:$0xff] %vm1534, %v1533
  %s1537 = scalar_lea.vmem %s0, 264
  %s1538 = smov 3
  %v1539 = vld [vmem:[%s1537] ss:$16 sm:%s1538]
  %s1540 = scalar_lea.vmem %s0, 264
  %s1541 = smov 12
  %v1542 = vld [vmem:[%s1540] ss:$16 sm:%s1541]
  %vm1543 = vcmask 1043458
  %v1544 = vsel %vm1543, %v1542, %v1539
  %s1545 = scalar_lea.vmem %s0, 264
  %s1546 = smov 48
  %v1547 = vld [vmem:[%s1545] ss:$16 sm:%s1546]
  %vm1548 = vcmask 1045508
  %v1549 = vsel %vm1548, %v1547, %v1544
  %s1550 = scalar_lea.vmem %s0, 264
  %s1551 = smov 192
  %v1552 = vld [vmem:[%s1550] ss:$16 sm:%s1551]
  %vm1553 = vcmask 1047558
  %v1554 = vsel %vm1553, %v1552, %v1549
  %1555 = vrot.lane.b32.xlu0 %v1554, 32
  %v1556 = vpop.permute.xlu0 %1555
  %vm1557 = vcmask 294144
  %s1558 = scalar_lea.vmem %s1, 16
  %1559 = vst.msk [vmem:[%s1558] sm:$0xff] %vm1557, %v1556
  %s1560 = scalar_lea.vmem %s0, 776
  %s1561 = smov 3
  %v1562 = vld [vmem:[%s1560] ss:$16 sm:%s1561]
  %s1563 = scalar_lea.vmem %s0, 776
  %s1564 = smov 12
  %v1565 = vld [vmem:[%s1563] ss:$16 sm:%s1564]
  %vm1566 = vcmask 1043458
  %v1567 = vsel %vm1566, %v1565, %v1562
  %s1568 = scalar_lea.vmem %s0, 776
  %s1569 = smov 48
  %v1570 = vld [vmem:[%s1568] ss:$16 sm:%s1569]
  %vm1571 = vcmask 1045508
  %v1572 = vsel %vm1571, %v1570, %v1567
  %s1573 = scalar_lea.vmem %s0, 776
  %s1574 = smov 192
  %v1575 = vld [vmem:[%s1573] ss:$16 sm:%s1574]
  %vm1576 = vcmask 1047558
  %v1577 = vsel %vm1576, %v1575, %v1572
  %1578 = vrot.lane.b32.xlu0 %v1577, 32
  %v1579 = vpop.permute.xlu0 %1578
  %vm1580 = vcmask 294144
  %s1581 = scalar_lea.vmem %s1, 48
  %1582 = vst.msk [vmem:[%s1581] sm:$0xff] %vm1580, %v1579
  %s1583 = scalar_lea.vmem %s0, 392
  %s1584 = smov 3
  %v1585 = vld [vmem:[%s1583] ss:$16 sm:%s1584]
  %s1586 = scalar_lea.vmem %s0, 392
  %s1587 = smov 12
  %v1588 = vld [vmem:[%s1586] ss:$16 sm:%s1587]
  %vm1589 = vcmask 1043458
  %v1590 = vsel %vm1589, %v1588, %v1585
  %s1591 = scalar_lea.vmem %s0, 392
  %s1592 = smov 48
  %v1593 = vld [vmem:[%s1591] ss:$16 sm:%s1592]
  %vm1594 = vcmask 1045508
  %v1595 = vsel %vm1594, %v1593, %v1590
  %s1596 = scalar_lea.vmem %s0, 392
  %s1597 = smov 192
  %v1598 = vld [vmem:[%s1596] ss:$16 sm:%s1597]
  %vm1599 = vcmask 1047558
  %v1600 = vsel %vm1599, %v1598, %v1595
  %1601 = vrot.lane.b32.xlu0 %v1600, 32
  %v1602 = vpop.permute.xlu0 %1601
  %vm1603 = vcmask 294144
  %s1604 = scalar_lea.vmem %s1, 24
  %1605 = vst.msk [vmem:[%s1604] sm:$0xff] %vm1603, %v1602
  %s1606 = scalar_lea.vmem %s0, 904
  %s1607 = smov 3
  %v1608 = vld [vmem:[%s1606] ss:$16 sm:%s1607]
  %s1609 = scalar_lea.vmem %s0, 904
  %s1610 = smov 12
  %v1611 = vld [vmem:[%s1609] ss:$16 sm:%s1610]
  %vm1612 = vcmask 1043458
  %v1613 = vsel %vm1612, %v1611, %v1608
  %s1614 = scalar_lea.vmem %s0, 904
  %s1615 = smov 48
  %v1616 = vld [vmem:[%s1614] ss:$16 sm:%s1615]
  %vm1617 = vcmask 1045508
  %v1618 = vsel %vm1617, %v1616, %v1613
  %s1619 = scalar_lea.vmem %s0, 904
  %s1620 = smov 192
  %v1621 = vld [vmem:[%s1619] ss:$16 sm:%s1620]
  %vm1622 = vcmask 1047558
  %v1623 = vsel %vm1622, %v1621, %v1618
  %1624 = vrot.lane.b32.xlu0 %v1623, 32
  %v1625 = vpop.permute.xlu0 %1624
  %vm1626 = vcmask 294144
  %s1627 = scalar_lea.vmem %s1, 56
  %1628 = vst.msk [vmem:[%s1627] sm:$0xff] %vm1626, %v1625
  %s1629 = scalar_lea.vmem %s0, 7
  %s1630 = smov 3
  %v1631 = vld [vmem:[%s1629] ss:$16 sm:%s1630]
  %s1632 = scalar_lea.vmem %s0, 7
  %s1633 = smov 12
  %v1634 = vld [vmem:[%s1632] ss:$16 sm:%s1633]
  %vm1635 = vcmask 1043458
  %v1636 = vsel %vm1635, %v1634, %v1631
  %s1637 = scalar_lea.vmem %s0, 7
  %s1638 = smov 48
  %v1639 = vld [vmem:[%s1637] ss:$16 sm:%s1638]
  %vm1640 = vcmask 1045508
  %v1641 = vsel %vm1640, %v1639, %v1636
  %s1642 = scalar_lea.vmem %s0, 7
  %s1643 = smov 192
  %v1644 = vld [vmem:[%s1642] ss:$16 sm:%s1643]
  %vm1645 = vcmask 1047558
  %v1646 = vsel %vm1645, %v1644, %v1641
  %1647 = vrot.lane.b32.xlu0 %v1646, 28
  %v1648 = vpop.permute.xlu0 %1647
  %vm1649 = vcmask 261344
  %1650 = vst.msk [vmem:[%s1] sm:$0xff] %vm1649, %v1648
  %s1651 = scalar_lea.vmem %s0, 519
  %s1652 = smov 3
  %v1653 = vld [vmem:[%s1651] ss:$16 sm:%s1652]
  %s1654 = scalar_lea.vmem %s0, 519
  %s1655 = smov 12
  %v1656 = vld [vmem:[%s1654] ss:$16 sm:%s1655]
  %vm1657 = vcmask 1043458
  %v1658 = vsel %vm1657, %v1656, %v1653
  %s1659 = scalar_lea.vmem %s0, 519
  %s1660 = smov 48
  %v1661 = vld [vmem:[%s1659] ss:$16 sm:%s1660]
  %vm1662 = vcmask 1045508
  %v1663 = vsel %vm1662, %v1661, %v1658
  %s1664 = scalar_lea.vmem %s0, 519
  %s1665 = smov 192
  %v1666 = vld [vmem:[%s1664] ss:$16 sm:%s1665]
  %vm1667 = vcmask 1047558
  %v1668 = vsel %vm1667, %v1666, %v1663
  %1669 = vrot.lane.b32.xlu0 %v1668, 28
  %v1670 = vpop.permute.xlu0 %1669
  %vm1671 = vcmask 261344
  %s1672 = scalar_lea.vmem %s1, 32
  %1673 = vst.msk [vmem:[%s1672] sm:$0xff] %vm1671, %v1670
  %s1674 = scalar_lea.vmem %s0, 135
  %s1675 = smov 3
  %v1676 = vld [vmem:[%s1674] ss:$16 sm:%s1675]
  %s1677 = scalar_lea.vmem %s0, 135
  %s1678 = smov 12
  %v1679 = vld [vmem:[%s1677] ss:$16 sm:%s1678]
  %vm1680 = vcmask 1043458
  %v1681 = vsel %vm1680, %v1679, %v1676
  %s1682 = scalar_lea.vmem %s0, 135
  %s1683 = smov 48
  %v1684 = vld [vmem:[%s1682] ss:$16 sm:%s1683]
  %vm1685 = vcmask 1045508
  %v1686 = vsel %vm1685, %v1684, %v1681
  %s1687 = scalar_lea.vmem %s0, 135
  %s1688 = smov 192
  %v1689 = vld [vmem:[%s1687] ss:$16 sm:%s1688]
  %vm1690 = vcmask 1047558
  %v1691 = vsel %vm1690, %v1689, %v1686
  %1692 = vrot.lane.b32.xlu0 %v1691, 28
  %v1693 = vpop.permute.xlu0 %1692
  %vm1694 = vcmask 261344
  %s1695 = scalar_lea.vmem %s1, 8
  %1696 = vst.msk [vmem:[%s1695] sm:$0xff] %vm1694, %v1693
  %s1697 = scalar_lea.vmem %s0, 647
  %s1698 = smov 3
  %v1699 = vld [vmem:[%s1697] ss:$16 sm:%s1698]
  %s1700 = scalar_lea.vmem %s0, 647
  %s1701 = smov 12
  %v1702 = vld [vmem:[%s1700] ss:$16 sm:%s1701]
  %vm1703 = vcmask 1043458
  %v1704 = vsel %vm1703, %v1702, %v1699
  %s1705 = scalar_lea.vmem %s0, 647
  %s1706 = smov 48
  %v1707 = vld [vmem:[%s1705] ss:$16 sm:%s1706]
  %vm1708 = vcmask 1045508
  %v1709 = vsel %vm1708, %v1707, %v1704
  %s1710 = scalar_lea.vmem %s0, 647
  %s1711 = smov 192
  %v1712 = vld [vmem:[%s1710] ss:$16 sm:%s1711]
  %vm1713 = vcmask 1047558
  %v1714 = vsel %vm1713, %v1712, %v1709
  %1715 = vrot.lane.b32.xlu0 %v1714, 28
  %v1716 = vpop.permute.xlu0 %1715
  %vm1717 = vcmask 261344
  %s1718 = scalar_lea.vmem %s1, 40
  %1719 = vst.msk [vmem:[%s1718] sm:$0xff] %vm1717, %v1716
  %s1720 = scalar_lea.vmem %s0, 263
  %s1721 = smov 3
  %v1722 = vld [vmem:[%s1720] ss:$16 sm:%s1721]
  %s1723 = scalar_lea.vmem %s0, 263
  %s1724 = smov 12
  %v1725 = vld [vmem:[%s1723] ss:$16 sm:%s1724]
  %vm1726 = vcmask 1043458
  %v1727 = vsel %vm1726, %v1725, %v1722
  %s1728 = scalar_lea.vmem %s0, 263
  %s1729 = smov 48
  %v1730 = vld [vmem:[%s1728] ss:$16 sm:%s1729]
  %vm1731 = vcmask 1045508
  %v1732 = vsel %vm1731, %v1730, %v1727
  %s1733 = scalar_lea.vmem %s0, 263
  %s1734 = smov 192
  %v1735 = vld [vmem:[%s1733] ss:$16 sm:%s1734]
  %vm1736 = vcmask 1047558
  %v1737 = vsel %vm1736, %v1735, %v1732
  %1738 = vrot.lane.b32.xlu0 %v1737, 28
  %v1739 = vpop.permute.xlu0 %1738
  %vm1740 = vcmask 261344
  %s1741 = scalar_lea.vmem %s1, 16
  %1742 = vst.msk [vmem:[%s1741] sm:$0xff] %vm1740, %v1739
  %s1743 = scalar_lea.vmem %s0, 775
  %s1744 = smov 3
  %v1745 = vld [vmem:[%s1743] ss:$16 sm:%s1744]
  %s1746 = scalar_lea.vmem %s0, 775
  %s1747 = smov 12
  %v1748 = vld [vmem:[%s1746] ss:$16 sm:%s1747]
  %vm1749 = vcmask 1043458
  %v1750 = vsel %vm1749, %v1748, %v1745
  %s1751 = scalar_lea.vmem %s0, 775
  %s1752 = smov 48
  %v1753 = vld [vmem:[%s1751] ss:$16 sm:%s1752]
  %vm1754 = vcmask 1045508
  %v1755 = vsel %vm1754, %v1753, %v1750
  %s1756 = scalar_lea.vmem %s0, 775
  %s1757 = smov 192
  %v1758 = vld [vmem:[%s1756] ss:$16 sm:%s1757]
  %vm1759 = vcmask 1047558
  %v1760 = vsel %vm1759, %v1758, %v1755
  %1761 = vrot.lane.b32.xlu0 %v1760, 28
  %v1762 = vpop.permute.xlu0 %1761
  %vm1763 = vcmask 261344
  %s1764 = scalar_lea.vmem %s1, 48
  %1765 = vst.msk [vmem:[%s1764] sm:$0xff] %vm1763, %v1762
  %s1766 = scalar_lea.vmem %s0, 391
  %s1767 = smov 3
  %v1768 = vld [vmem:[%s1766] ss:$16 sm:%s1767]
  %s1769 = scalar_lea.vmem %s0, 391
  %s1770 = smov 12
  %v1771 = vld [vmem:[%s1769] ss:$16 sm:%s1770]
  %vm1772 = vcmask 1043458
  %v1773 = vsel %vm1772, %v1771, %v1768
  %s1774 = scalar_lea.vmem %s0, 391
  %s1775 = smov 48
  %v1776 = vld [vmem:[%s1774] ss:$16 sm:%s1775]
  %vm1777 = vcmask 1045508
  %v1778 = vsel %vm1777, %v1776, %v1773
  %s1779 = scalar_lea.vmem %s0, 391
  %s1780 = smov 192
  %v1781 = vld [vmem:[%s1779] ss:$16 sm:%s1780]
  %vm1782 = vcmask 1047558
  %v1783 = vsel %vm1782, %v1781, %v1778
  %1784 = vrot.lane.b32.xlu0 %v1783, 28
  %v1785 = vpop.permute.xlu0 %1784
  %vm1786 = vcmask 261344
  %s1787 = scalar_lea.vmem %s1, 24
  %1788 = vst.msk [vmem:[%s1787] sm:$0xff] %vm1786, %v1785
  %s1789 = scalar_lea.vmem %s0, 903
  %s1790 = smov 3
  %v1791 = vld [vmem:[%s1789] ss:$16 sm:%s1790]
  %s1792 = scalar_lea.vmem %s0, 903
  %s1793 = smov 12
  %v1794 = vld [vmem:[%s1792] ss:$16 sm:%s1793]
  %vm1795 = vcmask 1043458
  %v1796 = vsel %vm1795, %v1794, %v1791
  %s1797 = scalar_lea.vmem %s0, 903
  %s1798 = smov 48
  %v1799 = vld [vmem:[%s1797] ss:$16 sm:%s1798]
  %vm1800 = vcmask 1045508
  %v1801 = vsel %vm1800, %v1799, %v1796
  %s1802 = scalar_lea.vmem %s0, 903
  %s1803 = smov 192
  %v1804 = vld [vmem:[%s1802] ss:$16 sm:%s1803]
  %vm1805 = vcmask 1047558
  %v1806 = vsel %vm1805, %v1804, %v1801
  %1807 = vrot.lane.b32.xlu0 %v1806, 28
  %v1808 = vpop.permute.xlu0 %1807
  %vm1809 = vcmask 261344
  %s1810 = scalar_lea.vmem %s1, 56
  %1811 = vst.msk [vmem:[%s1810] sm:$0xff] %vm1809, %v1808
  %s1812 = scalar_lea.vmem %s0, 6
  %s1813 = smov 3
  %v1814 = vld [vmem:[%s1812] ss:$16 sm:%s1813]
  %s1815 = scalar_lea.vmem %s0, 6
  %s1816 = smov 12
  %v1817 = vld [vmem:[%s1815] ss:$16 sm:%s1816]
  %vm1818 = vcmask 1043458
  %v1819 = vsel %vm1818, %v1817, %v1814
  %s1820 = scalar_lea.vmem %s0, 6
  %s1821 = smov 48
  %v1822 = vld [vmem:[%s1820] ss:$16 sm:%s1821]
  %vm1823 = vcmask 1045508
  %v1824 = vsel %vm1823, %v1822, %v1819
  %s1825 = scalar_lea.vmem %s0, 6
  %s1826 = smov 192
  %v1827 = vld [vmem:[%s1825] ss:$16 sm:%s1826]
  %vm1828 = vcmask 1047558
  %v1829 = vsel %vm1828, %v1827, %v1824
  %1830 = vrot.lane.b32.xlu0 %v1829, 24
  %v1831 = vpop.permute.xlu0 %1830
  %vm1832 = vcmask 228544
  %1833 = vst.msk [vmem:[%s1] sm:$0xff] %vm1832, %v1831
  %s1834 = scalar_lea.vmem %s0, 518
  %s1835 = smov 3
  %v1836 = vld [vmem:[%s1834] ss:$16 sm:%s1835]
  %s1837 = scalar_lea.vmem %s0, 518
  %s1838 = smov 12
  %v1839 = vld [vmem:[%s1837] ss:$16 sm:%s1838]
  %vm1840 = vcmask 1043458
  %v1841 = vsel %vm1840, %v1839, %v1836
  %s1842 = scalar_lea.vmem %s0, 518
  %s1843 = smov 48
  %v1844 = vld [vmem:[%s1842] ss:$16 sm:%s1843]
  %vm1845 = vcmask 1045508
  %v1846 = vsel %vm1845, %v1844, %v1841
  %s1847 = scalar_lea.vmem %s0, 518
  %s1848 = smov 192
  %v1849 = vld [vmem:[%s1847] ss:$16 sm:%s1848]
  %vm1850 = vcmask 1047558
  %v1851 = vsel %vm1850, %v1849, %v1846
  %1852 = vrot.lane.b32.xlu0 %v1851, 24
  %v1853 = vpop.permute.xlu0 %1852
  %vm1854 = vcmask 228544
  %s1855 = scalar_lea.vmem %s1, 32
  %1856 = vst.msk [vmem:[%s1855] sm:$0xff] %vm1854, %v1853
  %s1857 = scalar_lea.vmem %s0, 134
  %s1858 = smov 3
  %v1859 = vld [vmem:[%s1857] ss:$16 sm:%s1858]
  %s1860 = scalar_lea.vmem %s0, 134
  %s1861 = smov 12
  %v1862 = vld [vmem:[%s1860] ss:$16 sm:%s1861]
  %vm1863 = vcmask 1043458
  %v1864 = vsel %vm1863, %v1862, %v1859
  %s1865 = scalar_lea.vmem %s0, 134
  %s1866 = smov 48
  %v1867 = vld [vmem:[%s1865] ss:$16 sm:%s1866]
  %vm1868 = vcmask 1045508
  %v1869 = vsel %vm1868, %v1867, %v1864
  %s1870 = scalar_lea.vmem %s0, 134
  %s1871 = smov 192
  %v1872 = vld [vmem:[%s1870] ss:$16 sm:%s1871]
  %vm1873 = vcmask 1047558
  %v1874 = vsel %vm1873, %v1872, %v1869
  %1875 = vrot.lane.b32.xlu0 %v1874, 24
  %v1876 = vpop.permute.xlu0 %1875
  %vm1877 = vcmask 228544
  %s1878 = scalar_lea.vmem %s1, 8
  %1879 = vst.msk [vmem:[%s1878] sm:$0xff] %vm1877, %v1876
  %s1880 = scalar_lea.vmem %s0, 646
  %s1881 = smov 3
  %v1882 = vld [vmem:[%s1880] ss:$16 sm:%s1881]
  %s1883 = scalar_lea.vmem %s0, 646
  %s1884 = smov 12
  %v1885 = vld [vmem:[%s1883] ss:$16 sm:%s1884]
  %vm1886 = vcmask 1043458
  %v1887 = vsel %vm1886, %v1885, %v1882
  %s1888 = scalar_lea.vmem %s0, 646
  %s1889 = smov 48
  %v1890 = vld [vmem:[%s1888] ss:$16 sm:%s1889]
  %vm1891 = vcmask 1045508
  %v1892 = vsel %vm1891, %v1890, %v1887
  %s1893 = scalar_lea.vmem %s0, 646
  %s1894 = smov 192
  %v1895 = vld [vmem:[%s1893] ss:$16 sm:%s1894]
  %vm1896 = vcmask 1047558
  %v1897 = vsel %vm1896, %v1895, %v1892
  %1898 = vrot.lane.b32.xlu0 %v1897, 24
  %v1899 = vpop.permute.xlu0 %1898
  %vm1900 = vcmask 228544
  %s1901 = scalar_lea.vmem %s1, 40
  %1902 = vst.msk [vmem:[%s1901] sm:$0xff] %vm1900, %v1899
  %s1903 = scalar_lea.vmem %s0, 262
  %s1904 = smov 3
  %v1905 = vld [vmem:[%s1903] ss:$16 sm:%s1904]
  %s1906 = scalar_lea.vmem %s0, 262
  %s1907 = smov 12
  %v1908 = vld [vmem:[%s1906] ss:$16 sm:%s1907]
  %vm1909 = vcmask 1043458
  %v1910 = vsel %vm1909, %v1908, %v1905
  %s1911 = scalar_lea.vmem %s0, 262
  %s1912 = smov 48
  %v1913 = vld [vmem:[%s1911] ss:$16 sm:%s1912]
  %vm1914 = vcmask 1045508
  %v1915 = vsel %vm1914, %v1913, %v1910
  %s1916 = scalar_lea.vmem %s0, 262
  %s1917 = smov 192
  %v1918 = vld [vmem:[%s1916] ss:$16 sm:%s1917]
  %vm1919 = vcmask 1047558
  %v1920 = vsel %vm1919, %v1918, %v1915
  %1921 = vrot.lane.b32.xlu0 %v1920, 24
  %v1922 = vpop.permute.xlu0 %1921
  %vm1923 = vcmask 228544
  %s1924 = scalar_lea.vmem %s1, 16
  %1925 = vst.msk [vmem:[%s1924] sm:$0xff] %vm1923, %v1922
  %s1926 = scalar_lea.vmem %s0, 774
  %s1927 = smov 3
  %v1928 = vld [vmem:[%s1926] ss:$16 sm:%s1927]
  %s1929 = scalar_lea.vmem %s0, 774
  %s1930 = smov 12
  %v1931 = vld [vmem:[%s1929] ss:$16 sm:%s1930]
  %vm1932 = vcmask 1043458
  %v1933 = vsel %vm1932, %v1931, %v1928
  %s1934 = scalar_lea.vmem %s0, 774
  %s1935 = smov 48
  %v1936 = vld [vmem:[%s1934] ss:$16 sm:%s1935]
  %vm1937 = vcmask 1045508
  %v1938 = vsel %vm1937, %v1936, %v1933
  %s1939 = scalar_lea.vmem %s0, 774
  %s1940 = smov 192
  %v1941 = vld [vmem:[%s1939] ss:$16 sm:%s1940]
  %vm1942 = vcmask 1047558
  %v1943 = vsel %vm1942, %v1941, %v1938
  %1944 = vrot.lane.b32.xlu0 %v1943, 24
  %v1945 = vpop.permute.xlu0 %1944
  %vm1946 = vcmask 228544
  %s1947 = scalar_lea.vmem %s1, 48
  %1948 = vst.msk [vmem:[%s1947] sm:$0xff] %vm1946, %v1945
  %s1949 = scalar_lea.vmem %s0, 390
  %s1950 = smov 3
  %v1951 = vld [vmem:[%s1949] ss:$16 sm:%s1950]
  %s1952 = scalar_lea.vmem %s0, 390
  %s1953 = smov 12
  %v1954 = vld [vmem:[%s1952] ss:$16 sm:%s1953]
  %vm1955 = vcmask 1043458
  %v1956 = vsel %vm1955, %v1954, %v1951
  %s1957 = scalar_lea.vmem %s0, 390
  %s1958 = smov 48
  %v1959 = vld [vmem:[%s1957] ss:$16 sm:%s1958]
  %vm1960 = vcmask 1045508
  %v1961 = vsel %vm1960, %v1959, %v1956
  %s1962 = scalar_lea.vmem %s0, 390
  %s1963 = smov 192
  %v1964 = vld [vmem:[%s1962] ss:$16 sm:%s1963]
  %vm1965 = vcmask 1047558
  %v1966 = vsel %vm1965, %v1964, %v1961
  %1967 = vrot.lane.b32.xlu0 %v1966, 24
  %v1968 = vpop.permute.xlu0 %1967
  %vm1969 = vcmask 228544
  %s1970 = scalar_lea.vmem %s1, 24
  %1971 = vst.msk [vmem:[%s1970] sm:$0xff] %vm1969, %v1968
  %s1972 = scalar_lea.vmem %s0, 902
  %s1973 = smov 3
  %v1974 = vld [vmem:[%s1972] ss:$16 sm:%s1973]
  %s1975 = scalar_lea.vmem %s0, 902
  %s1976 = smov 12
  %v1977 = vld [vmem:[%s1975] ss:$16 sm:%s1976]
  %vm1978 = vcmask 1043458
  %v1979 = vsel %vm1978, %v1977, %v1974
  %s1980 = scalar_lea.vmem %s0, 902
  %s1981 = smov 48
  %v1982 = vld [vmem:[%s1980] ss:$16 sm:%s1981]
  %vm1983 = vcmask 1045508
  %v1984 = vsel %vm1983, %v1982, %v1979
  %s1985 = scalar_lea.vmem %s0, 902
  %s1986 = smov 192
  %v1987 = vld [vmem:[%s1985] ss:$16 sm:%s1986]
  %vm1988 = vcmask 1047558
  %v1989 = vsel %vm1988, %v1987, %v1984
  %1990 = vrot.lane.b32.xlu0 %v1989, 24
  %v1991 = vpop.permute.xlu0 %1990
  %vm1992 = vcmask 228544
  %s1993 = scalar_lea.vmem %s1, 56
  %1994 = vst.msk [vmem:[%s1993] sm:$0xff] %vm1992, %v1991
  %s1995 = scalar_lea.vmem %s0, 5
  %s1996 = smov 3
  %v1997 = vld [vmem:[%s1995] ss:$16 sm:%s1996]
  %s1998 = scalar_lea.vmem %s0, 5
  %s1999 = smov 12
  %v2000 = vld [vmem:[%s1998] ss:$16 sm:%s1999]
  %vm2001 = vcmask 1043458
  %v2002 = vsel %vm2001, %v2000, %v1997
  %s2003 = scalar_lea.vmem %s0, 5
  %s2004 = smov 48
  %v2005 = vld [vmem:[%s2003] ss:$16 sm:%s2004]
  %vm2006 = vcmask 1045508
  %v2007 = vsel %vm2006, %v2005, %v2002
  %s2008 = scalar_lea.vmem %s0, 5
  %s2009 = smov 192
  %v2010 = vld [vmem:[%s2008] ss:$16 sm:%s2009]
  %vm2011 = vcmask 1047558
  %v2012 = vsel %vm2011, %v2010, %v2007
  %2013 = vrot.lane.b32.xlu0 %v2012, 20
  %v2014 = vpop.permute.xlu0 %2013
  %vm2015 = vcmask 195744
  %2016 = vst.msk [vmem:[%s1] sm:$0xff] %vm2015, %v2014
  %s2017 = scalar_lea.vmem %s0, 517
  %s2018 = smov 3
  %v2019 = vld [vmem:[%s2017] ss:$16 sm:%s2018]
  %s2020 = scalar_lea.vmem %s0, 517
  %s2021 = smov 12
  %v2022 = vld [vmem:[%s2020] ss:$16 sm:%s2021]
  %vm2023 = vcmask 1043458
  %v2024 = vsel %vm2023, %v2022, %v2019
  %s2025 = scalar_lea.vmem %s0, 517
  %s2026 = smov 48
  %v2027 = vld [vmem:[%s2025] ss:$16 sm:%s2026]
  %vm2028 = vcmask 1045508
  %v2029 = vsel %vm2028, %v2027, %v2024
  %s2030 = scalar_lea.vmem %s0, 517
  %s2031 = smov 192
  %v2032 = vld [vmem:[%s2030] ss:$16 sm:%s2031]
  %vm2033 = vcmask 1047558
  %v2034 = vsel %vm2033, %v2032, %v2029
  %2035 = vrot.lane.b32.xlu0 %v2034, 20
  %v2036 = vpop.permute.xlu0 %2035
  %vm2037 = vcmask 195744
  %s2038 = scalar_lea.vmem %s1, 32
  %2039 = vst.msk [vmem:[%s2038] sm:$0xff] %vm2037, %v2036
  %s2040 = scalar_lea.vmem %s0, 133
  %s2041 = smov 3
  %v2042 = vld [vmem:[%s2040] ss:$16 sm:%s2041]
  %s2043 = scalar_lea.vmem %s0, 133
  %s2044 = smov 12
  %v2045 = vld [vmem:[%s2043] ss:$16 sm:%s2044]
  %vm2046 = vcmask 1043458
  %v2047 = vsel %vm2046, %v2045, %v2042
  %s2048 = scalar_lea.vmem %s0, 133
  %s2049 = smov 48
  %v2050 = vld [vmem:[%s2048] ss:$16 sm:%s2049]
  %vm2051 = vcmask 1045508
  %v2052 = vsel %vm2051, %v2050, %v2047
  %s2053 = scalar_lea.vmem %s0, 133
  %s2054 = smov 192
  %v2055 = vld [vmem:[%s2053] ss:$16 sm:%s2054]
  %vm2056 = vcmask 1047558
  %v2057 = vsel %vm2056, %v2055, %v2052
  %2058 = vrot.lane.b32.xlu0 %v2057, 20
  %v2059 = vpop.permute.xlu0 %2058
  %vm2060 = vcmask 195744
  %s2061 = scalar_lea.vmem %s1, 8
  %2062 = vst.msk [vmem:[%s2061] sm:$0xff] %vm2060, %v2059
  %s2063 = scalar_lea.vmem %s0, 645
  %s2064 = smov 3
  %v2065 = vld [vmem:[%s2063] ss:$16 sm:%s2064]
  %s2066 = scalar_lea.vmem %s0, 645
  %s2067 = smov 12
  %v2068 = vld [vmem:[%s2066] ss:$16 sm:%s2067]
  %vm2069 = vcmask 1043458
  %v2070 = vsel %vm2069, %v2068, %v2065
  %s2071 = scalar_lea.vmem %s0, 645
  %s2072 = smov 48
  %v2073 = vld [vmem:[%s2071] ss:$16 sm:%s2072]
  %vm2074 = vcmask 1045508
  %v2075 = vsel %vm2074, %v2073, %v2070
  %s2076 = scalar_lea.vmem %s0, 645
  %s2077 = smov 192
  %v2078 = vld [vmem:[%s2076] ss:$16 sm:%s2077]
  %vm2079 = vcmask 1047558
  %v2080 = vsel %vm2079, %v2078, %v2075
  %2081 = vrot.lane.b32.xlu0 %v2080, 20
  %v2082 = vpop.permute.xlu0 %2081
  %vm2083 = vcmask 195744
  %s2084 = scalar_lea.vmem %s1, 40
  %2085 = vst.msk [vmem:[%s2084] sm:$0xff] %vm2083, %v2082
  %s2086 = scalar_lea.vmem %s0, 261
  %s2087 = smov 3
  %v2088 = vld [vmem:[%s2086] ss:$16 sm:%s2087]
  %s2089 = scalar_lea.vmem %s0, 261
  %s2090 = smov 12
  %v2091 = vld [vmem:[%s2089] ss:$16 sm:%s2090]
  %vm2092 = vcmask 1043458
  %v2093 = vsel %vm2092, %v2091, %v2088
  %s2094 = scalar_lea.vmem %s0, 261
  %s2095 = smov 48
  %v2096 = vld [vmem:[%s2094] ss:$16 sm:%s2095]
  %vm2097 = vcmask 1045508
  %v2098 = vsel %vm2097, %v2096, %v2093
  %s2099 = scalar_lea.vmem %s0, 261
  %s2100 = smov 192
  %v2101 = vld [vmem:[%s2099] ss:$16 sm:%s2100]
  %vm2102 = vcmask 1047558
  %v2103 = vsel %vm2102, %v2101, %v2098
  %2104 = vrot.lane.b32.xlu0 %v2103, 20
  %v2105 = vpop.permute.xlu0 %2104
  %vm2106 = vcmask 195744
  %s2107 = scalar_lea.vmem %s1, 16
  %2108 = vst.msk [vmem:[%s2107] sm:$0xff] %vm2106, %v2105
  %s2109 = scalar_lea.vmem %s0, 773
  %s2110 = smov 3
  %v2111 = vld [vmem:[%s2109] ss:$16 sm:%s2110]
  %s2112 = scalar_lea.vmem %s0, 773
  %s2113 = smov 12
  %v2114 = vld [vmem:[%s2112] ss:$16 sm:%s2113]
  %vm2115 = vcmask 1043458
  %v2116 = vsel %vm2115, %v2114, %v2111
  %s2117 = scalar_lea.vmem %s0, 773
  %s2118 = smov 48
  %v2119 = vld [vmem:[%s2117] ss:$16 sm:%s2118]
  %vm2120 = vcmask 1045508
  %v2121 = vsel %vm2120, %v2119, %v2116
  %s2122 = scalar_lea.vmem %s0, 773
  %s2123 = smov 192
  %v2124 = vld [vmem:[%s2122] ss:$16 sm:%s2123]
  %vm2125 = vcmask 1047558
  %v2126 = vsel %vm2125, %v2124, %v2121
  %2127 = vrot.lane.b32.xlu0 %v2126, 20
  %v2128 = vpop.permute.xlu0 %2127
  %vm2129 = vcmask 195744
  %s2130 = scalar_lea.vmem %s1, 48
  %2131 = vst.msk [vmem:[%s2130] sm:$0xff] %vm2129, %v2128
  %s2132 = scalar_lea.vmem %s0, 389
  %s2133 = smov 3
  %v2134 = vld [vmem:[%s2132] ss:$16 sm:%s2133]
  %s2135 = scalar_lea.vmem %s0, 389
  %s2136 = smov 12
  %v2137 = vld [vmem:[%s2135] ss:$16 sm:%s2136]
  %vm2138 = vcmask 1043458
  %v2139 = vsel %vm2138, %v2137, %v2134
  %s2140 = scalar_lea.vmem %s0, 389
  %s2141 = smov 48
  %v2142 = vld [vmem:[%s2140] ss:$16 sm:%s2141]
  %vm2143 = vcmask 1045508
  %v2144 = vsel %vm2143, %v2142, %v2139
  %s2145 = scalar_lea.vmem %s0, 389
  %s2146 = smov 192
  %v2147 = vld [vmem:[%s2145] ss:$16 sm:%s2146]
  %vm2148 = vcmask 1047558
  %v2149 = vsel %vm2148, %v2147, %v2144
  %2150 = vrot.lane.b32.xlu0 %v2149, 20
  %v2151 = vpop.permute.xlu0 %2150
  %vm2152 = vcmask 195744
  %s2153 = scalar_lea.vmem %s1, 24
  %2154 = vst.msk [vmem:[%s2153] sm:$0xff] %vm2152, %v2151
  %s2155 = scalar_lea.vmem %s0, 901
  %s2156 = smov 3
  %v2157 = vld [vmem:[%s2155] ss:$16 sm:%s2156]
  %s2158 = scalar_lea.vmem %s0, 901
  %s2159 = smov 12
  %v2160 = vld [vmem:[%s2158] ss:$16 sm:%s2159]
  %vm2161 = vcmask 1043458
  %v2162 = vsel %vm2161, %v2160, %v2157
  %s2163 = scalar_lea.vmem %s0, 901
  %s2164 = smov 48
  %v2165 = vld [vmem:[%s2163] ss:$16 sm:%s2164]
  %vm2166 = vcmask 1045508
  %v2167 = vsel %vm2166, %v2165, %v2162
  %s2168 = scalar_lea.vmem %s0, 901
  %s2169 = smov 192
  %v2170 = vld [vmem:[%s2168] ss:$16 sm:%s2169]
  %vm2171 = vcmask 1047558
  %v2172 = vsel %vm2171, %v2170, %v2167
  %2173 = vrot.lane.b32.xlu0 %v2172, 20
  %v2174 = vpop.permute.xlu0 %2173
  %vm2175 = vcmask 195744
  %s2176 = scalar_lea.vmem %s1, 56
  %2177 = vst.msk [vmem:[%s2176] sm:$0xff] %vm2175, %v2174
  %s2178 = scalar_lea.vmem %s0, 4
  %s2179 = smov 3
  %v2180 = vld [vmem:[%s2178] ss:$16 sm:%s2179]
  %s2181 = scalar_lea.vmem %s0, 4
  %s2182 = smov 12
  %v2183 = vld [vmem:[%s2181] ss:$16 sm:%s2182]
  %vm2184 = vcmask 1043458
  %v2185 = vsel %vm2184, %v2183, %v2180
  %s2186 = scalar_lea.vmem %s0, 4
  %s2187 = smov 48
  %v2188 = vld [vmem:[%s2186] ss:$16 sm:%s2187]
  %vm2189 = vcmask 1045508
  %v2190 = vsel %vm2189, %v2188, %v2185
  %s2191 = scalar_lea.vmem %s0, 4
  %s2192 = smov 192
  %v2193 = vld [vmem:[%s2191] ss:$16 sm:%s2192]
  %vm2194 = vcmask 1047558
  %v2195 = vsel %vm2194, %v2193, %v2190
  %2196 = vrot.lane.b32.xlu0 %v2195, 16
  %v2197 = vpop.permute.xlu0 %2196
  %vm2198 = vcmask 162944
  %2199 = vst.msk [vmem:[%s1] sm:$0xff] %vm2198, %v2197
  %s2200 = scalar_lea.vmem %s0, 516
  %s2201 = smov 3
  %v2202 = vld [vmem:[%s2200] ss:$16 sm:%s2201]
  %s2203 = scalar_lea.vmem %s0, 516
  %s2204 = smov 12
  %v2205 = vld [vmem:[%s2203] ss:$16 sm:%s2204]
  %vm2206 = vcmask 1043458
  %v2207 = vsel %vm2206, %v2205, %v2202
  %s2208 = scalar_lea.vmem %s0, 516
  %s2209 = smov 48
  %v2210 = vld [vmem:[%s2208] ss:$16 sm:%s2209]
  %vm2211 = vcmask 1045508
  %v2212 = vsel %vm2211, %v2210, %v2207
  %s2213 = scalar_lea.vmem %s0, 516
  %s2214 = smov 192
  %v2215 = vld [vmem:[%s2213] ss:$16 sm:%s2214]
  %vm2216 = vcmask 1047558
  %v2217 = vsel %vm2216, %v2215, %v2212
  %2218 = vrot.lane.b32.xlu0 %v2217, 16
  %v2219 = vpop.permute.xlu0 %2218
  %vm2220 = vcmask 162944
  %s2221 = scalar_lea.vmem %s1, 32
  %2222 = vst.msk [vmem:[%s2221] sm:$0xff] %vm2220, %v2219
  %s2223 = scalar_lea.vmem %s0, 132
  %s2224 = smov 3
  %v2225 = vld [vmem:[%s2223] ss:$16 sm:%s2224]
  %s2226 = scalar_lea.vmem %s0, 132
  %s2227 = smov 12
  %v2228 = vld [vmem:[%s2226] ss:$16 sm:%s2227]
  %vm2229 = vcmask 1043458
  %v2230 = vsel %vm2229, %v2228, %v2225
  %s2231 = scalar_lea.vmem %s0, 132
  %s2232 = smov 48
  %v2233 = vld [vmem:[%s2231] ss:$16 sm:%s2232]
  %vm2234 = vcmask 1045508
  %v2235 = vsel %vm2234, %v2233, %v2230
  %s2236 = scalar_lea.vmem %s0, 132
  %s2237 = smov 192
  %v2238 = vld [vmem:[%s2236] ss:$16 sm:%s2237]
  %vm2239 = vcmask 1047558
  %v2240 = vsel %vm2239, %v2238, %v2235
  %2241 = vrot.lane.b32.xlu0 %v2240, 16
  %v2242 = vpop.permute.xlu0 %2241
  %vm2243 = vcmask 162944
  %s2244 = scalar_lea.vmem %s1, 8
  %2245 = vst.msk [vmem:[%s2244] sm:$0xff] %vm2243, %v2242
  %s2246 = scalar_lea.vmem %s0, 644
  %s2247 = smov 3
  %v2248 = vld [vmem:[%s2246] ss:$16 sm:%s2247]
  %s2249 = scalar_lea.vmem %s0, 644
  %s2250 = smov 12
  %v2251 = vld [vmem:[%s2249] ss:$16 sm:%s2250]
  %vm2252 = vcmask 1043458
  %v2253 = vsel %vm2252, %v2251, %v2248
  %s2254 = scalar_lea.vmem %s0, 644
  %s2255 = smov 48
  %v2256 = vld [vmem:[%s2254] ss:$16 sm:%s2255]
  %vm2257 = vcmask 1045508
  %v2258 = vsel %vm2257, %v2256, %v2253
  %s2259 = scalar_lea.vmem %s0, 644
  %s2260 = smov 192
  %v2261 = vld [vmem:[%s2259] ss:$16 sm:%s2260]
  %vm2262 = vcmask 1047558
  %v2263 = vsel %vm2262, %v2261, %v2258
  %2264 = vrot.lane.b32.xlu0 %v2263, 16
  %v2265 = vpop.permute.xlu0 %2264
  %vm2266 = vcmask 162944
  %s2267 = scalar_lea.vmem %s1, 40
  %2268 = vst.msk [vmem:[%s2267] sm:$0xff] %vm2266, %v2265
  %s2269 = scalar_lea.vmem %s0, 260
  %s2270 = smov 3
  %v2271 = vld [vmem:[%s2269] ss:$16 sm:%s2270]
  %s2272 = scalar_lea.vmem %s0, 260
  %s2273 = smov 12
  %v2274 = vld [vmem:[%s2272] ss:$16 sm:%s2273]
  %vm2275 = vcmask 1043458
  %v2276 = vsel %vm2275, %v2274, %v2271
  %s2277 = scalar_lea.vmem %s0, 260
  %s2278 = smov 48
  %v2279 = vld [vmem:[%s2277] ss:$16 sm:%s2278]
  %vm2280 = vcmask 1045508
  %v2281 = vsel %vm2280, %v2279, %v2276
  %s2282 = scalar_lea.vmem %s0, 260
  %s2283 = smov 192
  %v2284 = vld [vmem:[%s2282] ss:$16 sm:%s2283]
  %vm2285 = vcmask 1047558
  %v2286 = vsel %vm2285, %v2284, %v2281
  %2287 = vrot.lane.b32.xlu0 %v2286, 16
  %v2288 = vpop.permute.xlu0 %2287
  %vm2289 = vcmask 162944
  %s2290 = scalar_lea.vmem %s1, 16
  %2291 = vst.msk [vmem:[%s2290] sm:$0xff] %vm2289, %v2288
  %s2292 = scalar_lea.vmem %s0, 772
  %s2293 = smov 3
  %v2294 = vld [vmem:[%s2292] ss:$16 sm:%s2293]
  %s2295 = scalar_lea.vmem %s0, 772
  %s2296 = smov 12
  %v2297 = vld [vmem:[%s2295] ss:$16 sm:%s2296]
  %vm2298 = vcmask 1043458
  %v2299 = vsel %vm2298, %v2297, %v2294
  %s2300 = scalar_lea.vmem %s0, 772
  %s2301 = smov 48
  %v2302 = vld [vmem:[%s2300] ss:$16 sm:%s2301]
  %vm2303 = vcmask 1045508
  %v2304 = vsel %vm2303, %v2302, %v2299
  %s2305 = scalar_lea.vmem %s0, 772
  %s2306 = smov 192
  %v2307 = vld [vmem:[%s2305] ss:$16 sm:%s2306]
  %vm2308 = vcmask 1047558
  %v2309 = vsel %vm2308, %v2307, %v2304
  %2310 = vrot.lane.b32.xlu0 %v2309, 16
  %v2311 = vpop.permute.xlu0 %2310
  %vm2312 = vcmask 162944
  %s2313 = scalar_lea.vmem %s1, 48
  %2314 = vst.msk [vmem:[%s2313] sm:$0xff] %vm2312, %v2311
  %s2315 = scalar_lea.vmem %s0, 388
  %s2316 = smov 3
  %v2317 = vld [vmem:[%s2315] ss:$16 sm:%s2316]
  %s2318 = scalar_lea.vmem %s0, 388
  %s2319 = smov 12
  %v2320 = vld [vmem:[%s2318] ss:$16 sm:%s2319]
  %vm2321 = vcmask 1043458
  %v2322 = vsel %vm2321, %v2320, %v2317
  %s2323 = scalar_lea.vmem %s0, 388
  %s2324 = smov 48
  %v2325 = vld [vmem:[%s2323] ss:$16 sm:%s2324]
  %vm2326 = vcmask 1045508
  %v2327 = vsel %vm2326, %v2325, %v2322
  %s2328 = scalar_lea.vmem %s0, 388
  %s2329 = smov 192
  %v2330 = vld [vmem:[%s2328] ss:$16 sm:%s2329]
  %vm2331 = vcmask 1047558
  %v2332 = vsel %vm2331, %v2330, %v2327
  %2333 = vrot.lane.b32.xlu0 %v2332, 16
  %v2334 = vpop.permute.xlu0 %2333
  %vm2335 = vcmask 162944
  %s2336 = scalar_lea.vmem %s1, 24
  %2337 = vst.msk [vmem:[%s2336] sm:$0xff] %vm2335, %v2334
  %s2338 = scalar_lea.vmem %s0, 900
  %s2339 = smov 3
  %v2340 = vld [vmem:[%s2338] ss:$16 sm:%s2339]
  %s2341 = scalar_lea.vmem %s0, 900
  %s2342 = smov 12
  %v2343 = vld [vmem:[%s2341] ss:$16 sm:%s2342]
  %vm2344 = vcmask 1043458
  %v2345 = vsel %vm2344, %v2343, %v2340
  %s2346 = scalar_lea.vmem %s0, 900
  %s2347 = smov 48
  %v2348 = vld [vmem:[%s2346] ss:$16 sm:%s2347]
  %vm2349 = vcmask 1045508
  %v2350 = vsel %vm2349, %v2348, %v2345
  %s2351 = scalar_lea.vmem %s0, 900
  %s2352 = smov 192
  %v2353 = vld [vmem:[%s2351] ss:$16 sm:%s2352]
  %vm2354 = vcmask 1047558
  %v2355 = vsel %vm2354, %v2353, %v2350
  %2356 = vrot.lane.b32.xlu0 %v2355, 16
  %v2357 = vpop.permute.xlu0 %2356
  %vm2358 = vcmask 162944
  %s2359 = scalar_lea.vmem %s1, 56
  %2360 = vst.msk [vmem:[%s2359] sm:$0xff] %vm2358, %v2357
  %s2361 = scalar_lea.vmem %s0, 3
  %s2362 = smov 3
  %v2363 = vld [vmem:[%s2361] ss:$16 sm:%s2362]
  %s2364 = scalar_lea.vmem %s0, 3
  %s2365 = smov 12
  %v2366 = vld [vmem:[%s2364] ss:$16 sm:%s2365]
  %vm2367 = vcmask 1043458
  %v2368 = vsel %vm2367, %v2366, %v2363
  %s2369 = scalar_lea.vmem %s0, 3
  %s2370 = smov 48
  %v2371 = vld [vmem:[%s2369] ss:$16 sm:%s2370]
  %vm2372 = vcmask 1045508
  %v2373 = vsel %vm2372, %v2371, %v2368
  %s2374 = scalar_lea.vmem %s0, 3
  %s2375 = smov 192
  %v2376 = vld [vmem:[%s2374] ss:$16 sm:%s2375]
  %vm2377 = vcmask 1047558
  %v2378 = vsel %vm2377, %v2376, %v2373
  %2379 = vrot.lane.b32.xlu0 %v2378, 12
  %v2380 = vpop.permute.xlu0 %2379
  %vm2381 = vcmask 130144
  %2382 = vst.msk [vmem:[%s1] sm:$0xff] %vm2381, %v2380
  %s2383 = scalar_lea.vmem %s0, 515
  %s2384 = smov 3
  %v2385 = vld [vmem:[%s2383] ss:$16 sm:%s2384]
  %s2386 = scalar_lea.vmem %s0, 515
  %s2387 = smov 12
  %v2388 = vld [vmem:[%s2386] ss:$16 sm:%s2387]
  %vm2389 = vcmask 1043458
  %v2390 = vsel %vm2389, %v2388, %v2385
  %s2391 = scalar_lea.vmem %s0, 515
  %s2392 = smov 48
  %v2393 = vld [vmem:[%s2391] ss:$16 sm:%s2392]
  %vm2394 = vcmask 1045508
  %v2395 = vsel %vm2394, %v2393, %v2390
  %s2396 = scalar_lea.vmem %s0, 515
  %s2397 = smov 192
  %v2398 = vld [vmem:[%s2396] ss:$16 sm:%s2397]
  %vm2399 = vcmask 1047558
  %v2400 = vsel %vm2399, %v2398, %v2395
  %2401 = vrot.lane.b32.xlu0 %v2400, 12
  %v2402 = vpop.permute.xlu0 %2401
  %vm2403 = vcmask 130144
  %s2404 = scalar_lea.vmem %s1, 32
  %2405 = vst.msk [vmem:[%s2404] sm:$0xff] %vm2403, %v2402
  %s2406 = scalar_lea.vmem %s0, 131
  %s2407 = smov 3
  %v2408 = vld [vmem:[%s2406] ss:$16 sm:%s2407]
  %s2409 = scalar_lea.vmem %s0, 131
  %s2410 = smov 12
  %v2411 = vld [vmem:[%s2409] ss:$16 sm:%s2410]
  %vm2412 = vcmask 1043458
  %v2413 = vsel %vm2412, %v2411, %v2408
  %s2414 = scalar_lea.vmem %s0, 131
  %s2415 = smov 48
  %v2416 = vld [vmem:[%s2414] ss:$16 sm:%s2415]
  %vm2417 = vcmask 1045508
  %v2418 = vsel %vm2417, %v2416, %v2413
  %s2419 = scalar_lea.vmem %s0, 131
  %s2420 = smov 192
  %v2421 = vld [vmem:[%s2419] ss:$16 sm:%s2420]
  %vm2422 = vcmask 1047558
  %v2423 = vsel %vm2422, %v2421, %v2418
  %2424 = vrot.lane.b32.xlu0 %v2423, 12
  %v2425 = vpop.permute.xlu0 %2424
  %vm2426 = vcmask 130144
  %s2427 = scalar_lea.vmem %s1, 8
  %2428 = vst.msk [vmem:[%s2427] sm:$0xff] %vm2426, %v2425
  %s2429 = scalar_lea.vmem %s0, 643
  %s2430 = smov 3
  %v2431 = vld [vmem:[%s2429] ss:$16 sm:%s2430]
  %s2432 = scalar_lea.vmem %s0, 643
  %s2433 = smov 12
  %v2434 = vld [vmem:[%s2432] ss:$16 sm:%s2433]
  %vm2435 = vcmask 1043458
  %v2436 = vsel %vm2435, %v2434, %v2431
  %s2437 = scalar_lea.vmem %s0, 643
  %s2438 = smov 48
  %v2439 = vld [vmem:[%s2437] ss:$16 sm:%s2438]
  %vm2440 = vcmask 1045508
  %v2441 = vsel %vm2440, %v2439, %v2436
  %s2442 = scalar_lea.vmem %s0, 643
  %s2443 = smov 192
  %v2444 = vld [vmem:[%s2442] ss:$16 sm:%s2443]
  %vm2445 = vcmask 1047558
  %v2446 = vsel %vm2445, %v2444, %v2441
  %2447 = vrot.lane.b32.xlu0 %v2446, 12
  %v2448 = vpop.permute.xlu0 %2447
  %vm2449 = vcmask 130144
  %s2450 = scalar_lea.vmem %s1, 40
  %2451 = vst.msk [vmem:[%s2450] sm:$0xff] %vm2449, %v2448
  %s2452 = scalar_lea.vmem %s0, 259
  %s2453 = smov 3
  %v2454 = vld [vmem:[%s2452] ss:$16 sm:%s2453]
  %s2455 = scalar_lea.vmem %s0, 259
  %s2456 = smov 12
  %v2457 = vld [vmem:[%s2455] ss:$16 sm:%s2456]
  %vm2458 = vcmask 1043458
  %v2459 = vsel %vm2458, %v2457, %v2454
  %s2460 = scalar_lea.vmem %s0, 259
  %s2461 = smov 48
  %v2462 = vld [vmem:[%s2460] ss:$16 sm:%s2461]
  %vm2463 = vcmask 1045508
  %v2464 = vsel %vm2463, %v2462, %v2459
  %s2465 = scalar_lea.vmem %s0, 259
  %s2466 = smov 192
  %v2467 = vld [vmem:[%s2465] ss:$16 sm:%s2466]
  %vm2468 = vcmask 1047558
  %v2469 = vsel %vm2468, %v2467, %v2464
  %2470 = vrot.lane.b32.xlu0 %v2469, 12
  %v2471 = vpop.permute.xlu0 %2470
  %vm2472 = vcmask 130144
  %s2473 = scalar_lea.vmem %s1, 16
  %2474 = vst.msk [vmem:[%s2473] sm:$0xff] %vm2472, %v2471
  %s2475 = scalar_lea.vmem %s0, 771
  %s2476 = smov 3
  %v2477 = vld [vmem:[%s2475] ss:$16 sm:%s2476]
  %s2478 = scalar_lea.vmem %s0, 771
  %s2479 = smov 12
  %v2480 = vld [vmem:[%s2478] ss:$16 sm:%s2479]
  %vm2481 = vcmask 1043458
  %v2482 = vsel %vm2481, %v2480, %v2477
  %s2483 = scalar_lea.vmem %s0, 771
  %s2484 = smov 48
  %v2485 = vld [vmem:[%s2483] ss:$16 sm:%s2484]
  %vm2486 = vcmask 1045508
  %v2487 = vsel %vm2486, %v2485, %v2482
  %s2488 = scalar_lea.vmem %s0, 771
  %s2489 = smov 192
  %v2490 = vld [vmem:[%s2488] ss:$16 sm:%s2489]
  %vm2491 = vcmask 1047558
  %v2492 = vsel %vm2491, %v2490, %v2487
  %2493 = vrot.lane.b32.xlu0 %v2492, 12
  %v2494 = vpop.permute.xlu0 %2493
  %vm2495 = vcmask 130144
  %s2496 = scalar_lea.vmem %s1, 48
  %2497 = vst.msk [vmem:[%s2496] sm:$0xff] %vm2495, %v2494
  %s2498 = scalar_lea.vmem %s0, 387
  %s2499 = smov 3
  %v2500 = vld [vmem:[%s2498] ss:$16 sm:%s2499]
  %s2501 = scalar_lea.vmem %s0, 387
  %s2502 = smov 12
  %v2503 = vld [vmem:[%s2501] ss:$16 sm:%s2502]
  %vm2504 = vcmask 1043458
  %v2505 = vsel %vm2504, %v2503, %v2500
  %s2506 = scalar_lea.vmem %s0, 387
  %s2507 = smov 48
  %v2508 = vld [vmem:[%s2506] ss:$16 sm:%s2507]
  %vm2509 = vcmask 1045508
  %v2510 = vsel %vm2509, %v2508, %v2505
  %s2511 = scalar_lea.vmem %s0, 387
  %s2512 = smov 192
  %v2513 = vld [vmem:[%s2511] ss:$16 sm:%s2512]
  %vm2514 = vcmask 1047558
  %v2515 = vsel %vm2514, %v2513, %v2510
  %2516 = vrot.lane.b32.xlu0 %v2515, 12
  %v2517 = vpop.permute.xlu0 %2516
  %vm2518 = vcmask 130144
  %s2519 = scalar_lea.vmem %s1, 24
  %2520 = vst.msk [vmem:[%s2519] sm:$0xff] %vm2518, %v2517
  %s2521 = scalar_lea.vmem %s0, 899
  %s2522 = smov 3
  %v2523 = vld [vmem:[%s2521] ss:$16 sm:%s2522]
  %s2524 = scalar_lea.vmem %s0, 899
  %s2525 = smov 12
  %v2526 = vld [vmem:[%s2524] ss:$16 sm:%s2525]
  %vm2527 = vcmask 1043458
  %v2528 = vsel %vm2527, %v2526, %v2523
  %s2529 = scalar_lea.vmem %s0, 899
  %s2530 = smov 48
  %v2531 = vld [vmem:[%s2529] ss:$16 sm:%s2530]
  %vm2532 = vcmask 1045508
  %v2533 = vsel %vm2532, %v2531, %v2528
  %s2534 = scalar_lea.vmem %s0, 899
  %s2535 = smov 192
  %v2536 = vld [vmem:[%s2534] ss:$16 sm:%s2535]
  %vm2537 = vcmask 1047558
  %v2538 = vsel %vm2537, %v2536, %v2533
  %2539 = vrot.lane.b32.xlu0 %v2538, 12
  %v2540 = vpop.permute.xlu0 %2539
  %vm2541 = vcmask 130144
  %s2542 = scalar_lea.vmem %s1, 56
  %2543 = vst.msk [vmem:[%s2542] sm:$0xff] %vm2541, %v2540
  %s2544 = scalar_lea.vmem %s0, 2
  %s2545 = smov 3
  %v2546 = vld [vmem:[%s2544] ss:$16 sm:%s2545]
  %s2547 = scalar_lea.vmem %s0, 2
  %s2548 = smov 12
  %v2549 = vld [vmem:[%s2547] ss:$16 sm:%s2548]
  %vm2550 = vcmask 1043458
  %v2551 = vsel %vm2550, %v2549, %v2546
  %s2552 = scalar_lea.vmem %s0, 2
  %s2553 = smov 48
  %v2554 = vld [vmem:[%s2552] ss:$16 sm:%s2553]
  %vm2555 = vcmask 1045508
  %v2556 = vsel %vm2555, %v2554, %v2551
  %s2557 = scalar_lea.vmem %s0, 2
  %s2558 = smov 192
  %v2559 = vld [vmem:[%s2557] ss:$16 sm:%s2558]
  %vm2560 = vcmask 1047558
  %v2561 = vsel %vm2560, %v2559, %v2556
  %2562 = vrot.lane.b32.xlu0 %v2561, 8
  %v2563 = vpop.permute.xlu0 %2562
  %vm2564 = vcmask 97344
  %2565 = vst.msk [vmem:[%s1] sm:$0xff] %vm2564, %v2563
  %s2566 = scalar_lea.vmem %s0, 514
  %s2567 = smov 3
  %v2568 = vld [vmem:[%s2566] ss:$16 sm:%s2567]
  %s2569 = scalar_lea.vmem %s0, 514
  %s2570 = smov 12
  %v2571 = vld [vmem:[%s2569] ss:$16 sm:%s2570]
  %vm2572 = vcmask 1043458
  %v2573 = vsel %vm2572, %v2571, %v2568
  %s2574 = scalar_lea.vmem %s0, 514
  %s2575 = smov 48
  %v2576 = vld [vmem:[%s2574] ss:$16 sm:%s2575]
  %vm2577 = vcmask 1045508
  %v2578 = vsel %vm2577, %v2576, %v2573
  %s2579 = scalar_lea.vmem %s0, 514
  %s2580 = smov 192
  %v2581 = vld [vmem:[%s2579] ss:$16 sm:%s2580]
  %vm2582 = vcmask 1047558
  %v2583 = vsel %vm2582, %v2581, %v2578
  %2584 = vrot.lane.b32.xlu0 %v2583, 8
  %v2585 = vpop.permute.xlu0 %2584
  %vm2586 = vcmask 97344
  %s2587 = scalar_lea.vmem %s1, 32
  %2588 = vst.msk [vmem:[%s2587] sm:$0xff] %vm2586, %v2585
  %s2589 = scalar_lea.vmem %s0, 130
  %s2590 = smov 3
  %v2591 = vld [vmem:[%s2589] ss:$16 sm:%s2590]
  %s2592 = scalar_lea.vmem %s0, 130
  %s2593 = smov 12
  %v2594 = vld [vmem:[%s2592] ss:$16 sm:%s2593]
  %vm2595 = vcmask 1043458
  %v2596 = vsel %vm2595, %v2594, %v2591
  %s2597 = scalar_lea.vmem %s0, 130
  %s2598 = smov 48
  %v2599 = vld [vmem:[%s2597] ss:$16 sm:%s2598]
  %vm2600 = vcmask 1045508
  %v2601 = vsel %vm2600, %v2599, %v2596
  %s2602 = scalar_lea.vmem %s0, 130
  %s2603 = smov 192
  %v2604 = vld [vmem:[%s2602] ss:$16 sm:%s2603]
  %vm2605 = vcmask 1047558
  %v2606 = vsel %vm2605, %v2604, %v2601
  %2607 = vrot.lane.b32.xlu0 %v2606, 8
  %v2608 = vpop.permute.xlu0 %2607
  %vm2609 = vcmask 97344
  %s2610 = scalar_lea.vmem %s1, 8
  %2611 = vst.msk [vmem:[%s2610] sm:$0xff] %vm2609, %v2608
  %s2612 = scalar_lea.vmem %s0, 642
  %s2613 = smov 3
  %v2614 = vld [vmem:[%s2612] ss:$16 sm:%s2613]
  %s2615 = scalar_lea.vmem %s0, 642
  %s2616 = smov 12
  %v2617 = vld [vmem:[%s2615] ss:$16 sm:%s2616]
  %vm2618 = vcmask 1043458
  %v2619 = vsel %vm2618, %v2617, %v2614
  %s2620 = scalar_lea.vmem %s0, 642
  %s2621 = smov 48
  %v2622 = vld [vmem:[%s2620] ss:$16 sm:%s2621]
  %vm2623 = vcmask 1045508
  %v2624 = vsel %vm2623, %v2622, %v2619
  %s2625 = scalar_lea.vmem %s0, 642
  %s2626 = smov 192
  %v2627 = vld [vmem:[%s2625] ss:$16 sm:%s2626]
  %vm2628 = vcmask 1047558
  %v2629 = vsel %vm2628, %v2627, %v2624
  %2630 = vrot.lane.b32.xlu0 %v2629, 8
  %v2631 = vpop.permute.xlu0 %2630
  %vm2632 = vcmask 97344
  %s2633 = scalar_lea.vmem %s1, 40
  %2634 = vst.msk [vmem:[%s2633] sm:$0xff] %vm2632, %v2631
  %s2635 = scalar_lea.vmem %s0, 258
  %s2636 = smov 3
  %v2637 = vld [vmem:[%s2635] ss:$16 sm:%s2636]
  %s2638 = scalar_lea.vmem %s0, 258
  %s2639 = smov 12
  %v2640 = vld [vmem:[%s2638] ss:$16 sm:%s2639]
  %vm2641 = vcmask 1043458
  %v2642 = vsel %vm2641, %v2640, %v2637
  %s2643 = scalar_lea.vmem %s0, 258
  %s2644 = smov 48
  %v2645 = vld [vmem:[%s2643] ss:$16 sm:%s2644]
  %vm2646 = vcmask 1045508
  %v2647 = vsel %vm2646, %v2645, %v2642
  %s2648 = scalar_lea.vmem %s0, 258
  %s2649 = smov 192
  %v2650 = vld [vmem:[%s2648] ss:$16 sm:%s2649]
  %vm2651 = vcmask 1047558
  %v2652 = vsel %vm2651, %v2650, %v2647
  %2653 = vrot.lane.b32.xlu0 %v2652, 8
  %v2654 = vpop.permute.xlu0 %2653
  %vm2655 = vcmask 97344
  %s2656 = scalar_lea.vmem %s1, 16
  %2657 = vst.msk [vmem:[%s2656] sm:$0xff] %vm2655, %v2654
  %s2658 = scalar_lea.vmem %s0, 770
  %s2659 = smov 3
  %v2660 = vld [vmem:[%s2658] ss:$16 sm:%s2659]
  %s2661 = scalar_lea.vmem %s0, 770
  %s2662 = smov 12
  %v2663 = vld [vmem:[%s2661] ss:$16 sm:%s2662]
  %vm2664 = vcmask 1043458
  %v2665 = vsel %vm2664, %v2663, %v2660
  %s2666 = scalar_lea.vmem %s0, 770
  %s2667 = smov 48
  %v2668 = vld [vmem:[%s2666] ss:$16 sm:%s2667]
  %vm2669 = vcmask 1045508
  %v2670 = vsel %vm2669, %v2668, %v2665
  %s2671 = scalar_lea.vmem %s0, 770
  %s2672 = smov 192
  %v2673 = vld [vmem:[%s2671] ss:$16 sm:%s2672]
  %vm2674 = vcmask 1047558
  %v2675 = vsel %vm2674, %v2673, %v2670
  %2676 = vrot.lane.b32.xlu0 %v2675, 8
  %v2677 = vpop.permute.xlu0 %2676
  %vm2678 = vcmask 97344
  %s2679 = scalar_lea.vmem %s1, 48
  %2680 = vst.msk [vmem:[%s2679] sm:$0xff] %vm2678, %v2677
  %s2681 = scalar_lea.vmem %s0, 386
  %s2682 = smov 3
  %v2683 = vld [vmem:[%s2681] ss:$16 sm:%s2682]
  %s2684 = scalar_lea.vmem %s0, 386
  %s2685 = smov 12
  %v2686 = vld [vmem:[%s2684] ss:$16 sm:%s2685]
  %vm2687 = vcmask 1043458
  %v2688 = vsel %vm2687, %v2686, %v2683
  %s2689 = scalar_lea.vmem %s0, 386
  %s2690 = smov 48
  %v2691 = vld [vmem:[%s2689] ss:$16 sm:%s2690]
  %vm2692 = vcmask 1045508
  %v2693 = vsel %vm2692, %v2691, %v2688
  %s2694 = scalar_lea.vmem %s0, 386
  %s2695 = smov 192
  %v2696 = vld [vmem:[%s2694] ss:$16 sm:%s2695]
  %vm2697 = vcmask 1047558
  %v2698 = vsel %vm2697, %v2696, %v2693
  %2699 = vrot.lane.b32.xlu0 %v2698, 8
  %v2700 = vpop.permute.xlu0 %2699
  %vm2701 = vcmask 97344
  %s2702 = scalar_lea.vmem %s1, 24
  %2703 = vst.msk [vmem:[%s2702] sm:$0xff] %vm2701, %v2700
  %s2704 = scalar_lea.vmem %s0, 898
  %s2705 = smov 3
  %v2706 = vld [vmem:[%s2704] ss:$16 sm:%s2705]
  %s2707 = scalar_lea.vmem %s0, 898
  %s2708 = smov 12
  %v2709 = vld [vmem:[%s2707] ss:$16 sm:%s2708]
  %vm2710 = vcmask 1043458
  %v2711 = vsel %vm2710, %v2709, %v2706
  %s2712 = scalar_lea.vmem %s0, 898
  %s2713 = smov 48
  %v2714 = vld [vmem:[%s2712] ss:$16 sm:%s2713]
  %vm2715 = vcmask 1045508
  %v2716 = vsel %vm2715, %v2714, %v2711
  %s2717 = scalar_lea.vmem %s0, 898
  %s2718 = smov 192
  %v2719 = vld [vmem:[%s2717] ss:$16 sm:%s2718]
  %vm2720 = vcmask 1047558
  %v2721 = vsel %vm2720, %v2719, %v2716
  %2722 = vrot.lane.b32.xlu0 %v2721, 8
  %v2723 = vpop.permute.xlu0 %2722
  %vm2724 = vcmask 97344
  %s2725 = scalar_lea.vmem %s1, 56
  %2726 = vst.msk [vmem:[%s2725] sm:$0xff] %vm2724, %v2723
  %s2727 = scalar_lea.vmem %s0, 1
  %s2728 = smov 3
  %v2729 = vld [vmem:[%s2727] ss:$16 sm:%s2728]
  %s2730 = scalar_lea.vmem %s0, 1
  %s2731 = smov 12
  %v2732 = vld [vmem:[%s2730] ss:$16 sm:%s2731]
  %vm2733 = vcmask 1043458
  %v2734 = vsel %vm2733, %v2732, %v2729
  %s2735 = scalar_lea.vmem %s0, 1
  %s2736 = smov 48
  %v2737 = vld [vmem:[%s2735] ss:$16 sm:%s2736]
  %vm2738 = vcmask 1045508
  %v2739 = vsel %vm2738, %v2737, %v2734
  %s2740 = scalar_lea.vmem %s0, 1
  %s2741 = smov 192
  %v2742 = vld [vmem:[%s2740] ss:$16 sm:%s2741]
  %vm2743 = vcmask 1047558
  %v2744 = vsel %vm2743, %v2742, %v2739
  %2745 = vrot.lane.b32.xlu0 %v2744, 4
  %v2746 = vpop.permute.xlu0 %2745
  %vm2747 = vcmask 64544
  %2748 = vst.msk [vmem:[%s1] sm:$0xff] %vm2747, %v2746
  %s2749 = scalar_lea.vmem %s0, 513
  %s2750 = smov 3
  %v2751 = vld [vmem:[%s2749] ss:$16 sm:%s2750]
  %s2752 = scalar_lea.vmem %s0, 513
  %s2753 = smov 12
  %v2754 = vld [vmem:[%s2752] ss:$16 sm:%s2753]
  %vm2755 = vcmask 1043458
  %v2756 = vsel %vm2755, %v2754, %v2751
  %s2757 = scalar_lea.vmem %s0, 513
  %s2758 = smov 48
  %v2759 = vld [vmem:[%s2757] ss:$16 sm:%s2758]
  %vm2760 = vcmask 1045508
  %v2761 = vsel %vm2760, %v2759, %v2756
  %s2762 = scalar_lea.vmem %s0, 513
  %s2763 = smov 192
  %v2764 = vld [vmem:[%s2762] ss:$16 sm:%s2763]
  %vm2765 = vcmask 1047558
  %v2766 = vsel %vm2765, %v2764, %v2761
  %2767 = vrot.lane.b32.xlu0 %v2766, 4
  %v2768 = vpop.permute.xlu0 %2767
  %vm2769 = vcmask 64544
  %s2770 = scalar_lea.vmem %s1, 32
  %2771 = vst.msk [vmem:[%s2770] sm:$0xff] %vm2769, %v2768
  %s2772 = scalar_lea.vmem %s0, 129
  %s2773 = smov 3
  %v2774 = vld [vmem:[%s2772] ss:$16 sm:%s2773]
  %s2775 = scalar_lea.vmem %s0, 129
  %s2776 = smov 12
  %v2777 = vld [vmem:[%s2775] ss:$16 sm:%s2776]
  %vm2778 = vcmask 1043458
  %v2779 = vsel %vm2778, %v2777, %v2774
  %s2780 = scalar_lea.vmem %s0, 129
  %s2781 = smov 48
  %v2782 = vld [vmem:[%s2780] ss:$16 sm:%s2781]
  %vm2783 = vcmask 1045508
  %v2784 = vsel %vm2783, %v2782, %v2779
  %s2785 = scalar_lea.vmem %s0, 129
  %s2786 = smov 192
  %v2787 = vld [vmem:[%s2785] ss:$16 sm:%s2786]
  %vm2788 = vcmask 1047558
  %v2789 = vsel %vm2788, %v2787, %v2784
  %2790 = vrot.lane.b32.xlu0 %v2789, 4
  %v2791 = vpop.permute.xlu0 %2790
  %vm2792 = vcmask 64544
  %s2793 = scalar_lea.vmem %s1, 8
  %2794 = vst.msk [vmem:[%s2793] sm:$0xff] %vm2792, %v2791
  %s2795 = scalar_lea.vmem %s0, 641
  %s2796 = smov 3
  %v2797 = vld [vmem:[%s2795] ss:$16 sm:%s2796]
  %s2798 = scalar_lea.vmem %s0, 641
  %s2799 = smov 12
  %v2800 = vld [vmem:[%s2798] ss:$16 sm:%s2799]
  %vm2801 = vcmask 1043458
  %v2802 = vsel %vm2801, %v2800, %v2797
  %s2803 = scalar_lea.vmem %s0, 641
  %s2804 = smov 48
  %v2805 = vld [vmem:[%s2803] ss:$16 sm:%s2804]
  %vm2806 = vcmask 1045508
  %v2807 = vsel %vm2806, %v2805, %v2802
  %s2808 = scalar_lea.vmem %s0, 641
  %s2809 = smov 192
  %v2810 = vld [vmem:[%s2808] ss:$16 sm:%s2809]
  %vm2811 = vcmask 1047558
  %v2812 = vsel %vm2811, %v2810, %v2807
  %2813 = vrot.lane.b32.xlu0 %v2812, 4
  %v2814 = vpop.permute.xlu0 %2813
  %vm2815 = vcmask 64544
  %s2816 = scalar_lea.vmem %s1, 40
  %2817 = vst.msk [vmem:[%s2816] sm:$0xff] %vm2815, %v2814
  %s2818 = scalar_lea.vmem %s0, 257
  %s2819 = smov 3
  %v2820 = vld [vmem:[%s2818] ss:$16 sm:%s2819]
  %s2821 = scalar_lea.vmem %s0, 257
  %s2822 = smov 12
  %v2823 = vld [vmem:[%s2821] ss:$16 sm:%s2822]
  %vm2824 = vcmask 1043458
  %v2825 = vsel %vm2824, %v2823, %v2820
  %s2826 = scalar_lea.vmem %s0, 257
  %s2827 = smov 48
  %v2828 = vld [vmem:[%s2826] ss:$16 sm:%s2827]
  %vm2829 = vcmask 1045508
  %v2830 = vsel %vm2829, %v2828, %v2825
  %s2831 = scalar_lea.vmem %s0, 257
  %s2832 = smov 192
  %v2833 = vld [vmem:[%s2831] ss:$16 sm:%s2832]
  %vm2834 = vcmask 1047558
  %v2835 = vsel %vm2834, %v2833, %v2830
  %2836 = vrot.lane.b32.xlu0 %v2835, 4
  %v2837 = vpop.permute.xlu0 %2836
  %vm2838 = vcmask 64544
  %s2839 = scalar_lea.vmem %s1, 16
  %2840 = vst.msk [vmem:[%s2839] sm:$0xff] %vm2838, %v2837
  %s2841 = scalar_lea.vmem %s0, 769
  %s2842 = smov 3
  %v2843 = vld [vmem:[%s2841] ss:$16 sm:%s2842]
  %s2844 = scalar_lea.vmem %s0, 769
  %s2845 = smov 12
  %v2846 = vld [vmem:[%s2844] ss:$16 sm:%s2845]
  %vm2847 = vcmask 1043458
  %v2848 = vsel %vm2847, %v2846, %v2843
  %s2849 = scalar_lea.vmem %s0, 769
  %s2850 = smov 48
  %v2851 = vld [vmem:[%s2849] ss:$16 sm:%s2850]
  %vm2852 = vcmask 1045508
  %v2853 = vsel %vm2852, %v2851, %v2848
  %s2854 = scalar_lea.vmem %s0, 769
  %s2855 = smov 192
  %v2856 = vld [vmem:[%s2854] ss:$16 sm:%s2855]
  %vm2857 = vcmask 1047558
  %v2858 = vsel %vm2857, %v2856, %v2853
  %2859 = vrot.lane.b32.xlu0 %v2858, 4
  %v2860 = vpop.permute.xlu0 %2859
  %vm2861 = vcmask 64544
  %s2862 = scalar_lea.vmem %s1, 48
  %2863 = vst.msk [vmem:[%s2862] sm:$0xff] %vm2861, %v2860
  %s2864 = scalar_lea.vmem %s0, 385
  %s2865 = smov 3
  %v2866 = vld [vmem:[%s2864] ss:$16 sm:%s2865]
  %s2867 = scalar_lea.vmem %s0, 385
  %s2868 = smov 12
  %v2869 = vld [vmem:[%s2867] ss:$16 sm:%s2868]
  %vm2870 = vcmask 1043458
  %v2871 = vsel %vm2870, %v2869, %v2866
  %s2872 = scalar_lea.vmem %s0, 385
  %s2873 = smov 48
  %v2874 = vld [vmem:[%s2872] ss:$16 sm:%s2873]
  %vm2875 = vcmask 1045508
  %v2876 = vsel %vm2875, %v2874, %v2871
  %s2877 = scalar_lea.vmem %s0, 385
  %s2878 = smov 192
  %v2879 = vld [vmem:[%s2877] ss:$16 sm:%s2878]
  %vm2880 = vcmask 1047558
  %v2881 = vsel %vm2880, %v2879, %v2876
  %2882 = vrot.lane.b32.xlu0 %v2881, 4
  %v2883 = vpop.permute.xlu0 %2882
  %vm2884 = vcmask 64544
  %s2885 = scalar_lea.vmem %s1, 24
  %2886 = vst.msk [vmem:[%s2885] sm:$0xff] %vm2884, %v2883
  %s2887 = scalar_lea.vmem %s0, 897
  %s2888 = smov 3
  %v2889 = vld [vmem:[%s2887] ss:$16 sm:%s2888]
  %s2890 = scalar_lea.vmem %s0, 897
  %s2891 = smov 12
  %v2892 = vld [vmem:[%s2890] ss:$16 sm:%s2891]
  %vm2893 = vcmask 1043458
  %v2894 = vsel %vm2893, %v2892, %v2889
  %s2895 = scalar_lea.vmem %s0, 897
  %s2896 = smov 48
  %v2897 = vld [vmem:[%s2895] ss:$16 sm:%s2896]
  %vm2898 = vcmask 1045508
  %v2899 = vsel %vm2898, %v2897, %v2894
  %s2900 = scalar_lea.vmem %s0, 897
  %s2901 = smov 192
  %v2902 = vld [vmem:[%s2900] ss:$16 sm:%s2901]
  %vm2903 = vcmask 1047558
  %v2904 = vsel %vm2903, %v2902, %v2899
  %2905 = vrot.lane.b32.xlu0 %v2904, 4
  %v2906 = vpop.permute.xlu0 %2905
  %vm2907 = vcmask 64544
  %s2908 = scalar_lea.vmem %s1, 56
  %2909 = vst.msk [vmem:[%s2908] sm:$0xff] %vm2907, %v2906

// kernel: c2f_kagnconv_forward.6
$region0: #{c2f_kagnconv_forward.6}
  #allocation0 [shape = 'u32[]', space=smem, size = 0x4, offset = 0x4, fixed_abs, tag = 'smem constant byte address 0x4 - core index']
  #allocation1 [shape = 'u32[72,128]{1,0:T(1,128)}', space=vmem, size = 0x9000, scoped, tag = 'internal scratch']
  %s0 = inlined_call_operand.vmem [shape: f32[2,18,72], index: 0, kind: input, shape index: {}]
  %s1 = inlined_call_operand.vmem [shape: bf16[3,72,64], index: 1, kind: input, shape index: {}]
  %s2 = inlined_call_operand.vmem [shape: f32[1,64], index: 2, kind: input, shape index: {}]
  %s3 = inlined_call_operand.vmem [shape: f32[1,64], index: 3, kind: input, shape index: {}]
  %s4 = inlined_call_operand.vmem [shape: f32[2,16,64], index: 4, kind: output, shape index: {}]
  %s5 = sld [smem:[#allocation0]]
  $region49: #{c2f_kagnconv_forward.6} parent=0
    _
  %s7 = ssub.s32 1, %s5
  %s8 = scalar_select 0, %s7, %s5
  loop: start=0, step=1, limit=4
  $region2: #{c2f_kagnconv_forward.6} parent=0 // loop_pre_header
    _
  $region3: #{c2f_kagnconv_forward.6} parent=0 // loop_header
    %s10 = sphi 0, %s14
    %p11 = scmp.ge.s32.totalorder %s10, 4
    %s17 = sphi 0, %s29
    %s18 = sphi 0, %s25
    %s19 = sphi 0, %s17
    %s20 = sphi 0, %s18
    %s21 = sphi 0, %s19
    %s22 = sphi 0, %s20
    %s32 = sphi 0, %s34
    %s35 = sphi 0, %s32
    %s36 = sphi 0, %s35
    %s52 = sphi 0, %s36
    %s56 = sphi 0, %s56
    %s58 = sphi 0, %s56
    %s59 = sphi 0, %s58
    %s73 = sphi 0, %s59
    %s77 = sphi 0, %s77
    %s79 = sphi 0, %s77
    %s80 = sphi 0, %s79
    %s94 = sphi 0, %s80
    %s98 = sphi 0, %s98
    %s100 = sphi 0, %s98
    %s101 = sphi 0, %s100
    %s115 = sphi 0, %s101
    %s123 = sphi 0, %s125
    %s126 = sphi 0, %s123
    %s127 = sphi 0, %s126
    %s143 = sphi 0, %s127
  $region4: #{c2f_kagnconv_forward.6} parent=0 // loop_header_branch
    %13 = sbr.rel (%p11) target = $region8
  $region5: #{c2f_kagnconv_forward.6} parent=0 // loop_body
    %s15 = ssub.s32 %s10, 1
    %s16 = ssub.s32 %s10, 2
    %s23 = sadd.s32 1, %s18
    %p24 = scmp.ge.s32.totalorder %s23, 1
    %s25 = scalar_select %p24, 0, %s23
    %s26 = sadd.s32 1, %s17
    %s27 = scalar_select %p24, %s26, %s17
    %p28 = scmp.ge.s32.totalorder %s27, 2
    %s29 = scalar_select %p28, 0, %s27
    %s30 = ssub.s32 %s17, %s29
    %p31 = scmp.eq.s32.totalorder %s30, 0
    %s33 = sadd.s32 %s32, 1
    %s34 = scalar_select %p31, %s32, %s33
    %p37 = pneg %p31
    %p38 = scmp.eq.s32.totalorder %s10, 1
    %p39 = por %p37, %p38
    %p40 = scmp.ne.s32.totalorder %s32, %s35
    %p41 = scmp.eq.s32.totalorder %s10, 0
    %p42 = por %p40, %p41
    %p43 = scmp.ne.s32.totalorder %s32, %s35
    %p44 = scmp.eq.s32.totalorder %s15, 1
    %p45 = por %p43, %p44
    %p46 = scmp.ne.s32.totalorder %s35, %s36
    %p47 = scmp.eq.s32.totalorder %s15, 0
    %p48 = por %p46, %p47
    %p49 = scmp.ne.s32.totalorder %s35, %s36
    %p50 = scmp.eq.s32.totalorder %s16, 1
    %p51 = por %p49, %p50
    %p53 = scmp.ne.s32.totalorder %s36, %s52
    %p54 = scmp.eq.s32.totalorder %s16, 0
    %p55 = por %p53, %p54
    %s57 = sadd.s32 %s56, 1
    %p60 = scmp.eq.s32.totalorder %s10, 1
    %p61 = scmp.ne.s32.totalorder %s56, %s58
    %p62 = scmp.eq.s32.totalorder %s10, 0
    %p63 = por %p61, %p62
    %p64 = scmp.ne.s32.totalorder %s56, %s58
    %p65 = scmp.eq.s32.totalorder %s15, 1
    %p66 = por %p64, %p65
    %p67 = scmp.ne.s32.totalorder %s58, %s59
    %p68 = scmp.eq.s32.totalorder %s15, 0
    %p69 = por %p67, %p68
    %p70 = scmp.ne.s32.totalorder %s58, %s59
    %p71 = scmp.eq.s32.totalorder %s16, 1
    %p72 = por %p70, %p71
    %p74 = scmp.ne.s32.totalorder %s59, %s73
    %p75 = scmp.eq.s32.totalorder %s16, 0
    %p76 = por %p74, %p75
    %s78 = sadd.s32 %s77, 1
    %p81 = scmp.eq.s32.totalorder %s10, 1
    %p82 = scmp.ne.s32.totalorder %s77, %s79
    %p83 = scmp.eq.s32.totalorder %s10, 0
    %p84 = por %p82, %p83
    %p85 = scmp.ne.s32.totalorder %s77, %s79
    %p86 = scmp.eq.s32.totalorder %s15, 1
    %p87 = por %p85, %p86
    %p88 = scmp.ne.s32.totalorder %s79, %s80
    %p89 = scmp.eq.s32.totalorder %s15, 0
    %p90 = por %p88, %p89
    %p91 = scmp.ne.s32.totalorder %s79, %s80
    %p92 = scmp.eq.s32.totalorder %s16, 1
    %p93 = por %p91, %p92
    %p95 = scmp.ne.s32.totalorder %s80, %s94
    %p96 = scmp.eq.s32.totalorder %s16, 0
    %p97 = por %p95, %p96
    %s99 = sadd.s32 %s98, 1
    %p102 = scmp.eq.s32.totalorder %s10, 1
    %p103 = scmp.ne.s32.totalorder %s98, %s100
    %p104 = scmp.eq.s32.totalorder %s10, 0
    %p105 = por %p103, %p104
    %p106 = scmp.ne.s32.totalorder %s98, %s100
    %p107 = scmp.eq.s32.totalorder %s15, 1
    %p108 = por %p106, %p107
    %p109 = scmp.ne.s32.totalorder %s100, %s101
    %p110 = scmp.eq.s32.totalorder %s15, 0
    %p111 = por %p109, %p110
    %p112 = scmp.ne.s32.totalorder %s100, %s101
    %p113 = scmp.eq.s32.totalorder %s16, 1
    %p114 = por %p112, %p113
    %p116 = scmp.ne.s32.totalorder %s101, %s115
    %p117 = scmp.eq.s32.totalorder %s16, 0
    %p118 = por %p116, %p117
    %s119 = ssub.s32 %s17, %s29
    %s120 = ssub.s32 %s18, %s25
    %s121 = sor.u32 %s119, %s120
    %p122 = scmp.eq.s32.totalorder %s121, 0
    %s124 = sadd.s32 %s123, 1
    %s125 = scalar_select %p122, %s123, %s124
    %p128 = pneg %p122
    %p129 = scmp.eq.s32.totalorder %s10, 1
    %p130 = por %p128, %p129
    %p131 = scmp.ne.s32.totalorder %s123, %s126
    %p132 = scmp.eq.s32.totalorder %s10, 0
    %p133 = por %p131, %p132
    %p134 = scmp.ne.s32.totalorder %s123, %s126
    %p135 = scmp.eq.s32.totalorder %s15, 1
    %p136 = por %p134, %p135
    %p137 = scmp.ne.s32.totalorder %s126, %s127
    %p138 = scmp.eq.s32.totalorder %s15, 0
    %p139 = por %p137, %p138
    %p140 = scmp.ne.s32.totalorder %s126, %s127
    %p141 = scmp.eq.s32.totalorder %s16, 1
    %p142 = por %p140, %p141
    %p144 = scmp.ne.s32.totalorder %s127, %s143
    %p145 = scmp.eq.s32.totalorder %s16, 0
    %p146 = por %p144, %p145
    %p147 = scmp.le.s32.totalorder 1, %s10
    %p148 = scmp.lt.s32.totalorder %s10, 3
    %p149 = pnand %p147, %p148
    %p150 = pneg %p149
    // Predicated region
    $region9: #{c2f_kagnconv_forward.6} parent=5 // pred_check
      _
    $region10: #{c2f_kagnconv_forward.6} parent=5 // pred_check_branch
      %152 = sbr.rel (%p149) target = $region12
    $region11: #{c2f_kagnconv_forward.6} parent=5 // pred_region
      %s153 = ssub.s32 %s10, 1
      // Predicated region
      $region13: #{c2f_kagnconv_forward.6} parent=11 // pred_check
        %p154 = pneg %p69
      $region14: #{c2f_kagnconv_forward.6} parent=11 // pred_check_branch
        %156 = sbr.rel (%p154) target = $region16
      $region15: #{c2f_kagnconv_forward.6} parent=11 // pred_region
        _
      $region16: #{c2f_kagnconv_forward.6} parent=11 // pred_fallthru
        _
      // Predicated region
      $region17: #{c2f_kagnconv_forward.6} parent=11 // pred_check
        %p157 = pneg %p90
      $region18: #{c2f_kagnconv_forward.6} parent=11 // pred_check_branch
        %159 = sbr.rel (%p157) target = $region20
      $region19: #{c2f_kagnconv_forward.6} parent=11 // pred_region
        _
      $region20: #{c2f_kagnconv_forward.6} parent=11 // pred_fallthru
        _
      // Predicated region
      $region21: #{c2f_kagnconv_forward.6} parent=11 // pred_check
        %p160 = pneg %p111
      $region22: #{c2f_kagnconv_forward.6} parent=11 // pred_check_branch
        %162 = sbr.rel (%p160) target = $region24
      $region23: #{c2f_kagnconv_forward.6} parent=11 // pred_region
        _
      $region24: #{c2f_kagnconv_forward.6} parent=11 // pred_fallthru
        _
    $region12: #{c2f_kagnconv_forward.6} parent=5 // pred_fallthru
      _
    %p163 = scmp.lt.s32.totalorder %s10, 2
    // Predicated region
    $region25: #{c2f_kagnconv_forward.6} parent=5 // pred_check
      %p164 = pneg %p163
    $region26: #{c2f_kagnconv_forward.6} parent=5 // pred_check_branch
      %166 = sbr.rel (%p164) target = $region28
    $region27: #{c2f_kagnconv_forward.6} parent=5 // pred_region
      // Predicated region
      $region29: #{c2f_kagnconv_forward.6} parent=27 // pred_check
        %p167 = pneg %p42
      $region30: #{c2f_kagnconv_forward.6} parent=27 // pred_check_branch
        %169 = sbr.rel (%p167) target = $region32
      $region31: #{c2f_kagnconv_forward.6} parent=27 // pred_region
        %p170 = scmp.lt.s32.totalorder %s17, 1
        %s171 = scalar_select %p170, %s17, 1
        %s172 = smul.addr %s171, 3
        %s173 = smul.addr %s172, 8
        %s174 = scalar_lea.vmem %s0, %s173
      $region32: #{c2f_kagnconv_forward.6} parent=27 // pred_fallthru
        _
    $region28: #{c2f_kagnconv_forward.6} parent=5 // pred_fallthru
      _
    %p175 = scmp.le.s32.totalorder 1, %s10
    %p176 = scmp.lt.s32.totalorder %s10, 3
    %p177 = pnand %p175, %p176
    %p178 = pneg %p177
    // Predicated region
    $region33: #{c2f_kagnconv_forward.6} parent=5 // pred_check
      _
    $region34: #{c2f_kagnconv_forward.6} parent=5 // pred_check_branch
      %180 = sbr.rel (%p177) target = $region36
    $region35: #{c2f_kagnconv_forward.6} parent=5 // pred_region
      %s181 = ssub.s32 %s10, 1
      %p182 = scmp.lt.s32.totalorder %s19, 1
      %s183 = scalar_select %p182, %s19, 1
      %s184 = smul.addr %s183, 3
      %s185 = smul.addr %s184, 8
      %s186 = scalar_lea.vmem %s0, %s185
      %p187 = pneg %p48
      %p188 = pneg %p45
      %p189 = pneg %p69
      %p190 = pneg %p66
      %p191 = pneg %p90
      %p192 = pneg %p87
      %p193 = pneg %p111
      %p194 = pneg %p108
      %p195 = pneg %p139
      %p196 = pneg %p136
      %s197 = smul.u32 2, %s20
      %p198 = scmp.lt.s32.totalorder %s19, 1
      %s199 = scalar_select %p198, %s19, 1
      %p200 = scmp.lt.s32.totalorder %s197, 1
      %s201 = scalar_select %p200, %s197, 1
      %s202 = smul.addr %s199, 2
      %s203 = sadd.s32 %s201, %s202
      %s204 = smul.addr %s203, 8
      %s205 = scalar_lea.vmem %s4, %s204
      %p206 = scmp.lt.s32.totalorder %s19, 1
      %s207 = scalar_select %p206, %s19, 1
      %s208 = smul.addr %s207, 3
      %s209 = smul.addr %s208, 8
      %s210 = scalar_lea.vmem %s0, %s209
      %s211 = smul.u32 2, %s20
      %p212 = scmp.lt.s32.totalorder %s19, 1
      %s213 = scalar_select %p212, %s19, 1
      %p214 = scmp.lt.s32.totalorder %s211, 1
      %s215 = scalar_select %p214, %s211, 1
      %s216 = smul.addr %s213, 2
      %s217 = sadd.s32 %s215, %s216
      %s218 = smul.addr %s217, 8
      %s219 = scalar_lea.vmem %s4, %s218
      %s220 = smul.u32 2, %s20
      %s222 = smul.u32 %s20, 16
      %s223 = scalar_lea.vmem %s210, %s222
      %v224 = vld [vmem:[%s223] sm:$0xff]
      %v225 = vld [vmem:[%s223 + $0x8] sm:$0xff]
      %v226 = vld [vmem:[%s223 + $0x10] sm:$0x3]
      %v227 = vpack.c.bf16 %v224, %v224
      %v228 = vpack.c.bf16 %v225, %v225
      %v229 = vpack.c.bf16 %v226, %v226
      %v230 = vld [vmem:[%s1] sm:$0xf]
      %v231 = vld [vmem:[%s1 + $0x4] sm:$0xf]
      %v232 = vld [vmem:[%s1 + $0x8] sm:$0xf]
      %v233 = vld [vmem:[%s1 + $0xc] sm:$0xf]
      %v234 = vld [vmem:[%s1 + $0x10] sm:$0xf]
      %v235 = vld [vmem:[%s1 + $0x14] sm:$0xf]
      %v236 = vld [vmem:[%s1 + $0x18] sm:$0xf]
      %v237 = vld [vmem:[%s1 + $0x1c] sm:$0xf]
      %v238 = vld [vmem:[%s1 + $0x20] sm:$0xf]
      %s239 = scalar_lea.vmem %s1, 36
      %v240 = vld [vmem:[%s239] sm:$0xf]
      %v241 = vld [vmem:[%s239 + $0x4] sm:$0xf]
      %v242 = vld [vmem:[%s239 + $0x8] sm:$0xf]
      %v243 = vld [vmem:[%s239 + $0xc] sm:$0xf]
      %v244 = vld [vmem:[%s239 + $0x10] sm:$0xf]
      %v245 = vld [vmem:[%s239 + $0x14] sm:$0xf]
      %v246 = vld [vmem:[%s239 + $0x18] sm:$0xf]
      %v247 = vld [vmem:[%s239 + $0x1c] sm:$0xf]
      %v248 = vld [vmem:[%s239 + $0x20] sm:$0xf]
      %v252 = vunpack.c.l.b16 %v227
      %v253 = vunpack.c.l.b16 %v228
      %v254 = vunpack.c.l.b16 %v229
      %v255 = vpack.c.b16 %v253, %v252
      %v256 = vpack.c.b16 %v254, %v254
      %vm257 = vsmask.f32 7424
      %v259 = vshrl.u32 %v255, 16
      %v261 = vshll.u32 %v255, 16
      %v263 = vrot.slane %v261, 1
      %v264 = vor.u32 %v259, %v263
      %v266 = vshll.u32 %v256, 16
      %v268 = vrot.slane %v266, 1
      %v269 = vsel %vm257, %v264, %v268
      %v279 = vunpack.c.l.b16 %v240
      %v280 = vunpack.c.l.b16 %v241
      %v281 = vunpack.c.l.b16 %v242
      %v282 = vunpack.c.l.b16 %v243
      %v283 = vunpack.c.l.b16 %v244
      %v284 = vunpack.c.l.b16 %v245
      %v285 = vunpack.c.l.b16 %v246
      %v286 = vunpack.c.l.b16 %v247
      %v287 = vunpack.c.l.b16 %v248
      %v288 = vpack.c.b16 %v280, %v279
      %v289 = vpack.c.b16 %v282, %v281
      %v290 = vpack.c.b16 %v284, %v283
      %v291 = vpack.c.b16 %v286, %v285
      %v292 = vpack.c.b16 %v287, %v287
      %vm297 = vcmask 588800
      %v299 = vsel %vm297, %v269, 0
      %vm301 = vcmask 1043456
      %v303 = vsel %vm301, %v292, 0
      %305 = vmatpush.bf16.msra.mxu0 0
      %306 = vmatpush.bf16.msra.mxu0 0
      %307 = vmatpush.bf16.msra.mxu0 0
      %308 = vmatpush.bf16.msra.mxu0 %v303
      %309 = vmatpush.bf16.msra.mxu0 %v291
      %310 = vmatpush.bf16.msra.mxu0 %v290
      %311 = vmatpush.bf16.msra.mxu0 %v289
      %312 = vmatpush.bf16.msra.mxu0 %v288
      %313 = vmatmul.bf16.gmra.mxu0 %v299
      %v314 = vpop.f32.mrf.mxu0
      %v315 = vadd.f32 0.0, %v314
      %v316 = vpop.f32.mrf.mxu0
      %v317 = vadd.f32 0.0, %v316
      %318 = vdwg.mxu0
      %v328 = vunpack.c.l.b16 %v230
      %v329 = vunpack.c.l.b16 %v231
      %v330 = vunpack.c.l.b16 %v232
      %v331 = vunpack.c.l.b16 %v233
      %v332 = vunpack.c.l.b16 %v234
      %v333 = vunpack.c.l.b16 %v235
      %v334 = vunpack.c.l.b16 %v236
      %v335 = vunpack.c.l.b16 %v237
      %v336 = vunpack.c.l.b16 %v238
      %v337 = vpack.c.b16 %v329, %v328
      %v338 = vpack.c.b16 %v331, %v330
      %v339 = vpack.c.b16 %v333, %v332
      %v340 = vpack.c.b16 %v335, %v334
      %v341 = vpack.c.b16 %v336, %v336
      %v346 = vsel %vm297, %v255, 0
      %v349 = vsel %vm301, %v341, 0
      %351 = vmatpush.bf16.msra.mxu0 0
      %352 = vmatpush.bf16.msra.mxu0 0
      %353 = vmatpush.bf16.msra.mxu0 0
      %354 = vmatpush.bf16.msra.mxu0 %v349
      %355 = vmatpush.bf16.msra.mxu0 %v340
      %356 = vmatpush.bf16.msra.mxu0 %v339
      %357 = vmatpush.bf16.msra.mxu0 %v338
      %358 = vmatpush.bf16.msra.mxu0 %v337
      %359 = vmatmul.bf16.gmra.mxu0 %v346
      %v360 = vpop.f32.mrf.mxu0
      %v361 = vadd.f32 %v315, %v360
      %v362 = vpop.f32.mrf.mxu0
      %v363 = vadd.f32 %v317, %v362
      %364 = vdwg.mxu0
      %s365 = scalar_lea.vmem %s1, 72
      %v366 = vld [vmem:[%s365] sm:$0xf]
      %v367 = vld [vmem:[%s365 + $0x4] sm:$0xf]
      %v368 = vld [vmem:[%s365 + $0x8] sm:$0xf]
      %v369 = vld [vmem:[%s365 + $0xc] sm:$0xf]
      %v370 = vld [vmem:[%s365 + $0x10] sm:$0xf]
      %v371 = vld [vmem:[%s365 + $0x14] sm:$0xf]
      %v372 = vld [vmem:[%s365 + $0x18] sm:$0xf]
      %v373 = vld [vmem:[%s365 + $0x1c] sm:$0xf]
      %v374 = vld [vmem:[%s365 + $0x20] sm:$0xf]
      %vm375 = vcmask 1046528
      %v376 = vrot.slane %v255, 1
      %v377 = vrot.slane %v256, 1
      %v378 = vsel %vm375, %v376, %v377
      %v388 = vunpack.c.l.b16 %v366
      %v389 = vunpack.c.l.b16 %v367
      %v390 = vunpack.c.l.b16 %v368
      %v391 = vunpack.c.l.b16 %v369
      %v392 = vunpack.c.l.b16 %v370
      %v393 = vunpack.c.l.b16 %v371
      %v394 = vunpack.c.l.b16 %v372
      %v395 = vunpack.c.l.b16 %v373
      %v396 = vunpack.c.l.b16 %v374
      %v397 = vpack.c.b16 %v389, %v388
      %v398 = vpack.c.b16 %v391, %v390
      %v399 = vpack.c.b16 %v393, %v392
      %v400 = vpack.c.b16 %v395, %v394
      %v401 = vpack.c.b16 %v396, %v396
      %v407 = vsel %vm297, %v378, 0
      %v410 = vsel %vm301, %v401, 0
      %412 = vmatpush.bf16.msra.mxu0 0
      %413 = vmatpush.bf16.msra.mxu0 0
      %414 = vmatpush.bf16.msra.mxu0 0
      %415 = vmatpush.bf16.msra.mxu0 %v410
      %416 = vmatpush.bf16.msra.mxu0 %v400
      %417 = vmatpush.bf16.msra.mxu0 %v399
      %418 = vmatpush.bf16.msra.mxu0 %v398
      %419 = vmatpush.bf16.msra.mxu0 %v397
      %420 = vmatmul.bf16.gmra.mxu0 %v407
      %v421 = vpop.f32.mrf.mxu0
      %v422 = vadd.f32 0.0, %v421
      %v423 = vpop.f32.mrf.mxu0
      %v424 = vadd.f32 0.0, %v423
      %425 = vdwg.mxu0
      %v426 = vadd.f32 %v361, %v422
      %v427 = vadd.f32 %v363, %v424
      %v428 = vld [vmem:[%s2] sm:$0x1]
      %v430 = vperm.slane %v428, 0
      %v432 = vmul.f32 %v426, %v430
      %v433 = vmul.f32 %v427, %v430
      %v434 = vld [vmem:[%s3] sm:$0x1]
      %v436 = vperm.slane %v434, 0
      %v438 = vadd.f32 %v432, %v436
      %v439 = vadd.f32 %v433, %v436
      %v440 = vxor.u32 %v438, 2147483648
      %v441 = vxor.u32 %v439, 2147483648
      %v442 = vmul.f32 %v440, 1.442695
      %v443 = vpow.pop %v442
      %v444 = vmul.f32 %v441, 1.442695
      %v445 = vpow.pop %v444
      %v446 = vadd.f32 %v443, 1.0
      %v447 = vadd.f32 %v445, 1.0
      %v448 = vrcp.pop %v446
      %v449 = vmul.f32 %v446, %v448
      %v450 = vsub.f32 1.0, %v449
      %v451 = vmul.f32 %v448, %v450
      %v452 = vadd.f32 %v448, %v451
      %vm453 = vweird.f32 %v446
      %vm454 = vweird.f32 %v448
      %vm455 = vmor %vm453, %vm454
      %v456 = vsel %vm455, %v448, %v452
      %v457 = vand.u32 2147483647, %v446
      %vm458 = vcmp.eq.f32.partialorder %v457, 8.507059e+37
      %v459 = vand.u32 %v446, 2147483648
      %v460 = vor.u32 1.1754944e-38, %v459
      %v461 = vsel %vm458, %v460, %v456
      %v462 = vmul.f32 1.0, %v461
      %v463 = vrcp.pop %v447
      %v464 = vmul.f32 %v447, %v463
      %v465 = vsub.f32 1.0, %v464
      %v466 = vmul.f32 %v463, %v465
      %v467 = vadd.f32 %v463, %v466
      %vm468 = vweird.f32 %v447
      %vm469 = vweird.f32 %v463
      %vm470 = vmor %vm468, %vm469
      %v471 = vsel %vm470, %v463, %v467
      %v472 = vand.u32 2147483647, %v447
      %vm473 = vcmp.eq.f32.partialorder %v472, 8.507059e+37
      %v474 = vand.u32 %v447, 2147483648
      %v475 = vor.u32 1.1754944e-38, %v474
      %v476 = vsel %vm473, %v475, %v471
      %v477 = vmul.f32 1.0, %v476
      %v478 = vmul.f32 %v438, %v462
      %v479 = vmul.f32 %v439, %v477
      %vm480 = vcmask 523264
      %481 = vst.msk [vmem:[%s219] sm:$0xff] %vm480, %v478
      %482 = vst.msk [vmem:[%s219 + $0x8] sm:$0xff] %vm480, %v479
      %s483 = smul.u32 2, %s20
      %p484 = scmp.lt.s32.totalorder %s19, 1
      %s485 = scalar_select %p484, %s19, 1
      %p486 = scmp.lt.s32.totalorder %s483, 1
      %s487 = scalar_select %p486, %s483, 1
      %s488 = smul.addr %s485, 2
      %s489 = sadd.s32 %s487, %s488
      %s490 = smul.addr %s489, 8
      %s491 = scalar_lea.vmem %s4, %s490
      // Predicated region
      $region37: #{c2f_kagnconv_forward.6} parent=35 // pred_check
        %p492 = pneg %p136
      $region38: #{c2f_kagnconv_forward.6} parent=35 // pred_check_branch
        %494 = sbr.rel (%p492) target = $region40
      $region39: #{c2f_kagnconv_forward.6} parent=35 // pred_region
        %s495 = smul.u32 2, %s20
      $region40: #{c2f_kagnconv_forward.6} parent=35 // pred_fallthru
        _
    $region36: #{c2f_kagnconv_forward.6} parent=5 // pred_fallthru
      _
    %p496 = scmp.le.s32.totalorder 2, %s10
    // Predicated region
    $region41: #{c2f_kagnconv_forward.6} parent=5 // pred_check
      %p497 = pneg %p496
    $region42: #{c2f_kagnconv_forward.6} parent=5 // pred_check_branch
      %499 = sbr.rel (%p497) target = $region44
    $region43: #{c2f_kagnconv_forward.6} parent=5 // pred_region
      %s500 = ssub.s32 %s10, 2
      // Predicated region
      $region45: #{c2f_kagnconv_forward.6} parent=43 // pred_check
        %p501 = pneg %p142
      $region46: #{c2f_kagnconv_forward.6} parent=43 // pred_check_branch
        %503 = sbr.rel (%p501) target = $region48
      $region47: #{c2f_kagnconv_forward.6} parent=43 // pred_region
        %s504 = smul.u32 2, %s22
        %p505 = scmp.lt.s32.totalorder %s21, 1
        %s506 = scalar_select %p505, %s21, 1
        %p507 = scmp.lt.s32.totalorder %s504, 1
        %s508 = scalar_select %p507, %s504, 1
        %s509 = smul.addr %s506, 2
        %s510 = sadd.s32 %s508, %s509
        %s511 = smul.addr %s510, 8
        %s512 = scalar_lea.vmem %s4, %s511
      $region48: #{c2f_kagnconv_forward.6} parent=43 // pred_fallthru
        _
    $region44: #{c2f_kagnconv_forward.6} parent=5 // pred_fallthru
      _
  $region6: #{c2f_kagnconv_forward.6} parent=0 // loop_footer
    %s14 = sadd.s32 1, %s10
  $region7: #{c2f_kagnconv_forward.6} parent=0 // loop_footer_branch
    %9 = sbr.rel target = $region3
  $region8: #{c2f_kagnconv_forward.6} parent=0 // loop_exit
    _

// kernel: c2f_kagnconv_forward.8
$region0: #{c2f_kagnconv_forward.8}
  #allocation0 [shape = 'u32[]', space=smem, size = 0x4, offset = 0x4, fixed_abs, tag = 'smem constant byte address 0x4 - core index']
  #allocation1 [shape = 'u32[72,128]{1,0:T(1,128)}', space=vmem, size = 0x9000, scoped, tag = 'internal scratch']
  %s0 = inlined_call_operand.vmem [shape: f32[2,16,64], index: 0, kind: input, shape index: {}]
  %s1 = inlined_call_operand.vmem [shape: f32[64,64], index: 1, kind: input, shape index: {}]
  %s2 = inlined_call_operand.vmem [shape: f32[2,16,64], index: 2, kind: output, shape index: {}]
  %s3 = sld [smem:[#allocation0]]
  $region41: #{c2f_kagnconv_forward.8} parent=0
    _
  %s5 = ssub.s32 1, %s3
  %s6 = scalar_select 0, %s5, %s3
  loop: start=0, step=1, limit=4
  $region2: #{c2f_kagnconv_forward.8} parent=0 // loop_pre_header
    _
  $region3: #{c2f_kagnconv_forward.8} parent=0 // loop_header
    %s8 = sphi 0, %s12
    %p9 = scmp.ge.s32.totalorder %s8, 4
    %s18 = sphi 0, %s20
    %s21 = sphi 0, %s18
    %s22 = sphi 0, %s21
    %s38 = sphi 0, %s22
    %s42 = sphi 0, %s42
    %s44 = sphi 0, %s42
    %s45 = sphi 0, %s44
    %s59 = sphi 0, %s45
    %s65 = sphi 0, %s67
    %s68 = sphi 0, %s65
    %s69 = sphi 0, %s68
    %s85 = sphi 0, %s69
  $region4: #{c2f_kagnconv_forward.8} parent=0 // loop_header_branch
    %11 = sbr.rel (%p9) target = $region8
  $region5: #{c2f_kagnconv_forward.8} parent=0 // loop_body
    %s13 = ssub.s32 %s8, 1
    %s14 = ssub.s32 %s8, 2
    %s15 = sadd.s32 %s8, 1
    %s16 = ssub.s32 %s8, %s15
    %p17 = scmp.eq.s32.totalorder %s16, 0
    %s19 = sadd.s32 %s18, 1
    %s20 = scalar_select %p17, %s18, %s19
    %p23 = pneg %p17
    %p24 = scmp.eq.s32.totalorder %s8, 1
    %p25 = por %p23, %p24
    %p26 = scmp.ne.s32.totalorder %s18, %s21
    %p27 = scmp.eq.s32.totalorder %s8, 0
    %p28 = por %p26, %p27
    %p29 = scmp.ne.s32.totalorder %s18, %s21
    %p30 = scmp.eq.s32.totalorder %s13, 1
    %p31 = por %p29, %p30
    %p32 = scmp.ne.s32.totalorder %s21, %s22
    %p33 = scmp.eq.s32.totalorder %s13, 0
    %p34 = por %p32, %p33
    %p35 = scmp.ne.s32.totalorder %s21, %s22
    %p36 = scmp.eq.s32.totalorder %s14, 1
    %p37 = por %p35, %p36
    %p39 = scmp.ne.s32.totalorder %s22, %s38
    %p40 = scmp.eq.s32.totalorder %s14, 0
    %p41 = por %p39, %p40
    %s43 = sadd.s32 %s42, 1
    %p46 = scmp.eq.s32.totalorder %s8, 1
    %p47 = scmp.ne.s32.totalorder %s42, %s44
    %p48 = scmp.eq.s32.totalorder %s8, 0
    %p49 = por %p47, %p48
    %p50 = scmp.ne.s32.totalorder %s42, %s44
    %p51 = scmp.eq.s32.totalorder %s13, 1
    %p52 = por %p50, %p51
    %p53 = scmp.ne.s32.totalorder %s44, %s45
    %p54 = scmp.eq.s32.totalorder %s13, 0
    %p55 = por %p53, %p54
    %p56 = scmp.ne.s32.totalorder %s44, %s45
    %p57 = scmp.eq.s32.totalorder %s14, 1
    %p58 = por %p56, %p57
    %p60 = scmp.ne.s32.totalorder %s45, %s59
    %p61 = scmp.eq.s32.totalorder %s14, 0
    %p62 = por %p60, %p61
    %s63 = ssub.s32 %s8, %s15
    %p64 = scmp.eq.s32.totalorder %s63, 0
    %s66 = sadd.s32 %s65, 1
    %s67 = scalar_select %p64, %s65, %s66
    %p70 = pneg %p64
    %p71 = scmp.eq.s32.totalorder %s8, 1
    %p72 = por %p70, %p71
    %p73 = scmp.ne.s32.totalorder %s65, %s68
    %p74 = scmp.eq.s32.totalorder %s8, 0
    %p75 = por %p73, %p74
    %p76 = scmp.ne.s32.totalorder %s65, %s68
    %p77 = scmp.eq.s32.totalorder %s13, 1
    %p78 = por %p76, %p77
    %p79 = scmp.ne.s32.totalorder %s68, %s69
    %p80 = scmp.eq.s32.totalorder %s13, 0
    %p81 = por %p79, %p80
    %p82 = scmp.ne.s32.totalorder %s68, %s69
    %p83 = scmp.eq.s32.totalorder %s14, 1
    %p84 = por %p82, %p83
    %p86 = scmp.ne.s32.totalorder %s69, %s85
    %p87 = scmp.eq.s32.totalorder %s14, 0
    %p88 = por %p86, %p87
    %p89 = scmp.le.s32.totalorder 1, %s8
    %p90 = scmp.lt.s32.totalorder %s8, 3
    %p91 = pnand %p89, %p90
    %p92 = pneg %p91
    // Predicated region
    $region9: #{c2f_kagnconv_forward.8} parent=5 // pred_check
      _
    $region10: #{c2f_kagnconv_forward.8} parent=5 // pred_check_branch
      %94 = sbr.rel (%p91) target = $region12
    $region11: #{c2f_kagnconv_forward.8} parent=5 // pred_region
      %s95 = ssub.s32 %s8, 1
      // Predicated region
      $region13: #{c2f_kagnconv_forward.8} parent=11 // pred_check
        %p96 = pneg %p55
      $region14: #{c2f_kagnconv_forward.8} parent=11 // pred_check_branch
        %98 = sbr.rel (%p96) target = $region16
      $region15: #{c2f_kagnconv_forward.8} parent=11 // pred_region
        _
      $region16: #{c2f_kagnconv_forward.8} parent=11 // pred_fallthru
        _
    $region12: #{c2f_kagnconv_forward.8} parent=5 // pred_fallthru
      _
    %p99 = scmp.lt.s32.totalorder %s8, 2
    // Predicated region
    $region17: #{c2f_kagnconv_forward.8} parent=5 // pred_check
      %p100 = pneg %p99
    $region18: #{c2f_kagnconv_forward.8} parent=5 // pred_check_branch
      %102 = sbr.rel (%p100) target = $region20
    $region19: #{c2f_kagnconv_forward.8} parent=5 // pred_region
      // Predicated region
      $region21: #{c2f_kagnconv_forward.8} parent=19 // pred_check
        %p103 = pneg %p28
      $region22: #{c2f_kagnconv_forward.8} parent=19 // pred_check_branch
        %105 = sbr.rel (%p103) target = $region24
      $region23: #{c2f_kagnconv_forward.8} parent=19 // pred_region
        %p106 = scmp.lt.s32.totalorder %s8, 1
        %s107 = scalar_select %p106, %s8, 1
        %s108 = smul.addr %s107, 2
        %s109 = smul.addr %s108, 8
        %s110 = scalar_lea.vmem %s0, %s109
      $region24: #{c2f_kagnconv_forward.8} parent=19 // pred_fallthru
        _
    $region20: #{c2f_kagnconv_forward.8} parent=5 // pred_fallthru
      _
    %p111 = scmp.le.s32.totalorder 1, %s8
    %p112 = scmp.lt.s32.totalorder %s8, 3
    %p113 = pnand %p111, %p112
    %p114 = pneg %p113
    // Predicated region
    $region25: #{c2f_kagnconv_forward.8} parent=5 // pred_check
      _
    $region26: #{c2f_kagnconv_forward.8} parent=5 // pred_check_branch
      %116 = sbr.rel (%p113) target = $region28
    $region27: #{c2f_kagnconv_forward.8} parent=5 // pred_region
      %s117 = ssub.s32 %s8, 1
      %p118 = scmp.lt.s32.totalorder %s13, 1
      %s119 = scalar_select %p118, %s13, 1
      %s120 = smul.addr %s119, 2
      %s121 = smul.addr %s120, 8
      %s122 = scalar_lea.vmem %s0, %s121
      %p123 = pneg %p34
      %p124 = pneg %p31
      %p125 = pneg %p55
      %p126 = pneg %p52
      %p127 = pneg %p81
      %p128 = pneg %p78
      %p129 = scmp.lt.s32.totalorder %s13, 1
      %s130 = scalar_select %p129, %s13, 1
      %s131 = smul.addr %s130, 2
      %s132 = smul.addr %s131, 8
      %s133 = scalar_lea.vmem %s2, %s132
      %p134 = scmp.lt.s32.totalorder %s13, 1
      %s135 = scalar_select %p134, %s13, 1
      %s136 = smul.addr %s135, 2
      %s137 = smul.addr %s136, 8
      %s138 = scalar_lea.vmem %s0, %s137
      %p139 = scmp.lt.s32.totalorder %s13, 1
      %s140 = scalar_select %p139, %s13, 1
      %s141 = smul.addr %s140, 2
      %s142 = smul.addr %s141, 8
      %s143 = scalar_lea.vmem %s2, %s142
      %v144 = vld [vmem:[%s138] sm:$0xff]
      %v145 = vld [vmem:[%s138 + $0x8] sm:$0xff]
      %v146 = vld [vmem:[%s1] sm:$0xff]
      %v147 = vld [vmem:[%s1 + $0x8] sm:$0xff]
      %v148 = vld [vmem:[%s1 + $0x10] sm:$0xff]
      %v149 = vld [vmem:[%s1 + $0x18] sm:$0xff]
      %v150 = vld [vmem:[%s1 + $0x20] sm:$0xff]
      %v151 = vld [vmem:[%s1 + $0x28] sm:$0xff]
      %v152 = vld [vmem:[%s1 + $0x30] sm:$0xff]
      %v153 = vld [vmem:[%s1 + $0x38] sm:$0xff]
      %vm154 = vcmask 523264
      %v156 = vsel %vm154, %v144, 0
      %v159 = vsel %vm154, %v145, 0
      %161 = vmatpush.msra.mxu0 0.0
      %162 = vmatpush.msra.mxu0 0.0
      %163 = vmatpush.msra.mxu0 0.0
      %164 = vmatpush.msra.mxu0 0.0
      %165 = vmatpush.msra.mxu0 0.0
      %166 = vmatpush.msra.mxu0 0.0
      %167 = vmatpush.msra.mxu0 0.0
      %168 = vmatpush.msra.mxu0 0.0
      %169 = vmatpush.msra.mxu0 %v153
      %170 = vmatpush.msra.mxu0 %v152
      %171 = vmatpush.msra.mxu0 %v151
      %172 = vmatpush.msra.mxu0 %v150
      %173 = vmatpush.msra.mxu0 %v149
      %174 = vmatpush.msra.mxu0 %v148
      %175 = vmatpush.msra.mxu0 %v147
      %176 = vmatpush.msra.mxu0 %v146
      %177 = vmatmul.f32.gmra.mxu0 %v156
      %v178 = vpop.f32.mrf.mxu0
      %v179 = vadd.f32 0.0, %v178
      %180 = vmatmul.f32.gmra.mxu0 %v159
      %v181 = vpop.f32.mrf.mxu0
      %v182 = vadd.f32 0.0, %v181
      %183 = vdwg.mxu0
      %v184 = vsel %vm154, %v179, 0.0
      %v185 = vsel %vm154, %v182, 0.0
      %v186 = vadd.f32 %v184, %v185
      %v187 = vrot.slane %v186, 4
      %v188 = vadd.f32 %v186, %v187
      %v189 = vrot.slane %v188, 2
      %v190 = vadd.f32 %v188, %v189
      %v191 = vrot.slane %v190, 1
      %v192 = vadd.f32 %v190, %v191
      %v193 = vmul.f32 %v192, 0.00390625
      %v194 = vsub.f32 %v144, %v193
      %v195 = vsub.f32 %v145, %v193
      %v196 = vmul.f32 %v194, %v194
      %v197 = vmul.f32 %v195, %v195
      %v199 = vsel %vm154, %v196, 0
      %v202 = vsel %vm154, %v197, 0
      %204 = vmatpush.msra.mxu0 0.0
      %205 = vmatpush.msra.mxu0 0.0
      %206 = vmatpush.msra.mxu0 0.0
      %207 = vmatpush.msra.mxu0 0.0
      %208 = vmatpush.msra.mxu0 0.0
      %209 = vmatpush.msra.mxu0 0.0
      %210 = vmatpush.msra.mxu0 0.0
      %211 = vmatpush.msra.mxu0 0.0
      %212 = vmatpush.msra.mxu0 %v153
      %213 = vmatpush.msra.mxu0 %v152
      %214 = vmatpush.msra.mxu0 %v151
      %215 = vmatpush.msra.mxu0 %v150
      %216 = vmatpush.msra.mxu0 %v149
      %217 = vmatpush.msra.mxu0 %v148
      %218 = vmatpush.msra.mxu0 %v147
      %219 = vmatpush.msra.mxu0 %v146
      %220 = vmatmul.f32.gmra.mxu0 %v199
      %v221 = vpop.f32.mrf.mxu0
      %v222 = vadd.f32 0.0, %v221
      %223 = vmatmul.f32.gmra.mxu0 %v202
      %v224 = vpop.f32.mrf.mxu0
      %v225 = vadd.f32 0.0, %v224
      %226 = vdwg.mxu0
      %v227 = vsel %vm154, %v222, 0.0
      %v228 = vsel %vm154, %v225, 0.0
      %v229 = vadd.f32 %v227, %v228
      %v230 = vrot.slane %v229, 4
      %v231 = vadd.f32 %v229, %v230
      %v232 = vrot.slane %v231, 2
      %v233 = vadd.f32 %v231, %v232
      %v234 = vrot.slane %v233, 1
      %v235 = vadd.f32 %v233, %v234
      %v236 = vmul.f32 %v235, 0.00390625
      %v237 = vadd.f32 %v236, 1e-05
      %v238 = vrsqrt.pop %v237
      %v239 = vmul.f32 %v238, %v237
      %v240 = vmul.f32 %v239, %v238
      %v241 = vmul.f32 0.5, %v240
      %v242 = vsub.f32 1.5, %v241
      %v243 = vmul.f32 %v238, %v242
      %vm244 = vweird.f32 %v237
      %vm245 = vweird.f32 %v238
      %vm246 = vmor %vm244, %vm245
      %v247 = vsel %vm246, %v238, %v243
      %v248 = vmul.f32 %v194, %v247
      %v249 = vmul.f32 %v195, %v247
      %v250 = vxor.u32 %v248, 2147483648
      %v251 = vxor.u32 %v249, 2147483648
      %v252 = vmul.f32 %v250, 1.442695
      %v253 = vpow.pop %v252
      %v254 = vmul.f32 %v251, 1.442695
      %v255 = vpow.pop %v254
      %v256 = vadd.f32 %v253, 1.0
      %v257 = vadd.f32 %v255, 1.0
      %v258 = vrcp.pop %v256
      %v259 = vmul.f32 %v256, %v258
      %v260 = vsub.f32 1.0, %v259
      %v261 = vmul.f32 %v258, %v260
      %v262 = vadd.f32 %v258, %v261
      %vm263 = vweird.f32 %v256
      %vm264 = vweird.f32 %v258
      %vm265 = vmor %vm263, %vm264
      %v266 = vsel %vm265, %v258, %v262
      %v267 = vand.u32 2147483647, %v256
      %vm268 = vcmp.eq.f32.partialorder %v267, 8.507059e+37
      %v269 = vand.u32 %v256, 2147483648
      %v270 = vor.u32 1.1754944e-38, %v269
      %v271 = vsel %vm268, %v270, %v266
      %v272 = vmul.f32 1.0, %v271
      %v273 = vrcp.pop %v257
      %v274 = vmul.f32 %v257, %v273
      %v275 = vsub.f32 1.0, %v274
      %v276 = vmul.f32 %v273, %v275
      %v277 = vadd.f32 %v273, %v276
      %vm278 = vweird.f32 %v257
      %vm279 = vweird.f32 %v273
      %vm280 = vmor %vm278, %vm279
      %v281 = vsel %vm280, %v273, %v277
      %v282 = vand.u32 2147483647, %v257
      %vm283 = vcmp.eq.f32.partialorder %v282, 8.507059e+37
      %v284 = vand.u32 %v257, 2147483648
      %v285 = vor.u32 1.1754944e-38, %v284
      %v286 = vsel %vm283, %v285, %v281
      %v287 = vmul.f32 1.0, %v286
      %v288 = vmul.f32 %v248, %v272
      %v289 = vmul.f32 %v249, %v287
      %290 = vst.msk [vmem:[%s143] sm:$0xff] %vm154, %v288
      %291 = vst.msk [vmem:[%s143 + $0x8] sm:$0xff] %vm154, %v289
      %p292 = scmp.lt.s32.totalorder %s13, 1
      %s293 = scalar_select %p292, %s13, 1
      %s294 = smul.addr %s293, 2
      %s295 = smul.addr %s294, 8
      %s296 = scalar_lea.vmem %s2, %s295
      // Predicated region
      $region29: #{c2f_kagnconv_forward.8} parent=27 // pred_check
        %p297 = pneg %p78
      $region30: #{c2f_kagnconv_forward.8} parent=27 // pred_check_branch
        %299 = sbr.rel (%p297) target = $region32
      $region31: #{c2f_kagnconv_forward.8} parent=27 // pred_region
        _
      $region32: #{c2f_kagnconv_forward.8} parent=27 // pred_fallthru
        _
    $region28: #{c2f_kagnconv_forward.8} parent=5 // pred_fallthru
      _
    %p300 = scmp.le.s32.totalorder 2, %s8
    // Predicated region
    $region33: #{c2f_kagnconv_forward.8} parent=5 // pred_check
      %p301 = pneg %p300
    $region34: #{c2f_kagnconv_forward.8} parent=5 // pred_check_branch
      %303 = sbr.rel (%p301) target = $region36
    $region35: #{c2f_kagnconv_forward.8} parent=5 // pred_region
      %s304 = ssub.s32 %s8, 2
      // Predicated region
      $region37: #{c2f_kagnconv_forward.8} parent=35 // pred_check
        %p305 = pneg %p84
      $region38: #{c2f_kagnconv_forward.8} parent=35 // pred_check_branch
        %307 = sbr.rel (%p305) target = $region40
      $region39: #{c2f_kagnconv_forward.8} parent=35 // pred_region
        %p308 = scmp.lt.s32.totalorder %s14, 1
        %s309 = scalar_select %p308, %s14, 1
        %s310 = smul.addr %s309, 2
        %s311 = smul.addr %s310, 8
        %s312 = scalar_lea.vmem %s2, %s311
      $region40: #{c2f_kagnconv_forward.8} parent=35 // pred_fallthru
        _
    $region36: #{c2f_kagnconv_forward.8} parent=5 // pred_fallthru
      _
  $region6: #{c2f_kagnconv_forward.8} parent=0 // loop_footer
    %s12 = sadd.s32 1, %s8
  $region7: #{c2f_kagnconv_forward.8} parent=0 // loop_footer_branch
    %7 = sbr.rel target = $region3
  $region8: #{c2f_kagnconv_forward.8} parent=0 // loop_exit
    _

// kernel: c2f_kagnconv_forward.7
$region0: #{c2f_kagnconv_forward.7}
  #allocation0 [shape = 'u32[]', space=smem, size = 0x4, offset = 0x4, fixed_abs, tag = 'smem constant byte address 0x4 - core index']
  #allocation1 [shape = 'u32[72,128]{1,0:T(1,128)}', space=vmem, size = 0x9000, scoped, tag = 'internal scratch']
  %s0 = inlined_call_operand.vmem [shape: f32[2,18,72], index: 0, kind: input, shape index: {}]
  %s1 = inlined_call_operand.vmem [shape: bf16[3,360,64], index: 1, kind: input, shape index: {}]
  %s2 = inlined_call_operand.vmem [shape: f32[2], index: 2, kind: input, shape index: {}]
  %s3 = inlined_call_operand.vmem [shape: f32[2,16,64], index: 3, kind: output, shape index: {}]
  %s4 = sld [smem:[#allocation0]]
  $region49: #{c2f_kagnconv_forward.7} parent=0
    _
  %s6 = ssub.s32 1, %s4
  %s7 = scalar_select 0, %s6, %s4
  $region1: #{c2f_kagnconv_forward.7} parent=0
    #allocation2 [shape = 'u8[512]{0}', space=smem, size = 0x200, scoped, tag = 'input window, operand 2, single buffered']
    #allocation3 [shape = 's32[2]{0}', space=sflag, size = 0x8, scoped, tag = 'scoped memory for c2f_kagnconv_forward.7']
    %8 = vsyncpa [#allocation3], 0
    loop: start=0, step=1, limit=4
    $region2: #{c2f_kagnconv_forward.7} parent=1 // loop_pre_header
      _
    $region3: #{c2f_kagnconv_forward.7} parent=1 // loop_header
      %s10 = sphi 0, %s14
      %p11 = scmp.ge.s32.totalorder %s10, 4
      %s17 = sphi 0, %s29
      %s18 = sphi 0, %s25
      %s19 = sphi 0, %s17
      %s20 = sphi 0, %s18
      %s21 = sphi 0, %s19
      %s22 = sphi 0, %s20
      %s32 = sphi 0, %s34
      %s35 = sphi 0, %s32
      %s36 = sphi 0, %s35
      %s52 = sphi 0, %s36
      %s56 = sphi 0, %s56
      %s58 = sphi 0, %s56
      %s59 = sphi 0, %s58
      %s73 = sphi 0, %s59
      %s77 = sphi 0, %s77
      %s79 = sphi 0, %s77
      %s80 = sphi 0, %s79
      %s94 = sphi 0, %s80
      %s102 = sphi 0, %s104
      %s105 = sphi 0, %s102
      %s106 = sphi 0, %s105
      %s122 = sphi 0, %s106
    $region4: #{c2f_kagnconv_forward.7} parent=1 // loop_header_branch
      %13 = sbr.rel (%p11) target = $region8
    $region5: #{c2f_kagnconv_forward.7} parent=1 // loop_body
      %s15 = ssub.s32 %s10, 1
      %s16 = ssub.s32 %s10, 2
      %s23 = sadd.s32 1, %s18
      %p24 = scmp.ge.s32.totalorder %s23, 1
      %s25 = scalar_select %p24, 0, %s23
      %s26 = sadd.s32 1, %s17
      %s27 = scalar_select %p24, %s26, %s17
      %p28 = scmp.ge.s32.totalorder %s27, 2
      %s29 = scalar_select %p28, 0, %s27
      %s30 = ssub.s32 %s17, %s29
      %p31 = scmp.eq.s32.totalorder %s30, 0
      %s33 = sadd.s32 %s32, 1
      %s34 = scalar_select %p31, %s32, %s33
      %p37 = pneg %p31
      %p38 = scmp.eq.s32.totalorder %s10, 1
      %p39 = por %p37, %p38
      %p40 = scmp.ne.s32.totalorder %s32, %s35
      %p41 = scmp.eq.s32.totalorder %s10, 0
      %p42 = por %p40, %p41
      %p43 = scmp.ne.s32.totalorder %s32, %s35
      %p44 = scmp.eq.s32.totalorder %s15, 1
      %p45 = por %p43, %p44
      %p46 = scmp.ne.s32.totalorder %s35, %s36
      %p47 = scmp.eq.s32.totalorder %s15, 0
      %p48 = por %p46, %p47
      %p49 = scmp.ne.s32.totalorder %s35, %s36
      %p50 = scmp.eq.s32.totalorder %s16, 1
      %p51 = por %p49, %p50
      %p53 = scmp.ne.s32.totalorder %s36, %s52
      %p54 = scmp.eq.s32.totalorder %s16, 0
      %p55 = por %p53, %p54
      %s57 = sadd.s32 %s56, 1
      %p60 = scmp.eq.s32.totalorder %s10, 1
      %p61 = scmp.ne.s32.totalorder %s56, %s58
      %p62 = scmp.eq.s32.totalorder %s10, 0
      %p63 = por %p61, %p62
      %p64 = scmp.ne.s32.totalorder %s56, %s58
      %p65 = scmp.eq.s32.totalorder %s15, 1
      %p66 = por %p64, %p65
      %p67 = scmp.ne.s32.totalorder %s58, %s59
      %p68 = scmp.eq.s32.totalorder %s15, 0
      %p69 = por %p67, %p68
      %p70 = scmp.ne.s32.totalorder %s58, %s59
      %p71 = scmp.eq.s32.totalorder %s16, 1
      %p72 = por %p70, %p71
      %p74 = scmp.ne.s32.totalorder %s59, %s73
      %p75 = scmp.eq.s32.totalorder %s16, 0
      %p76 = por %p74, %p75
      %s78 = sadd.s32 %s77, 1
      %p81 = scmp.eq.s32.totalorder %s10, 1
      %p82 = scmp.ne.s32.totalorder %s77, %s79
      %p83 = scmp.eq.s32.totalorder %s10, 0
      %p84 = por %p82, %p83
      %p85 = scmp.ne.s32.totalorder %s77, %s79
      %p86 = scmp.eq.s32.totalorder %s15, 1
      %p87 = por %p85, %p86
      %p88 = scmp.ne.s32.totalorder %s79, %s80
      %p89 = scmp.eq.s32.totalorder %s15, 0
      %p90 = por %p88, %p89
      %p91 = scmp.ne.s32.totalorder %s79, %s80
      %p92 = scmp.eq.s32.totalorder %s16, 1
      %p93 = por %p91, %p92
      %p95 = scmp.ne.s32.totalorder %s80, %s94
      %p96 = scmp.eq.s32.totalorder %s16, 0
      %p97 = por %p95, %p96
      %s98 = ssub.s32 %s17, %s29
      %s99 = ssub.s32 %s18, %s25
      %s100 = sor.u32 %s98, %s99
      %p101 = scmp.eq.s32.totalorder %s100, 0
      %s103 = sadd.s32 %s102, 1
      %s104 = scalar_select %p101, %s102, %s103
      %p107 = pneg %p101
      %p108 = scmp.eq.s32.totalorder %s10, 1
      %p109 = por %p107, %p108
      %p110 = scmp.ne.s32.totalorder %s102, %s105
      %p111 = scmp.eq.s32.totalorder %s10, 0
      %p112 = por %p110, %p111
      %p113 = scmp.ne.s32.totalorder %s102, %s105
      %p114 = scmp.eq.s32.totalorder %s15, 1
      %p115 = por %p113, %p114
      %p116 = scmp.ne.s32.totalorder %s105, %s106
      %p117 = scmp.eq.s32.totalorder %s15, 0
      %p118 = por %p116, %p117
      %p119 = scmp.ne.s32.totalorder %s105, %s106
      %p120 = scmp.eq.s32.totalorder %s16, 1
      %p121 = por %p119, %p120
      %p123 = scmp.ne.s32.totalorder %s106, %s122
      %p124 = scmp.eq.s32.totalorder %s16, 0
      %p125 = por %p123, %p124
      %p126 = scmp.le.s32.totalorder 1, %s10
      %p127 = scmp.lt.s32.totalorder %s10, 3
      %p128 = pnand %p126, %p127
      %p129 = pneg %p128
      // Predicated region
      $region9: #{c2f_kagnconv_forward.7} parent=5 // pred_check
        _
      $region10: #{c2f_kagnconv_forward.7} parent=5 // pred_check_branch
        %131 = sbr.rel (%p128) target = $region12
      $region11: #{c2f_kagnconv_forward.7} parent=5 // pred_region
        %s132 = ssub.s32 %s10, 1
        // Predicated region
        $region13: #{c2f_kagnconv_forward.7} parent=11 // pred_check
          %p133 = pneg %p69
        $region14: #{c2f_kagnconv_forward.7} parent=11 // pred_check_branch
          %135 = sbr.rel (%p133) target = $region16
        $region15: #{c2f_kagnconv_forward.7} parent=11 // pred_region
          _
        $region16: #{c2f_kagnconv_forward.7} parent=11 // pred_fallthru
          _
        // Predicated region
        $region17: #{c2f_kagnconv_forward.7} parent=11 // pred_check
          %p136 = pneg %p90
        $region18: #{c2f_kagnconv_forward.7} parent=11 // pred_check_branch
          %138 = sbr.rel (%p136) target = $region20
        $region19: #{c2f_kagnconv_forward.7} parent=11 // pred_region
          %140 = vsyncadd [#allocation3], 0
          %s142 = sshll.u32 %s2, 4
          %s143 = int_to_ptr.vmem [resolvable:$true] %s142
          %145 = dma.vmem_to_smem %s143, 16, [#allocation2], [#allocation3]
        $region20: #{c2f_kagnconv_forward.7} parent=11 // pred_fallthru
          _
      $region12: #{c2f_kagnconv_forward.7} parent=5 // pred_fallthru
        _
      %p146 = scmp.lt.s32.totalorder %s10, 2
      // Predicated region
      $region21: #{c2f_kagnconv_forward.7} parent=5 // pred_check
        %p147 = pneg %p146
      $region22: #{c2f_kagnconv_forward.7} parent=5 // pred_check_branch
        %149 = sbr.rel (%p147) target = $region24
      $region23: #{c2f_kagnconv_forward.7} parent=5 // pred_region
        // Predicated region
        $region25: #{c2f_kagnconv_forward.7} parent=23 // pred_check
          %p150 = pneg %p42
        $region26: #{c2f_kagnconv_forward.7} parent=23 // pred_check_branch
          %152 = sbr.rel (%p150) target = $region28
        $region27: #{c2f_kagnconv_forward.7} parent=23 // pred_region
          %p153 = scmp.lt.s32.totalorder %s17, 1
          %s154 = scalar_select %p153, %s17, 1
          %s155 = smul.addr %s154, 3
          %s156 = smul.addr %s155, 8
          %s157 = scalar_lea.vmem %s0, %s156
        $region28: #{c2f_kagnconv_forward.7} parent=23 // pred_fallthru
          _
      $region24: #{c2f_kagnconv_forward.7} parent=5 // pred_fallthru
        _
      %p158 = scmp.le.s32.totalorder 1, %s10
      %p159 = scmp.lt.s32.totalorder %s10, 3
      %p160 = pnand %p158, %p159
      %p161 = pneg %p160
      // Predicated region
      $region29: #{c2f_kagnconv_forward.7} parent=5 // pred_check
        _
      $region30: #{c2f_kagnconv_forward.7} parent=5 // pred_check_branch
        %163 = sbr.rel (%p160) target = $region32
      $region31: #{c2f_kagnconv_forward.7} parent=5 // pred_region
        %s164 = ssub.s32 %s10, 1
        // Predicated region
        $region33: #{c2f_kagnconv_forward.7} parent=31 // pred_check
          %p165 = pneg %p90
        $region34: #{c2f_kagnconv_forward.7} parent=31 // pred_check_branch
          %167 = sbr.rel (%p165) target = $region36
        $region35: #{c2f_kagnconv_forward.7} parent=31 // pred_region
          %169 = dma.done [#allocation3], 16
        $region36: #{c2f_kagnconv_forward.7} parent=31 // pred_fallthru
          _
        %170 = sfence
        %p171 = scmp.lt.s32.totalorder %s19, 1
        %s172 = scalar_select %p171, %s19, 1
        %s173 = smul.addr %s172, 3
        %s174 = smul.addr %s173, 8
        %s175 = scalar_lea.vmem %s0, %s174
        %p176 = pneg %p48
        %p177 = pneg %p45
        %p178 = pneg %p69
        %p179 = pneg %p66
        %p180 = pneg %p90
        %p181 = pneg %p87
        %p182 = pneg %p118
        %p183 = pneg %p115
        %s184 = smul.u32 2, %s20
        %p185 = scmp.lt.s32.totalorder %s19, 1
        %s186 = scalar_select %p185, %s19, 1
        %p187 = scmp.lt.s32.totalorder %s184, 1
        %s188 = scalar_select %p187, %s184, 1
        %s189 = smul.addr %s186, 2
        %s190 = sadd.s32 %s188, %s189
        %s191 = smul.addr %s190, 8
        %s192 = scalar_lea.vmem %s3, %s191
        %p193 = scmp.lt.s32.totalorder %s19, 1
        %s194 = scalar_select %p193, %s19, 1
        %s195 = smul.addr %s194, 3
        %s196 = smul.addr %s195, 8
        %s197 = scalar_lea.vmem %s0, %s196
        %s198 = smul.u32 2, %s20
        %p199 = scmp.lt.s32.totalorder %s19, 1
        %s200 = scalar_select %p199, %s19, 1
        %p201 = scmp.lt.s32.totalorder %s198, 1
        %s202 = scalar_select %p201, %s198, 1
        %s203 = smul.addr %s200, 2
        %s204 = sadd.s32 %s202, %s203
        %s205 = smul.addr %s204, 8
        %s206 = scalar_lea.vmem %s3, %s205
        %s207 = smul.u32 2, %s20
        %s209 = smul.u32 %s20, 16
        %s210 = scalar_lea.vmem %s197, %s209
        %v211 = vld [vmem:[%s210] sm:$0xff]
        %v212 = vld [vmem:[%s210 + $0x8] sm:$0xff]
        %v213 = vld [vmem:[%s210 + $0x10] sm:$0x3]
        %v214 = vlaneseq
        %v215 = vshrl.u32 %v214, 7
        %v216 = vadd.s32 %v215, 8
        %v217 = vadd.s32 %v215, 16
        %v218 = vstv %s209
        %v219 = vadd.s32 %v215, %v218
        %v220 = vadd.s32 %v216, %v218
        %v221 = vadd.s32 %v217, %v218
        %v222 = vlaneseq
        %v223 = vand.u32 %v222, 127
        %vm224 = vcmp.ge.s32.totalorder %v219, 1
        %vm225 = vcmp.ge.s32.totalorder %v220, 1
        %vm226 = vcmp.ge.s32.totalorder %v221, 1
        %vm227 = vcmp.lt.s32.totalorder %v219, 17
        %vm228 = vcmp.lt.s32.totalorder %v220, 17
        %vm229 = vcmp.lt.s32.totalorder %v221, 17
        %vm230 = vmand %vm224, %vm227
        %vm231 = vmand %vm225, %vm228
        %vm232 = vmand %vm226, %vm229
        %vm233 = vcmp.ge.s32.totalorder %v223, 4
        %vm234 = vmand %vm230, %vm233
        %vm235 = vmand %vm231, %vm233
        %vm236 = vmand %vm232, %vm233
        %vm237 = vcmp.lt.s32.totalorder %v223, 68
        %vm238 = vmand %vm234, %vm237
        %vm239 = vmand %vm235, %vm237
        %vm240 = vmand %vm236, %vm237
        %v241 = vxor.u32 %v211, 2147483648
        %v242 = vxor.u32 %v212, 2147483648
        %v243 = vxor.u32 %v213, 2147483648
        %v244 = vmul.f32 %v241, 1.442695
        %v245 = vpow.pop %v244
        %v246 = vmul.f32 %v242, 1.442695
        %v247 = vpow.pop %v246
        %v248 = vmul.f32 %v243, 1.442695
        %v249 = vpow.pop %v248
        %v250 = vadd.f32 %v245, 1.0
        %v251 = vadd.f32 %v247, 1.0
        %v252 = vadd.f32 %v249, 1.0
        %v253 = vrcp.pop %v250
        %v254 = vmul.f32 %v250, %v253
        %v255 = vsub.f32 1.0, %v254
        %v256 = vmul.f32 %v253, %v255
        %v257 = vadd.f32 %v253, %v256
        %vm258 = vweird.f32 %v250
        %vm259 = vweird.f32 %v253
        %vm260 = vmor %vm258, %vm259
        %v261 = vsel %vm260, %v253, %v257
        %v262 = vand.u32 2147483647, %v250
        %vm263 = vcmp.eq.f32.partialorder %v262, 8.507059e+37
        %v264 = vand.u32 %v250, 2147483648
        %v265 = vor.u32 1.1754944e-38, %v264
        %v266 = vsel %vm263, %v265, %v261
        %v267 = vmul.f32 1.0, %v266
        %v268 = vrcp.pop %v251
        %v269 = vmul.f32 %v251, %v268
        %v270 = vsub.f32 1.0, %v269
        %v271 = vmul.f32 %v268, %v270
        %v272 = vadd.f32 %v268, %v271
        %vm273 = vweird.f32 %v251
        %vm274 = vweird.f32 %v268
        %vm275 = vmor %vm273, %vm274
        %v276 = vsel %vm275, %v268, %v272
        %v277 = vand.u32 2147483647, %v251
        %vm278 = vcmp.eq.f32.partialorder %v277, 8.507059e+37
        %v279 = vand.u32 %v251, 2147483648
        %v280 = vor.u32 1.1754944e-38, %v279
        %v281 = vsel %vm278, %v280, %v276
        %v282 = vmul.f32 1.0, %v281
        %v283 = vrcp.pop %v252
        %v284 = vmul.f32 %v252, %v283
        %v285 = vsub.f32 1.0, %v284
        %v286 = vmul.f32 %v283, %v285
        %v287 = vadd.f32 %v283, %v286
        %vm288 = vweird.f32 %v252
        %vm289 = vweird.f32 %v283
        %vm290 = vmor %vm288, %vm289
        %v291 = vsel %vm290, %v283, %v287
        %v292 = vand.u32 2147483647, %v252
        %vm293 = vcmp.eq.f32.partialorder %v292, 8.507059e+37
        %v294 = vand.u32 %v252, 2147483648
        %v295 = vor.u32 1.1754944e-38, %v294
        %v296 = vsel %vm293, %v295, %v291
        %v297 = vmul.f32 1.0, %v296
        %v298 = vmul.f32 %v211, %v267
        %v299 = vmul.f32 %v212, %v282
        %v300 = vmul.f32 %v213, %v297
        %v301 = vpack.c.bf16 %v298, %v298
        %v302 = vpack.c.bf16 %v299, %v299
        %v303 = vpack.c.bf16 %v300, %v300
        %v304 = vtanh.pop %v211
        %v305 = vtanh.pop %v212
        %v306 = vtanh.pop %v213
        %v307 = vsel %vm238, 0.7310586, 0.0
        %v308 = vsel %vm239, 0.7310586, 0.0
        %v309 = vsel %vm240, 0.7310586, 0.0
        %v310 = vpack.c.bf16 %v307, %v307
        %v311 = vpack.c.bf16 %v308, %v308
        %v312 = vpack.c.bf16 %v309, %v309
        %v313 = vxor.u32 %v304, 2147483648
        %v314 = vxor.u32 %v305, 2147483648
        %v315 = vxor.u32 %v306, 2147483648
        %v316 = vmul.f32 %v313, 1.442695
        %v317 = vpow.pop %v316
        %v318 = vmul.f32 %v314, 1.442695
        %v319 = vpow.pop %v318
        %v320 = vmul.f32 %v315, 1.442695
        %v321 = vpow.pop %v320
        %v322 = vadd.f32 %v317, 1.0
        %v323 = vadd.f32 %v319, 1.0
        %v324 = vadd.f32 %v321, 1.0
        %v325 = vrcp.pop %v322
        %v326 = vmul.f32 %v322, %v325
        %v327 = vsub.f32 1.0, %v326
        %v328 = vmul.f32 %v325, %v327
        %v329 = vadd.f32 %v325, %v328
        %vm330 = vweird.f32 %v322
        %vm331 = vweird.f32 %v325
        %vm332 = vmor %vm330, %vm331
        %v333 = vsel %vm332, %v325, %v329
        %v334 = vand.u32 2147483647, %v322
        %vm335 = vcmp.eq.f32.partialorder %v334, 8.507059e+37
        %v336 = vand.u32 %v322, 2147483648
        %v337 = vor.u32 1.1754944e-38, %v336
        %v338 = vsel %vm335, %v337, %v333
        %v339 = vmul.f32 1.0, %v338
        %v340 = vrcp.pop %v323
        %v341 = vmul.f32 %v323, %v340
        %v342 = vsub.f32 1.0, %v341
        %v343 = vmul.f32 %v340, %v342
        %v344 = vadd.f32 %v340, %v343
        %vm345 = vweird.f32 %v323
        %vm346 = vweird.f32 %v340
        %vm347 = vmor %vm345, %vm346
        %v348 = vsel %vm347, %v340, %v344
        %v349 = vand.u32 2147483647, %v323
        %vm350 = vcmp.eq.f32.partialorder %v349, 8.507059e+37
        %v351 = vand.u32 %v323, 2147483648
        %v352 = vor.u32 1.1754944e-38, %v351
        %v353 = vsel %vm350, %v352, %v348
        %v354 = vmul.f32 1.0, %v353
        %v355 = vrcp.pop %v324
        %v356 = vmul.f32 %v324, %v355
        %v357 = vsub.f32 1.0, %v356
        %v358 = vmul.f32 %v355, %v357
        %v359 = vadd.f32 %v355, %v358
        %vm360 = vweird.f32 %v324
        %vm361 = vweird.f32 %v355
        %vm362 = vmor %vm360, %vm361
        %v363 = vsel %vm362, %v355, %v359
        %v364 = vand.u32 2147483647, %v324
        %vm365 = vcmp.eq.f32.partialorder %v364, 8.507059e+37
        %v366 = vand.u32 %v324, 2147483648
        %v367 = vor.u32 1.1754944e-38, %v366
        %v368 = vsel %vm365, %v367, %v363
        %v369 = vmul.f32 1.0, %v368
        %v370 = vmul.f32 %v304, %v339
        %v371 = vmul.f32 %v305, %v354
        %v372 = vmul.f32 %v306, %v369
        %v373 = vsel %vm238, %v370, 0.0
        %v374 = vsel %vm239, %v371, 0.0
        %v375 = vsel %vm240, %v372, 0.0
        %v376 = vpack.c.bf16 %v373, %v373
        %v377 = vpack.c.bf16 %v374, %v374
        %v378 = vpack.c.bf16 %v375, %v375
        %v379 = vmul.f32 %v304, %v304
        %v380 = vmul.f32 %v305, %v305
        %v381 = vmul.f32 %v306, %v306
        %s382 = sld [smem:[#allocation2]]
        %v383 = vstv %s382
        %v384 = vsub.f32 %v379, %v383
        %v385 = vsub.f32 %v380, %v383
        %v386 = vsub.f32 %v381, %v383
        %v387 = vxor.u32 %v384, 2147483648
        %v388 = vxor.u32 %v385, 2147483648
        %v389 = vxor.u32 %v386, 2147483648
        %v390 = vmul.f32 %v387, 1.442695
        %v391 = vpow.pop %v390
        %v392 = vmul.f32 %v388, 1.442695
        %v393 = vpow.pop %v392
        %v394 = vmul.f32 %v389, 1.442695
        %v395 = vpow.pop %v394
        %v396 = vadd.f32 %v391, 1.0
        %v397 = vadd.f32 %v393, 1.0
        %v398 = vadd.f32 %v395, 1.0
        %v399 = vrcp.pop %v396
        %v400 = vmul.f32 %v396, %v399
        %v401 = vsub.f32 1.0, %v400
        %v402 = vmul.f32 %v399, %v401
        %v403 = vadd.f32 %v399, %v402
        %vm404 = vweird.f32 %v396
        %vm405 = vweird.f32 %v399
        %vm406 = vmor %vm404, %vm405
        %v407 = vsel %vm406, %v399, %v403
        %v408 = vand.u32 2147483647, %v396
        %vm409 = vcmp.eq.f32.partialorder %v408, 8.507059e+37
        %v410 = vand.u32 %v396, 2147483648
        %v411 = vor.u32 1.1754944e-38, %v410
        %v412 = vsel %vm409, %v411, %v407
        %v413 = vmul.f32 1.0, %v412
        %v414 = vrcp.pop %v397
        %v415 = vmul.f32 %v397, %v414
        %v416 = vsub.f32 1.0, %v415
        %v417 = vmul.f32 %v414, %v416
        %v418 = vadd.f32 %v414, %v417
        %vm419 = vweird.f32 %v397
        %vm420 = vweird.f32 %v414
        %vm421 = vmor %vm419, %vm420
        %v422 = vsel %vm421, %v414, %v418
        %v423 = vand.u32 2147483647, %v397
        %vm424 = vcmp.eq.f32.partialorder %v423, 8.507059e+37
        %v425 = vand.u32 %v397, 2147483648
        %v426 = vor.u32 1.1754944e-38, %v425
        %v427 = vsel %vm424, %v426, %v422
        %v428 = vmul.f32 1.0, %v427
        %v429 = vrcp.pop %v398
        %v430 = vmul.f32 %v398, %v429
        %v431 = vsub.f32 1.0, %v430
        %v432 = vmul.f32 %v429, %v431
        %v433 = vadd.f32 %v429, %v432
        %vm434 = vweird.f32 %v398
        %vm435 = vweird.f32 %v429
        %vm436 = vmor %vm434, %vm435
        %v437 = vsel %vm436, %v429, %v433
        %v438 = vand.u32 2147483647, %v398
        %vm439 = vcmp.eq.f32.partialorder %v438, 8.507059e+37
        %v440 = vand.u32 %v398, 2147483648
        %v441 = vor.u32 1.1754944e-38, %v440
        %v442 = vsel %vm439, %v441, %v437
        %v443 = vmul.f32 1.0, %v442
        %v444 = vmul.f32 %v384, %v413
        %v445 = vmul.f32 %v385, %v428
        %v446 = vmul.f32 %v386, %v443
        %v447 = vsel %vm238, %v444, 0.0
        %v448 = vsel %vm239, %v445, 0.0
        %v449 = vsel %vm240, %v446, 0.0
        %v450 = vpack.c.bf16 %v447, %v447
        %v451 = vpack.c.bf16 %v448, %v448
        %v452 = vpack.c.bf16 %v449, %v449
        %v453 = vmul.f32 %v304, %v384
        %v454 = vmul.f32 %v305, %v385
        %v455 = vmul.f32 %v306, %v386
        %s456 = sld [smem:[#allocation2 + $0x1]]
        %v457 = vstv %s456
        %v458 = vmul.f32 %v457, %v304
        %v459 = vmul.f32 %v457, %v305
        %v460 = vmul.f32 %v457, %v306
        %v461 = vsub.f32 %v453, %v458
        %v462 = vsub.f32 %v454, %v459
        %v463 = vsub.f32 %v455, %v460
        %v464 = vxor.u32 %v461, 2147483648
        %v465 = vxor.u32 %v462, 2147483648
        %v466 = vxor.u32 %v463, 2147483648
        %v467 = vmul.f32 %v464, 1.442695
        %v468 = vpow.pop %v467
        %v469 = vmul.f32 %v465, 1.442695
        %v470 = vpow.pop %v469
        %v471 = vmul.f32 %v466, 1.442695
        %v472 = vpow.pop %v471
        %v473 = vadd.f32 %v468, 1.0
        %v474 = vadd.f32 %v470, 1.0
        %v475 = vadd.f32 %v472, 1.0
        %v476 = vrcp.pop %v473
        %v477 = vmul.f32 %v473, %v476
        %v478 = vsub.f32 1.0, %v477
        %v479 = vmul.f32 %v476, %v478
        %v480 = vadd.f32 %v476, %v479
        %vm481 = vweird.f32 %v473
        %vm482 = vweird.f32 %v476
        %vm483 = vmor %vm481, %vm482
        %v484 = vsel %vm483, %v476, %v480
        %v485 = vand.u32 2147483647, %v473
        %vm486 = vcmp.eq.f32.partialorder %v485, 8.507059e+37
        %v487 = vand.u32 %v473, 2147483648
        %v488 = vor.u32 1.1754944e-38, %v487
        %v489 = vsel %vm486, %v488, %v484
        %v490 = vmul.f32 1.0, %v489
        %v491 = vrcp.pop %v474
        %v492 = vmul.f32 %v474, %v491
        %v493 = vsub.f32 1.0, %v492
        %v494 = vmul.f32 %v491, %v493
        %v495 = vadd.f32 %v491, %v494
        %vm496 = vweird.f32 %v474
        %vm497 = vweird.f32 %v491
        %vm498 = vmor %vm496, %vm497
        %v499 = vsel %vm498, %v491, %v495
        %v500 = vand.u32 2147483647, %v474
        %vm501 = vcmp.eq.f32.partialorder %v500, 8.507059e+37
        %v502 = vand.u32 %v474, 2147483648
        %v503 = vor.u32 1.1754944e-38, %v502
        %v504 = vsel %vm501, %v503, %v499
        %v505 = vmul.f32 1.0, %v504
        %v506 = vrcp.pop %v475
        %v507 = vmul.f32 %v475, %v506
        %v508 = vsub.f32 1.0, %v507
        %v509 = vmul.f32 %v506, %v508
        %v510 = vadd.f32 %v506, %v509
        %vm511 = vweird.f32 %v475
        %vm512 = vweird.f32 %v506
        %vm513 = vmor %vm511, %vm512
        %v514 = vsel %vm513, %v506, %v510
        %v515 = vand.u32 2147483647, %v475
        %vm516 = vcmp.eq.f32.partialorder %v515, 8.507059e+37
        %v517 = vand.u32 %v475, 2147483648
        %v518 = vor.u32 1.1754944e-38, %v517
        %v519 = vsel %vm516, %v518, %v514
        %v520 = vmul.f32 1.0, %v519
        %v521 = vmul.f32 %v461, %v490
        %v522 = vmul.f32 %v462, %v505
        %v523 = vmul.f32 %v463, %v520
        %v524 = vsel %vm238, %v521, 0.0
        %v525 = vsel %vm239, %v522, 0.0
        %v526 = vsel %vm240, %v523, 0.0
        %v527 = vpack.c.bf16 %v524, %v524
        %v528 = vpack.c.bf16 %v525, %v525
        %v529 = vpack.c.bf16 %v526, %v526
        %v533 = vunpack.c.l.b16 %v301
        %v534 = vunpack.c.l.b16 %v302
        %v535 = vunpack.c.l.b16 %v303
        %v536 = vpack.c.b16 %v534, %v533
        %v537 = vpack.c.b16 %v535, %v535
        %v541 = vunpack.c.l.b16 %v310
        %v542 = vunpack.c.l.b16 %v311
        %v543 = vunpack.c.l.b16 %v312
        %v544 = vpack.c.b16 %v542, %v541
        %v545 = vpack.c.b16 %v543, %v543
        %546 = vrot.lane.b32.xlu0 %v544, 72
        %v547 = vpop.permute.xlu0 %546
        %548 = vrot.lane.b32.xlu0 %v545, 72
        %v549 = vpop.permute.xlu0 %548
        %v553 = vunpack.c.l.b16 %v376
        %v554 = vunpack.c.l.b16 %v377
        %v555 = vunpack.c.l.b16 %v378
        %v556 = vpack.c.b16 %v554, %v553
        %v557 = vpack.c.b16 %v555, %v555
        %558 = vrot.lane.b32.xlu0 %v556, 16
        %v559 = vpop.permute.xlu0 %558
        %560 = vrot.lane.b32.xlu0 %v557, 16
        %v561 = vpop.permute.xlu0 %560
        %v565 = vunpack.c.l.b16 %v450
        %v566 = vunpack.c.l.b16 %v451
        %v567 = vunpack.c.l.b16 %v452
        %v568 = vpack.c.b16 %v566, %v565
        %v569 = vpack.c.b16 %v567, %v567
        %570 = vrot.lane.b32.xlu0 %v568, 88
        %v571 = vpop.permute.xlu0 %570
        %572 = vrot.lane.b32.xlu0 %v569, 88
        %v573 = vpop.permute.xlu0 %572
        %v577 = vunpack.c.l.b16 %v527
        %v578 = vunpack.c.l.b16 %v528
        %v579 = vunpack.c.l.b16 %v529
        %v580 = vpack.c.b16 %v578, %v577
        %v581 = vpack.c.b16 %v579, %v579
        %582 = vrot.lane.b32.xlu0 %v580, 32
        %v583 = vpop.permute.xlu0 %582
        %584 = vrot.lane.b32.xlu0 %v581, 32
        %v585 = vpop.permute.xlu0 %584
        %vm586 = vcmask 588800
        %v589 = vsel %vm586, %v536, %v547
        %v593 = vsel %vm586, %v537, %v549
        %vm594 = vcmask 130048
        %v596 = vsel %vm594, %v547, %v559
        %v598 = vsel %vm594, %v549, %v561
        %vm599 = vcmask 719872
        %v601 = vsel %vm599, %v596, %v571
        %v604 = vsel %vm599, %v598, %v573
        %vm605 = vcmask 261120
        %v607 = vsel %vm605, %v571, %v583
        %v609 = vsel %vm605, %v573, %v585
        %v610 = vld [vmem:[%s1] sm:$0xf]
        %v611 = vld [vmem:[%s1 + $0x4] sm:$0xf]
        %v612 = vld [vmem:[%s1 + $0x8] sm:$0xf]
        %v613 = vld [vmem:[%s1 + $0xc] sm:$0xf]
        %v614 = vld [vmem:[%s1 + $0x10] sm:$0xf]
        %v615 = vld [vmem:[%s1 + $0x14] sm:$0xf]
        %v616 = vld [vmem:[%s1 + $0x18] sm:$0xf]
        %v617 = vld [vmem:[%s1 + $0x1c] sm:$0xf]
        %v618 = vld [vmem:[%s1 + $0x20] sm:$0xf]
        %v619 = vld [vmem:[%s1 + $0x24] sm:$0xf]
        %v620 = vld [vmem:[%s1 + $0x28] sm:$0xf]
        %v621 = vld [vmem:[%s1 + $0x2c] sm:$0xf]
        %v622 = vld [vmem:[%s1 + $0x30] sm:$0xf]
        %v623 = vld [vmem:[%s1 + $0x34] sm:$0xf]
        %v624 = vld [vmem:[%s1 + $0x38] sm:$0xf]
        %v625 = vld [vmem:[%s1 + $0x3c] sm:$0xf]
        %v626 = vld [vmem:[%s1 + $0x40] sm:$0xf]
        %v627 = vld [vmem:[%s1 + $0x44] sm:$0xf]
        %v628 = vld [vmem:[%s1 + $0x48] sm:$0xf]
        %v629 = vld [vmem:[%s1 + $0x4c] sm:$0xf]
        %v630 = vld [vmem:[%s1 + $0x50] sm:$0xf]
        %v631 = vld [vmem:[%s1 + $0x54] sm:$0xf]
        %v632 = vld [vmem:[%s1 + $0x58] sm:$0xf]
        %v633 = vld [vmem:[%s1 + $0x5c] sm:$0xf]
        %v634 = vld [vmem:[%s1 + $0x60] sm:$0xf]
        %v635 = vld [vmem:[%s1 + $0x64] sm:$0xf]
        %v636 = vld [vmem:[%s1 + $0x68] sm:$0xf]
        %v637 = vld [vmem:[%s1 + $0x6c] sm:$0xf]
        %v638 = vld [vmem:[%s1 + $0x70] sm:$0xf]
        %v639 = vld [vmem:[%s1 + $0x74] sm:$0xf]
        %v640 = vld [vmem:[%s1 + $0x78] sm:$0xf]
        %v641 = vld [vmem:[%s1 + $0x7c] sm:$0xf]
        %v642 = vld [vmem:[%s1 + $0x80] sm:$0xf]
        %v643 = vld [vmem:[%s1 + $0x84] sm:$0xf]
        %v644 = vld [vmem:[%s1 + $0x88] sm:$0xf]
        %v645 = vld [vmem:[%s1 + $0x8c] sm:$0xf]
        %v646 = vld [vmem:[%s1 + $0x90] sm:$0xf]
        %v647 = vld [vmem:[%s1 + $0x94] sm:$0xf]
        %v648 = vld [vmem:[%s1 + $0x98] sm:$0xf]
        %v649 = vld [vmem:[%s1 + $0x9c] sm:$0xf]
        %v650 = vld [vmem:[%s1 + $0xa0] sm:$0xf]
        %v651 = vld [vmem:[%s1 + $0xa4] sm:$0xf]
        %v652 = vld [vmem:[%s1 + $0xa8] sm:$0xf]
        %v653 = vld [vmem:[%s1 + $0xac] sm:$0xf]
        %v654 = vld [vmem:[%s1 + $0xb0] sm:$0xf]
        %s655 = scalar_lea.vmem %s1, 180
        %v656 = vld [vmem:[%s655] sm:$0xf]
        %v657 = vld [vmem:[%s655 + $0x4] sm:$0xf]
        %v658 = vld [vmem:[%s655 + $0x8] sm:$0xf]
        %v659 = vld [vmem:[%s655 + $0xc] sm:$0xf]
        %v660 = vld [vmem:[%s655 + $0x10] sm:$0xf]
        %v661 = vld [vmem:[%s655 + $0x14] sm:$0xf]
        %v662 = vld [vmem:[%s655 + $0x18] sm:$0xf]
        %v663 = vld [vmem:[%s655 + $0x1c] sm:$0xf]
        %v664 = vld [vmem:[%s655 + $0x20] sm:$0xf]
        %v665 = vld [vmem:[%s655 + $0x24] sm:$0xf]
        %v666 = vld [vmem:[%s655 + $0x28] sm:$0xf]
        %v667 = vld [vmem:[%s655 + $0x2c] sm:$0xf]
        %v668 = vld [vmem:[%s655 + $0x30] sm:$0xf]
        %v669 = vld [vmem:[%s655 + $0x34] sm:$0xf]
        %v670 = vld [vmem:[%s655 + $0x38] sm:$0xf]
        %v671 = vld [vmem:[%s655 + $0x3c] sm:$0xf]
        %v672 = vld [vmem:[%s655 + $0x40] sm:$0xf]
        %v673 = vld [vmem:[%s655 + $0x44] sm:$0xf]
        %v674 = vld [vmem:[%s655 + $0x48] sm:$0xf]
        %v675 = vld [vmem:[%s655 + $0x4c] sm:$0xf]
        %v676 = vld [vmem:[%s655 + $0x50] sm:$0xf]
        %v677 = vld [vmem:[%s655 + $0x54] sm:$0xf]
        %v678 = vld [vmem:[%s655 + $0x58] sm:$0xf]
        %v679 = vld [vmem:[%s655 + $0x5c] sm:$0xf]
        %v680 = vld [vmem:[%s655 + $0x60] sm:$0xf]
        %v681 = vld [vmem:[%s655 + $0x64] sm:$0xf]
        %v682 = vld [vmem:[%s655 + $0x68] sm:$0xf]
        %v683 = vld [vmem:[%s655 + $0x6c] sm:$0xf]
        %v684 = vld [vmem:[%s655 + $0x70] sm:$0xf]
        %v685 = vld [vmem:[%s655 + $0x74] sm:$0xf]
        %v686 = vld [vmem:[%s655 + $0x78] sm:$0xf]
        %v687 = vld [vmem:[%s655 + $0x7c] sm:$0xf]
        %v688 = vld [vmem:[%s655 + $0x80] sm:$0xf]
        %v689 = vld [vmem:[%s655 + $0x84] sm:$0xf]
        %v690 = vld [vmem:[%s655 + $0x88] sm:$0xf]
        %v691 = vld [vmem:[%s655 + $0x8c] sm:$0xf]
        %v692 = vld [vmem:[%s655 + $0x90] sm:$0xf]
        %v693 = vld [vmem:[%s655 + $0x94] sm:$0xf]
        %v694 = vld [vmem:[%s655 + $0x98] sm:$0xf]
        %v695 = vld [vmem:[%s655 + $0x9c] sm:$0xf]
        %v696 = vld [vmem:[%s655 + $0xa0] sm:$0xf]
        %v697 = vld [vmem:[%s655 + $0xa4] sm:$0xf]
        %v698 = vld [vmem:[%s655 + $0xa8] sm:$0xf]
        %v699 = vld [vmem:[%s655 + $0xac] sm:$0xf]
        %v700 = vld [vmem:[%s655 + $0xb0] sm:$0xf]
        %vm701 = vsmask.f32 7424
        %v702 = vshrl.u32 %v589, 16
        %v704 = vshll.u32 %v589, 16
        %v706 = vrot.slane %v704, 1
        %v707 = vor.u32 %v702, %v706
        %v708 = vshll.u32 %v593, 16
        %v710 = vrot.slane %v708, 1
        %v711 = vsel %vm701, %v707, %v710
        %v712 = vshrl.u32 %v601, 16
        %v714 = vshll.u32 %v601, 16
        %v716 = vrot.slane %v714, 1
        %v717 = vor.u32 %v712, %v716
        %v718 = vshll.u32 %v604, 16
        %v720 = vrot.slane %v718, 1
        %v721 = vsel %vm701, %v717, %v720
        %v722 = vshrl.u32 %v607, 16
        %v724 = vshll.u32 %v607, 16
        %v726 = vrot.slane %v724, 1
        %v727 = vor.u32 %v722, %v726
        %v728 = vshll.u32 %v609, 16
        %v730 = vrot.slane %v728, 1
        %v731 = vsel %vm701, %v727, %v730
        %v779 = vunpack.c.l.b16 %v656
        %v780 = vunpack.c.l.b16 %v657
        %v781 = vunpack.c.l.b16 %v658
        %v782 = vunpack.c.l.b16 %v659
        %v783 = vunpack.c.l.b16 %v660
        %v784 = vunpack.c.l.b16 %v661
        %v785 = vunpack.c.l.b16 %v662
        %v786 = vunpack.c.l.b16 %v663
        %v787 = vunpack.c.l.b16 %v664
        %v788 = vunpack.c.l.b16 %v665
        %v789 = vunpack.c.l.b16 %v666
        %v790 = vunpack.c.l.b16 %v667
        %v791 = vunpack.c.l.b16 %v668
        %v792 = vunpack.c.l.b16 %v669
        %v793 = vunpack.c.l.b16 %v670
        %v794 = vunpack.c.l.b16 %v671
        %v795 = vunpack.c.l.b16 %v672
        %v796 = vunpack.c.l.b16 %v673
        %v797 = vunpack.c.l.b16 %v674
        %v798 = vunpack.c.l.b16 %v675
        %v799 = vunpack.c.l.b16 %v676
        %v800 = vunpack.c.l.b16 %v677
        %v801 = vunpack.c.l.b16 %v678
        %v802 = vunpack.c.l.b16 %v679
        %v803 = vunpack.c.l.b16 %v680
        %v804 = vunpack.c.l.b16 %v681
        %v805 = vunpack.c.l.b16 %v682
        %v806 = vunpack.c.l.b16 %v683
        %v807 = vunpack.c.l.b16 %v684
        %v808 = vunpack.c.l.b16 %v685
        %v809 = vunpack.c.l.b16 %v686
        %v810 = vunpack.c.l.b16 %v687
        %v811 = vunpack.c.l.b16 %v688
        %v812 = vunpack.c.l.b16 %v689
        %v813 = vunpack.c.l.b16 %v690
        %v814 = vunpack.c.l.b16 %v691
        %v815 = vunpack.c.l.b16 %v692
        %v816 = vunpack.c.l.b16 %v693
        %v817 = vunpack.c.l.b16 %v694
        %v818 = vunpack.c.l.b16 %v695
        %v819 = vunpack.c.l.b16 %v696
        %v820 = vunpack.c.l.b16 %v697
        %v821 = vunpack.c.l.b16 %v698
        %v822 = vunpack.c.l.b16 %v699
        %v823 = vunpack.c.l.b16 %v700
        %v824 = vpack.c.b16 %v780, %v779
        %v825 = vpack.c.b16 %v782, %v781
        %v826 = vpack.c.b16 %v784, %v783
        %v827 = vpack.c.b16 %v786, %v785
        %v828 = vpack.c.b16 %v788, %v787
        %v829 = vpack.c.b16 %v790, %v789
        %v830 = vpack.c.b16 %v792, %v791
        %v831 = vpack.c.b16 %v794, %v793
        %v832 = vpack.c.b16 %v796, %v795
        %v833 = vpack.c.b16 %v798, %v797
        %v834 = vpack.c.b16 %v800, %v799
        %v835 = vpack.c.b16 %v802, %v801
        %v836 = vpack.c.b16 %v804, %v803
        %v837 = vpack.c.b16 %v806, %v805
        %v838 = vpack.c.b16 %v808, %v807
        %v839 = vpack.c.b16 %v810, %v809
        %v840 = vpack.c.b16 %v812, %v811
        %v841 = vpack.c.b16 %v814, %v813
        %v842 = vpack.c.b16 %v816, %v815
        %v843 = vpack.c.b16 %v818, %v817
        %v844 = vpack.c.b16 %v820, %v819
        %v845 = vpack.c.b16 %v822, %v821
        %v846 = vpack.c.b16 %v823, %v823
        %vm869 = vcmask 850944
        %v871 = vsel %vm869, %v731, 0
        %vm873 = vcmask 1043456
        %v875 = vsel %vm873, %v846, 0
        %877 = vmatpush.bf16.msra.mxu0 %v831
        %878 = vmatpush.bf16.msra.mxu0 %v830
        %879 = vmatpush.bf16.msra.mxu0 %v829
        %880 = vmatpush.bf16.msra.mxu0 %v828
        %881 = vmatpush.bf16.msra.mxu0 %v827
        %882 = vmatpush.bf16.msra.mxu0 %v826
        %883 = vmatpush.bf16.msra.mxu0 %v825
        %884 = vmatpush.bf16.msra.mxu0 %v824
        %885 = vmatmul.bf16.gmra.mxu0 %v711
        %v886 = vpop.f32.mrf.mxu0
        %v887 = vadd.f32 0.0, %v886
        %v888 = vpop.f32.mrf.mxu0
        %v889 = vadd.f32 0.0, %v888
        %890 = vdwg.mxu0
        %891 = vmatpush.bf16.msra.mxu0 %v839
        %892 = vmatpush.bf16.msra.mxu0 %v838
        %893 = vmatpush.bf16.msra.mxu0 %v837
        %894 = vmatpush.bf16.msra.mxu0 %v836
        %895 = vmatpush.bf16.msra.mxu0 %v835
        %896 = vmatpush.bf16.msra.mxu0 %v834
        %897 = vmatpush.bf16.msra.mxu0 %v833
        %898 = vmatpush.bf16.msra.mxu0 %v832
        %899 = vmatmul.bf16.gmra.mxu0 %v721
        %v900 = vpop.f32.mrf.mxu0
        %v901 = vadd.f32 %v887, %v900
        %v902 = vpop.f32.mrf.mxu0
        %v903 = vadd.f32 %v889, %v902
        %904 = vdwg.mxu0
        %905 = vmatpush.bf16.msra.mxu0 0
        %906 = vmatpush.bf16.msra.mxu0 %v875
        %907 = vmatpush.bf16.msra.mxu0 %v845
        %908 = vmatpush.bf16.msra.mxu0 %v844
        %909 = vmatpush.bf16.msra.mxu0 %v843
        %910 = vmatpush.bf16.msra.mxu0 %v842
        %911 = vmatpush.bf16.msra.mxu0 %v841
        %912 = vmatpush.bf16.msra.mxu0 %v840
        %913 = vmatmul.bf16.gmra.mxu0 %v871
        %v914 = vpop.f32.mrf.mxu0
        %v915 = vadd.f32 %v901, %v914
        %v916 = vpop.f32.mrf.mxu0
        %v917 = vadd.f32 %v903, %v916
        %918 = vdwg.mxu0
        %v964 = vunpack.c.l.b16 %v610
        %v965 = vunpack.c.l.b16 %v611
        %v966 = vunpack.c.l.b16 %v612
        %v967 = vunpack.c.l.b16 %v613
        %v968 = vunpack.c.l.b16 %v614
        %v969 = vunpack.c.l.b16 %v615
        %v970 = vunpack.c.l.b16 %v616
        %v971 = vunpack.c.l.b16 %v617
        %v972 = vunpack.c.l.b16 %v618
        %v973 = vunpack.c.l.b16 %v619
        %v974 = vunpack.c.l.b16 %v620
        %v975 = vunpack.c.l.b16 %v621
        %v976 = vunpack.c.l.b16 %v622
        %v977 = vunpack.c.l.b16 %v623
        %v978 = vunpack.c.l.b16 %v624
        %v979 = vunpack.c.l.b16 %v625
        %v980 = vunpack.c.l.b16 %v626
        %v981 = vunpack.c.l.b16 %v627
        %v982 = vunpack.c.l.b16 %v628
        %v983 = vunpack.c.l.b16 %v629
        %v984 = vunpack.c.l.b16 %v630
        %v985 = vunpack.c.l.b16 %v631
        %v986 = vunpack.c.l.b16 %v632
        %v987 = vunpack.c.l.b16 %v633
        %v988 = vunpack.c.l.b16 %v634
        %v989 = vunpack.c.l.b16 %v635
        %v990 = vunpack.c.l.b16 %v636
        %v991 = vunpack.c.l.b16 %v637
        %v992 = vunpack.c.l.b16 %v638
        %v993 = vunpack.c.l.b16 %v639
        %v994 = vunpack.c.l.b16 %v640
        %v995 = vunpack.c.l.b16 %v641
        %v996 = vunpack.c.l.b16 %v642
        %v997 = vunpack.c.l.b16 %v643
        %v998 = vunpack.c.l.b16 %v644
        %v999 = vunpack.c.l.b16 %v645
        %v1000 = vunpack.c.l.b16 %v646
        %v1001 = vunpack.c.l.b16 %v647
        %v1002 = vunpack.c.l.b16 %v648
        %v1003 = vunpack.c.l.b16 %v649
        %v1004 = vunpack.c.l.b16 %v650
        %v1005 = vunpack.c.l.b16 %v651
        %v1006 = vunpack.c.l.b16 %v652
        %v1007 = vunpack.c.l.b16 %v653
        %v1008 = vunpack.c.l.b16 %v654
        %v1009 = vpack.c.b16 %v965, %v964
        %v1010 = vpack.c.b16 %v967, %v966
        %v1011 = vpack.c.b16 %v969, %v968
        %v1012 = vpack.c.b16 %v971, %v970
        %v1013 = vpack.c.b16 %v973, %v972
        %v1014 = vpack.c.b16 %v975, %v974
        %v1015 = vpack.c.b16 %v977, %v976
        %v1016 = vpack.c.b16 %v979, %v978
        %v1017 = vpack.c.b16 %v981, %v980
        %v1018 = vpack.c.b16 %v983, %v982
        %v1019 = vpack.c.b16 %v985, %v984
        %v1020 = vpack.c.b16 %v987, %v986
        %v1021 = vpack.c.b16 %v989, %v988
        %v1022 = vpack.c.b16 %v991, %v990
        %v1023 = vpack.c.b16 %v993, %v992
        %v1024 = vpack.c.b16 %v995, %v994
        %v1025 = vpack.c.b16 %v997, %v996
        %v1026 = vpack.c.b16 %v999, %v998
        %v1027 = vpack.c.b16 %v1001, %v1000
        %v1028 = vpack.c.b16 %v1003, %v1002
        %v1029 = vpack.c.b16 %v1005, %v1004
        %v1030 = vpack.c.b16 %v1007, %v1006
        %v1031 = vpack.c.b16 %v1008, %v1008
        %v1054 = vsel %vm869, %v607, 0
        %v1057 = vsel %vm873, %v1031, 0
        %1059 = vmatpush.bf16.msra.mxu0 %v1016
        %1060 = vmatpush.bf16.msra.mxu0 %v1015
        %1061 = vmatpush.bf16.msra.mxu0 %v1014
        %1062 = vmatpush.bf16.msra.mxu0 %v1013
        %1063 = vmatpush.bf16.msra.mxu0 %v1012
        %1064 = vmatpush.bf16.msra.mxu0 %v1011
        %1065 = vmatpush.bf16.msra.mxu0 %v1010
        %1066 = vmatpush.bf16.msra.mxu0 %v1009
        %1067 = vmatmul.bf16.gmra.mxu0 %v589
        %v1068 = vpop.f32.mrf.mxu0
        %v1069 = vadd.f32 %v915, %v1068
        %v1070 = vpop.f32.mrf.mxu0
        %v1071 = vadd.f32 %v917, %v1070
        %1072 = vdwg.mxu0
        %1073 = vmatpush.bf16.msra.mxu0 %v1024
        %1074 = vmatpush.bf16.msra.mxu0 %v1023
        %1075 = vmatpush.bf16.msra.mxu0 %v1022
        %1076 = vmatpush.bf16.msra.mxu0 %v1021
        %1077 = vmatpush.bf16.msra.mxu0 %v1020
        %1078 = vmatpush.bf16.msra.mxu0 %v1019
        %1079 = vmatpush.bf16.msra.mxu0 %v1018
        %1080 = vmatpush.bf16.msra.mxu0 %v1017
        %1081 = vmatmul.bf16.gmra.mxu0 %v601
        %v1082 = vpop.f32.mrf.mxu0
        %v1083 = vadd.f32 %v1069, %v1082
        %v1084 = vpop.f32.mrf.mxu0
        %v1085 = vadd.f32 %v1071, %v1084
        %1086 = vdwg.mxu0
        %1087 = vmatpush.bf16.msra.mxu0 0
        %1088 = vmatpush.bf16.msra.mxu0 %v1057
        %1089 = vmatpush.bf16.msra.mxu0 %v1030
        %1090 = vmatpush.bf16.msra.mxu0 %v1029
        %1091 = vmatpush.bf16.msra.mxu0 %v1028
        %1092 = vmatpush.bf16.msra.mxu0 %v1027
        %1093 = vmatpush.bf16.msra.mxu0 %v1026
        %1094 = vmatpush.bf16.msra.mxu0 %v1025
        %1095 = vmatmul.bf16.gmra.mxu0 %v1054
        %v1096 = vpop.f32.mrf.mxu0
        %v1097 = vadd.f32 %v1083, %v1096
        %v1098 = vpop.f32.mrf.mxu0
        %v1099 = vadd.f32 %v1085, %v1098
        %1100 = vdwg.mxu0
        %s1101 = scalar_lea.vmem %s1, 360
        %v1102 = vld [vmem:[%s1101] sm:$0xf]
        %v1103 = vld [vmem:[%s1101 + $0x4] sm:$0xf]
        %v1104 = vld [vmem:[%s1101 + $0x8] sm:$0xf]
        %v1105 = vld [vmem:[%s1101 + $0xc] sm:$0xf]
        %v1106 = vld [vmem:[%s1101 + $0x10] sm:$0xf]
        %v1107 = vld [vmem:[%s1101 + $0x14] sm:$0xf]
        %v1108 = vld [vmem:[%s1101 + $0x18] sm:$0xf]
        %v1109 = vld [vmem:[%s1101 + $0x1c] sm:$0xf]
        %v1110 = vld [vmem:[%s1101 + $0x20] sm:$0xf]
        %v1111 = vld [vmem:[%s1101 + $0x24] sm:$0xf]
        %v1112 = vld [vmem:[%s1101 + $0x28] sm:$0xf]
        %v1113 = vld [vmem:[%s1101 + $0x2c] sm:$0xf]
        %v1114 = vld [vmem:[%s1101 + $0x30] sm:$0xf]
        %v1115 = vld [vmem:[%s1101 + $0x34] sm:$0xf]
        %v1116 = vld [vmem:[%s1101 + $0x38] sm:$0xf]
        %v1117 = vld [vmem:[%s1101 + $0x3c] sm:$0xf]
        %v1118 = vld [vmem:[%s1101 + $0x40] sm:$0xf]
        %v1119 = vld [vmem:[%s1101 + $0x44] sm:$0xf]
        %v1120 = vld [vmem:[%s1101 + $0x48] sm:$0xf]
        %v1121 = vld [vmem:[%s1101 + $0x4c] sm:$0xf]
        %v1122 = vld [vmem:[%s1101 + $0x50] sm:$0xf]
        %v1123 = vld [vmem:[%s1101 + $0x54] sm:$0xf]
        %v1124 = vld [vmem:[%s1101 + $0x58] sm:$0xf]
        %v1125 = vld [vmem:[%s1101 + $0x5c] sm:$0xf]
        %v1126 = vld [vmem:[%s1101 + $0x60] sm:$0xf]
        %v1127 = vld [vmem:[%s1101 + $0x64] sm:$0xf]
        %v1128 = vld [vmem:[%s1101 + $0x68] sm:$0xf]
        %v1129 = vld [vmem:[%s1101 + $0x6c] sm:$0xf]
        %v1130 = vld [vmem:[%s1101 + $0x70] sm:$0xf]
        %v1131 = vld [vmem:[%s1101 + $0x74] sm:$0xf]
        %v1132 = vld [vmem:[%s1101 + $0x78] sm:$0xf]
        %v1133 = vld [vmem:[%s1101 + $0x7c] sm:$0xf]
        %v1134 = vld [vmem:[%s1101 + $0x80] sm:$0xf]
        %v1135 = vld [vmem:[%s1101 + $0x84] sm:$0xf]
        %v1136 = vld [vmem:[%s1101 + $0x88] sm:$0xf]
        %v1137 = vld [vmem:[%s1101 + $0x8c] sm:$0xf]
        %v1138 = vld [vmem:[%s1101 + $0x90] sm:$0xf]
        %v1139 = vld [vmem:[%s1101 + $0x94] sm:$0xf]
        %v1140 = vld [vmem:[%s1101 + $0x98] sm:$0xf]
        %v1141 = vld [vmem:[%s1101 + $0x9c] sm:$0xf]
        %v1142 = vld [vmem:[%s1101 + $0xa0] sm:$0xf]
        %v1143 = vld [vmem:[%s1101 + $0xa4] sm:$0xf]
        %v1144 = vld [vmem:[%s1101 + $0xa8] sm:$0xf]
        %v1145 = vld [vmem:[%s1101 + $0xac] sm:$0xf]
        %v1146 = vld [vmem:[%s1101 + $0xb0] sm:$0xf]
        %vm1153 = vcmask 1046528
        %v1154 = vrot.slane %v589, 1
        %v1155 = vrot.slane %v593, 1
        %v1156 = vsel %vm1153, %v1154, %v1155
        %v1157 = vrot.slane %v601, 1
        %v1158 = vrot.slane %v604, 1
        %v1159 = vsel %vm1153, %v1157, %v1158
        %v1160 = vrot.slane %v607, 1
        %v1161 = vrot.slane %v609, 1
        %v1162 = vsel %vm1153, %v1160, %v1161
        %v1210 = vunpack.c.l.b16 %v1102
        %v1211 = vunpack.c.l.b16 %v1103
        %v1212 = vunpack.c.l.b16 %v1104
        %v1213 = vunpack.c.l.b16 %v1105
        %v1214 = vunpack.c.l.b16 %v1106
        %v1215 = vunpack.c.l.b16 %v1107
        %v1216 = vunpack.c.l.b16 %v1108
        %v1217 = vunpack.c.l.b16 %v1109
        %v1218 = vunpack.c.l.b16 %v1110
        %v1219 = vunpack.c.l.b16 %v1111
        %v1220 = vunpack.c.l.b16 %v1112
        %v1221 = vunpack.c.l.b16 %v1113
        %v1222 = vunpack.c.l.b16 %v1114
        %v1223 = vunpack.c.l.b16 %v1115
        %v1224 = vunpack.c.l.b16 %v1116
        %v1225 = vunpack.c.l.b16 %v1117
        %v1226 = vunpack.c.l.b16 %v1118
        %v1227 = vunpack.c.l.b16 %v1119
        %v1228 = vunpack.c.l.b16 %v1120
        %v1229 = vunpack.c.l.b16 %v1121
        %v1230 = vunpack.c.l.b16 %v1122
        %v1231 = vunpack.c.l.b16 %v1123
        %v1232 = vunpack.c.l.b16 %v1124
        %v1233 = vunpack.c.l.b16 %v1125
        %v1234 = vunpack.c.l.b16 %v1126
        %v1235 = vunpack.c.l.b16 %v1127
        %v1236 = vunpack.c.l.b16 %v1128
        %v1237 = vunpack.c.l.b16 %v1129
        %v1238 = vunpack.c.l.b16 %v1130
        %v1239 = vunpack.c.l.b16 %v1131
        %v1240 = vunpack.c.l.b16 %v1132
        %v1241 = vunpack.c.l.b16 %v1133
        %v1242 = vunpack.c.l.b16 %v1134
        %v1243 = vunpack.c.l.b16 %v1135
        %v1244 = vunpack.c.l.b16 %v1136
        %v1245 = vunpack.c.l.b16 %v1137
        %v1246 = vunpack.c.l.b16 %v1138
        %v1247 = vunpack.c.l.b16 %v1139
        %v1248 = vunpack.c.l.b16 %v1140
        %v1249 = vunpack.c.l.b16 %v1141
        %v1250 = vunpack.c.l.b16 %v1142
        %v1251 = vunpack.c.l.b16 %v1143
        %v1252 = vunpack.c.l.b16 %v1144
        %v1253 = vunpack.c.l.b16 %v1145
        %v1254 = vunpack.c.l.b16 %v1146
        %v1255 = vpack.c.b16 %v1211, %v1210
        %v1256 = vpack.c.b16 %v1213, %v1212
        %v1257 = vpack.c.b16 %v1215, %v1214
        %v1258 = vpack.c.b16 %v1217, %v1216
        %v1259 = vpack.c.b16 %v1219, %v1218
        %v1260 = vpack.c.b16 %v1221, %v1220
        %v1261 = vpack.c.b16 %v1223, %v1222
        %v1262 = vpack.c.b16 %v1225, %v1224
        %v1263 = vpack.c.b16 %v1227, %v1226
        %v1264 = vpack.c.b16 %v1229, %v1228
        %v1265 = vpack.c.b16 %v1231, %v1230
        %v1266 = vpack.c.b16 %v1233, %v1232
        %v1267 = vpack.c.b16 %v1235, %v1234
        %v1268 = vpack.c.b16 %v1237, %v1236
        %v1269 = vpack.c.b16 %v1239, %v1238
        %v1270 = vpack.c.b16 %v1241, %v1240
        %v1271 = vpack.c.b16 %v1243, %v1242
        %v1272 = vpack.c.b16 %v1245, %v1244
        %v1273 = vpack.c.b16 %v1247, %v1246
        %v1274 = vpack.c.b16 %v1249, %v1248
        %v1275 = vpack.c.b16 %v1251, %v1250
        %v1276 = vpack.c.b16 %v1253, %v1252
        %v1277 = vpack.c.b16 %v1254, %v1254
        %v1301 = vsel %vm869, %v1162, 0
        %v1304 = vsel %vm873, %v1277, 0
        %1306 = vmatpush.bf16.msra.mxu0 %v1262
        %1307 = vmatpush.bf16.msra.mxu0 %v1261
        %1308 = vmatpush.bf16.msra.mxu0 %v1260
        %1309 = vmatpush.bf16.msra.mxu0 %v1259
        %1310 = vmatpush.bf16.msra.mxu0 %v1258
        %1311 = vmatpush.bf16.msra.mxu0 %v1257
        %1312 = vmatpush.bf16.msra.mxu0 %v1256
        %1313 = vmatpush.bf16.msra.mxu0 %v1255
        %1314 = vmatmul.bf16.gmra.mxu0 %v1156
        %v1315 = vpop.f32.mrf.mxu0
        %v1316 = vadd.f32 0.0, %v1315
        %v1317 = vpop.f32.mrf.mxu0
        %v1318 = vadd.f32 0.0, %v1317
        %1319 = vdwg.mxu0
        %1320 = vmatpush.bf16.msra.mxu0 %v1270
        %1321 = vmatpush.bf16.msra.mxu0 %v1269
        %1322 = vmatpush.bf16.msra.mxu0 %v1268
        %1323 = vmatpush.bf16.msra.mxu0 %v1267
        %1324 = vmatpush.bf16.msra.mxu0 %v1266
        %1325 = vmatpush.bf16.msra.mxu0 %v1265
        %1326 = vmatpush.bf16.msra.mxu0 %v1264
        %1327 = vmatpush.bf16.msra.mxu0 %v1263
        %1328 = vmatmul.bf16.gmra.mxu0 %v1159
        %v1329 = vpop.f32.mrf.mxu0
        %v1330 = vadd.f32 %v1316, %v1329
        %v1331 = vpop.f32.mrf.mxu0
        %v1332 = vadd.f32 %v1318, %v1331
        %1333 = vdwg.mxu0
        %1334 = vmatpush.bf16.msra.mxu0 0
        %1335 = vmatpush.bf16.msra.mxu0 %v1304
        %1336 = vmatpush.bf16.msra.mxu0 %v1276
        %1337 = vmatpush.bf16.msra.mxu0 %v1275
        %1338 = vmatpush.bf16.msra.mxu0 %v1274
        %1339 = vmatpush.bf16.msra.mxu0 %v1273
        %1340 = vmatpush.bf16.msra.mxu0 %v1272
        %1341 = vmatpush.bf16.msra.mxu0 %v1271
        %1342 = vmatmul.bf16.gmra.mxu0 %v1301
        %v1343 = vpop.f32.mrf.mxu0
        %v1344 = vadd.f32 %v1330, %v1343
        %v1345 = vpop.f32.mrf.mxu0
        %v1346 = vadd.f32 %v1332, %v1345
        %1347 = vdwg.mxu0
        %v1348 = vadd.f32 %v1097, %v1344
        %v1349 = vadd.f32 %v1099, %v1346
        %vm1350 = vcmask 523264
        %1351 = vst.msk [vmem:[%s206] sm:$0xff] %vm1350, %v1348
        %1352 = vst.msk [vmem:[%s206 + $0x8] sm:$0xff] %vm1350, %v1349
        %s1353 = smul.u32 2, %s20
        %p1354 = scmp.lt.s32.totalorder %s19, 1
        %s1355 = scalar_select %p1354, %s19, 1
        %p1356 = scmp.lt.s32.totalorder %s1353, 1
        %s1357 = scalar_select %p1356, %s1353, 1
        %s1358 = smul.addr %s1355, 2
        %s1359 = sadd.s32 %s1357, %s1358
        %s1360 = smul.addr %s1359, 8
        %s1361 = scalar_lea.vmem %s3, %s1360
        // Predicated region
        $region37: #{c2f_kagnconv_forward.7} parent=31 // pred_check
          %p1362 = pneg %p115
        $region38: #{c2f_kagnconv_forward.7} parent=31 // pred_check_branch
          %1364 = sbr.rel (%p1362) target = $region40
        $region39: #{c2f_kagnconv_forward.7} parent=31 // pred_region
          %s1365 = smul.u32 2, %s20
        $region40: #{c2f_kagnconv_forward.7} parent=31 // pred_fallthru
          _
      $region32: #{c2f_kagnconv_forward.7} parent=5 // pred_fallthru
        _
      %p1366 = scmp.le.s32.totalorder 2, %s10
      // Predicated region
      $region41: #{c2f_kagnconv_forward.7} parent=5 // pred_check
        %p1367 = pneg %p1366
      $region42: #{c2f_kagnconv_forward.7} parent=5 // pred_check_branch
        %1369 = sbr.rel (%p1367) target = $region44
      $region43: #{c2f_kagnconv_forward.7} parent=5 // pred_region
        %s1370 = ssub.s32 %s10, 2
        // Predicated region
        $region45: #{c2f_kagnconv_forward.7} parent=43 // pred_check
          %p1371 = pneg %p121
        $region46: #{c2f_kagnconv_forward.7} parent=43 // pred_check_branch
          %1373 = sbr.rel (%p1371) target = $region48
        $region47: #{c2f_kagnconv_forward.7} parent=43 // pred_region
          %s1374 = smul.u32 2, %s22
          %p1375 = scmp.lt.s32.totalorder %s21, 1
          %s1376 = scalar_select %p1375, %s21, 1
          %p1377 = scmp.lt.s32.totalorder %s1374, 1
          %s1378 = scalar_select %p1377, %s1374, 1
          %s1379 = smul.addr %s1376, 2
          %s1380 = sadd.s32 %s1378, %s1379
          %s1381 = smul.addr %s1380, 8
          %s1382 = scalar_lea.vmem %s3, %s1381
        $region48: #{c2f_kagnconv_forward.7} parent=43 // pred_fallthru
          _
      $region44: #{c2f_kagnconv_forward.7} parent=5 // pred_fallthru
        _
    $region6: #{c2f_kagnconv_forward.7} parent=1 // loop_footer
      %s14 = sadd.s32 1, %s10
    $region7: #{c2f_kagnconv_forward.7} parent=1 // loop_footer_branch
      %9 = sbr.rel target = $region3
    $region8: #{c2f_kagnconv_forward.7} parent=1 // loop_exit
      _
    %1383 = vsyncpa [#allocation3], 1
    %s1384 = scalar_lea.sflag [#allocation3], 1
    %1385 = vsyncpa %s1384, 1

// kernel: c2f_kagnconv_forward.9
$region0: #{c2f_kagnconv_forward.9}
  #allocation0 [shape = 'u32[]', space=smem, size = 0x4, offset = 0x4, fixed_abs, tag = 'smem constant byte address 0x4 - core index']
  #allocation1 [shape = 'u32[72,128]{1,0:T(1,128)}', space=vmem, size = 0x9000, scoped, tag = 'internal scratch']
  %s0 = inlined_call_operand.vmem [shape: f32[2,16,64], index: 0, kind: input, shape index: {}]
  %s1 = inlined_call_operand.vmem [shape: f32[2,16,64], index: 1, kind: input, shape index: {}]
  %s2 = inlined_call_operand.vmem [shape: f32[2,16,64], index: 2, kind: input, shape index: {}]
  %s3 = inlined_call_operand.vmem [shape: bf16[1,192,128], index: 3, kind: input, shape index: {}]
  %s4 = inlined_call_operand.vmem [shape: f32[1,128], index: 4, kind: input, shape index: {}]
  %s5 = inlined_call_operand.vmem [shape: f32[1,128], index: 5, kind: input, shape index: {}]
  %s6 = inlined_call_operand.vmem [shape: f32[2,16,128], index: 6, kind: output, shape index: {}]
  %s7 = sld [smem:[#allocation0]]
  $region57: #{c2f_kagnconv_forward.9} parent=0
    _
  %s9 = ssub.s32 1, %s7
  %s10 = scalar_select 0, %s9, %s7
  loop: start=0, step=1, limit=4
  $region2: #{c2f_kagnconv_forward.9} parent=0 // loop_pre_header
    _
  $region3: #{c2f_kagnconv_forward.9} parent=0 // loop_header
    %s12 = sphi 0, %s16
    %p13 = scmp.ge.s32.totalorder %s12, 4
    %s19 = sphi 0, %s31
    %s20 = sphi 0, %s27
    %s21 = sphi 0, %s19
    %s22 = sphi 0, %s20
    %s23 = sphi 0, %s21
    %s24 = sphi 0, %s22
    %s34 = sphi 0, %s36
    %s37 = sphi 0, %s34
    %s38 = sphi 0, %s37
    %s54 = sphi 0, %s38
    %s60 = sphi 0, %s62
    %s63 = sphi 0, %s60
    %s64 = sphi 0, %s63
    %s80 = sphi 0, %s64
    %s86 = sphi 0, %s88
    %s89 = sphi 0, %s86
    %s90 = sphi 0, %s89
    %s106 = sphi 0, %s90
    %s110 = sphi 0, %s110
    %s112 = sphi 0, %s110
    %s113 = sphi 0, %s112
    %s127 = sphi 0, %s113
    %s131 = sphi 0, %s131
    %s133 = sphi 0, %s131
    %s134 = sphi 0, %s133
    %s148 = sphi 0, %s134
    %s152 = sphi 0, %s152
    %s154 = sphi 0, %s152
    %s155 = sphi 0, %s154
    %s169 = sphi 0, %s155
    %s177 = sphi 0, %s179
    %s180 = sphi 0, %s177
    %s181 = sphi 0, %s180
    %s197 = sphi 0, %s181
  $region4: #{c2f_kagnconv_forward.9} parent=0 // loop_header_branch
    %15 = sbr.rel (%p13) target = $region8
  $region5: #{c2f_kagnconv_forward.9} parent=0 // loop_body
    %s17 = ssub.s32 %s12, 1
    %s18 = ssub.s32 %s12, 2
    %s25 = sadd.s32 1, %s20
    %p26 = scmp.ge.s32.totalorder %s25, 1
    %s27 = scalar_select %p26, 0, %s25
    %s28 = sadd.s32 1, %s19
    %s29 = scalar_select %p26, %s28, %s19
    %p30 = scmp.ge.s32.totalorder %s29, 2
    %s31 = scalar_select %p30, 0, %s29
    %s32 = ssub.s32 %s19, %s31
    %p33 = scmp.eq.s32.totalorder %s32, 0
    %s35 = sadd.s32 %s34, 1
    %s36 = scalar_select %p33, %s34, %s35
    %p39 = pneg %p33
    %p40 = scmp.eq.s32.totalorder %s12, 1
    %p41 = por %p39, %p40
    %p42 = scmp.ne.s32.totalorder %s34, %s37
    %p43 = scmp.eq.s32.totalorder %s12, 0
    %p44 = por %p42, %p43
    %p45 = scmp.ne.s32.totalorder %s34, %s37
    %p46 = scmp.eq.s32.totalorder %s17, 1
    %p47 = por %p45, %p46
    %p48 = scmp.ne.s32.totalorder %s37, %s38
    %p49 = scmp.eq.s32.totalorder %s17, 0
    %p50 = por %p48, %p49
    %p51 = scmp.ne.s32.totalorder %s37, %s38
    %p52 = scmp.eq.s32.totalorder %s18, 1
    %p53 = por %p51, %p52
    %p55 = scmp.ne.s32.totalorder %s38, %s54
    %p56 = scmp.eq.s32.totalorder %s18, 0
    %p57 = por %p55, %p56
    %s58 = ssub.s32 %s19, %s31
    %p59 = scmp.eq.s32.totalorder %s58, 0
    %s61 = sadd.s32 %s60, 1
    %s62 = scalar_select %p59, %s60, %s61
    %p65 = pneg %p59
    %p66 = scmp.eq.s32.totalorder %s12, 1
    %p67 = por %p65, %p66
    %p68 = scmp.ne.s32.totalorder %s60, %s63
    %p69 = scmp.eq.s32.totalorder %s12, 0
    %p70 = por %p68, %p69
    %p71 = scmp.ne.s32.totalorder %s60, %s63
    %p72 = scmp.eq.s32.totalorder %s17, 1
    %p73 = por %p71, %p72
    %p74 = scmp.ne.s32.totalorder %s63, %s64
    %p75 = scmp.eq.s32.totalorder %s17, 0
    %p76 = por %p74, %p75
    %p77 = scmp.ne.s32.totalorder %s63, %s64
    %p78 = scmp.eq.s32.totalorder %s18, 1
    %p79 = por %p77, %p78
    %p81 = scmp.ne.s32.totalorder %s64, %s80
    %p82 = scmp.eq.s32.totalorder %s18, 0
    %p83 = por %p81, %p82
    %s84 = ssub.s32 %s19, %s31
    %p85 = scmp.eq.s32.totalorder %s84, 0
    %s87 = sadd.s32 %s86, 1
    %s88 = scalar_select %p85, %s86, %s87
    %p91 = pneg %p85
    %p92 = scmp.eq.s32.totalorder %s12, 1
    %p93 = por %p91, %p92
    %p94 = scmp.ne.s32.totalorder %s86, %s89
    %p95 = scmp.eq.s32.totalorder %s12, 0
    %p96 = por %p94, %p95
    %p97 = scmp.ne.s32.totalorder %s86, %s89
    %p98 = scmp.eq.s32.totalorder %s17, 1
    %p99 = por %p97, %p98
    %p100 = scmp.ne.s32.totalorder %s89, %s90
    %p101 = scmp.eq.s32.totalorder %s17, 0
    %p102 = por %p100, %p101
    %p103 = scmp.ne.s32.totalorder %s89, %s90
    %p104 = scmp.eq.s32.totalorder %s18, 1
    %p105 = por %p103, %p104
    %p107 = scmp.ne.s32.totalorder %s90, %s106
    %p108 = scmp.eq.s32.totalorder %s18, 0
    %p109 = por %p107, %p108
    %s111 = sadd.s32 %s110, 1
    %p114 = scmp.eq.s32.totalorder %s12, 1
    %p115 = scmp.ne.s32.totalorder %s110, %s112
    %p116 = scmp.eq.s32.totalorder %s12, 0
    %p117 = por %p115, %p116
    %p118 = scmp.ne.s32.totalorder %s110, %s112
    %p119 = scmp.eq.s32.totalorder %s17, 1
    %p120 = por %p118, %p119
    %p121 = scmp.ne.s32.totalorder %s112, %s113
    %p122 = scmp.eq.s32.totalorder %s17, 0
    %p123 = por %p121, %p122
    %p124 = scmp.ne.s32.totalorder %s112, %s113
    %p125 = scmp.eq.s32.totalorder %s18, 1
    %p126 = por %p124, %p125
    %p128 = scmp.ne.s32.totalorder %s113, %s127
    %p129 = scmp.eq.s32.totalorder %s18, 0
    %p130 = por %p128, %p129
    %s132 = sadd.s32 %s131, 1
    %p135 = scmp.eq.s32.totalorder %s12, 1
    %p136 = scmp.ne.s32.totalorder %s131, %s133
    %p137 = scmp.eq.s32.totalorder %s12, 0
    %p138 = por %p136, %p137
    %p139 = scmp.ne.s32.totalorder %s131, %s133
    %p140 = scmp.eq.s32.totalorder %s17, 1
    %p141 = por %p139, %p140
    %p142 = scmp.ne.s32.totalorder %s133, %s134
    %p143 = scmp.eq.s32.totalorder %s17, 0
    %p144 = por %p142, %p143
    %p145 = scmp.ne.s32.totalorder %s133, %s134
    %p146 = scmp.eq.s32.totalorder %s18, 1
    %p147 = por %p145, %p146
    %p149 = scmp.ne.s32.totalorder %s134, %s148
    %p150 = scmp.eq.s32.totalorder %s18, 0
    %p151 = por %p149, %p150
    %s153 = sadd.s32 %s152, 1
    %p156 = scmp.eq.s32.totalorder %s12, 1
    %p157 = scmp.ne.s32.totalorder %s152, %s154
    %p158 = scmp.eq.s32.totalorder %s12, 0
    %p159 = por %p157, %p158
    %p160 = scmp.ne.s32.totalorder %s152, %s154
    %p161 = scmp.eq.s32.totalorder %s17, 1
    %p162 = por %p160, %p161
    %p163 = scmp.ne.s32.totalorder %s154, %s155
    %p164 = scmp.eq.s32.totalorder %s17, 0
    %p165 = por %p163, %p164
    %p166 = scmp.ne.s32.totalorder %s154, %s155
    %p167 = scmp.eq.s32.totalorder %s18, 1
    %p168 = por %p166, %p167
    %p170 = scmp.ne.s32.totalorder %s155, %s169
    %p171 = scmp.eq.s32.totalorder %s18, 0
    %p172 = por %p170, %p171
    %s173 = ssub.s32 %s19, %s31
    %s174 = ssub.s32 %s20, %s27
    %s175 = sor.u32 %s173, %s174
    %p176 = scmp.eq.s32.totalorder %s175, 0
    %s178 = sadd.s32 %s177, 1
    %s179 = scalar_select %p176, %s177, %s178
    %p182 = pneg %p176
    %p183 = scmp.eq.s32.totalorder %s12, 1
    %p184 = por %p182, %p183
    %p185 = scmp.ne.s32.totalorder %s177, %s180
    %p186 = scmp.eq.s32.totalorder %s12, 0
    %p187 = por %p185, %p186
    %p188 = scmp.ne.s32.totalorder %s177, %s180
    %p189 = scmp.eq.s32.totalorder %s17, 1
    %p190 = por %p188, %p189
    %p191 = scmp.ne.s32.totalorder %s180, %s181
    %p192 = scmp.eq.s32.totalorder %s17, 0
    %p193 = por %p191, %p192
    %p194 = scmp.ne.s32.totalorder %s180, %s181
    %p195 = scmp.eq.s32.totalorder %s18, 1
    %p196 = por %p194, %p195
    %p198 = scmp.ne.s32.totalorder %s181, %s197
    %p199 = scmp.eq.s32.totalorder %s18, 0
    %p200 = por %p198, %p199
    %p201 = scmp.le.s32.totalorder 1, %s12
    %p202 = scmp.lt.s32.totalorder %s12, 3
    %p203 = pnand %p201, %p202
    %p204 = pneg %p203
    // Predicated region
    $region9: #{c2f_kagnconv_forward.9} parent=5 // pred_check
      _
    $region10: #{c2f_kagnconv_forward.9} parent=5 // pred_check_branch
      %206 = sbr.rel (%p203) target = $region12
    $region11: #{c2f_kagnconv_forward.9} parent=5 // pred_region
      %s207 = ssub.s32 %s12, 1
      // Predicated region
      $region13: #{c2f_kagnconv_forward.9} parent=11 // pred_check
        %p208 = pneg %p123
      $region14: #{c2f_kagnconv_forward.9} parent=11 // pred_check_branch
        %210 = sbr.rel (%p208) target = $region16
      $region15: #{c2f_kagnconv_forward.9} parent=11 // pred_region
        _
      $region16: #{c2f_kagnconv_forward.9} parent=11 // pred_fallthru
        _
      // Predicated region
      $region17: #{c2f_kagnconv_forward.9} parent=11 // pred_check
        %p211 = pneg %p144
      $region18: #{c2f_kagnconv_forward.9} parent=11 // pred_check_branch
        %213 = sbr.rel (%p211) target = $region20
      $region19: #{c2f_kagnconv_forward.9} parent=11 // pred_region
        _
      $region20: #{c2f_kagnconv_forward.9} parent=11 // pred_fallthru
        _
      // Predicated region
      $region21: #{c2f_kagnconv_forward.9} parent=11 // pred_check
        %p214 = pneg %p165
      $region22: #{c2f_kagnconv_forward.9} parent=11 // pred_check_branch
        %216 = sbr.rel (%p214) target = $region24
      $region23: #{c2f_kagnconv_forward.9} parent=11 // pred_region
        _
      $region24: #{c2f_kagnconv_forward.9} parent=11 // pred_fallthru
        _
    $region12: #{c2f_kagnconv_forward.9} parent=5 // pred_fallthru
      _
    %p217 = scmp.lt.s32.totalorder %s12, 2
    // Predicated region
    $region25: #{c2f_kagnconv_forward.9} parent=5 // pred_check
      %p218 = pneg %p217
    $region26: #{c2f_kagnconv_forward.9} parent=5 // pred_check_branch
      %220 = sbr.rel (%p218) target = $region28
    $region27: #{c2f_kagnconv_forward.9} parent=5 // pred_region
      // Predicated region
      $region29: #{c2f_kagnconv_forward.9} parent=27 // pred_check
        %p221 = pneg %p44
      $region30: #{c2f_kagnconv_forward.9} parent=27 // pred_check_branch
        %223 = sbr.rel (%p221) target = $region32
      $region31: #{c2f_kagnconv_forward.9} parent=27 // pred_region
        %p224 = scmp.lt.s32.totalorder %s19, 1
        %s225 = scalar_select %p224, %s19, 1
        %s226 = smul.addr %s225, 2
        %s227 = smul.addr %s226, 8
        %s228 = scalar_lea.vmem %s0, %s227
      $region32: #{c2f_kagnconv_forward.9} parent=27 // pred_fallthru
        _
      // Predicated region
      $region33: #{c2f_kagnconv_forward.9} parent=27 // pred_check
        %p229 = pneg %p70
      $region34: #{c2f_kagnconv_forward.9} parent=27 // pred_check_branch
        %231 = sbr.rel (%p229) target = $region36
      $region35: #{c2f_kagnconv_forward.9} parent=27 // pred_region
        %p232 = scmp.lt.s32.totalorder %s19, 1
        %s233 = scalar_select %p232, %s19, 1
        %s234 = smul.addr %s233, 2
        %s235 = smul.addr %s234, 8
        %s236 = scalar_lea.vmem %s1, %s235
      $region36: #{c2f_kagnconv_forward.9} parent=27 // pred_fallthru
        _
      // Predicated region
      $region37: #{c2f_kagnconv_forward.9} parent=27 // pred_check
        %p237 = pneg %p96
      $region38: #{c2f_kagnconv_forward.9} parent=27 // pred_check_branch
        %239 = sbr.rel (%p237) target = $region40
      $region39: #{c2f_kagnconv_forward.9} parent=27 // pred_region
        %p240 = scmp.lt.s32.totalorder %s19, 1
        %s241 = scalar_select %p240, %s19, 1
        %s242 = smul.addr %s241, 2
        %s243 = smul.addr %s242, 8
        %s244 = scalar_lea.vmem %s2, %s243
      $region40: #{c2f_kagnconv_forward.9} parent=27 // pred_fallthru
        _
    $region28: #{c2f_kagnconv_forward.9} parent=5 // pred_fallthru
      _
    %p245 = scmp.le.s32.totalorder 1, %s12
    %p246 = scmp.lt.s32.totalorder %s12, 3
    %p247 = pnand %p245, %p246
    %p248 = pneg %p247
    // Predicated region
    $region41: #{c2f_kagnconv_forward.9} parent=5 // pred_check
      _
    $region42: #{c2f_kagnconv_forward.9} parent=5 // pred_check_branch
      %250 = sbr.rel (%p247) target = $region44
    $region43: #{c2f_kagnconv_forward.9} parent=5 // pred_region
      %s251 = ssub.s32 %s12, 1
      %p252 = scmp.lt.s32.totalorder %s21, 1
      %s253 = scalar_select %p252, %s21, 1
      %s254 = smul.addr %s253, 2
      %s255 = smul.addr %s254, 8
      %s256 = scalar_lea.vmem %s0, %s255
      %p257 = pneg %p50
      %p258 = pneg %p47
      %p259 = scmp.lt.s32.totalorder %s21, 1
      %s260 = scalar_select %p259, %s21, 1
      %s261 = smul.addr %s260, 2
      %s262 = smul.addr %s261, 8
      %s263 = scalar_lea.vmem %s1, %s262
      %p264 = pneg %p76
      %p265 = pneg %p73
      %p266 = scmp.lt.s32.totalorder %s21, 1
      %s267 = scalar_select %p266, %s21, 1
      %s268 = smul.addr %s267, 2
      %s269 = smul.addr %s268, 8
      %s270 = scalar_lea.vmem %s2, %s269
      %p271 = pneg %p102
      %p272 = pneg %p99
      %p273 = pneg %p123
      %p274 = pneg %p120
      %p275 = pneg %p144
      %p276 = pneg %p141
      %p277 = pneg %p165
      %p278 = pneg %p162
      %p279 = pneg %p193
      %p280 = pneg %p190
      %s281 = smul.u32 2, %s22
      %p282 = scmp.lt.s32.totalorder %s21, 1
      %s283 = scalar_select %p282, %s21, 1
      %p284 = scmp.lt.s32.totalorder %s281, 1
      %s285 = scalar_select %p284, %s281, 1
      %s286 = smul.addr %s283, 2
      %s287 = sadd.s32 %s285, %s286
      %s288 = smul.addr %s287, 8
      %s289 = scalar_lea.vmem %s6, %s288
      %p290 = scmp.lt.s32.totalorder %s21, 1
      %s291 = scalar_select %p290, %s21, 1
      %s292 = smul.addr %s291, 2
      %s293 = smul.addr %s292, 8
      %s294 = scalar_lea.vmem %s0, %s293
      %p295 = scmp.lt.s32.totalorder %s21, 1
      %s296 = scalar_select %p295, %s21, 1
      %s297 = smul.addr %s296, 2
      %s298 = smul.addr %s297, 8
      %s299 = scalar_lea.vmem %s1, %s298
      %p300 = scmp.lt.s32.totalorder %s21, 1
      %s301 = scalar_select %p300, %s21, 1
      %s302 = smul.addr %s301, 2
      %s303 = smul.addr %s302, 8
      %s304 = scalar_lea.vmem %s2, %s303
      %s305 = smul.u32 2, %s22
      %p306 = scmp.lt.s32.totalorder %s21, 1
      %s307 = scalar_select %p306, %s21, 1
      %p308 = scmp.lt.s32.totalorder %s305, 1
      %s309 = scalar_select %p308, %s305, 1
      %s310 = smul.addr %s307, 2
      %s311 = sadd.s32 %s309, %s310
      %s312 = smul.addr %s311, 8
      %s313 = scalar_lea.vmem %s6, %s312
      %s314 = smul.u32 2, %s22
      %s316 = smul.u32 %s22, 16
      %s317 = scalar_lea.vmem %s294, %s316
      %v318 = vld [vmem:[%s317] sm:$0xff]
      %v319 = vld [vmem:[%s317 + $0x8] sm:$0xff]
      %v320 = vpack.c.bf16 %v318, %v318
      %v321 = vpack.c.bf16 %v319, %v319
      %s322 = scalar_lea.vmem %s299, %s316
      %v323 = vld [vmem:[%s322] sm:$0xff]
      %v324 = vld [vmem:[%s322 + $0x8] sm:$0xff]
      %v325 = vpack.c.bf16 %v323, %v323
      %v326 = vpack.c.bf16 %v324, %v324
      %s327 = scalar_lea.vmem %s304, %s316
      %v328 = vld [vmem:[%s327] sm:$0xff]
      %v329 = vld [vmem:[%s327 + $0x8] sm:$0xff]
      %v330 = vpack.c.bf16 %v328, %v328
      %v331 = vpack.c.bf16 %v329, %v329
      %v334 = vunpack.c.l.b16 %v320
      %v335 = vunpack.c.l.b16 %v321
      %v336 = vpack.c.b16 %v335, %v334
      %v339 = vunpack.c.l.b16 %v325
      %v340 = vunpack.c.l.b16 %v326
      %v341 = vpack.c.b16 %v340, %v339
      %342 = vrot.lane.b32.xlu0 %v341, 64
      %v343 = vpop.permute.xlu0 %342
      %v346 = vunpack.c.l.b16 %v330
      %v347 = vunpack.c.l.b16 %v331
      %v348 = vpack.c.b16 %v347, %v346
      %vm349 = vcmask 523264
      %v352 = vsel %vm349, %v336, %v343
      %v354 = vld [vmem:[%s3] sm:$0xf]
      %v355 = vld [vmem:[%s3 + $0x4] sm:$0xf]
      %v356 = vld [vmem:[%s3 + $0x8] sm:$0xf]
      %v357 = vld [vmem:[%s3 + $0xc] sm:$0xf]
      %v358 = vld [vmem:[%s3 + $0x10] sm:$0xf]
      %v359 = vld [vmem:[%s3 + $0x14] sm:$0xf]
      %v360 = vld [vmem:[%s3 + $0x18] sm:$0xf]
      %v361 = vld [vmem:[%s3 + $0x1c] sm:$0xf]
      %v362 = vld [vmem:[%s3 + $0x20] sm:$0xf]
      %v363 = vld [vmem:[%s3 + $0x24] sm:$0xf]
      %v364 = vld [vmem:[%s3 + $0x28] sm:$0xf]
      %v365 = vld [vmem:[%s3 + $0x2c] sm:$0xf]
      %v366 = vld [vmem:[%s3 + $0x30] sm:$0xf]
      %v367 = vld [vmem:[%s3 + $0x34] sm:$0xf]
      %v368 = vld [vmem:[%s3 + $0x38] sm:$0xf]
      %v369 = vld [vmem:[%s3 + $0x3c] sm:$0xf]
      %v370 = vld [vmem:[%s3 + $0x40] sm:$0xf]
      %v371 = vld [vmem:[%s3 + $0x44] sm:$0xf]
      %v372 = vld [vmem:[%s3 + $0x48] sm:$0xf]
      %v373 = vld [vmem:[%s3 + $0x4c] sm:$0xf]
      %v374 = vld [vmem:[%s3 + $0x50] sm:$0xf]
      %v375 = vld [vmem:[%s3 + $0x54] sm:$0xf]
      %v376 = vld [vmem:[%s3 + $0x58] sm:$0xf]
      %v377 = vld [vmem:[%s3 + $0x5c] sm:$0xf]
      %v402 = vunpack.c.l.b16 %v354
      %v403 = vunpack.c.l.b16 %v355
      %v404 = vunpack.c.l.b16 %v356
      %v405 = vunpack.c.l.b16 %v357
      %v406 = vunpack.c.l.b16 %v358
      %v407 = vunpack.c.l.b16 %v359
      %v408 = vunpack.c.l.b16 %v360
      %v409 = vunpack.c.l.b16 %v361
      %v410 = vunpack.c.l.b16 %v362
      %v411 = vunpack.c.l.b16 %v363
      %v412 = vunpack.c.l.b16 %v364
      %v413 = vunpack.c.l.b16 %v365
      %v414 = vunpack.c.l.b16 %v366
      %v415 = vunpack.c.l.b16 %v367
      %v416 = vunpack.c.l.b16 %v368
      %v417 = vunpack.c.l.b16 %v369
      %v418 = vunpack.c.l.b16 %v370
      %v419 = vunpack.c.l.b16 %v371
      %v420 = vunpack.c.l.b16 %v372
      %v421 = vunpack.c.l.b16 %v373
      %v422 = vunpack.c.l.b16 %v374
      %v423 = vunpack.c.l.b16 %v375
      %v424 = vunpack.c.l.b16 %v376
      %v425 = vunpack.c.l.b16 %v377
      %v426 = vpack.c.b16 %v403, %v402
      %v427 = vpack.c.b16 %v405, %v404
      %v428 = vpack.c.b16 %v407, %v406
      %v429 = vpack.c.b16 %v409, %v408
      %v430 = vpack.c.b16 %v411, %v410
      %v431 = vpack.c.b16 %v413, %v412
      %v432 = vpack.c.b16 %v415, %v414
      %v433 = vpack.c.b16 %v417, %v416
      %v434 = vpack.c.b16 %v419, %v418
      %v435 = vpack.c.b16 %v421, %v420
      %v436 = vpack.c.b16 %v423, %v422
      %v437 = vpack.c.b16 %v425, %v424
      %v451 = vsel %vm349, %v348, 0
      %453 = vmatpush.bf16.msra.mxu0 %v433
      %454 = vmatpush.bf16.msra.mxu0 %v432
      %455 = vmatpush.bf16.msra.mxu0 %v431
      %456 = vmatpush.bf16.msra.mxu0 %v430
      %457 = vmatpush.bf16.msra.mxu0 %v429
      %458 = vmatpush.bf16.msra.mxu0 %v428
      %459 = vmatpush.bf16.msra.mxu0 %v427
      %460 = vmatpush.bf16.msra.mxu0 %v426
      %461 = vmatmul.bf16.gmra.mxu0 %v352
      %v462 = vpop.f32.mrf.mxu0
      %v463 = vadd.f32 0.0, %v462
      %v464 = vpop.f32.mrf.mxu0
      %v465 = vadd.f32 0.0, %v464
      %466 = vdwg.mxu0
      %467 = vmatpush.bf16.msra.mxu0 0
      %468 = vmatpush.bf16.msra.mxu0 0
      %469 = vmatpush.bf16.msra.mxu0 0
      %470 = vmatpush.bf16.msra.mxu0 0
      %471 = vmatpush.bf16.msra.mxu0 %v437
      %472 = vmatpush.bf16.msra.mxu0 %v436
      %473 = vmatpush.bf16.msra.mxu0 %v435
      %474 = vmatpush.bf16.msra.mxu0 %v434
      %475 = vmatmul.bf16.gmra.mxu0 %v451
      %v476 = vpop.f32.mrf.mxu0
      %v477 = vadd.f32 %v463, %v476
      %v478 = vpop.f32.mrf.mxu0
      %v479 = vadd.f32 %v465, %v478
      %480 = vdwg.mxu0
      %v481 = vld [vmem:[%s4] sm:$0x1]
      %v483 = vperm.slane %v481, 0
      %v485 = vmul.f32 %v477, %v483
      %v486 = vmul.f32 %v479, %v483
      %v487 = vld [vmem:[%s5] sm:$0x1]
      %v489 = vperm.slane %v487, 0
      %v491 = vadd.f32 %v485, %v489
      %v492 = vadd.f32 %v486, %v489
      %v493 = vxor.u32 %v491, 2147483648
      %v494 = vxor.u32 %v492, 2147483648
      %v495 = vmul.f32 %v493, 1.442695
      %v496 = vpow.pop %v495
      %v497 = vmul.f32 %v494, 1.442695
      %v498 = vpow.pop %v497
      %v499 = vadd.f32 %v496, 1.0
      %v500 = vadd.f32 %v498, 1.0
      %v501 = vrcp.pop %v499
      %v502 = vmul.f32 %v499, %v501
      %v503 = vsub.f32 1.0, %v502
      %v504 = vmul.f32 %v501, %v503
      %v505 = vadd.f32 %v501, %v504
      %vm506 = vweird.f32 %v499
      %vm507 = vweird.f32 %v501
      %vm508 = vmor %vm506, %vm507
      %v509 = vsel %vm508, %v501, %v505
      %v510 = vand.u32 2147483647, %v499
      %vm511 = vcmp.eq.f32.partialorder %v510, 8.507059e+37
      %v512 = vand.u32 %v499, 2147483648
      %v513 = vor.u32 1.1754944e-38, %v512
      %v514 = vsel %vm511, %v513, %v509
      %v515 = vmul.f32 1.0, %v514
      %v516 = vrcp.pop %v500
      %v517 = vmul.f32 %v500, %v516
      %v518 = vsub.f32 1.0, %v517
      %v519 = vmul.f32 %v516, %v518
      %v520 = vadd.f32 %v516, %v519
      %vm521 = vweird.f32 %v500
      %vm522 = vweird.f32 %v516
      %vm523 = vmor %vm521, %vm522
      %v524 = vsel %vm523, %v516, %v520
      %v525 = vand.u32 2147483647, %v500
      %vm526 = vcmp.eq.f32.partialorder %v525, 8.507059e+37
      %v527 = vand.u32 %v500, 2147483648
      %v528 = vor.u32 1.1754944e-38, %v527
      %v529 = vsel %vm526, %v528, %v524
      %v530 = vmul.f32 1.0, %v529
      %v531 = vmul.f32 %v491, %v515
      %v532 = vmul.f32 %v492, %v530
      %533 = vst [vmem:[%s313] sm:$0xff] %v531
      %534 = vst [vmem:[%s313 + $0x8] sm:$0xff] %v532
      %s535 = smul.u32 2, %s22
      %p536 = scmp.lt.s32.totalorder %s21, 1
      %s537 = scalar_select %p536, %s21, 1
      %p538 = scmp.lt.s32.totalorder %s535, 1
      %s539 = scalar_select %p538, %s535, 1
      %s540 = smul.addr %s537, 2
      %s541 = sadd.s32 %s539, %s540
      %s542 = smul.addr %s541, 8
      %s543 = scalar_lea.vmem %s6, %s542
      // Predicated region
      $region45: #{c2f_kagnconv_forward.9} parent=43 // pred_check
        %p544 = pneg %p190
      $region46: #{c2f_kagnconv_forward.9} parent=43 // pred_check_branch
        %546 = sbr.rel (%p544) target = $region48
      $region47: #{c2f_kagnconv_forward.9} parent=43 // pred_region
        %s547 = smul.u32 2, %s22
      $region48: #{c2f_kagnconv_forward.9} parent=43 // pred_fallthru
        _
    $region44: #{c2f_kagnconv_forward.9} parent=5 // pred_fallthru
      _
    %p548 = scmp.le.s32.totalorder 2, %s12
    // Predicated region
    $region49: #{c2f_kagnconv_forward.9} parent=5 // pred_check
      %p549 = pneg %p548
    $region50: #{c2f_kagnconv_forward.9} parent=5 // pred_check_branch
      %551 = sbr.rel (%p549) target = $region52
    $region51: #{c2f_kagnconv_forward.9} parent=5 // pred_region
      %s552 = ssub.s32 %s12, 2
      // Predicated region
      $region53: #{c2f_kagnconv_forward.9} parent=51 // pred_check
        %p553 = pneg %p196
      $region54: #{c2f_kagnconv_forward.9} parent=51 // pred_check_branch
        %555 = sbr.rel (%p553) target = $region56
      $region55: #{c2f_kagnconv_forward.9} parent=51 // pred_region
        %s556 = smul.u32 2, %s24
        %p557 = scmp.lt.s32.totalorder %s23, 1
        %s558 = scalar_select %p557, %s23, 1
        %p559 = scmp.lt.s32.totalorder %s556, 1
        %s560 = scalar_select %p559, %s556, 1
        %s561 = smul.addr %s558, 2
        %s562 = sadd.s32 %s560, %s561
        %s563 = smul.addr %s562, 8
        %s564 = scalar_lea.vmem %s6, %s563
      $region56: #{c2f_kagnconv_forward.9} parent=51 // pred_fallthru
        _
    $region52: #{c2f_kagnconv_forward.9} parent=5 // pred_fallthru
      _
  $region6: #{c2f_kagnconv_forward.9} parent=0 // loop_footer
    %s16 = sadd.s32 1, %s12
  $region7: #{c2f_kagnconv_forward.9} parent=0 // loop_footer_branch
    %11 = sbr.rel target = $region3
  $region8: #{c2f_kagnconv_forward.9} parent=0 // loop_exit
    _

</llo_original>
